<compile_context>
chip_gen: v5e
topology: v5e:2x2
jax: 0.10.0
libtpu: 0.0.40
codegen_flags: <defaults>
</compile_context>

<pallas_src>
import functools

import jax
import jax.numpy as jnp
from jax import lax
from jax.experimental import pallas as pl
from jax.experimental.pallas import tpu as pltpu

LEAKY_SLOPE = 0.1
BN_EPS = 1e-5
ACT_DTYPE = jnp.bfloat16              # inter-layer activation storage dtype
VMEM_LIMIT_BYTES = 32 * 1024 * 1024   # v7x has 64 MiB physical VMEM; peak use ~8 MB


# ----------------------------------------------------------------------------
# Fused ConvBlock kernel:
#   3x3 conv (stride 1, pad 1, BN scale pre-folded into weights) + shift +
#   LeakyReLU(0.1), with an optional fused epilogue that is either
#     * MaxPool2d(2, 2)                              (modules 1,3,5,7,9), or
#     * ZeroPad2d((0,1,0,1)) + MaxPool2d(2, stride 1) (modules 11,12).
# ----------------------------------------------------------------------------
def _conv_block_kernel(x_ref, w_ref, shift_ref, *refs, apply_act, fuse_pool,
                       fuse_pad_pool_s1, emit_conv, rows_per_chunk, n_chunks):
    # x_ref    : (1, H, W, Cin)   bf16 un-padded input tile
    # w_ref    : (9*Cin, TCout)   bf16 weights, K = (kh, kw, cin), BN scale folded in
    # shift_ref: (1, TCout)       f32  beta - mean * scale
    # outputs  : pooled (1,Hp,Wp,TCout) and/or conv (1,H,W,TCout)
    # scratch  : xp_ref (H+2, W+2, Cin) VMEM, zero-bordered padded input
    want_pool = fuse_pool or fuse_pad_pool_s1
    if want_pool and emit_conv:
        pool_ref, conv_ref, xp_ref = refs
    elif want_pool:
        pool_ref, xp_ref = refs
        conv_ref = None
    else:
        conv_ref, xp_ref = refs
        pool_ref = None

    H, W, Cin = x_ref.shape[1], x_ref.shape[2], x_ref.shape[3]
    Cout = w_ref.shape[1]

    # Zero only the 1-pixel halo border (interior is overwritten below).
    xp_ref[0:1, :, :] = jnp.zeros((1, W + 2, Cin), xp_ref.dtype)
    xp_ref[H + 1:H + 2, :, :] = jnp.zeros((1, W + 2, Cin), xp_ref.dtype)
    xp_ref[:, 0:1, :] = jnp.zeros((H + 2, 1, Cin), xp_ref.dtype)
    xp_ref[:, W + 1:W + 2, :] = jnp.zeros((H + 2, 1, Cin), xp_ref.dtype)
    xp_ref[1:H + 1, 1:W + 1, :] = x_ref[0]

    shift = shift_ref[...]                                   # (1, TCout) f32

    # Row-chunked im2col + single K=9*Cin MXU matmul per chunk.  Chunks are
    # statically unrolled (shapes are static and small); each chunk stores to
    # the output refs immediately so only one chunk's f32 accumulator
    # (<=256 rows, ~<=32 vregs) is live at a time.
    for c in range(n_chunks):
        r0 = c * rows_per_chunk
        R = rows_per_chunk

        taps = []
        for kh in range(3):
            band = xp_ref[r0 + kh:r0 + kh + R, :, :]          # (R, W+2, Cin)
            for kw in range(3):
                taps.append(band[:, kw:kw + W, :])            # (R, W, Cin)
        patch = jnp.concatenate(taps, axis=-1)                # (R, W, 9*Cin)
        patch = patch.reshape(R * W, 9 * Cin)

        acc = jnp.dot(patch, w_ref[...],
                      preferred_element_type=jnp.float32)     # (R*W, TCout) f32
        y = acc + shift                                       # BN (scale folded in weights)
        if apply_act:
            y = jnp.where(y > 0, y, LEAKY_SLOPE * y)          # LeakyReLU(0.1)
        y = y.reshape(R, W, Cout)

        if conv_ref is not None:
            conv_ref[0, r0:r0 + R, :, :] = y.astype(conv_ref.dtype)

        if fuse_pool:                                         # MaxPool2d(2, 2)
            yh = y.reshape(R // 2, 2, W, Cout)
            y2 = jnp.maximum(yh[:, 0, :, :], yh[:, 1, :, :])
            yw = y2.reshape(R // 2, W // 2, 2, Cout)
            pooled = jnp.maximum(yw[:, :, 0, :], yw[:, :, 1, :])
            pool_ref[0, r0 // 2:(r0 + R) // 2, :, :] = pooled.astype(pool_ref.dtype)

        if fuse_pad_pool_s1:        # ZeroPad2d((0,1,0,1)) + MaxPool2d(2, stride 1)
            # (only used with n_chunks == 1, so R == H here)
            zrow = jnp.zeros((1, W, Cout), jnp.float32)
            yp = jnp.concatenate([y, zrow], axis=0)           # (R+1, W, C)
            zcol = jnp.zeros((R + 1, 1, Cout), jnp.float32)
            yp = jnp.concatenate([yp, zcol], axis=1)          # (R+1, W+1, C)
            a = yp[0:R, 0:W, :]
            b = yp[1:R + 1, 0:W, :]
            cpix = yp[0:R, 1:W + 1, :]
            d = yp[1:R + 1, 1:W + 1, :]
            pooled = jnp.maximum(jnp.maximum(a, b), jnp.maximum(cpix, d))
            pool_ref[0] = pooled.astype(pool_ref.dtype)


def conv_block(x, w_packed, shift, *, apply_act=True, fuse_pool=False,
               fuse_pad_pool_s1=False, emit_conv=True, cout_tile=256):
    # x        : (N, H, W, Cin)    bf16 NHWC
    # w_packed : (9*Cin, Cout)     bf16, BN scale folded in
    N, H, W, Cin = x.shape
    Cout = w_packed.shape[1]
    assert w_packed.shape[0] == 9 * Cin
    assert not (fuse_pool and fuse_pad_pool_s1)
    if fuse_pool:
        assert H % 2 == 0 and W % 2 == 0, (H, W)

    TCout = min(cout_tile, Cout)
    assert Cout % TCout == 0
    n_j = Cout // TCout

    # Row chunking: keep each chunk's f32 accumulator at ~<=256 rows.
    rows_per_chunk = min(H, max(2 if fuse_pool else 1, 256 // max(W, 1)))
    if fuse_pad_pool_s1:
        rows_per_chunk = H            # epilogue needs the full spatial extent
    assert H % rows_per_chunk == 0, (H, rows_per_chunk)
    if fuse_pool:
        assert rows_per_chunk % 2 == 0
    n_chunks = H // rows_per_chunk

    shift2 = shift.reshape(1, Cout)

    if n_j == 1:
        grid = (N,)
        dim_sem = ("parallel",)
        x_map = lambda n: (n, 0, 0, 0)
        w_map = lambda n: (0, 0)
        s_map = lambda n: (0, 0)
        o_map = lambda n: (n, 0, 0, 0)
    else:
        # Cout-tile axis OUTER, batch INNER: the weight block index (0, j) is
        # unchanged between consecutive grid steps, so Pallas keeps the weight
        # tile resident instead of re-DMAing it for every image.
        grid = (n_j, N)
        dim_sem = ("parallel", "arbitrary")
        x_map = lambda j, n: (n, 0, 0, 0)
        w_map = lambda j, n: (0, j)
        s_map = lambda j, n: (0, j)
        o_map = lambda j, n: (n, 0, 0, j)

    in_specs = [
        pl.BlockSpec((1, H, W, Cin), x_map),
        pl.BlockSpec((9 * Cin, TCout), w_map),
        pl.BlockSpec((1, TCout), s_map),
    ]

    want_pool = fuse_pool or fuse_pad_pool_s1
    pool_H, pool_W = (H // 2, W // 2) if fuse_pool else (H, W)

    out_shapes, out_specs = [], []
    if want_pool:
        out_shapes.append(jax.ShapeDtypeStruct((N, pool_H, pool_W, Cout), x.dtype))
        out_specs.append(pl.BlockSpec((1, pool_H, pool_W, TCout), o_map))
        if emit_conv:
            out_shapes.append(jax.ShapeDtypeStruct((N, H, W, Cout), x.dtype))
            out_specs.append(pl.BlockSpec((1, H, W, TCout), o_map))
    else:
        out_shapes.append(jax.ShapeDtypeStruct((N, H, W, Cout), x.dtype))
        out_specs.append(pl.BlockSpec((1, H, W, TCout), o_map))

    multiple = len(out_shapes) > 1
    kern = functools.partial(_conv_block_kernel, apply_act=apply_act,
                             fuse_pool=fuse_pool,
                             fuse_pad_pool_s1=fuse_pad_pool_s1,
                             emit_conv=emit_conv,
                             rows_per_chunk=rows_per_chunk, n_chunks=n_chunks)
    return pl.pallas_call(
        kern,
        out_shape=tuple(out_shapes) if multiple else out_shapes[0],
        grid=grid,
        in_specs=in_specs,
        out_specs=tuple(out_specs) if multiple else out_specs[0],
        scratch_shapes=[pltpu.VMEM((H + 2, W + 2, Cin), x.dtype)],
        compiler_params=pltpu.CompilerParams(
            dimension_semantics=dim_sem,
            vmem_limit_bytes=VMEM_LIMIT_BYTES,
        ),
    )(x, w_packed, shift2)


# ----------------------------------------------------------------------------
# Parameters (deterministic synthetic init — shapes from the module __init__)
# ----------------------------------------------------------------------------
CONV_CHANNELS = [(3, 16), (16, 32), (32, 64), (64, 128),
                 (128, 256), (256, 512), (512, 1024)]


def init_params(key):
    params = []
    for cin, cout in CONV_CHANNELS:
        key, k_w, k_g, k_b, k_m, k_v = jax.random.split(key, 6)
        w = jax.random.normal(k_w, (3, 3, cin, cout), jnp.float32) / jnp.sqrt(9.0 * cin)
        gamma = 1.0 + 0.1 * jax.random.normal(k_g, (cout,), jnp.float32)
        beta = 0.1 * jax.random.normal(k_b, (cout,), jnp.float32)
        running_mean = 0.1 * jax.random.normal(k_m, (cout,), jnp.float32)
        running_var = jnp.abs(jax.random.normal(k_v, (cout,), jnp.float32)) + 0.5
        scale = gamma / jnp.sqrt(running_var + BN_EPS)       # fold BN (inference)
        shift = beta - running_mean * scale
        # Fold the BN scale into the conv weights in f32 BEFORE the bf16 cast;
        # the kernel epilogue is then just `+ shift` and LeakyReLU.
        w_scaled = w * scale                                 # broadcast over Cout
        params.append(dict(
            w_hwio=w,                                        # f32, unscaled (reference path)
            scale=scale,
            shift=shift,
            w_packed=w_scaled.reshape(9 * cin, cout).astype(jnp.bfloat16),
        ))
    return params


# ----------------------------------------------------------------------------
# Full backbone forward (matches nn.ModuleList order; returns (x, layer_outputs))
# ----------------------------------------------------------------------------
def yolo_tiny_backbone(x_nchw, params, *, collect_intermediates=True,
                       layer_outputs_nchw=True):
    """Returns (x, layer_outputs) like the PyTorch module.

    collect_intermediates=False: skip writing pre-pool conv activations (pools
      stay fully fused in VMEM) and return layer_outputs=[].
    layer_outputs_nchw=False: keep layer_outputs in NHWC/bf16 (no relayouts).
    """
    x = jnp.transpose(x_nchw, (0, 2, 3, 1)).astype(ACT_DTYPE)   # NCHW f32 -> NHWC bf16
    layer_outputs = []

    def record(y):
        if collect_intermediates:
            if layer_outputs_nchw:
                layer_outputs.append(
                    jnp.transpose(y, (0, 3, 1, 2)).astype(jnp.float32))
            else:
                layer_outputs.append(y)
        return y

    # modules 0..9: five (ConvBlock, MaxPool2d(2,2)) pairs — pool fused into conv.
    for i in range(5):
        p = params[i]
        if collect_intermediates:
            pooled, conv_out = conv_block(x, p['w_packed'], p['shift'],
                                          fuse_pool=True, emit_conv=True)
            record(conv_out)      # module 2*i   : ConvBlock
            record(pooled)        # module 2*i+1 : MaxPool2d(2, 2)
        else:
            pooled = conv_block(x, p['w_packed'], p['shift'],
                                fuse_pool=True, emit_conv=False)
        x = pooled

    # modules 10..12: ConvBlock(256,512) + ZeroPad2d((0,1,0,1)) + MaxPool2d(2,1)
    # — pad + stride-1 pool fused into the conv epilogue (one pallas_call).
    p = params[5]
    if collect_intermediates:
        pooled, conv_out = conv_block(x, p['w_packed'], p['shift'],
                                      fuse_pad_pool_s1=True, emit_conv=True)
        record(conv_out)                                                  # 10: ConvBlock(256,512)
        record(jnp.pad(conv_out, ((0, 0), (0, 1), (0, 1), (0, 0))))       # 11: ZeroPad2d((0,1,0,1))
        record(pooled)                                                    # 12: MaxPool2d(2, 1)
    else:
        pooled = conv_block(x, p['w_packed'], p['shift'],
                            fuse_pad_pool_s1=True, emit_conv=False)
    x = pooled

    # module 13: ConvBlock(512, 1024)
    p = params[6]
    x = conv_block(x, p['w_packed'], p['shift'])
    record(x)

    final = jnp.transpose(x, (0, 3, 1, 2)).astype(jnp.float32)            # == layer_outputs[-1]
    return final, layer_outputs


# ----------------------------------------------------------------------------
# Pure-JAX reference (correctness checking only; f32 everywhere)
# ----------------------------------------------------------------------------
def reference_forward(x_nchw, params):
    x = jnp.transpose(x_nchw, (0, 2, 3, 1)).astype(jnp.float32)

    def conv(x, p):
        w = p['w_hwio'].astype(jnp.float32)
        y = lax.conv_general_dilated(x, w, (1, 1), ((1, 1), (1, 1)),
                                     dimension_numbers=("NHWC", "HWIO", "NHWC"))
        y = y * p['scale'] + p['shift']
        return jnp.where(y > 0, y, LEAKY_SLOPE * y)

    def pool_s2(x):
        return lax.reduce_window(x, -jnp.inf, lax.max, (1, 2, 2, 1), (1, 2, 2, 1), "VALID")

    def pool_s1(x):
        return lax.reduce_window(x, -jnp.inf, lax.max, (1, 2, 2, 1), (1, 1, 1, 1), "VALID")

    for i in range(5):
        x = conv(x, params[i])
        x = pool_s2(x)
    x = conv(x, params[5])
    x = jnp.pad(x, ((0, 0), (0, 1), (0, 1), (0, 0)))
    x = pool_s1(x)
    x = conv(x, params[6])
    return jnp.transpose(x, (0, 3, 1, 2))


if __name__ == "__main__":
    key = jax.random.PRNGKey(0)
    kx, kp = jax.random.split(key)
    # NCHW input; 3 channels required by the first conv; 32x32 is the smallest
    # spatial size that survives this backbone's five stride-2 pools.
    x = jax.random.normal(kx, (2, 3, 32, 32), jnp.float32)
    params = init_params(kp)

    # Full-fidelity path (all 14 layer outputs, NCHW f32 like the PyTorch module).
    final, layer_outputs = yolo_tiny_backbone(x, params)
    final = jax.block_until_ready(final)
    assert final.shape == (2, 1024, 1, 1), final.shape
    assert len(layer_outputs) == 14
    assert layer_outputs[0].shape == (2, 16, 32, 32)
    assert layer_outputs[9].shape == (2, 256, 1, 1)
    assert layer_outputs[10].shape == (2, 512, 1, 1)
    assert layer_outputs[11].shape == (2, 512, 2, 2)
    assert layer_outputs[12].shape == (2, 512, 1, 1)

    # Fast path: pools fully fused, no intermediate HBM writes / relayouts.
    final_fast, _ = yolo_tiny_backbone(x, params, collect_intermediates=False)
    final_fast = jax.block_until_ready(final_fast)
    assert jnp.allclose(final, final_fast, rtol=1e-5, atol=1e-5)

    # Compare against the f32 reference (kernel path uses bf16 storage + MXU).
    ref = reference_forward(x, params)
    max_err = float(jnp.max(jnp.abs(final - ref)))
    assert jnp.allclose(final, ref, rtol=5e-2, atol=5e-2), f"max abs err {max_err}"

    print("KERNEL_OK")
</pallas_src>

<mosaic_0001>
module attributes {stable_mosaic.version = 11 : i64} {
  func.func @_conv_block_kernel(%arg0: i32, %arg1: memref<1x32x32x3xbf16, #tpu.memory_space<vmem>>, %arg2: memref<27x16xbf16, #tpu.memory_space<vmem>>, %arg3: memref<1x16xf32, #tpu.memory_space<vmem>>, %arg4: memref<1x16x16x16xbf16, #tpu.memory_space<vmem>>, %arg5: memref<1x32x32x16xbf16, #tpu.memory_space<vmem>>, %arg6: memref<34x34x3xbf16, #tpu.memory_space<vmem>>) attributes {dimension_semantics = [#tpu.dimension_semantics<parallel>], iteration_bounds = array<i64: 2>, scalar_prefetch = 0 : i64, scratch_operands = 1 : i64, tpu.core_type = #tpu.core_type<tc>, window_params = [{transform_indices = @transform_0, window_bounds = array<i64: 1, 32, 32, 3>}, {pipeline_mode = #tpu.pipeline_mode<synchronous>, transform_indices = @transform_1, window_bounds = array<i64: 27, 16>}, {pipeline_mode = #tpu.pipeline_mode<synchronous>, transform_indices = @transform_2, window_bounds = array<i64: 1, 16>}, {transform_indices = @transform_3, window_bounds = array<i64: 1, 16, 16, 16>}, {transform_indices = @transform_4, window_bounds = array<i64: 1, 32, 32, 16>}]} {
    %cst = arith.constant 0.000000e+00 : bf16
    %0 = vector.broadcast %cst : bf16 to vector<1x34x3xbf16>
    %c0 = arith.constant 0 : index
    %c0_0 = arith.constant 0 : index
    %c0_1 = arith.constant 0 : index
    %1 = vector.load %arg6[%c0, %c0_0, %c0_1] : memref<34x34x3xbf16, #tpu.memory_space<vmem>>, vector<1x34x3xbf16>
    tpu.vector_store %arg6[%c0, %c0_0, %c0_1], %0 {strides = array<i32>} : memref<34x34x3xbf16, #tpu.memory_space<vmem>>, vector<1x34x3xbf16>,
    %cst_2 = arith.constant 0.000000e+00 : bf16
    %2 = vector.broadcast %cst_2 : bf16 to vector<1x34x3xbf16>
    %c33 = arith.constant 33 : index
    %c0_3 = arith.constant 0 : index
    %c0_4 = arith.constant 0 : index
    %3 = vector.load %arg6[%c33, %c0_3, %c0_4] : memref<34x34x3xbf16, #tpu.memory_space<vmem>>, vector<1x34x3xbf16>
    tpu.vector_store %arg6[%c33, %c0_3, %c0_4], %2 {strides = array<i32>} : memref<34x34x3xbf16, #tpu.memory_space<vmem>>, vector<1x34x3xbf16>,
    %cst_5 = arith.constant 0.000000e+00 : bf16
    %4 = vector.broadcast %cst_5 : bf16 to vector<34x1x3xbf16>
    %c0_6 = arith.constant 0 : index
    %c0_7 = arith.constant 0 : index
    %c0_8 = arith.constant 0 : index
    %5 = vector.load %arg6[%c0_6, %c0_7, %c0_8] : memref<34x34x3xbf16, #tpu.memory_space<vmem>>, vector<34x1x3xbf16>
    tpu.vector_store %arg6[%c0_6, %c0_7, %c0_8], %4 {strides = array<i32>} : memref<34x34x3xbf16, #tpu.memory_space<vmem>>, vector<34x1x3xbf16>,
    %cst_9 = arith.constant 0.000000e+00 : bf16
    %6 = vector.broadcast %cst_9 : bf16 to vector<34x1x3xbf16>
    %c0_10 = arith.constant 0 : index
    %c33_11 = arith.constant 33 : index
    %c0_12 = arith.constant 0 : index
    %7 = vector.load %arg6[%c0_10, %c33_11, %c0_12] : memref<34x34x3xbf16, #tpu.memory_space<vmem>>, vector<34x1x3xbf16>
    tpu.vector_store %arg6[%c0_10, %c33_11, %c0_12], %6 {strides = array<i32>} : memref<34x34x3xbf16, #tpu.memory_space<vmem>>, vector<34x1x3xbf16>,
    %c0_13 = arith.constant 0 : index
    %c0_14 = arith.constant 0 : index
    %c0_15 = arith.constant 0 : index
    %c0_16 = arith.constant 0 : index
    %8 = vector.load %arg1[%c0_13, %c0_14, %c0_15, %c0_16] : memref<1x32x32x3xbf16, #tpu.memory_space<vmem>>, vector<1x32x32x3xbf16>
    %9 = vector.shape_cast %8 : vector<1x32x32x3xbf16> to vector<32x32x3xbf16>
    %c1 = arith.constant 1 : index
    %c1_17 = arith.constant 1 : index
    %c0_18 = arith.constant 0 : index
    %10 = vector.load %arg6[%c1, %c1_17, %c0_18] : memref<34x34x3xbf16, #tpu.memory_space<vmem>>, vector<32x32x3xbf16>
    tpu.vector_store %arg6[%c1, %c1_17, %c0_18], %9 {strides = array<i32>} : memref<34x34x3xbf16, #tpu.memory_space<vmem>>, vector<32x32x3xbf16>,
    %c0_19 = arith.constant 0 : index
    %c0_20 = arith.constant 0 : index
    %11 = vector.load %arg3[%c0_19, %c0_20] : memref<1x16xf32, #tpu.memory_space<vmem>>, vector<1x16xf32>
    %c0_21 = arith.constant 0 : index
    %c0_22 = arith.constant 0 : index
    %c0_23 = arith.constant 0 : index
    %12 = vector.load %arg6[%c0_21, %c0_22, %c0_23] : memref<34x34x3xbf16, #tpu.memory_space<vmem>>, vector<8x34x3xbf16>
    %13 = vector.extract_strided_slice %12 {offsets = [0, 0, 0], sizes = [8, 32, 3], strides = [1, 1, 1]} : vector<8x34x3xbf16> to vector<8x32x3xbf16>
    %14 = vector.extract_strided_slice %12 {offsets = [0, 1, 0], sizes = [8, 32, 3], strides = [1, 1, 1]} : vector<8x34x3xbf16> to vector<8x32x3xbf16>
    %15 = vector.extract_strided_slice %12 {offsets = [0, 2, 0], sizes = [8, 32, 3], strides = [1, 1, 1]} : vector<8x34x3xbf16> to vector<8x32x3xbf16>
    %c1_24 = arith.constant 1 : index
    %c0_25 = arith.constant 0 : index
    %c0_26 = arith.constant 0 : index
    %16 = vector.load %arg6[%c1_24, %c0_25, %c0_26] : memref<34x34x3xbf16, #tpu.memory_space<vmem>>, vector<8x34x3xbf16>
    %17 = vector.extract_strided_slice %16 {offsets = [0, 0, 0], sizes = [8, 32, 3], strides = [1, 1, 1]} : vector<8x34x3xbf16> to vector<8x32x3xbf16>
    %18 = vector.extract_strided_slice %16 {offsets = [0, 1, 0], sizes = [8, 32, 3], strides = [1, 1, 1]} : vector<8x34x3xbf16> to vector<8x32x3xbf16>
    %19 = vector.extract_strided_slice %16 {offsets = [0, 2, 0], sizes = [8, 32, 3], strides = [1, 1, 1]} : vector<8x34x3xbf16> to vector<8x32x3xbf16>
    %c2 = arith.constant 2 : index
    %c0_27 = arith.constant 0 : index
    %c0_28 = arith.constant 0 : index
    %20 = vector.load %arg6[%c2, %c0_27, %c0_28] : memref<34x34x3xbf16, #tpu.memory_space<vmem>>, vector<8x34x3xbf16>
    %21 = vector.extract_strided_slice %20 {offsets = [0, 0, 0], sizes = [8, 32, 3], strides = [1, 1, 1]} : vector<8x34x3xbf16> to vector<8x32x3xbf16>
    %22 = vector.extract_strided_slice %20 {offsets = [0, 1, 0], sizes = [8, 32, 3], strides = [1, 1, 1]} : vector<8x34x3xbf16> to vector<8x32x3xbf16>
    %23 = vector.extract_strided_slice %20 {offsets = [0, 2, 0], sizes = [8, 32, 3], strides = [1, 1, 1]} : vector<8x34x3xbf16> to vector<8x32x3xbf16>
    %24 = tpu.concatenate %13, %14, %15, %17, %18, %19, %21, %22, %23 in 2 : vector<8x32x3xbf16>, vector<8x32x3xbf16>, vector<8x32x3xbf16>, vector<8x32x3xbf16>, vector<8x32x3xbf16>, vector<8x32x3xbf16>, vector<8x32x3xbf16>, vector<8x32x3xbf16>, vector<8x32x3xbf16> -> vector<8x32x27xbf16>
    %25 = vector.shape_cast %24 : vector<8x32x27xbf16> to vector<256x27xbf16>
    %c0_29 = arith.constant 0 : index
    %c0_30 = arith.constant 0 : index
    %26 = vector.load %arg2[%c0_29, %c0_30] : memref<27x16xbf16, #tpu.memory_space<vmem>>, vector<27x16xbf16>
    %cst_31 = arith.constant dense<0.000000e+00> : vector<256x16xf32>
    %27 = tpu.matmul %25, %26, %cst_31 {dimension_numbers = #tpu.dot_dimension_numbers<[1], [0], [0], [1], [0, 0, 1, 1], [], []>} : vector<256x27xbf16>, vector<27x16xbf16>, vector<256x16xf32> -> vector<256x16xf32>
    %28 = vector.broadcast %11 : vector<1x16xf32> to vector<256x16xf32>
    %29 = arith.addf %27, %28 : vector<256x16xf32>
    %cst_32 = arith.constant 0.000000e+00 : f32
    %30 = vector.broadcast %cst_32 : f32 to vector<256x16xf32>
    %31 = arith.cmpf ogt, %29, %30 : vector<256x16xf32>
    %cst_33 = arith.constant 1.000000e-01 : f32
    %32 = vector.broadcast %cst_33 : f32 to vector<256x16xf32>
    %33 = arith.mulf %32, %29 : vector<256x16xf32>
    %34 = arith.select %31, %29, %33 : vector<256x16xi1>, vector<256x16xf32>
    %35 = vector.shape_cast %34 : vector<256x16xf32> to vector<8x32x16xf32>
    %36 = arith.truncf %35 : vector<8x32x16xf32> to vector<8x32x16xbf16>
    %c0_34 = arith.constant 0 : index
    %c0_35 = arith.constant 0 : index
    %c0_36 = arith.constant 0 : index
    %c0_37 = arith.constant 0 : index
    %37 = vector.load %arg5[%c0_34, %c0_35, %c0_36, %c0_37] : memref<1x32x32x16xbf16, #tpu.memory_space<vmem>>, vector<1x8x32x16xbf16>
    %38 = vector.shape_cast %37 : vector<1x8x32x16xbf16> to vector<8x32x16xbf16>
    %39 = vector.shape_cast %36 : vector<8x32x16xbf16> to vector<1x8x32x16xbf16>
    tpu.vector_store %arg5[%c0_34, %c0_35, %c0_36, %c0_37], %39 {strides = array<i32>} : memref<1x32x32x16xbf16, #tpu.memory_space<vmem>>, vector<1x8x32x16xbf16>,
    %40 = vector.shape_cast %35 : vector<8x32x16xf32> to vector<4x2x32x16xf32>
    %41 = vector.extract_strided_slice %40 {offsets = [0, 0, 0, 0], sizes = [4, 1, 32, 16], strides = [1, 1, 1, 1]} : vector<4x2x32x16xf32> to vector<4x1x32x16xf32>
    %42 = vector.shape_cast %41 : vector<4x1x32x16xf32> to vector<4x32x16xf32>
    %43 = vector.extract_strided_slice %40 {offsets = [0, 1, 0, 0], sizes = [4, 1, 32, 16], strides = [1, 1, 1, 1]} : vector<4x2x32x16xf32> to vector<4x1x32x16xf32>
    %44 = vector.shape_cast %43 : vector<4x1x32x16xf32> to vector<4x32x16xf32>
    %45 = arith.maximumf %42, %44 : vector<4x32x16xf32>
    %46 = vector.shape_cast %45 : vector<4x32x16xf32> to vector<4x16x2x16xf32>
    %47 = vector.extract_strided_slice %46 {offsets = [0, 0, 0, 0], sizes = [4, 16, 1, 16], strides = [1, 1, 1, 1]} : vector<4x16x2x16xf32> to vector<4x16x1x16xf32>
    %48 = vector.shape_cast %47 : vector<4x16x1x16xf32> to vector<4x16x16xf32>
    %49 = vector.extract_strided_slice %46 {offsets = [0, 0, 1, 0], sizes = [4, 16, 1, 16], strides = [1, 1, 1, 1]} : vector<4x16x2x16xf32> to vector<4x16x1x16xf32>
    %50 = vector.shape_cast %49 : vector<4x16x1x16xf32> to vector<4x16x16xf32>
    %51 = arith.maximumf %48, %50 : vector<4x16x16xf32>
    %52 = arith.truncf %51 : vector<4x16x16xf32> to vector<4x16x16xbf16>
    %c0_38 = arith.constant 0 : index
    %c0_39 = arith.constant 0 : index
    %c0_40 = arith.constant 0 : index
    %c0_41 = arith.constant 0 : index
    %53 = vector.load %arg4[%c0_38, %c0_39, %c0_40, %c0_41] : memref<1x16x16x16xbf16, #tpu.memory_space<vmem>>, vector<1x4x16x16xbf16>
    %54 = vector.shape_cast %53 : vector<1x4x16x16xbf16> to vector<4x16x16xbf16>
    %55 = vector.shape_cast %52 : vector<4x16x16xbf16> to vector<1x4x16x16xbf16>
    tpu.vector_store %arg4[%c0_38, %c0_39, %c0_40, %c0_41], %55 {strides = array<i32>} : memref<1x16x16x16xbf16, #tpu.memory_space<vmem>>, vector<1x4x16x16xbf16>,
    %c8 = arith.constant 8 : index
    %c0_42 = arith.constant 0 : index
    %c0_43 = arith.constant 0 : index
    %56 = vector.load %arg6[%c8, %c0_42, %c0_43] : memref<34x34x3xbf16, #tpu.memory_space<vmem>>, vector<8x34x3xbf16>
    %57 = vector.extract_strided_slice %56 {offsets = [0, 0, 0], sizes = [8, 32, 3], strides = [1, 1, 1]} : vector<8x34x3xbf16> to vector<8x32x3xbf16>
    %58 = vector.extract_strided_slice %56 {offsets = [0, 1, 0], sizes = [8, 32, 3], strides = [1, 1, 1]} : vector<8x34x3xbf16> to vector<8x32x3xbf16>
    %59 = vector.extract_strided_slice %56 {offsets = [0, 2, 0], sizes = [8, 32, 3], strides = [1, 1, 1]} : vector<8x34x3xbf16> to vector<8x32x3xbf16>
    %c9 = arith.constant 9 : index
    %c0_44 = arith.constant 0 : index
    %c0_45 = arith.constant 0 : index
    %60 = vector.load %arg6[%c9, %c0_44, %c0_45] : memref<34x34x3xbf16, #tpu.memory_space<vmem>>, vector<8x34x3xbf16>
    %61 = vector.extract_strided_slice %60 {offsets = [0, 0, 0], sizes = [8, 32, 3], strides = [1, 1, 1]} : vector<8x34x3xbf16> to vector<8x32x3xbf16>
    %62 = vector.extract_strided_slice %60 {offsets = [0, 1, 0], sizes = [8, 32, 3], strides = [1, 1, 1]} : vector<8x34x3xbf16> to vector<8x32x3xbf16>
    %63 = vector.extract_strided_slice %60 {offsets = [0, 2, 0], sizes = [8, 32, 3], strides = [1, 1, 1]} : vector<8x34x3xbf16> to vector<8x32x3xbf16>
    %c10 = arith.constant 10 : index
    %c0_46 = arith.constant 0 : index
    %c0_47 = arith.constant 0 : index
    %64 = vector.load %arg6[%c10, %c0_46, %c0_47] : memref<34x34x3xbf16, #tpu.memory_space<vmem>>, vector<8x34x3xbf16>
    %65 = vector.extract_strided_slice %64 {offsets = [0, 0, 0], sizes = [8, 32, 3], strides = [1, 1, 1]} : vector<8x34x3xbf16> to vector<8x32x3xbf16>
    %66 = vector.extract_strided_slice %64 {offsets = [0, 1, 0], sizes = [8, 32, 3], strides = [1, 1, 1]} : vector<8x34x3xbf16> to vector<8x32x3xbf16>
    %67 = vector.extract_strided_slice %64 {offsets = [0, 2, 0], sizes = [8, 32, 3], strides = [1, 1, 1]} : vector<8x34x3xbf16> to vector<8x32x3xbf16>
    %68 = tpu.concatenate %57, %58, %59, %61, %62, %63, %65, %66, %67 in 2 : vector<8x32x3xbf16>, vector<8x32x3xbf16>, vector<8x32x3xbf16>, vector<8x32x3xbf16>, vector<8x32x3xbf16>, vector<8x32x3xbf16>, vector<8x32x3xbf16>, vector<8x32x3xbf16>, vector<8x32x3xbf16> -> vector<8x32x27xbf16>
    %69 = vector.shape_cast %68 : vector<8x32x27xbf16> to vector<256x27xbf16>
    %c0_48 = arith.constant 0 : index
    %c0_49 = arith.constant 0 : index
    %70 = vector.load %arg2[%c0_48, %c0_49] : memref<27x16xbf16, #tpu.memory_space<vmem>>, vector<27x16xbf16>
    %cst_50 = arith.constant dense<0.000000e+00> : vector<256x16xf32>
    %71 = tpu.matmul %69, %70, %cst_50 {dimension_numbers = #tpu.dot_dimension_numbers<[1], [0], [0], [1], [0, 0, 1, 1], [], []>} : vector<256x27xbf16>, vector<27x16xbf16>, vector<256x16xf32> -> vector<256x16xf32>
    %72 = vector.broadcast %11 : vector<1x16xf32> to vector<256x16xf32>
    %73 = arith.addf %71, %72 : vector<256x16xf32>
    %cst_51 = arith.constant 0.000000e+00 : f32
    %74 = vector.broadcast %cst_51 : f32 to vector<256x16xf32>
    %75 = arith.cmpf ogt, %73, %74 : vector<256x16xf32>
    %cst_52 = arith.constant 1.000000e-01 : f32
    %76 = vector.broadcast %cst_52 : f32 to vector<256x16xf32>
    %77 = arith.mulf %76, %73 : vector<256x16xf32>
    %78 = arith.select %75, %73, %77 : vector<256x16xi1>, vector<256x16xf32>
    %79 = vector.shape_cast %78 : vector<256x16xf32> to vector<8x32x16xf32>
    %80 = arith.truncf %79 : vector<8x32x16xf32> to vector<8x32x16xbf16>
    %c0_53 = arith.constant 0 : index
    %c8_54 = arith.constant 8 : index
    %c0_55 = arith.constant 0 : index
    %c0_56 = arith.constant 0 : index
    %81 = vector.load %arg5[%c0_53, %c8_54, %c0_55, %c0_56] : memref<1x32x32x16xbf16, #tpu.memory_space<vmem>>, vector<1x8x32x16xbf16>
    %82 = vector.shape_cast %81 : vector<1x8x32x16xbf16> to vector<8x32x16xbf16>
    %83 = vector.shape_cast %80 : vector<8x32x16xbf16> to vector<1x8x32x16xbf16>
    tpu.vector_store %arg5[%c0_53, %c8_54, %c0_55, %c0_56], %83 {strides = array<i32>} : memref<1x32x32x16xbf16, #tpu.memory_space<vmem>>, vector<1x8x32x16xbf16>,
    %84 = vector.shape_cast %79 : vector<8x32x16xf32> to vector<4x2x32x16xf32>
    %85 = vector.extract_strided_slice %84 {offsets = [0, 0, 0, 0], sizes = [4, 1, 32, 16], strides = [1, 1, 1, 1]} : vector<4x2x32x16xf32> to vector<4x1x32x16xf32>
    %86 = vector.shape_cast %85 : vector<4x1x32x16xf32> to vector<4x32x16xf32>
    %87 = vector.extract_strided_slice %84 {offsets = [0, 1, 0, 0], sizes = [4, 1, 32, 16], strides = [1, 1, 1, 1]} : vector<4x2x32x16xf32> to vector<4x1x32x16xf32>
    %88 = vector.shape_cast %87 : vector<4x1x32x16xf32> to vector<4x32x16xf32>
    %89 = arith.maximumf %86, %88 : vector<4x32x16xf32>
    %90 = vector.shape_cast %89 : vector<4x32x16xf32> to vector<4x16x2x16xf32>
    %91 = vector.extract_strided_slice %90 {offsets = [0, 0, 0, 0], sizes = [4, 16, 1, 16], strides = [1, 1, 1, 1]} : vector<4x16x2x16xf32> to vector<4x16x1x16xf32>
    %92 = vector.shape_cast %91 : vector<4x16x1x16xf32> to vector<4x16x16xf32>
    %93 = vector.extract_strided_slice %90 {offsets = [0, 0, 1, 0], sizes = [4, 16, 1, 16], strides = [1, 1, 1, 1]} : vector<4x16x2x16xf32> to vector<4x16x1x16xf32>
    %94 = vector.shape_cast %93 : vector<4x16x1x16xf32> to vector<4x16x16xf32>
    %95 = arith.maximumf %92, %94 : vector<4x16x16xf32>
    %96 = arith.truncf %95 : vector<4x16x16xf32> to vector<4x16x16xbf16>
    %c0_57 = arith.constant 0 : index
    %c4 = arith.constant 4 : index
    %c0_58 = arith.constant 0 : index
    %c0_59 = arith.constant 0 : index
    %97 = vector.load %arg4[%c0_57, %c4, %c0_58, %c0_59] : memref<1x16x16x16xbf16, #tpu.memory_space<vmem>>, vector<1x4x16x16xbf16>
    %98 = vector.shape_cast %97 : vector<1x4x16x16xbf16> to vector<4x16x16xbf16>
    %99 = vector.shape_cast %96 : vector<4x16x16xbf16> to vector<1x4x16x16xbf16>
    tpu.vector_store %arg4[%c0_57, %c4, %c0_58, %c0_59], %99 {strides = array<i32>} : memref<1x16x16x16xbf16, #tpu.memory_space<vmem>>, vector<1x4x16x16xbf16>,
    %c16 = arith.constant 16 : index
    %c0_60 = arith.constant 0 : index
    %c0_61 = arith.constant 0 : index
    %100 = vector.load %arg6[%c16, %c0_60, %c0_61] : memref<34x34x3xbf16, #tpu.memory_space<vmem>>, vector<8x34x3xbf16>
    %101 = vector.extract_strided_slice %100 {offsets = [0, 0, 0], sizes = [8, 32, 3], strides = [1, 1, 1]} : vector<8x34x3xbf16> to vector<8x32x3xbf16>
    %102 = vector.extract_strided_slice %100 {offsets = [0, 1, 0], sizes = [8, 32, 3], strides = [1, 1, 1]} : vector<8x34x3xbf16> to vector<8x32x3xbf16>
    %103 = vector.extract_strided_slice %100 {offsets = [0, 2, 0], sizes = [8, 32, 3], strides = [1, 1, 1]} : vector<8x34x3xbf16> to vector<8x32x3xbf16>
    %c17 = arith.constant 17 : index
    %c0_62 = arith.constant 0 : index
    %c0_63 = arith.constant 0 : index
    %104 = vector.load %arg6[%c17, %c0_62, %c0_63] : memref<34x34x3xbf16, #tpu.memory_space<vmem>>, vector<8x34x3xbf16>
    %105 = vector.extract_strided_slice %104 {offsets = [0, 0, 0], sizes = [8, 32, 3], strides = [1, 1, 1]} : vector<8x34x3xbf16> to vector<8x32x3xbf16>
    %106 = vector.extract_strided_slice %104 {offsets = [0, 1, 0], sizes = [8, 32, 3], strides = [1, 1, 1]} : vector<8x34x3xbf16> to vector<8x32x3xbf16>
    %107 = vector.extract_strided_slice %104 {offsets = [0, 2, 0], sizes = [8, 32, 3], strides = [1, 1, 1]} : vector<8x34x3xbf16> to vector<8x32x3xbf16>
    %c18 = arith.constant 18 : index
    %c0_64 = arith.constant 0 : index
    %c0_65 = arith.constant 0 : index
    %108 = vector.load %arg6[%c18, %c0_64, %c0_65] : memref<34x34x3xbf16, #tpu.memory_space<vmem>>, vector<8x34x3xbf16>
    %109 = vector.extract_strided_slice %108 {offsets = [0, 0, 0], sizes = [8, 32, 3], strides = [1, 1, 1]} : vector<8x34x3xbf16> to vector<8x32x3xbf16>
    %110 = vector.extract_strided_slice %108 {offsets = [0, 1, 0], sizes = [8, 32, 3], strides = [1, 1, 1]} : vector<8x34x3xbf16> to vector<8x32x3xbf16>
    %111 = vector.extract_strided_slice %108 {offsets = [0, 2, 0], sizes = [8, 32, 3], strides = [1, 1, 1]} : vector<8x34x3xbf16> to vector<8x32x3xbf16>
    %112 = tpu.concatenate %101, %102, %103, %105, %106, %107, %109, %110, %111 in 2 : vector<8x32x3xbf16>, vector<8x32x3xbf16>, vector<8x32x3xbf16>, vector<8x32x3xbf16>, vector<8x32x3xbf16>, vector<8x32x3xbf16>, vector<8x32x3xbf16>, vector<8x32x3xbf16>, vector<8x32x3xbf16> -> vector<8x32x27xbf16>
    %113 = vector.shape_cast %112 : vector<8x32x27xbf16> to vector<256x27xbf16>
    %c0_66 = arith.constant 0 : index
    %c0_67 = arith.constant 0 : index
    %114 = vector.load %arg2[%c0_66, %c0_67] : memref<27x16xbf16, #tpu.memory_space<vmem>>, vector<27x16xbf16>
    %cst_68 = arith.constant dense<0.000000e+00> : vector<256x16xf32>
    %115 = tpu.matmul %113, %114, %cst_68 {dimension_numbers = #tpu.dot_dimension_numbers<[1], [0], [0], [1], [0, 0, 1, 1], [], []>} : vector<256x27xbf16>, vector<27x16xbf16>, vector<256x16xf32> -> vector<256x16xf32>
    %116 = vector.broadcast %11 : vector<1x16xf32> to vector<256x16xf32>
    %117 = arith.addf %115, %116 : vector<256x16xf32>
    %cst_69 = arith.constant 0.000000e+00 : f32
    %118 = vector.broadcast %cst_69 : f32 to vector<256x16xf32>
    %119 = arith.cmpf ogt, %117, %118 : vector<256x16xf32>
    %cst_70 = arith.constant 1.000000e-01 : f32
    %120 = vector.broadcast %cst_70 : f32 to vector<256x16xf32>
    %121 = arith.mulf %120, %117 : vector<256x16xf32>
    %122 = arith.select %119, %117, %121 : vector<256x16xi1>, vector<256x16xf32>
    %123 = vector.shape_cast %122 : vector<256x16xf32> to vector<8x32x16xf32>
    %124 = arith.truncf %123 : vector<8x32x16xf32> to vector<8x32x16xbf16>
    %c0_71 = arith.constant 0 : index
    %c16_72 = arith.constant 16 : index
    %c0_73 = arith.constant 0 : index
    %c0_74 = arith.constant 0 : index
    %125 = vector.load %arg5[%c0_71, %c16_72, %c0_73, %c0_74] : memref<1x32x32x16xbf16, #tpu.memory_space<vmem>>, vector<1x8x32x16xbf16>
    %126 = vector.shape_cast %125 : vector<1x8x32x16xbf16> to vector<8x32x16xbf16>
    %127 = vector.shape_cast %124 : vector<8x32x16xbf16> to vector<1x8x32x16xbf16>
    tpu.vector_store %arg5[%c0_71, %c16_72, %c0_73, %c0_74], %127 {strides = array<i32>} : memref<1x32x32x16xbf16, #tpu.memory_space<vmem>>, vector<1x8x32x16xbf16>,
    %128 = vector.shape_cast %123 : vector<8x32x16xf32> to vector<4x2x32x16xf32>
    %129 = vector.extract_strided_slice %128 {offsets = [0, 0, 0, 0], sizes = [4, 1, 32, 16], strides = [1, 1, 1, 1]} : vector<4x2x32x16xf32> to vector<4x1x32x16xf32>
    %130 = vector.shape_cast %129 : vector<4x1x32x16xf32> to vector<4x32x16xf32>
    %131 = vector.extract_strided_slice %128 {offsets = [0, 1, 0, 0], sizes = [4, 1, 32, 16], strides = [1, 1, 1, 1]} : vector<4x2x32x16xf32> to vector<4x1x32x16xf32>
    %132 = vector.shape_cast %131 : vector<4x1x32x16xf32> to vector<4x32x16xf32>
    %133 = arith.maximumf %130, %132 : vector<4x32x16xf32>
    %134 = vector.shape_cast %133 : vector<4x32x16xf32> to vector<4x16x2x16xf32>
    %135 = vector.extract_strided_slice %134 {offsets = [0, 0, 0, 0], sizes = [4, 16, 1, 16], strides = [1, 1, 1, 1]} : vector<4x16x2x16xf32> to vector<4x16x1x16xf32>
    %136 = vector.shape_cast %135 : vector<4x16x1x16xf32> to vector<4x16x16xf32>
    %137 = vector.extract_strided_slice %134 {offsets = [0, 0, 1, 0], sizes = [4, 16, 1, 16], strides = [1, 1, 1, 1]} : vector<4x16x2x16xf32> to vector<4x16x1x16xf32>
    %138 = vector.shape_cast %137 : vector<4x16x1x16xf32> to vector<4x16x16xf32>
    %139 = arith.maximumf %136, %138 : vector<4x16x16xf32>
    %140 = arith.truncf %139 : vector<4x16x16xf32> to vector<4x16x16xbf16>
    %c0_75 = arith.constant 0 : index
    %c8_76 = arith.constant 8 : index
    %c0_77 = arith.constant 0 : index
    %c0_78 = arith.constant 0 : index
    %141 = vector.load %arg4[%c0_75, %c8_76, %c0_77, %c0_78] : memref<1x16x16x16xbf16, #tpu.memory_space<vmem>>, vector<1x4x16x16xbf16>
    %142 = vector.shape_cast %141 : vector<1x4x16x16xbf16> to vector<4x16x16xbf16>
    %143 = vector.shape_cast %140 : vector<4x16x16xbf16> to vector<1x4x16x16xbf16>
    tpu.vector_store %arg4[%c0_75, %c8_76, %c0_77, %c0_78], %143 {strides = array<i32>} : memref<1x16x16x16xbf16, #tpu.memory_space<vmem>>, vector<1x4x16x16xbf16>,
    %c24 = arith.constant 24 : index
    %c0_79 = arith.constant 0 : index
    %c0_80 = arith.constant 0 : index
    %144 = vector.load %arg6[%c24, %c0_79, %c0_80] : memref<34x34x3xbf16, #tpu.memory_space<vmem>>, vector<8x34x3xbf16>
    %145 = vector.extract_strided_slice %144 {offsets = [0, 0, 0], sizes = [8, 32, 3], strides = [1, 1, 1]} : vector<8x34x3xbf16> to vector<8x32x3xbf16>
    %146 = vector.extract_strided_slice %144 {offsets = [0, 1, 0], sizes = [8, 32, 3], strides = [1, 1, 1]} : vector<8x34x3xbf16> to vector<8x32x3xbf16>
    %147 = vector.extract_strided_slice %144 {offsets = [0, 2, 0], sizes = [8, 32, 3], strides = [1, 1, 1]} : vector<8x34x3xbf16> to vector<8x32x3xbf16>
    %c25 = arith.constant 25 : index
    %c0_81 = arith.constant 0 : index
    %c0_82 = arith.constant 0 : index
    %148 = vector.load %arg6[%c25, %c0_81, %c0_82] : memref<34x34x3xbf16, #tpu.memory_space<vmem>>, vector<8x34x3xbf16>
    %149 = vector.extract_strided_slice %148 {offsets = [0, 0, 0], sizes = [8, 32, 3], strides = [1, 1, 1]} : vector<8x34x3xbf16> to vector<8x32x3xbf16>
    %150 = vector.extract_strided_slice %148 {offsets = [0, 1, 0], sizes = [8, 32, 3], strides = [1, 1, 1]} : vector<8x34x3xbf16> to vector<8x32x3xbf16>
    %151 = vector.extract_strided_slice %148 {offsets = [0, 2, 0], sizes = [8, 32, 3], strides = [1, 1, 1]} : vector<8x34x3xbf16> to vector<8x32x3xbf16>
    %c26 = arith.constant 26 : index
    %c0_83 = arith.constant 0 : index
    %c0_84 = arith.constant 0 : index
    %152 = vector.load %arg6[%c26, %c0_83, %c0_84] : memref<34x34x3xbf16, #tpu.memory_space<vmem>>, vector<8x34x3xbf16>
    %153 = vector.extract_strided_slice %152 {offsets = [0, 0, 0], sizes = [8, 32, 3], strides = [1, 1, 1]} : vector<8x34x3xbf16> to vector<8x32x3xbf16>
    %154 = vector.extract_strided_slice %152 {offsets = [0, 1, 0], sizes = [8, 32, 3], strides = [1, 1, 1]} : vector<8x34x3xbf16> to vector<8x32x3xbf16>
    %155 = vector.extract_strided_slice %152 {offsets = [0, 2, 0], sizes = [8, 32, 3], strides = [1, 1, 1]} : vector<8x34x3xbf16> to vector<8x32x3xbf16>
    %156 = tpu.concatenate %145, %146, %147, %149, %150, %151, %153, %154, %155 in 2 : vector<8x32x3xbf16>, vector<8x32x3xbf16>, vector<8x32x3xbf16>, vector<8x32x3xbf16>, vector<8x32x3xbf16>, vector<8x32x3xbf16>, vector<8x32x3xbf16>, vector<8x32x3xbf16>, vector<8x32x3xbf16> -> vector<8x32x27xbf16>
    %157 = vector.shape_cast %156 : vector<8x32x27xbf16> to vector<256x27xbf16>
    %c0_85 = arith.constant 0 : index
    %c0_86 = arith.constant 0 : index
    %158 = vector.load %arg2[%c0_85, %c0_86] : memref<27x16xbf16, #tpu.memory_space<vmem>>, vector<27x16xbf16>
    %cst_87 = arith.constant dense<0.000000e+00> : vector<256x16xf32>
    %159 = tpu.matmul %157, %158, %cst_87 {dimension_numbers = #tpu.dot_dimension_numbers<[1], [0], [0], [1], [0, 0, 1, 1], [], []>} : vector<256x27xbf16>, vector<27x16xbf16>, vector<256x16xf32> -> vector<256x16xf32>
    %160 = vector.broadcast %11 : vector<1x16xf32> to vector<256x16xf32>
    %161 = arith.addf %159, %160 : vector<256x16xf32>
    %cst_88 = arith.constant 0.000000e+00 : f32
    %162 = vector.broadcast %cst_88 : f32 to vector<256x16xf32>
    %163 = arith.cmpf ogt, %161, %162 : vector<256x16xf32>
    %cst_89 = arith.constant 1.000000e-01 : f32
    %164 = vector.broadcast %cst_89 : f32 to vector<256x16xf32>
    %165 = arith.mulf %164, %161 : vector<256x16xf32>
    %166 = arith.select %163, %161, %165 : vector<256x16xi1>, vector<256x16xf32>
    %167 = vector.shape_cast %166 : vector<256x16xf32> to vector<8x32x16xf32>
    %168 = arith.truncf %167 : vector<8x32x16xf32> to vector<8x32x16xbf16>
    %c0_90 = arith.constant 0 : index
    %c24_91 = arith.constant 24 : index
    %c0_92 = arith.constant 0 : index
    %c0_93 = arith.constant 0 : index
    %169 = vector.load %arg5[%c0_90, %c24_91, %c0_92, %c0_93] : memref<1x32x32x16xbf16, #tpu.memory_space<vmem>>, vector<1x8x32x16xbf16>
    %170 = vector.shape_cast %169 : vector<1x8x32x16xbf16> to vector<8x32x16xbf16>
    %171 = vector.shape_cast %168 : vector<8x32x16xbf16> to vector<1x8x32x16xbf16>
    tpu.vector_store %arg5[%c0_90, %c24_91, %c0_92, %c0_93], %171 {strides = array<i32>} : memref<1x32x32x16xbf16, #tpu.memory_space<vmem>>, vector<1x8x32x16xbf16>,
    %172 = vector.shape_cast %167 : vector<8x32x16xf32> to vector<4x2x32x16xf32>
    %173 = vector.extract_strided_slice %172 {offsets = [0, 0, 0, 0], sizes = [4, 1, 32, 16], strides = [1, 1, 1, 1]} : vector<4x2x32x16xf32> to vector<4x1x32x16xf32>
    %174 = vector.shape_cast %173 : vector<4x1x32x16xf32> to vector<4x32x16xf32>
    %175 = vector.extract_strided_slice %172 {offsets = [0, 1, 0, 0], sizes = [4, 1, 32, 16], strides = [1, 1, 1, 1]} : vector<4x2x32x16xf32> to vector<4x1x32x16xf32>
    %176 = vector.shape_cast %175 : vector<4x1x32x16xf32> to vector<4x32x16xf32>
    %177 = arith.maximumf %174, %176 : vector<4x32x16xf32>
    %178 = vector.shape_cast %177 : vector<4x32x16xf32> to vector<4x16x2x16xf32>
    %179 = vector.extract_strided_slice %178 {offsets = [0, 0, 0, 0], sizes = [4, 16, 1, 16], strides = [1, 1, 1, 1]} : vector<4x16x2x16xf32> to vector<4x16x1x16xf32>
    %180 = vector.shape_cast %179 : vector<4x16x1x16xf32> to vector<4x16x16xf32>
    %181 = vector.extract_strided_slice %178 {offsets = [0, 0, 1, 0], sizes = [4, 16, 1, 16], strides = [1, 1, 1, 1]} : vector<4x16x2x16xf32> to vector<4x16x1x16xf32>
    %182 = vector.shape_cast %181 : vector<4x16x1x16xf32> to vector<4x16x16xf32>
    %183 = arith.maximumf %180, %182 : vector<4x16x16xf32>
    %184 = arith.truncf %183 : vector<4x16x16xf32> to vector<4x16x16xbf16>
    %c0_94 = arith.constant 0 : index
    %c12 = arith.constant 12 : index
    %c0_95 = arith.constant 0 : index
    %c0_96 = arith.constant 0 : index
    %185 = vector.load %arg4[%c0_94, %c12, %c0_95, %c0_96] : memref<1x16x16x16xbf16, #tpu.memory_space<vmem>>, vector<1x4x16x16xbf16>
    %186 = vector.shape_cast %185 : vector<1x4x16x16xbf16> to vector<4x16x16xbf16>
    %187 = vector.shape_cast %184 : vector<4x16x16xbf16> to vector<1x4x16x16xbf16>
    tpu.vector_store %arg4[%c0_94, %c12, %c0_95, %c0_96], %187 {strides = array<i32>} : memref<1x16x16x16xbf16, #tpu.memory_space<vmem>>, vector<1x4x16x16xbf16>,
    return
  }
  func.func @transform_0(%arg0: i32) -> (i32, i32, i32, i32) {
    %c0_i32 = arith.constant 0 : i32
    %c0_i32_0 = arith.constant 0 : i32
    %c0_i32_1 = arith.constant 0 : i32
    %c0_i32_2 = arith.constant 0 : i32
    return %arg0, %c0_i32, %c0_i32_0, %c0_i32_1 : i32, i32, i32, i32
  }
  func.func @transform_1(%arg0: i32) -> (i32, i32) {
    %c0_i32 = arith.constant 0 : i32
    %c0_i32_0 = arith.constant 0 : i32
    %c0_i32_1 = arith.constant 0 : i32
    return %c0_i32, %c0_i32_0 : i32, i32
  }
  func.func @transform_2(%arg0: i32) -> (i32, i32) {
    %c0_i32 = arith.constant 0 : i32
    %c0_i32_0 = arith.constant 0 : i32
    %c0_i32_1 = arith.constant 0 : i32
    return %c0_i32, %c0_i32_0 : i32, i32
  }
  func.func @transform_3(%arg0: i32) -> (i32, i32, i32, i32) {
    %c0_i32 = arith.constant 0 : i32
    %c0_i32_0 = arith.constant 0 : i32
    %c0_i32_1 = arith.constant 0 : i32
    %c0_i32_2 = arith.constant 0 : i32
    return %arg0, %c0_i32, %c0_i32_0, %c0_i32_1 : i32, i32, i32, i32
  }
  func.func @transform_4(%arg0: i32) -> (i32, i32, i32, i32) {
    %c0_i32 = arith.constant 0 : i32
    %c0_i32_0 = arith.constant 0 : i32
    %c0_i32_1 = arith.constant 0 : i32
    %c0_i32_2 = arith.constant 0 : i32
    return %arg0, %c0_i32, %c0_i32_0, %c0_i32_1 : i32, i32, i32, i32
  }
}

</mosaic_0001>

<llo_original>
// kernel: tpu_custom_call.1
$region0: #{tpu_custom_call.1}
  #allocation0 [shape = 'u32[]', space=smem, size = 0x4, offset = 0x4, fixed_abs, tag = 'smem constant byte address 0x4 - core index']
  #allocation1 [shape = 'u32[72,128]{1,0:T(1,128)}', space=vmem, size = 0x9000, scoped, tag = 'internal scratch']
  #allocation2 [shape = 'bf16[34,34,3]{2,1,0:T(8,128)(2,1)}', space=vmem, size = 0x55000, scoped, tag = 'scratch operand']
  %s0 = inlined_call_operand.vmem [shape: bf16[2,32,32,3], index: 0, kind: input, shape index: {}]
  %s1 = inlined_call_operand.vmem [shape: bf16[27,16], index: 1, kind: input, shape index: {}]
  %s2 = inlined_call_operand.vmem [shape: f32[1,16], index: 2, kind: input, shape index: {}]
  %s3 = inlined_call_operand.hbm [shape: bf16[2,16,16,16], index: 3, kind: output, shape index: {0}]
  %s4 = inlined_call_operand.vmem [shape: bf16[2,32,32,16], index: 4, kind: output, shape index: {1}]
  %5 = xla_tuple %s3, %s4
  %s6 = sld [smem:[#allocation0]]
  $region53: #{tpu_custom_call.1} parent=0
    _
  %s8 = ssub.s32 1, %s6
  %s9 = scalar_select 0, %s8, %s6
  $region1: #{tpu_custom_call.1} parent=0
    #allocation3 [shape = 'u8[131072]{0}', space=vmem, size = 0x20000, scoped, tag = 'output window, operand 0']
    #allocation4 [shape = 's32[2]{0}', space=sflag, size = 0x8, scoped, tag = 'scoped memory for tpu_custom_call.1']
    %10 = vsyncpa [#allocation4], 0
    %s11 = scalar_lea.sflag [#allocation4], 1
    %12 = vsyncpa %s11, 0
    loop: start=0, step=1, limit=4
    $region2: #{tpu_custom_call.1} parent=1 // loop_pre_header
      _
    $region3: #{tpu_custom_call.1} parent=1 // loop_header
      %s14 = sphi 0, %s18
      %p15 = scmp.ge.s32.totalorder %s14, 4
      %s24 = sphi 0, %s26
      %s27 = sphi 0, %s24
      %s28 = sphi 0, %s27
      %s44 = sphi 0, %s28
      %s48 = sphi 0, %s48
      %s50 = sphi 0, %s48
      %s51 = sphi 0, %s50
      %s65 = sphi 0, %s51
      %s69 = sphi 0, %s69
      %s71 = sphi 0, %s69
      %s72 = sphi 0, %s71
      %s86 = sphi 0, %s72
      %s92 = sphi 0, %s94
      %s95 = sphi 0, %s92
      %s96 = sphi 0, %s95
      %s112 = sphi 0, %s96
      %s118 = sphi 0, %s120
      %s121 = sphi 0, %s118
      %s122 = sphi 0, %s121
      %s138 = sphi 0, %s122
    $region4: #{tpu_custom_call.1} parent=1 // loop_header_branch
      %17 = sbr.rel (%p15) target = $region8
    $region5: #{tpu_custom_call.1} parent=1 // loop_body
      %s19 = ssub.s32 %s14, 1
      %s20 = ssub.s32 %s14, 2
      %s21 = sadd.s32 %s14, 1
      %s22 = ssub.s32 %s14, %s21
      %p23 = scmp.eq.s32.totalorder %s22, 0
      %s25 = sadd.s32 %s24, 1
      %s26 = scalar_select %p23, %s24, %s25
      %p29 = pneg %p23
      %p30 = scmp.eq.s32.totalorder %s14, 1
      %p31 = por %p29, %p30
      %p32 = scmp.ne.s32.totalorder %s24, %s27
      %p33 = scmp.eq.s32.totalorder %s14, 0
      %p34 = por %p32, %p33
      %p35 = scmp.ne.s32.totalorder %s24, %s27
      %p36 = scmp.eq.s32.totalorder %s19, 1
      %p37 = por %p35, %p36
      %p38 = scmp.ne.s32.totalorder %s27, %s28
      %p39 = scmp.eq.s32.totalorder %s19, 0
      %p40 = por %p38, %p39
      %p41 = scmp.ne.s32.totalorder %s27, %s28
      %p42 = scmp.eq.s32.totalorder %s20, 1
      %p43 = por %p41, %p42
      %p45 = scmp.ne.s32.totalorder %s28, %s44
      %p46 = scmp.eq.s32.totalorder %s20, 0
      %p47 = por %p45, %p46
      %s49 = sadd.s32 %s48, 1
      %p52 = scmp.eq.s32.totalorder %s14, 1
      %p53 = scmp.ne.s32.totalorder %s48, %s50
      %p54 = scmp.eq.s32.totalorder %s14, 0
      %p55 = por %p53, %p54
      %p56 = scmp.ne.s32.totalorder %s48, %s50
      %p57 = scmp.eq.s32.totalorder %s19, 1
      %p58 = por %p56, %p57
      %p59 = scmp.ne.s32.totalorder %s50, %s51
      %p60 = scmp.eq.s32.totalorder %s19, 0
      %p61 = por %p59, %p60
      %p62 = scmp.ne.s32.totalorder %s50, %s51
      %p63 = scmp.eq.s32.totalorder %s20, 1
      %p64 = por %p62, %p63
      %p66 = scmp.ne.s32.totalorder %s51, %s65
      %p67 = scmp.eq.s32.totalorder %s20, 0
      %p68 = por %p66, %p67
      %s70 = sadd.s32 %s69, 1
      %p73 = scmp.eq.s32.totalorder %s14, 1
      %p74 = scmp.ne.s32.totalorder %s69, %s71
      %p75 = scmp.eq.s32.totalorder %s14, 0
      %p76 = por %p74, %p75
      %p77 = scmp.ne.s32.totalorder %s69, %s71
      %p78 = scmp.eq.s32.totalorder %s19, 1
      %p79 = por %p77, %p78
      %p80 = scmp.ne.s32.totalorder %s71, %s72
      %p81 = scmp.eq.s32.totalorder %s19, 0
      %p82 = por %p80, %p81
      %p83 = scmp.ne.s32.totalorder %s71, %s72
      %p84 = scmp.eq.s32.totalorder %s20, 1
      %p85 = por %p83, %p84
      %p87 = scmp.ne.s32.totalorder %s72, %s86
      %p88 = scmp.eq.s32.totalorder %s20, 0
      %p89 = por %p87, %p88
      %s90 = ssub.s32 %s14, %s21
      %p91 = scmp.eq.s32.totalorder %s90, 0
      %s93 = sadd.s32 %s92, 1
      %s94 = scalar_select %p91, %s92, %s93
      %p97 = pneg %p91
      %p98 = scmp.eq.s32.totalorder %s14, 1
      %p99 = por %p97, %p98
      %p100 = scmp.ne.s32.totalorder %s92, %s95
      %p101 = scmp.eq.s32.totalorder %s14, 0
      %p102 = por %p100, %p101
      %p103 = scmp.ne.s32.totalorder %s92, %s95
      %p104 = scmp.eq.s32.totalorder %s19, 1
      %p105 = por %p103, %p104
      %p106 = scmp.ne.s32.totalorder %s95, %s96
      %p107 = scmp.eq.s32.totalorder %s19, 0
      %p108 = por %p106, %p107
      %p109 = scmp.ne.s32.totalorder %s95, %s96
      %p110 = scmp.eq.s32.totalorder %s20, 1
      %p111 = por %p109, %p110
      %p113 = scmp.ne.s32.totalorder %s96, %s112
      %p114 = scmp.eq.s32.totalorder %s20, 0
      %p115 = por %p113, %p114
      %s116 = ssub.s32 %s14, %s21
      %p117 = scmp.eq.s32.totalorder %s116, 0
      %s119 = sadd.s32 %s118, 1
      %s120 = scalar_select %p117, %s118, %s119
      %p123 = pneg %p117
      %p124 = scmp.eq.s32.totalorder %s14, 1
      %p125 = por %p123, %p124
      %p126 = scmp.ne.s32.totalorder %s118, %s121
      %p127 = scmp.eq.s32.totalorder %s14, 0
      %p128 = por %p126, %p127
      %p129 = scmp.ne.s32.totalorder %s118, %s121
      %p130 = scmp.eq.s32.totalorder %s19, 1
      %p131 = por %p129, %p130
      %p132 = scmp.ne.s32.totalorder %s121, %s122
      %p133 = scmp.eq.s32.totalorder %s19, 0
      %p134 = por %p132, %p133
      %p135 = scmp.ne.s32.totalorder %s121, %s122
      %p136 = scmp.eq.s32.totalorder %s20, 1
      %p137 = por %p135, %p136
      %p139 = scmp.ne.s32.totalorder %s122, %s138
      %p140 = scmp.eq.s32.totalorder %s20, 0
      %p141 = por %p139, %p140
      %p142 = scmp.le.s32.totalorder 1, %s14
      %p143 = scmp.lt.s32.totalorder %s14, 3
      %p144 = pnand %p142, %p143
      %p145 = pneg %p144
      // Predicated region
      $region9: #{tpu_custom_call.1} parent=5 // pred_check
        _
      $region10: #{tpu_custom_call.1} parent=5 // pred_check_branch
        %147 = sbr.rel (%p144) target = $region12
      $region11: #{tpu_custom_call.1} parent=5 // pred_region
        %s148 = ssub.s32 %s14, 1
        // Predicated region
        $region13: #{tpu_custom_call.1} parent=11 // pred_check
          %p149 = pneg %p61
        $region14: #{tpu_custom_call.1} parent=11 // pred_check_branch
          %151 = sbr.rel (%p149) target = $region16
        $region15: #{tpu_custom_call.1} parent=11 // pred_region
          _
        $region16: #{tpu_custom_call.1} parent=11 // pred_fallthru
          _
        // Predicated region
        $region17: #{tpu_custom_call.1} parent=11 // pred_check
          %p152 = pneg %p82
        $region18: #{tpu_custom_call.1} parent=11 // pred_check_branch
          %154 = sbr.rel (%p152) target = $region20
        $region19: #{tpu_custom_call.1} parent=11 // pred_region
          _
        $region20: #{tpu_custom_call.1} parent=11 // pred_fallthru
          _
      $region12: #{tpu_custom_call.1} parent=5 // pred_fallthru
        _
      %p155 = scmp.lt.s32.totalorder %s14, 2
      // Predicated region
      $region21: #{tpu_custom_call.1} parent=5 // pred_check
        %p156 = pneg %p155
      $region22: #{tpu_custom_call.1} parent=5 // pred_check_branch
        %158 = sbr.rel (%p156) target = $region24
      $region23: #{tpu_custom_call.1} parent=5 // pred_region
        // Predicated region
        $region25: #{tpu_custom_call.1} parent=23 // pred_check
          %p159 = pneg %p34
        $region26: #{tpu_custom_call.1} parent=23 // pred_check_branch
          %161 = sbr.rel (%p159) target = $region28
        $region27: #{tpu_custom_call.1} parent=23 // pred_region
          %p162 = scmp.lt.s32.totalorder %s14, 1
          %s163 = scalar_select %p162, %s14, 1
          %s164 = smul.addr %s163, 128
          %s165 = smul.addr %s164, 4
          %s166 = scalar_lea.vmem %s0, %s165
        $region28: #{tpu_custom_call.1} parent=23 // pred_fallthru
          _
      $region24: #{tpu_custom_call.1} parent=5 // pred_fallthru
        _
      %p167 = scmp.le.s32.totalorder 1, %s14
      %p168 = scmp.lt.s32.totalorder %s14, 3
      %p169 = pnand %p167, %p168
      %p170 = pneg %p169
      // Predicated region
      $region29: #{tpu_custom_call.1} parent=5 // pred_check
        _
      $region30: #{tpu_custom_call.1} parent=5 // pred_check_branch
        %172 = sbr.rel (%p169) target = $region32
      $region31: #{tpu_custom_call.1} parent=5 // pred_region
        %s173 = ssub.s32 %s14, 1
        %p174 = scmp.lt.s32.totalorder %s19, 1
        %s175 = scalar_select %p174, %s19, 1
        %s176 = smul.addr %s175, 128
        %s177 = smul.addr %s176, 4
        %s178 = scalar_lea.vmem %s0, %s177
        %p179 = pneg %p40
        %p180 = pneg %p37
        %p181 = pneg %p61
        %p182 = pneg %p58
        %p183 = pneg %p82
        %p184 = pneg %p79
        %p185 = pneg %p108
        %p186 = pneg %p105
        %s187 = sand.u32 %s95, 1
        %s188 = scalar_lea.sflag [#allocation4], %s187
        %s189 = sand.u32 %s95, 1
        %s190 = smul.addr %s189, 128
        %s191 = scalar_lea.vmem [#allocation3], %s190
        %p192 = pneg %p134
        %p193 = pneg %p131
        %p194 = scmp.lt.s32.totalorder %s19, 1
        %s195 = scalar_select %p194, %s19, 1
        %s196 = smul.addr %s195, 128
        %s197 = smul.addr %s196, 4
        %s198 = scalar_lea.vmem %s4, %s197
        %p199 = scmp.lt.s32.totalorder %s19, 1
        %s200 = scalar_select %p199, %s19, 1
        %s201 = smul.addr %s200, 128
        %s202 = smul.addr %s201, 4
        %s203 = scalar_lea.vmem %s0, %s202
        %p204 = scmp.lt.s32.totalorder %s19, 1
        %s205 = scalar_select %p204, %s19, 1
        %s206 = smul.addr %s205, 128
        %s207 = smul.addr %s206, 4
        %s208 = scalar_lea.vmem %s4, %s207
        %vm210 = vcmask 19456
        %211 = vst.msk [vmem:[#allocation2] sm:$0xf] %vm210, 0
        %212 = vst.msk [vmem:[#allocation2 + $0x4] sm:$0xf] %vm210, 0
        %213 = vst.msk [vmem:[#allocation2 + $0x8] sm:$0xf] %vm210, 0
        %214 = vst.msk [vmem:[#allocation2 + $0xc] sm:$0xf] %vm210, 0
        %vm215 = vcmask 16384
        %216 = vst.msk [vmem:[#allocation2 + $0x10] sm:$0x1] %vm215, 0
        %s217 = scalar_lea.vmem [#allocation2], 660
        %218 = vst.msk [vmem:[%s217] sm:$0xf] %vm210, 0
        %219 = vst.msk [vmem:[%s217 + $0x4] sm:$0xf] %vm210, 0
        %220 = vst.msk [vmem:[%s217 + $0x8] sm:$0xf] %vm210, 0
        %221 = vst.msk [vmem:[%s217 + $0xc] sm:$0xf] %vm210, 0
        %222 = vst.msk [vmem:[%s217 + $0x10] sm:$0x1] %vm215, 0
        %vm223 = vcmask 16384
        %vm224 = vsmask.f32 256
        %vm225 = vmand %vm223, %vm224
        %v226 = vld [vmem:[#allocation2] sm:$0x1]
        %v227 = vsel %vm225, 0, %v226
        %228 = vst [vmem:[#allocation2] sm:$0x1] %v227
        %v229 = vld [vmem:[#allocation2 + $0x14] sm:$0x1]
        %v230 = vsel %vm225, 0, %v229
        %231 = vst [vmem:[#allocation2 + $0x14] sm:$0x1] %v230
        %v232 = vld [vmem:[#allocation2 + $0x28] sm:$0x1]
        %v233 = vsel %vm225, 0, %v232
        %234 = vst [vmem:[#allocation2 + $0x28] sm:$0x1] %v233
        %v235 = vld [vmem:[#allocation2 + $0x3c] sm:$0x1]
        %v236 = vsel %vm225, 0, %v235
        %237 = vst [vmem:[#allocation2 + $0x3c] sm:$0x1] %v236
        %v238 = vld [vmem:[#allocation2 + $0x50] sm:$0x1]
        %v239 = vsel %vm225, 0, %v238
        %240 = vst [vmem:[#allocation2 + $0x50] sm:$0x1] %v239
        %v241 = vld [vmem:[#allocation2 + $0x64] sm:$0x1]
        %v242 = vsel %vm225, 0, %v241
        %243 = vst [vmem:[#allocation2 + $0x64] sm:$0x1] %v242
        %v244 = vld [vmem:[#allocation2 + $0x78] sm:$0x1]
        %v245 = vsel %vm225, 0, %v244
        %246 = vst [vmem:[#allocation2 + $0x78] sm:$0x1] %v245
        %v247 = vld [vmem:[#allocation2 + $0x8c] sm:$0x1]
        %v248 = vsel %vm225, 0, %v247
        %249 = vst [vmem:[#allocation2 + $0x8c] sm:$0x1] %v248
        %v250 = vld [vmem:[#allocation2 + $0xa0] sm:$0x1]
        %v251 = vsel %vm225, 0, %v250
        %252 = vst [vmem:[#allocation2 + $0xa0] sm:$0x1] %v251
        %v253 = vld [vmem:[#allocation2 + $0xb4] sm:$0x1]
        %v254 = vsel %vm225, 0, %v253
        %255 = vst [vmem:[#allocation2 + $0xb4] sm:$0x1] %v254
        %v256 = vld [vmem:[#allocation2 + $0xc8] sm:$0x1]
        %v257 = vsel %vm225, 0, %v256
        %258 = vst [vmem:[#allocation2 + $0xc8] sm:$0x1] %v257
        %v259 = vld [vmem:[#allocation2 + $0xdc] sm:$0x1]
        %v260 = vsel %vm225, 0, %v259
        %261 = vst [vmem:[#allocation2 + $0xdc] sm:$0x1] %v260
        %v262 = vld [vmem:[#allocation2 + $0xf0] sm:$0x1]
        %v263 = vsel %vm225, 0, %v262
        %264 = vst [vmem:[#allocation2 + $0xf0] sm:$0x1] %v263
        %v265 = vld [vmem:[#allocation2 + $0x104] sm:$0x1]
        %v266 = vsel %vm225, 0, %v265
        %267 = vst [vmem:[#allocation2 + $0x104] sm:$0x1] %v266
        %v268 = vld [vmem:[#allocation2 + $0x118] sm:$0x1]
        %v269 = vsel %vm225, 0, %v268
        %270 = vst [vmem:[#allocation2 + $0x118] sm:$0x1] %v269
        %v271 = vld [vmem:[#allocation2 + $0x12c] sm:$0x1]
        %v272 = vsel %vm225, 0, %v271
        %273 = vst [vmem:[#allocation2 + $0x12c] sm:$0x1] %v272
        %v274 = vld [vmem:[#allocation2 + $0x140] sm:$0x1]
        %v275 = vsel %vm225, 0, %v274
        %276 = vst [vmem:[#allocation2 + $0x140] sm:$0x1] %v275
        %v277 = vld [vmem:[#allocation2 + $0x154] sm:$0x1]
        %v278 = vsel %vm225, 0, %v277
        %279 = vst [vmem:[#allocation2 + $0x154] sm:$0x1] %v278
        %v280 = vld [vmem:[#allocation2 + $0x168] sm:$0x1]
        %v281 = vsel %vm225, 0, %v280
        %282 = vst [vmem:[#allocation2 + $0x168] sm:$0x1] %v281
        %v283 = vld [vmem:[#allocation2 + $0x17c] sm:$0x1]
        %v284 = vsel %vm225, 0, %v283
        %285 = vst [vmem:[#allocation2 + $0x17c] sm:$0x1] %v284
        %v286 = vld [vmem:[#allocation2 + $0x190] sm:$0x1]
        %v287 = vsel %vm225, 0, %v286
        %288 = vst [vmem:[#allocation2 + $0x190] sm:$0x1] %v287
        %v289 = vld [vmem:[#allocation2 + $0x1a4] sm:$0x1]
        %v290 = vsel %vm225, 0, %v289
        %291 = vst [vmem:[#allocation2 + $0x1a4] sm:$0x1] %v290
        %v292 = vld [vmem:[#allocation2 + $0x1b8] sm:$0x1]
        %v293 = vsel %vm225, 0, %v292
        %294 = vst [vmem:[#allocation2 + $0x1b8] sm:$0x1] %v293
        %v295 = vld [vmem:[#allocation2 + $0x1cc] sm:$0x1]
        %v296 = vsel %vm225, 0, %v295
        %297 = vst [vmem:[#allocation2 + $0x1cc] sm:$0x1] %v296
        %v298 = vld [vmem:[#allocation2 + $0x1e0] sm:$0x1]
        %v299 = vsel %vm225, 0, %v298
        %300 = vst [vmem:[#allocation2 + $0x1e0] sm:$0x1] %v299
        %v301 = vld [vmem:[#allocation2 + $0x1f4] sm:$0x1]
        %v302 = vsel %vm225, 0, %v301
        %303 = vst [vmem:[#allocation2 + $0x1f4] sm:$0x1] %v302
        %v304 = vld [vmem:[#allocation2 + $0x208] sm:$0x1]
        %v305 = vsel %vm225, 0, %v304
        %306 = vst [vmem:[#allocation2 + $0x208] sm:$0x1] %v305
        %v307 = vld [vmem:[#allocation2 + $0x21c] sm:$0x1]
        %v308 = vsel %vm225, 0, %v307
        %309 = vst [vmem:[#allocation2 + $0x21c] sm:$0x1] %v308
        %v310 = vld [vmem:[#allocation2 + $0x230] sm:$0x1]
        %v311 = vsel %vm225, 0, %v310
        %312 = vst [vmem:[#allocation2 + $0x230] sm:$0x1] %v311
        %v313 = vld [vmem:[#allocation2 + $0x244] sm:$0x1]
        %v314 = vsel %vm225, 0, %v313
        %315 = vst [vmem:[#allocation2 + $0x244] sm:$0x1] %v314
        %v316 = vld [vmem:[#allocation2 + $0x258] sm:$0x1]
        %v317 = vsel %vm225, 0, %v316
        %318 = vst [vmem:[#allocation2 + $0x258] sm:$0x1] %v317
        %v319 = vld [vmem:[#allocation2 + $0x26c] sm:$0x1]
        %v320 = vsel %vm225, 0, %v319
        %321 = vst [vmem:[#allocation2 + $0x26c] sm:$0x1] %v320
        %v322 = vld [vmem:[#allocation2 + $0x280] sm:$0x1]
        %v323 = vsel %vm225, 0, %v322
        %324 = vst [vmem:[#allocation2 + $0x280] sm:$0x1] %v323
        %v325 = vld [vmem:[#allocation2 + $0x294] sm:$0x1]
        %v326 = vsel %vm225, 0, %v325
        %327 = vst [vmem:[#allocation2 + $0x294] sm:$0x1] %v326
        %vm328 = vsmask.f32 7938
        %vm329 = vmand %vm223, %vm328
        %v330 = vld [vmem:[#allocation2 + $0x10] sm:$0x1]
        %v331 = vsel %vm329, 0, %v330
        %332 = vst [vmem:[#allocation2 + $0x10] sm:$0x1] %v331
        %v333 = vld [vmem:[#allocation2 + $0x24] sm:$0x1]
        %v334 = vsel %vm329, 0, %v333
        %335 = vst [vmem:[#allocation2 + $0x24] sm:$0x1] %v334
        %v336 = vld [vmem:[#allocation2 + $0x38] sm:$0x1]
        %v337 = vsel %vm329, 0, %v336
        %338 = vst [vmem:[#allocation2 + $0x38] sm:$0x1] %v337
        %v339 = vld [vmem:[#allocation2 + $0x4c] sm:$0x1]
        %v340 = vsel %vm329, 0, %v339
        %341 = vst [vmem:[#allocation2 + $0x4c] sm:$0x1] %v340
        %v342 = vld [vmem:[#allocation2 + $0x60] sm:$0x1]
        %v343 = vsel %vm329, 0, %v342
        %344 = vst [vmem:[#allocation2 + $0x60] sm:$0x1] %v343
        %v345 = vld [vmem:[#allocation2 + $0x74] sm:$0x1]
        %v346 = vsel %vm329, 0, %v345
        %347 = vst [vmem:[#allocation2 + $0x74] sm:$0x1] %v346
        %v348 = vld [vmem:[#allocation2 + $0x88] sm:$0x1]
        %v349 = vsel %vm329, 0, %v348
        %350 = vst [vmem:[#allocation2 + $0x88] sm:$0x1] %v349
        %v351 = vld [vmem:[#allocation2 + $0x9c] sm:$0x1]
        %v352 = vsel %vm329, 0, %v351
        %353 = vst [vmem:[#allocation2 + $0x9c] sm:$0x1] %v352
        %v354 = vld [vmem:[#allocation2 + $0xb0] sm:$0x1]
        %v355 = vsel %vm329, 0, %v354
        %356 = vst [vmem:[#allocation2 + $0xb0] sm:$0x1] %v355
        %v357 = vld [vmem:[#allocation2 + $0xc4] sm:$0x1]
        %v358 = vsel %vm329, 0, %v357
        %359 = vst [vmem:[#allocation2 + $0xc4] sm:$0x1] %v358
        %v360 = vld [vmem:[#allocation2 + $0xd8] sm:$0x1]
        %v361 = vsel %vm329, 0, %v360
        %362 = vst [vmem:[#allocation2 + $0xd8] sm:$0x1] %v361
        %v363 = vld [vmem:[#allocation2 + $0xec] sm:$0x1]
        %v364 = vsel %vm329, 0, %v363
        %365 = vst [vmem:[#allocation2 + $0xec] sm:$0x1] %v364
        %v366 = vld [vmem:[#allocation2 + $0x100] sm:$0x1]
        %v367 = vsel %vm329, 0, %v366
        %368 = vst [vmem:[#allocation2 + $0x100] sm:$0x1] %v367
        %v369 = vld [vmem:[#allocation2 + $0x114] sm:$0x1]
        %v370 = vsel %vm329, 0, %v369
        %371 = vst [vmem:[#allocation2 + $0x114] sm:$0x1] %v370
        %v372 = vld [vmem:[#allocation2 + $0x128] sm:$0x1]
        %v373 = vsel %vm329, 0, %v372
        %374 = vst [vmem:[#allocation2 + $0x128] sm:$0x1] %v373
        %v375 = vld [vmem:[#allocation2 + $0x13c] sm:$0x1]
        %v376 = vsel %vm329, 0, %v375
        %377 = vst [vmem:[#allocation2 + $0x13c] sm:$0x1] %v376
        %v378 = vld [vmem:[#allocation2 + $0x150] sm:$0x1]
        %v379 = vsel %vm329, 0, %v378
        %380 = vst [vmem:[#allocation2 + $0x150] sm:$0x1] %v379
        %v381 = vld [vmem:[#allocation2 + $0x164] sm:$0x1]
        %v382 = vsel %vm329, 0, %v381
        %383 = vst [vmem:[#allocation2 + $0x164] sm:$0x1] %v382
        %v384 = vld [vmem:[#allocation2 + $0x178] sm:$0x1]
        %v385 = vsel %vm329, 0, %v384
        %386 = vst [vmem:[#allocation2 + $0x178] sm:$0x1] %v385
        %v387 = vld [vmem:[#allocation2 + $0x18c] sm:$0x1]
        %v388 = vsel %vm329, 0, %v387
        %389 = vst [vmem:[#allocation2 + $0x18c] sm:$0x1] %v388
        %v390 = vld [vmem:[#allocation2 + $0x1a0] sm:$0x1]
        %v391 = vsel %vm329, 0, %v390
        %392 = vst [vmem:[#allocation2 + $0x1a0] sm:$0x1] %v391
        %v393 = vld [vmem:[#allocation2 + $0x1b4] sm:$0x1]
        %v394 = vsel %vm329, 0, %v393
        %395 = vst [vmem:[#allocation2 + $0x1b4] sm:$0x1] %v394
        %v396 = vld [vmem:[#allocation2 + $0x1c8] sm:$0x1]
        %v397 = vsel %vm329, 0, %v396
        %398 = vst [vmem:[#allocation2 + $0x1c8] sm:$0x1] %v397
        %v399 = vld [vmem:[#allocation2 + $0x1dc] sm:$0x1]
        %v400 = vsel %vm329, 0, %v399
        %401 = vst [vmem:[#allocation2 + $0x1dc] sm:$0x1] %v400
        %v402 = vld [vmem:[#allocation2 + $0x1f0] sm:$0x1]
        %v403 = vsel %vm329, 0, %v402
        %404 = vst [vmem:[#allocation2 + $0x1f0] sm:$0x1] %v403
        %v405 = vld [vmem:[#allocation2 + $0x204] sm:$0x1]
        %v406 = vsel %vm329, 0, %v405
        %407 = vst [vmem:[#allocation2 + $0x204] sm:$0x1] %v406
        %v408 = vld [vmem:[#allocation2 + $0x218] sm:$0x1]
        %v409 = vsel %vm329, 0, %v408
        %410 = vst [vmem:[#allocation2 + $0x218] sm:$0x1] %v409
        %v411 = vld [vmem:[#allocation2 + $0x22c] sm:$0x1]
        %v412 = vsel %vm329, 0, %v411
        %413 = vst [vmem:[#allocation2 + $0x22c] sm:$0x1] %v412
        %v414 = vld [vmem:[#allocation2 + $0x240] sm:$0x1]
        %v415 = vsel %vm329, 0, %v414
        %416 = vst [vmem:[#allocation2 + $0x240] sm:$0x1] %v415
        %v417 = vld [vmem:[#allocation2 + $0x254] sm:$0x1]
        %v418 = vsel %vm329, 0, %v417
        %419 = vst [vmem:[#allocation2 + $0x254] sm:$0x1] %v418
        %v420 = vld [vmem:[#allocation2 + $0x268] sm:$0x1]
        %v421 = vsel %vm329, 0, %v420
        %422 = vst [vmem:[#allocation2 + $0x268] sm:$0x1] %v421
        %v423 = vld [vmem:[#allocation2 + $0x27c] sm:$0x1]
        %v424 = vsel %vm329, 0, %v423
        %425 = vst [vmem:[#allocation2 + $0x27c] sm:$0x1] %v424
        %v426 = vld [vmem:[#allocation2 + $0x290] sm:$0x1]
        %v427 = vsel %vm329, 0, %v426
        %428 = vst [vmem:[#allocation2 + $0x290] sm:$0x1] %v427
        %v429 = vld [vmem:[#allocation2 + $0x2a4] sm:$0x1]
        %v430 = vsel %vm329, 0, %v429
        %431 = vst [vmem:[#allocation2 + $0x2a4] sm:$0x1] %v430
        %v432 = vld [vmem:[%s203] sm:$0xf]
        %v433 = vld [vmem:[%s203 + $0x4] sm:$0xf]
        %v434 = vld [vmem:[%s203 + $0x8] sm:$0xf]
        %v435 = vld [vmem:[%s203 + $0xc] sm:$0xf]
        %v436 = vld [vmem:[%s203 + $0x10] sm:$0xf]
        %v437 = vld [vmem:[%s203 + $0x14] sm:$0xf]
        %v438 = vld [vmem:[%s203 + $0x18] sm:$0xf]
        %v439 = vld [vmem:[%s203 + $0x1c] sm:$0xf]
        %v440 = vld [vmem:[%s203 + $0x20] sm:$0xf]
        %v441 = vld [vmem:[%s203 + $0x24] sm:$0xf]
        %v442 = vld [vmem:[%s203 + $0x28] sm:$0xf]
        %v443 = vld [vmem:[%s203 + $0x2c] sm:$0xf]
        %v444 = vld [vmem:[%s203 + $0x30] sm:$0xf]
        %v445 = vld [vmem:[%s203 + $0x34] sm:$0xf]
        %v446 = vld [vmem:[%s203 + $0x38] sm:$0xf]
        %v447 = vld [vmem:[%s203 + $0x3c] sm:$0xf]
        %v448 = vld [vmem:[%s203 + $0x40] sm:$0xf]
        %v449 = vld [vmem:[%s203 + $0x44] sm:$0xf]
        %v450 = vld [vmem:[%s203 + $0x48] sm:$0xf]
        %v451 = vld [vmem:[%s203 + $0x4c] sm:$0xf]
        %v452 = vld [vmem:[%s203 + $0x50] sm:$0xf]
        %v453 = vld [vmem:[%s203 + $0x54] sm:$0xf]
        %v454 = vld [vmem:[%s203 + $0x58] sm:$0xf]
        %v455 = vld [vmem:[%s203 + $0x5c] sm:$0xf]
        %v456 = vld [vmem:[%s203 + $0x60] sm:$0xf]
        %v457 = vld [vmem:[%s203 + $0x64] sm:$0xf]
        %v458 = vld [vmem:[%s203 + $0x68] sm:$0xf]
        %v459 = vld [vmem:[%s203 + $0x6c] sm:$0xf]
        %v460 = vld [vmem:[%s203 + $0x70] sm:$0xf]
        %v461 = vld [vmem:[%s203 + $0x74] sm:$0xf]
        %v462 = vld [vmem:[%s203 + $0x78] sm:$0xf]
        %v463 = vld [vmem:[%s203 + $0x7c] sm:$0xf]
        %v464 = vld [vmem:[%s203 + $0x80] sm:$0xf]
        %v465 = vld [vmem:[%s203 + $0x84] sm:$0xf]
        %v466 = vld [vmem:[%s203 + $0x88] sm:$0xf]
        %v467 = vld [vmem:[%s203 + $0x8c] sm:$0xf]
        %v468 = vld [vmem:[%s203 + $0x90] sm:$0xf]
        %v469 = vld [vmem:[%s203 + $0x94] sm:$0xf]
        %v470 = vld [vmem:[%s203 + $0x98] sm:$0xf]
        %v471 = vld [vmem:[%s203 + $0x9c] sm:$0xf]
        %v472 = vld [vmem:[%s203 + $0xa0] sm:$0xf]
        %v473 = vld [vmem:[%s203 + $0xa4] sm:$0xf]
        %v474 = vld [vmem:[%s203 + $0xa8] sm:$0xf]
        %v475 = vld [vmem:[%s203 + $0xac] sm:$0xf]
        %v476 = vld [vmem:[%s203 + $0xb0] sm:$0xf]
        %v477 = vld [vmem:[%s203 + $0xb4] sm:$0xf]
        %v478 = vld [vmem:[%s203 + $0xb8] sm:$0xf]
        %v479 = vld [vmem:[%s203 + $0xbc] sm:$0xf]
        %v480 = vld [vmem:[%s203 + $0xc0] sm:$0xf]
        %v481 = vld [vmem:[%s203 + $0xc4] sm:$0xf]
        %v482 = vld [vmem:[%s203 + $0xc8] sm:$0xf]
        %v483 = vld [vmem:[%s203 + $0xcc] sm:$0xf]
        %v484 = vld [vmem:[%s203 + $0xd0] sm:$0xf]
        %v485 = vld [vmem:[%s203 + $0xd4] sm:$0xf]
        %v486 = vld [vmem:[%s203 + $0xd8] sm:$0xf]
        %v487 = vld [vmem:[%s203 + $0xdc] sm:$0xf]
        %v488 = vld [vmem:[%s203 + $0xe0] sm:$0xf]
        %v489 = vld [vmem:[%s203 + $0xe4] sm:$0xf]
        %v490 = vld [vmem:[%s203 + $0xe8] sm:$0xf]
        %v491 = vld [vmem:[%s203 + $0xec] sm:$0xf]
        %v492 = vld [vmem:[%s203 + $0xf0] sm:$0xf]
        %v493 = vld [vmem:[%s203 + $0xf4] sm:$0xf]
        %v494 = vld [vmem:[%s203 + $0xf8] sm:$0xf]
        %v495 = vld [vmem:[%s203 + $0xfc] sm:$0xf]
        %v496 = vld [vmem:[%s203 + $0x100] sm:$0xf]
        %v497 = vld [vmem:[%s203 + $0x104] sm:$0xf]
        %v498 = vld [vmem:[%s203 + $0x108] sm:$0xf]
        %v499 = vld [vmem:[%s203 + $0x10c] sm:$0xf]
        %v500 = vld [vmem:[%s203 + $0x110] sm:$0xf]
        %v501 = vld [vmem:[%s203 + $0x114] sm:$0xf]
        %v502 = vld [vmem:[%s203 + $0x118] sm:$0xf]
        %v503 = vld [vmem:[%s203 + $0x11c] sm:$0xf]
        %v504 = vld [vmem:[%s203 + $0x120] sm:$0xf]
        %v505 = vld [vmem:[%s203 + $0x124] sm:$0xf]
        %v506 = vld [vmem:[%s203 + $0x128] sm:$0xf]
        %v507 = vld [vmem:[%s203 + $0x12c] sm:$0xf]
        %v508 = vld [vmem:[%s203 + $0x130] sm:$0xf]
        %v509 = vld [vmem:[%s203 + $0x134] sm:$0xf]
        %v510 = vld [vmem:[%s203 + $0x138] sm:$0xf]
        %v511 = vld [vmem:[%s203 + $0x13c] sm:$0xf]
        %v512 = vld [vmem:[%s203 + $0x140] sm:$0xf]
        %v513 = vld [vmem:[%s203 + $0x144] sm:$0xf]
        %v514 = vld [vmem:[%s203 + $0x148] sm:$0xf]
        %v515 = vld [vmem:[%s203 + $0x14c] sm:$0xf]
        %v516 = vld [vmem:[%s203 + $0x150] sm:$0xf]
        %v517 = vld [vmem:[%s203 + $0x154] sm:$0xf]
        %v518 = vld [vmem:[%s203 + $0x158] sm:$0xf]
        %v519 = vld [vmem:[%s203 + $0x15c] sm:$0xf]
        %v520 = vld [vmem:[%s203 + $0x160] sm:$0xf]
        %v521 = vld [vmem:[%s203 + $0x164] sm:$0xf]
        %v522 = vld [vmem:[%s203 + $0x168] sm:$0xf]
        %v523 = vld [vmem:[%s203 + $0x16c] sm:$0xf]
        %v524 = vld [vmem:[%s203 + $0x170] sm:$0xf]
        %v525 = vld [vmem:[%s203 + $0x174] sm:$0xf]
        %v526 = vld [vmem:[%s203 + $0x178] sm:$0xf]
        %v527 = vld [vmem:[%s203 + $0x17c] sm:$0xf]
        %v528 = vld [vmem:[%s203 + $0x180] sm:$0xf]
        %v529 = vld [vmem:[%s203 + $0x184] sm:$0xf]
        %v530 = vld [vmem:[%s203 + $0x188] sm:$0xf]
        %v531 = vld [vmem:[%s203 + $0x18c] sm:$0xf]
        %v532 = vld [vmem:[%s203 + $0x190] sm:$0xf]
        %v533 = vld [vmem:[%s203 + $0x194] sm:$0xf]
        %v534 = vld [vmem:[%s203 + $0x198] sm:$0xf]
        %v535 = vld [vmem:[%s203 + $0x19c] sm:$0xf]
        %v536 = vld [vmem:[%s203 + $0x1a0] sm:$0xf]
        %v537 = vld [vmem:[%s203 + $0x1a4] sm:$0xf]
        %v538 = vld [vmem:[%s203 + $0x1a8] sm:$0xf]
        %v539 = vld [vmem:[%s203 + $0x1ac] sm:$0xf]
        %v540 = vld [vmem:[%s203 + $0x1b0] sm:$0xf]
        %v541 = vld [vmem:[%s203 + $0x1b4] sm:$0xf]
        %v542 = vld [vmem:[%s203 + $0x1b8] sm:$0xf]
        %v543 = vld [vmem:[%s203 + $0x1bc] sm:$0xf]
        %v544 = vld [vmem:[%s203 + $0x1c0] sm:$0xf]
        %v545 = vld [vmem:[%s203 + $0x1c4] sm:$0xf]
        %v546 = vld [vmem:[%s203 + $0x1c8] sm:$0xf]
        %v547 = vld [vmem:[%s203 + $0x1cc] sm:$0xf]
        %v548 = vld [vmem:[%s203 + $0x1d0] sm:$0xf]
        %v549 = vld [vmem:[%s203 + $0x1d4] sm:$0xf]
        %v550 = vld [vmem:[%s203 + $0x1d8] sm:$0xf]
        %v551 = vld [vmem:[%s203 + $0x1dc] sm:$0xf]
        %v552 = vld [vmem:[%s203 + $0x1e0] sm:$0xf]
        %v553 = vld [vmem:[%s203 + $0x1e4] sm:$0xf]
        %v554 = vld [vmem:[%s203 + $0x1e8] sm:$0xf]
        %v555 = vld [vmem:[%s203 + $0x1ec] sm:$0xf]
        %v556 = vld [vmem:[%s203 + $0x1f0] sm:$0xf]
        %v557 = vld [vmem:[%s203 + $0x1f4] sm:$0xf]
        %v558 = vld [vmem:[%s203 + $0x1f8] sm:$0xf]
        %v559 = vld [vmem:[%s203 + $0x1fc] sm:$0xf]
        %vm560 = vsmask.f32 4368
        %vm561 = vmor %vm224, %vm560
        %v563 = vshrl.u32 %v432, 16
        %v565 = vrot.slane %v563, 7
        %v566 = vshll.u32 %v432, 16
        %v568 = vor.u32 %v565, %v566
        %v569 = vrot.slane %v565, 4
        %v571 = vshrl.u32 %v433, 16
        %v573 = vrot.slane %v571, 7
        %v574 = vshll.u32 %v433, 16
        %v576 = vor.u32 %v573, %v574
        %v577 = vsel %vm561, %v569, %v576
        %v578 = vrot.slane %v573, 4
        %v580 = vshrl.u32 %v434, 16
        %v582 = vrot.slane %v580, 7
        %v583 = vshll.u32 %v434, 16
        %v585 = vor.u32 %v582, %v583
        %v586 = vsel %vm561, %v578, %v585
        %v587 = vrot.slane %v582, 4
        %v589 = vshrl.u32 %v435, 16
        %v591 = vrot.slane %v589, 7
        %v592 = vshll.u32 %v435, 16
        %v594 = vor.u32 %v591, %v592
        %v595 = vsel %vm561, %v587, %v594
        %v596 = vrot.slane %v591, 4
        %v598 = vshrl.u32 %v436, 16
        %v600 = vrot.slane %v598, 7
        %v601 = vshll.u32 %v436, 16
        %v603 = vor.u32 %v600, %v601
        %v604 = vrot.slane %v600, 4
        %v606 = vshrl.u32 %v437, 16
        %v608 = vrot.slane %v606, 7
        %v609 = vshll.u32 %v437, 16
        %v611 = vor.u32 %v608, %v609
        %v612 = vsel %vm561, %v604, %v611
        %v613 = vrot.slane %v608, 4
        %v615 = vshrl.u32 %v438, 16
        %v617 = vrot.slane %v615, 7
        %v618 = vshll.u32 %v438, 16
        %v620 = vor.u32 %v617, %v618
        %v621 = vsel %vm561, %v613, %v620
        %v622 = vrot.slane %v617, 4
        %v624 = vshrl.u32 %v439, 16
        %v626 = vrot.slane %v624, 7
        %v627 = vshll.u32 %v439, 16
        %v629 = vor.u32 %v626, %v627
        %v630 = vsel %vm561, %v622, %v629
        %v631 = vrot.slane %v626, 4
        %v633 = vshrl.u32 %v440, 16
        %v635 = vrot.slane %v633, 7
        %v636 = vshll.u32 %v440, 16
        %v638 = vor.u32 %v635, %v636
        %v639 = vrot.slane %v635, 4
        %v641 = vshrl.u32 %v441, 16
        %v643 = vrot.slane %v641, 7
        %v644 = vshll.u32 %v441, 16
        %v646 = vor.u32 %v643, %v644
        %v647 = vsel %vm561, %v639, %v646
        %v648 = vrot.slane %v643, 4
        %v650 = vshrl.u32 %v442, 16
        %v652 = vrot.slane %v650, 7
        %v653 = vshll.u32 %v442, 16
        %v655 = vor.u32 %v652, %v653
        %v656 = vsel %vm561, %v648, %v655
        %v657 = vrot.slane %v652, 4
        %v659 = vshrl.u32 %v443, 16
        %v661 = vrot.slane %v659, 7
        %v662 = vshll.u32 %v443, 16
        %v664 = vor.u32 %v661, %v662
        %v665 = vsel %vm561, %v657, %v664
        %v666 = vrot.slane %v661, 4
        %v668 = vshrl.u32 %v444, 16
        %v670 = vrot.slane %v668, 7
        %v671 = vshll.u32 %v444, 16
        %v673 = vor.u32 %v670, %v671
        %v674 = vrot.slane %v670, 4
        %v676 = vshrl.u32 %v445, 16
        %v678 = vrot.slane %v676, 7
        %v679 = vshll.u32 %v445, 16
        %v681 = vor.u32 %v678, %v679
        %v682 = vsel %vm561, %v674, %v681
        %v683 = vrot.slane %v678, 4
        %v685 = vshrl.u32 %v446, 16
        %v687 = vrot.slane %v685, 7
        %v688 = vshll.u32 %v446, 16
        %v690 = vor.u32 %v687, %v688
        %v691 = vsel %vm561, %v683, %v690
        %v692 = vrot.slane %v687, 4
        %v694 = vshrl.u32 %v447, 16
        %v696 = vrot.slane %v694, 7
        %v697 = vshll.u32 %v447, 16
        %v699 = vor.u32 %v696, %v697
        %v700 = vsel %vm561, %v692, %v699
        %v701 = vrot.slane %v696, 4
        %v703 = vshrl.u32 %v448, 16
        %v705 = vrot.slane %v703, 7
        %v706 = vshll.u32 %v448, 16
        %v708 = vor.u32 %v705, %v706
        %v709 = vrot.slane %v705, 4
        %v711 = vshrl.u32 %v449, 16
        %v713 = vrot.slane %v711, 7
        %v714 = vshll.u32 %v449, 16
        %v716 = vor.u32 %v713, %v714
        %v717 = vsel %vm561, %v709, %v716
        %v718 = vrot.slane %v713, 4
        %v720 = vshrl.u32 %v450, 16
        %v722 = vrot.slane %v720, 7
        %v723 = vshll.u32 %v450, 16
        %v725 = vor.u32 %v722, %v723
        %v726 = vsel %vm561, %v718, %v725
        %v727 = vrot.slane %v722, 4
        %v729 = vshrl.u32 %v451, 16
        %v731 = vrot.slane %v729, 7
        %v732 = vshll.u32 %v451, 16
        %v734 = vor.u32 %v731, %v732
        %v735 = vsel %vm561, %v727, %v734
        %v736 = vrot.slane %v731, 4
        %v738 = vshrl.u32 %v452, 16
        %v740 = vrot.slane %v738, 7
        %v741 = vshll.u32 %v452, 16
        %v743 = vor.u32 %v740, %v741
        %v744 = vrot.slane %v740, 4
        %v746 = vshrl.u32 %v453, 16
        %v748 = vrot.slane %v746, 7
        %v749 = vshll.u32 %v453, 16
        %v751 = vor.u32 %v748, %v749
        %v752 = vsel %vm561, %v744, %v751
        %v753 = vrot.slane %v748, 4
        %v755 = vshrl.u32 %v454, 16
        %v757 = vrot.slane %v755, 7
        %v758 = vshll.u32 %v454, 16
        %v760 = vor.u32 %v757, %v758
        %v761 = vsel %vm561, %v753, %v760
        %v762 = vrot.slane %v757, 4
        %v764 = vshrl.u32 %v455, 16
        %v766 = vrot.slane %v764, 7
        %v767 = vshll.u32 %v455, 16
        %v769 = vor.u32 %v766, %v767
        %v770 = vsel %vm561, %v762, %v769
        %v771 = vrot.slane %v766, 4
        %v773 = vshrl.u32 %v456, 16
        %v775 = vrot.slane %v773, 7
        %v776 = vshll.u32 %v456, 16
        %v778 = vor.u32 %v775, %v776
        %v779 = vrot.slane %v775, 4
        %v781 = vshrl.u32 %v457, 16
        %v783 = vrot.slane %v781, 7
        %v784 = vshll.u32 %v457, 16
        %v786 = vor.u32 %v783, %v784
        %v787 = vsel %vm561, %v779, %v786
        %v788 = vrot.slane %v783, 4
        %v790 = vshrl.u32 %v458, 16
        %v792 = vrot.slane %v790, 7
        %v793 = vshll.u32 %v458, 16
        %v795 = vor.u32 %v792, %v793
        %v796 = vsel %vm561, %v788, %v795
        %v797 = vrot.slane %v792, 4
        %v799 = vshrl.u32 %v459, 16
        %v801 = vrot.slane %v799, 7
        %v802 = vshll.u32 %v459, 16
        %v804 = vor.u32 %v801, %v802
        %v805 = vsel %vm561, %v797, %v804
        %v806 = vrot.slane %v801, 4
        %v808 = vshrl.u32 %v460, 16
        %v810 = vrot.slane %v808, 7
        %v811 = vshll.u32 %v460, 16
        %v813 = vor.u32 %v810, %v811
        %v814 = vrot.slane %v810, 4
        %v816 = vshrl.u32 %v461, 16
        %v818 = vrot.slane %v816, 7
        %v819 = vshll.u32 %v461, 16
        %v821 = vor.u32 %v818, %v819
        %v822 = vsel %vm561, %v814, %v821
        %v823 = vrot.slane %v818, 4
        %v825 = vshrl.u32 %v462, 16
        %v827 = vrot.slane %v825, 7
        %v828 = vshll.u32 %v462, 16
        %v830 = vor.u32 %v827, %v828
        %v831 = vsel %vm561, %v823, %v830
        %v832 = vrot.slane %v827, 4
        %v834 = vshrl.u32 %v463, 16
        %v836 = vrot.slane %v834, 7
        %v837 = vshll.u32 %v463, 16
        %v839 = vor.u32 %v836, %v837
        %v840 = vsel %vm561, %v832, %v839
        %v841 = vrot.slane %v836, 4
        %v843 = vshrl.u32 %v464, 16
        %v845 = vrot.slane %v843, 7
        %v846 = vshll.u32 %v464, 16
        %v848 = vor.u32 %v845, %v846
        %v849 = vrot.slane %v845, 4
        %v851 = vshrl.u32 %v465, 16
        %v853 = vrot.slane %v851, 7
        %v854 = vshll.u32 %v465, 16
        %v856 = vor.u32 %v853, %v854
        %v857 = vsel %vm561, %v849, %v856
        %v858 = vrot.slane %v853, 4
        %v860 = vshrl.u32 %v466, 16
        %v862 = vrot.slane %v860, 7
        %v863 = vshll.u32 %v466, 16
        %v865 = vor.u32 %v862, %v863
        %v866 = vsel %vm561, %v858, %v865
        %v867 = vrot.slane %v862, 4
        %v869 = vshrl.u32 %v467, 16
        %v871 = vrot.slane %v869, 7
        %v872 = vshll.u32 %v467, 16
        %v874 = vor.u32 %v871, %v872
        %v875 = vsel %vm561, %v867, %v874
        %v876 = vrot.slane %v871, 4
        %v878 = vshrl.u32 %v468, 16
        %v880 = vrot.slane %v878, 7
        %v881 = vshll.u32 %v468, 16
        %v883 = vor.u32 %v880, %v881
        %v884 = vrot.slane %v880, 4
        %v886 = vshrl.u32 %v469, 16
        %v888 = vrot.slane %v886, 7
        %v889 = vshll.u32 %v469, 16
        %v891 = vor.u32 %v888, %v889
        %v892 = vsel %vm561, %v884, %v891
        %v893 = vrot.slane %v888, 4
        %v895 = vshrl.u32 %v470, 16
        %v897 = vrot.slane %v895, 7
        %v898 = vshll.u32 %v470, 16
        %v900 = vor.u32 %v897, %v898
        %v901 = vsel %vm561, %v893, %v900
        %v902 = vrot.slane %v897, 4
        %v904 = vshrl.u32 %v471, 16
        %v906 = vrot.slane %v904, 7
        %v907 = vshll.u32 %v471, 16
        %v909 = vor.u32 %v906, %v907
        %v910 = vsel %vm561, %v902, %v909
        %v911 = vrot.slane %v906, 4
        %v913 = vshrl.u32 %v472, 16
        %v915 = vrot.slane %v913, 7
        %v916 = vshll.u32 %v472, 16
        %v918 = vor.u32 %v915, %v916
        %v919 = vrot.slane %v915, 4
        %v921 = vshrl.u32 %v473, 16
        %v923 = vrot.slane %v921, 7
        %v924 = vshll.u32 %v473, 16
        %v926 = vor.u32 %v923, %v924
        %v927 = vsel %vm561, %v919, %v926
        %v928 = vrot.slane %v923, 4
        %v930 = vshrl.u32 %v474, 16
        %v932 = vrot.slane %v930, 7
        %v933 = vshll.u32 %v474, 16
        %v935 = vor.u32 %v932, %v933
        %v936 = vsel %vm561, %v928, %v935
        %v937 = vrot.slane %v932, 4
        %v939 = vshrl.u32 %v475, 16
        %v941 = vrot.slane %v939, 7
        %v942 = vshll.u32 %v475, 16
        %v944 = vor.u32 %v941, %v942
        %v945 = vsel %vm561, %v937, %v944
        %v946 = vrot.slane %v941, 4
        %v948 = vshrl.u32 %v476, 16
        %v950 = vrot.slane %v948, 7
        %v951 = vshll.u32 %v476, 16
        %v953 = vor.u32 %v950, %v951
        %v954 = vrot.slane %v950, 4
        %v956 = vshrl.u32 %v477, 16
        %v958 = vrot.slane %v956, 7
        %v959 = vshll.u32 %v477, 16
        %v961 = vor.u32 %v958, %v959
        %v962 = vsel %vm561, %v954, %v961
        %v963 = vrot.slane %v958, 4
        %v965 = vshrl.u32 %v478, 16
        %v967 = vrot.slane %v965, 7
        %v968 = vshll.u32 %v478, 16
        %v970 = vor.u32 %v967, %v968
        %v971 = vsel %vm561, %v963, %v970
        %v972 = vrot.slane %v967, 4
        %v974 = vshrl.u32 %v479, 16
        %v976 = vrot.slane %v974, 7
        %v977 = vshll.u32 %v479, 16
        %v979 = vor.u32 %v976, %v977
        %v980 = vsel %vm561, %v972, %v979
        %v981 = vrot.slane %v976, 4
        %v983 = vshrl.u32 %v480, 16
        %v985 = vrot.slane %v983, 7
        %v986 = vshll.u32 %v480, 16
        %v988 = vor.u32 %v985, %v986
        %v989 = vrot.slane %v985, 4
        %v991 = vshrl.u32 %v481, 16
        %v993 = vrot.slane %v991, 7
        %v994 = vshll.u32 %v481, 16
        %v996 = vor.u32 %v993, %v994
        %v997 = vsel %vm561, %v989, %v996
        %v998 = vrot.slane %v993, 4
        %v1000 = vshrl.u32 %v482, 16
        %v1002 = vrot.slane %v1000, 7
        %v1003 = vshll.u32 %v482, 16
        %v1005 = vor.u32 %v1002, %v1003
        %v1006 = vsel %vm561, %v998, %v1005
        %v1007 = vrot.slane %v1002, 4
        %v1009 = vshrl.u32 %v483, 16
        %v1011 = vrot.slane %v1009, 7
        %v1012 = vshll.u32 %v483, 16
        %v1014 = vor.u32 %v1011, %v1012
        %v1015 = vsel %vm561, %v1007, %v1014
        %v1016 = vrot.slane %v1011, 4
        %v1018 = vshrl.u32 %v484, 16
        %v1020 = vrot.slane %v1018, 7
        %v1021 = vshll.u32 %v484, 16
        %v1023 = vor.u32 %v1020, %v1021
        %v1024 = vrot.slane %v1020, 4
        %v1026 = vshrl.u32 %v485, 16
        %v1028 = vrot.slane %v1026, 7
        %v1029 = vshll.u32 %v485, 16
        %v1031 = vor.u32 %v1028, %v1029
        %v1032 = vsel %vm561, %v1024, %v1031
        %v1033 = vrot.slane %v1028, 4
        %v1035 = vshrl.u32 %v486, 16
        %v1037 = vrot.slane %v1035, 7
        %v1038 = vshll.u32 %v486, 16
        %v1040 = vor.u32 %v1037, %v1038
        %v1041 = vsel %vm561, %v1033, %v1040
        %v1042 = vrot.slane %v1037, 4
        %v1044 = vshrl.u32 %v487, 16
        %v1046 = vrot.slane %v1044, 7
        %v1047 = vshll.u32 %v487, 16
        %v1049 = vor.u32 %v1046, %v1047
        %v1050 = vsel %vm561, %v1042, %v1049
        %v1051 = vrot.slane %v1046, 4
        %v1053 = vshrl.u32 %v488, 16
        %v1055 = vrot.slane %v1053, 7
        %v1056 = vshll.u32 %v488, 16
        %v1058 = vor.u32 %v1055, %v1056
        %v1059 = vrot.slane %v1055, 4
        %v1061 = vshrl.u32 %v489, 16
        %v1063 = vrot.slane %v1061, 7
        %v1064 = vshll.u32 %v489, 16
        %v1066 = vor.u32 %v1063, %v1064
        %v1067 = vsel %vm561, %v1059, %v1066
        %v1068 = vrot.slane %v1063, 4
        %v1070 = vshrl.u32 %v490, 16
        %v1072 = vrot.slane %v1070, 7
        %v1073 = vshll.u32 %v490, 16
        %v1075 = vor.u32 %v1072, %v1073
        %v1076 = vsel %vm561, %v1068, %v1075
        %v1077 = vrot.slane %v1072, 4
        %v1079 = vshrl.u32 %v491, 16
        %v1081 = vrot.slane %v1079, 7
        %v1082 = vshll.u32 %v491, 16
        %v1084 = vor.u32 %v1081, %v1082
        %v1085 = vsel %vm561, %v1077, %v1084
        %v1086 = vrot.slane %v1081, 4
        %v1088 = vshrl.u32 %v492, 16
        %v1090 = vrot.slane %v1088, 7
        %v1091 = vshll.u32 %v492, 16
        %v1093 = vor.u32 %v1090, %v1091
        %v1094 = vrot.slane %v1090, 4
        %v1096 = vshrl.u32 %v493, 16
        %v1098 = vrot.slane %v1096, 7
        %v1099 = vshll.u32 %v493, 16
        %v1101 = vor.u32 %v1098, %v1099
        %v1102 = vsel %vm561, %v1094, %v1101
        %v1103 = vrot.slane %v1098, 4
        %v1105 = vshrl.u32 %v494, 16
        %v1107 = vrot.slane %v1105, 7
        %v1108 = vshll.u32 %v494, 16
        %v1110 = vor.u32 %v1107, %v1108
        %v1111 = vsel %vm561, %v1103, %v1110
        %v1112 = vrot.slane %v1107, 4
        %v1114 = vshrl.u32 %v495, 16
        %v1116 = vrot.slane %v1114, 7
        %v1117 = vshll.u32 %v495, 16
        %v1119 = vor.u32 %v1116, %v1117
        %v1120 = vsel %vm561, %v1112, %v1119
        %v1121 = vrot.slane %v1116, 4
        %v1123 = vshrl.u32 %v496, 16
        %v1125 = vrot.slane %v1123, 7
        %v1126 = vshll.u32 %v496, 16
        %v1128 = vor.u32 %v1125, %v1126
        %v1129 = vrot.slane %v1125, 4
        %v1131 = vshrl.u32 %v497, 16
        %v1133 = vrot.slane %v1131, 7
        %v1134 = vshll.u32 %v497, 16
        %v1136 = vor.u32 %v1133, %v1134
        %v1137 = vsel %vm561, %v1129, %v1136
        %v1138 = vrot.slane %v1133, 4
        %v1140 = vshrl.u32 %v498, 16
        %v1142 = vrot.slane %v1140, 7
        %v1143 = vshll.u32 %v498, 16
        %v1145 = vor.u32 %v1142, %v1143
        %v1146 = vsel %vm561, %v1138, %v1145
        %v1147 = vrot.slane %v1142, 4
        %v1149 = vshrl.u32 %v499, 16
        %v1151 = vrot.slane %v1149, 7
        %v1152 = vshll.u32 %v499, 16
        %v1154 = vor.u32 %v1151, %v1152
        %v1155 = vsel %vm561, %v1147, %v1154
        %v1156 = vrot.slane %v1151, 4
        %v1158 = vshrl.u32 %v500, 16
        %v1160 = vrot.slane %v1158, 7
        %v1161 = vshll.u32 %v500, 16
        %v1163 = vor.u32 %v1160, %v1161
        %v1164 = vrot.slane %v1160, 4
        %v1166 = vshrl.u32 %v501, 16
        %v1168 = vrot.slane %v1166, 7
        %v1169 = vshll.u32 %v501, 16
        %v1171 = vor.u32 %v1168, %v1169
        %v1172 = vsel %vm561, %v1164, %v1171
        %v1173 = vrot.slane %v1168, 4
        %v1175 = vshrl.u32 %v502, 16
        %v1177 = vrot.slane %v1175, 7
        %v1178 = vshll.u32 %v502, 16
        %v1180 = vor.u32 %v1177, %v1178
        %v1181 = vsel %vm561, %v1173, %v1180
        %v1182 = vrot.slane %v1177, 4
        %v1184 = vshrl.u32 %v503, 16
        %v1186 = vrot.slane %v1184, 7
        %v1187 = vshll.u32 %v503, 16
        %v1189 = vor.u32 %v1186, %v1187
        %v1190 = vsel %vm561, %v1182, %v1189
        %v1191 = vrot.slane %v1186, 4
        %v1193 = vshrl.u32 %v504, 16
        %v1195 = vrot.slane %v1193, 7
        %v1196 = vshll.u32 %v504, 16
        %v1198 = vor.u32 %v1195, %v1196
        %v1199 = vrot.slane %v1195, 4
        %v1201 = vshrl.u32 %v505, 16
        %v1203 = vrot.slane %v1201, 7
        %v1204 = vshll.u32 %v505, 16
        %v1206 = vor.u32 %v1203, %v1204
        %v1207 = vsel %vm561, %v1199, %v1206
        %v1208 = vrot.slane %v1203, 4
        %v1210 = vshrl.u32 %v506, 16
        %v1212 = vrot.slane %v1210, 7
        %v1213 = vshll.u32 %v506, 16
        %v1215 = vor.u32 %v1212, %v1213
        %v1216 = vsel %vm561, %v1208, %v1215
        %v1217 = vrot.slane %v1212, 4
        %v1219 = vshrl.u32 %v507, 16
        %v1221 = vrot.slane %v1219, 7
        %v1222 = vshll.u32 %v507, 16
        %v1224 = vor.u32 %v1221, %v1222
        %v1225 = vsel %vm561, %v1217, %v1224
        %v1226 = vrot.slane %v1221, 4
        %v1228 = vshrl.u32 %v508, 16
        %v1230 = vrot.slane %v1228, 7
        %v1231 = vshll.u32 %v508, 16
        %v1233 = vor.u32 %v1230, %v1231
        %v1234 = vrot.slane %v1230, 4
        %v1236 = vshrl.u32 %v509, 16
        %v1238 = vrot.slane %v1236, 7
        %v1239 = vshll.u32 %v509, 16
        %v1241 = vor.u32 %v1238, %v1239
        %v1242 = vsel %vm561, %v1234, %v1241
        %v1243 = vrot.slane %v1238, 4
        %v1245 = vshrl.u32 %v510, 16
        %v1247 = vrot.slane %v1245, 7
        %v1248 = vshll.u32 %v510, 16
        %v1250 = vor.u32 %v1247, %v1248
        %v1251 = vsel %vm561, %v1243, %v1250
        %v1252 = vrot.slane %v1247, 4
        %v1254 = vshrl.u32 %v511, 16
        %v1256 = vrot.slane %v1254, 7
        %v1257 = vshll.u32 %v511, 16
        %v1259 = vor.u32 %v1256, %v1257
        %v1260 = vsel %vm561, %v1252, %v1259
        %v1261 = vrot.slane %v1256, 4
        %v1263 = vshrl.u32 %v512, 16
        %v1265 = vrot.slane %v1263, 7
        %v1266 = vshll.u32 %v512, 16
        %v1268 = vor.u32 %v1265, %v1266
        %v1269 = vrot.slane %v1265, 4
        %v1271 = vshrl.u32 %v513, 16
        %v1273 = vrot.slane %v1271, 7
        %v1274 = vshll.u32 %v513, 16
        %v1276 = vor.u32 %v1273, %v1274
        %v1277 = vsel %vm561, %v1269, %v1276
        %v1278 = vrot.slane %v1273, 4
        %v1280 = vshrl.u32 %v514, 16
        %v1282 = vrot.slane %v1280, 7
        %v1283 = vshll.u32 %v514, 16
        %v1285 = vor.u32 %v1282, %v1283
        %v1286 = vsel %vm561, %v1278, %v1285
        %v1287 = vrot.slane %v1282, 4
        %v1289 = vshrl.u32 %v515, 16
        %v1291 = vrot.slane %v1289, 7
        %v1292 = vshll.u32 %v515, 16
        %v1294 = vor.u32 %v1291, %v1292
        %v1295 = vsel %vm561, %v1287, %v1294
        %v1296 = vrot.slane %v1291, 4
        %v1298 = vshrl.u32 %v516, 16
        %v1300 = vrot.slane %v1298, 7
        %v1301 = vshll.u32 %v516, 16
        %v1303 = vor.u32 %v1300, %v1301
        %v1304 = vrot.slane %v1300, 4
        %v1306 = vshrl.u32 %v517, 16
        %v1308 = vrot.slane %v1306, 7
        %v1309 = vshll.u32 %v517, 16
        %v1311 = vor.u32 %v1308, %v1309
        %v1312 = vsel %vm561, %v1304, %v1311
        %v1313 = vrot.slane %v1308, 4
        %v1315 = vshrl.u32 %v518, 16
        %v1317 = vrot.slane %v1315, 7
        %v1318 = vshll.u32 %v518, 16
        %v1320 = vor.u32 %v1317, %v1318
        %v1321 = vsel %vm561, %v1313, %v1320
        %v1322 = vrot.slane %v1317, 4
        %v1324 = vshrl.u32 %v519, 16
        %v1326 = vrot.slane %v1324, 7
        %v1327 = vshll.u32 %v519, 16
        %v1329 = vor.u32 %v1326, %v1327
        %v1330 = vsel %vm561, %v1322, %v1329
        %v1331 = vrot.slane %v1326, 4
        %v1333 = vshrl.u32 %v520, 16
        %v1335 = vrot.slane %v1333, 7
        %v1336 = vshll.u32 %v520, 16
        %v1338 = vor.u32 %v1335, %v1336
        %v1339 = vrot.slane %v1335, 4
        %v1341 = vshrl.u32 %v521, 16
        %v1343 = vrot.slane %v1341, 7
        %v1344 = vshll.u32 %v521, 16
        %v1346 = vor.u32 %v1343, %v1344
        %v1347 = vsel %vm561, %v1339, %v1346
        %v1348 = vrot.slane %v1343, 4
        %v1350 = vshrl.u32 %v522, 16
        %v1352 = vrot.slane %v1350, 7
        %v1353 = vshll.u32 %v522, 16
        %v1355 = vor.u32 %v1352, %v1353
        %v1356 = vsel %vm561, %v1348, %v1355
        %v1357 = vrot.slane %v1352, 4
        %v1359 = vshrl.u32 %v523, 16
        %v1361 = vrot.slane %v1359, 7
        %v1362 = vshll.u32 %v523, 16
        %v1364 = vor.u32 %v1361, %v1362
        %v1365 = vsel %vm561, %v1357, %v1364
        %v1366 = vrot.slane %v1361, 4
        %v1368 = vshrl.u32 %v524, 16
        %v1370 = vrot.slane %v1368, 7
        %v1371 = vshll.u32 %v524, 16
        %v1373 = vor.u32 %v1370, %v1371
        %v1374 = vrot.slane %v1370, 4
        %v1376 = vshrl.u32 %v525, 16
        %v1378 = vrot.slane %v1376, 7
        %v1379 = vshll.u32 %v525, 16
        %v1381 = vor.u32 %v1378, %v1379
        %v1382 = vsel %vm561, %v1374, %v1381
        %v1383 = vrot.slane %v1378, 4
        %v1385 = vshrl.u32 %v526, 16
        %v1387 = vrot.slane %v1385, 7
        %v1388 = vshll.u32 %v526, 16
        %v1390 = vor.u32 %v1387, %v1388
        %v1391 = vsel %vm561, %v1383, %v1390
        %v1392 = vrot.slane %v1387, 4
        %v1394 = vshrl.u32 %v527, 16
        %v1396 = vrot.slane %v1394, 7
        %v1397 = vshll.u32 %v527, 16
        %v1399 = vor.u32 %v1396, %v1397
        %v1400 = vsel %vm561, %v1392, %v1399
        %v1401 = vrot.slane %v1396, 4
        %v1403 = vshrl.u32 %v528, 16
        %v1405 = vrot.slane %v1403, 7
        %v1406 = vshll.u32 %v528, 16
        %v1408 = vor.u32 %v1405, %v1406
        %v1409 = vrot.slane %v1405, 4
        %v1411 = vshrl.u32 %v529, 16
        %v1413 = vrot.slane %v1411, 7
        %v1414 = vshll.u32 %v529, 16
        %v1416 = vor.u32 %v1413, %v1414
        %v1417 = vsel %vm561, %v1409, %v1416
        %v1418 = vrot.slane %v1413, 4
        %v1420 = vshrl.u32 %v530, 16
        %v1422 = vrot.slane %v1420, 7
        %v1423 = vshll.u32 %v530, 16
        %v1425 = vor.u32 %v1422, %v1423
        %v1426 = vsel %vm561, %v1418, %v1425
        %v1427 = vrot.slane %v1422, 4
        %v1429 = vshrl.u32 %v531, 16
        %v1431 = vrot.slane %v1429, 7
        %v1432 = vshll.u32 %v531, 16
        %v1434 = vor.u32 %v1431, %v1432
        %v1435 = vsel %vm561, %v1427, %v1434
        %v1436 = vrot.slane %v1431, 4
        %v1438 = vshrl.u32 %v532, 16
        %v1440 = vrot.slane %v1438, 7
        %v1441 = vshll.u32 %v532, 16
        %v1443 = vor.u32 %v1440, %v1441
        %v1444 = vrot.slane %v1440, 4
        %v1446 = vshrl.u32 %v533, 16
        %v1448 = vrot.slane %v1446, 7
        %v1449 = vshll.u32 %v533, 16
        %v1451 = vor.u32 %v1448, %v1449
        %v1452 = vsel %vm561, %v1444, %v1451
        %v1453 = vrot.slane %v1448, 4
        %v1455 = vshrl.u32 %v534, 16
        %v1457 = vrot.slane %v1455, 7
        %v1458 = vshll.u32 %v534, 16
        %v1460 = vor.u32 %v1457, %v1458
        %v1461 = vsel %vm561, %v1453, %v1460
        %v1462 = vrot.slane %v1457, 4
        %v1464 = vshrl.u32 %v535, 16
        %v1466 = vrot.slane %v1464, 7
        %v1467 = vshll.u32 %v535, 16
        %v1469 = vor.u32 %v1466, %v1467
        %v1470 = vsel %vm561, %v1462, %v1469
        %v1471 = vrot.slane %v1466, 4
        %v1473 = vshrl.u32 %v536, 16
        %v1475 = vrot.slane %v1473, 7
        %v1476 = vshll.u32 %v536, 16
        %v1478 = vor.u32 %v1475, %v1476
        %v1479 = vrot.slane %v1475, 4
        %v1481 = vshrl.u32 %v537, 16
        %v1483 = vrot.slane %v1481, 7
        %v1484 = vshll.u32 %v537, 16
        %v1486 = vor.u32 %v1483, %v1484
        %v1487 = vsel %vm561, %v1479, %v1486
        %v1488 = vrot.slane %v1483, 4
        %v1490 = vshrl.u32 %v538, 16
        %v1492 = vrot.slane %v1490, 7
        %v1493 = vshll.u32 %v538, 16
        %v1495 = vor.u32 %v1492, %v1493
        %v1496 = vsel %vm561, %v1488, %v1495
        %v1497 = vrot.slane %v1492, 4
        %v1499 = vshrl.u32 %v539, 16
        %v1501 = vrot.slane %v1499, 7
        %v1502 = vshll.u32 %v539, 16
        %v1504 = vor.u32 %v1501, %v1502
        %v1505 = vsel %vm561, %v1497, %v1504
        %v1506 = vrot.slane %v1501, 4
        %v1508 = vshrl.u32 %v540, 16
        %v1510 = vrot.slane %v1508, 7
        %v1511 = vshll.u32 %v540, 16
        %v1513 = vor.u32 %v1510, %v1511
        %v1514 = vrot.slane %v1510, 4
        %v1516 = vshrl.u32 %v541, 16
        %v1518 = vrot.slane %v1516, 7
        %v1519 = vshll.u32 %v541, 16
        %v1521 = vor.u32 %v1518, %v1519
        %v1522 = vsel %vm561, %v1514, %v1521
        %v1523 = vrot.slane %v1518, 4
        %v1525 = vshrl.u32 %v542, 16
        %v1527 = vrot.slane %v1525, 7
        %v1528 = vshll.u32 %v542, 16
        %v1530 = vor.u32 %v1527, %v1528
        %v1531 = vsel %vm561, %v1523, %v1530
        %v1532 = vrot.slane %v1527, 4
        %v1534 = vshrl.u32 %v543, 16
        %v1536 = vrot.slane %v1534, 7
        %v1537 = vshll.u32 %v543, 16
        %v1539 = vor.u32 %v1536, %v1537
        %v1540 = vsel %vm561, %v1532, %v1539
        %v1541 = vrot.slane %v1536, 4
        %v1543 = vshrl.u32 %v544, 16
        %v1545 = vrot.slane %v1543, 7
        %v1546 = vshll.u32 %v544, 16
        %v1548 = vor.u32 %v1545, %v1546
        %v1549 = vrot.slane %v1545, 4
        %v1551 = vshrl.u32 %v545, 16
        %v1553 = vrot.slane %v1551, 7
        %v1554 = vshll.u32 %v545, 16
        %v1556 = vor.u32 %v1553, %v1554
        %v1557 = vsel %vm561, %v1549, %v1556
        %v1558 = vrot.slane %v1553, 4
        %v1560 = vshrl.u32 %v546, 16
        %v1562 = vrot.slane %v1560, 7
        %v1563 = vshll.u32 %v546, 16
        %v1565 = vor.u32 %v1562, %v1563
        %v1566 = vsel %vm561, %v1558, %v1565
        %v1567 = vrot.slane %v1562, 4
        %v1569 = vshrl.u32 %v547, 16
        %v1571 = vrot.slane %v1569, 7
        %v1572 = vshll.u32 %v547, 16
        %v1574 = vor.u32 %v1571, %v1572
        %v1575 = vsel %vm561, %v1567, %v1574
        %v1576 = vrot.slane %v1571, 4
        %v1578 = vshrl.u32 %v548, 16
        %v1580 = vrot.slane %v1578, 7
        %v1581 = vshll.u32 %v548, 16
        %v1583 = vor.u32 %v1580, %v1581
        %v1584 = vrot.slane %v1580, 4
        %v1586 = vshrl.u32 %v549, 16
        %v1588 = vrot.slane %v1586, 7
        %v1589 = vshll.u32 %v549, 16
        %v1591 = vor.u32 %v1588, %v1589
        %v1592 = vsel %vm561, %v1584, %v1591
        %v1593 = vrot.slane %v1588, 4
        %v1595 = vshrl.u32 %v550, 16
        %v1597 = vrot.slane %v1595, 7
        %v1598 = vshll.u32 %v550, 16
        %v1600 = vor.u32 %v1597, %v1598
        %v1601 = vsel %vm561, %v1593, %v1600
        %v1602 = vrot.slane %v1597, 4
        %v1604 = vshrl.u32 %v551, 16
        %v1606 = vrot.slane %v1604, 7
        %v1607 = vshll.u32 %v551, 16
        %v1609 = vor.u32 %v1606, %v1607
        %v1610 = vsel %vm561, %v1602, %v1609
        %v1611 = vrot.slane %v1606, 4
        %v1613 = vshrl.u32 %v552, 16
        %v1615 = vrot.slane %v1613, 7
        %v1616 = vshll.u32 %v552, 16
        %v1618 = vor.u32 %v1615, %v1616
        %v1619 = vrot.slane %v1615, 4
        %v1621 = vshrl.u32 %v553, 16
        %v1623 = vrot.slane %v1621, 7
        %v1624 = vshll.u32 %v553, 16
        %v1626 = vor.u32 %v1623, %v1624
        %v1627 = vsel %vm561, %v1619, %v1626
        %v1628 = vrot.slane %v1623, 4
        %v1630 = vshrl.u32 %v554, 16
        %v1632 = vrot.slane %v1630, 7
        %v1633 = vshll.u32 %v554, 16
        %v1635 = vor.u32 %v1632, %v1633
        %v1636 = vsel %vm561, %v1628, %v1635
        %v1637 = vrot.slane %v1632, 4
        %v1639 = vshrl.u32 %v555, 16
        %v1641 = vrot.slane %v1639, 7
        %v1642 = vshll.u32 %v555, 16
        %v1644 = vor.u32 %v1641, %v1642
        %v1645 = vsel %vm561, %v1637, %v1644
        %v1646 = vrot.slane %v1641, 4
        %v1648 = vshrl.u32 %v556, 16
        %v1650 = vrot.slane %v1648, 7
        %v1651 = vshll.u32 %v556, 16
        %v1653 = vor.u32 %v1650, %v1651
        %v1654 = vrot.slane %v1650, 4
        %v1656 = vshrl.u32 %v557, 16
        %v1658 = vrot.slane %v1656, 7
        %v1659 = vshll.u32 %v557, 16
        %v1661 = vor.u32 %v1658, %v1659
        %v1662 = vsel %vm561, %v1654, %v1661
        %v1663 = vrot.slane %v1658, 4
        %v1665 = vshrl.u32 %v558, 16
        %v1667 = vrot.slane %v1665, 7
        %v1668 = vshll.u32 %v558, 16
        %v1670 = vor.u32 %v1667, %v1668
        %v1671 = vsel %vm561, %v1663, %v1670
        %v1672 = vrot.slane %v1667, 4
        %v1674 = vshrl.u32 %v559, 16
        %v1676 = vrot.slane %v1674, 7
        %v1677 = vshll.u32 %v559, 16
        %v1679 = vor.u32 %v1676, %v1677
        %v1680 = vsel %vm561, %v1672, %v1679
        %v1681 = vrot.slane %v1676, 4
        %s1842 = scalar_lea.vmem [#allocation2], 20
        %vm1843 = vcmask 19456
        %vm1844 = vmand %vm1843, %vm328
        %v1845 = vld [vmem:[%s1842] sm:$0xf]
        %v1846 = vsel %vm1844, %v568, %v1845
        %1847 = vst [vmem:[%s1842] sm:$0xf] %v1846
        %1848 = vst.msk [vmem:[%s1842 + $0x4] sm:$0xf] %vm210, %v577
        %1849 = vst.msk [vmem:[%s1842 + $0x8] sm:$0xf] %vm210, %v586
        %1850 = vst.msk [vmem:[%s1842 + $0xc] sm:$0xf] %vm210, %v595
        %v1851 = vld [vmem:[%s1842 + $0x10] sm:$0x1]
        %v1852 = vsel %vm225, %v596, %v1851
        %1853 = vst [vmem:[%s1842 + $0x10] sm:$0x1] %v1852
        %v1854 = vld [vmem:[%s1842 + $0x14] sm:$0xf]
        %v1855 = vsel %vm1844, %v603, %v1854
        %1856 = vst [vmem:[%s1842 + $0x14] sm:$0xf] %v1855
        %1857 = vst.msk [vmem:[%s1842 + $0x18] sm:$0xf] %vm210, %v612
        %1858 = vst.msk [vmem:[%s1842 + $0x1c] sm:$0xf] %vm210, %v621
        %1859 = vst.msk [vmem:[%s1842 + $0x20] sm:$0xf] %vm210, %v630
        %v1860 = vld [vmem:[%s1842 + $0x24] sm:$0x1]
        %v1861 = vsel %vm225, %v631, %v1860
        %1862 = vst [vmem:[%s1842 + $0x24] sm:$0x1] %v1861
        %v1863 = vld [vmem:[%s1842 + $0x28] sm:$0xf]
        %v1864 = vsel %vm1844, %v638, %v1863
        %1865 = vst [vmem:[%s1842 + $0x28] sm:$0xf] %v1864
        %1866 = vst.msk [vmem:[%s1842 + $0x2c] sm:$0xf] %vm210, %v647
        %1867 = vst.msk [vmem:[%s1842 + $0x30] sm:$0xf] %vm210, %v656
        %1868 = vst.msk [vmem:[%s1842 + $0x34] sm:$0xf] %vm210, %v665
        %v1869 = vld [vmem:[%s1842 + $0x38] sm:$0x1]
        %v1870 = vsel %vm225, %v666, %v1869
        %1871 = vst [vmem:[%s1842 + $0x38] sm:$0x1] %v1870
        %v1872 = vld [vmem:[%s1842 + $0x3c] sm:$0xf]
        %v1873 = vsel %vm1844, %v673, %v1872
        %1874 = vst [vmem:[%s1842 + $0x3c] sm:$0xf] %v1873
        %1875 = vst.msk [vmem:[%s1842 + $0x40] sm:$0xf] %vm210, %v682
        %1876 = vst.msk [vmem:[%s1842 + $0x44] sm:$0xf] %vm210, %v691
        %1877 = vst.msk [vmem:[%s1842 + $0x48] sm:$0xf] %vm210, %v700
        %v1878 = vld [vmem:[%s1842 + $0x4c] sm:$0x1]
        %v1879 = vsel %vm225, %v701, %v1878
        %1880 = vst [vmem:[%s1842 + $0x4c] sm:$0x1] %v1879
        %v1881 = vld [vmem:[%s1842 + $0x50] sm:$0xf]
        %v1882 = vsel %vm1844, %v708, %v1881
        %1883 = vst [vmem:[%s1842 + $0x50] sm:$0xf] %v1882
        %1884 = vst.msk [vmem:[%s1842 + $0x54] sm:$0xf] %vm210, %v717
        %1885 = vst.msk [vmem:[%s1842 + $0x58] sm:$0xf] %vm210, %v726
        %1886 = vst.msk [vmem:[%s1842 + $0x5c] sm:$0xf] %vm210, %v735
        %v1887 = vld [vmem:[%s1842 + $0x60] sm:$0x1]
        %v1888 = vsel %vm225, %v736, %v1887
        %1889 = vst [vmem:[%s1842 + $0x60] sm:$0x1] %v1888
        %v1890 = vld [vmem:[%s1842 + $0x64] sm:$0xf]
        %v1891 = vsel %vm1844, %v743, %v1890
        %1892 = vst [vmem:[%s1842 + $0x64] sm:$0xf] %v1891
        %1893 = vst.msk [vmem:[%s1842 + $0x68] sm:$0xf] %vm210, %v752
        %1894 = vst.msk [vmem:[%s1842 + $0x6c] sm:$0xf] %vm210, %v761
        %1895 = vst.msk [vmem:[%s1842 + $0x70] sm:$0xf] %vm210, %v770
        %v1896 = vld [vmem:[%s1842 + $0x74] sm:$0x1]
        %v1897 = vsel %vm225, %v771, %v1896
        %1898 = vst [vmem:[%s1842 + $0x74] sm:$0x1] %v1897
        %v1899 = vld [vmem:[%s1842 + $0x78] sm:$0xf]
        %v1900 = vsel %vm1844, %v778, %v1899
        %1901 = vst [vmem:[%s1842 + $0x78] sm:$0xf] %v1900
        %1902 = vst.msk [vmem:[%s1842 + $0x7c] sm:$0xf] %vm210, %v787
        %1903 = vst.msk [vmem:[%s1842 + $0x80] sm:$0xf] %vm210, %v796
        %1904 = vst.msk [vmem:[%s1842 + $0x84] sm:$0xf] %vm210, %v805
        %v1905 = vld [vmem:[%s1842 + $0x88] sm:$0x1]
        %v1906 = vsel %vm225, %v806, %v1905
        %1907 = vst [vmem:[%s1842 + $0x88] sm:$0x1] %v1906
        %v1908 = vld [vmem:[%s1842 + $0x8c] sm:$0xf]
        %v1909 = vsel %vm1844, %v813, %v1908
        %1910 = vst [vmem:[%s1842 + $0x8c] sm:$0xf] %v1909
        %1911 = vst.msk [vmem:[%s1842 + $0x90] sm:$0xf] %vm210, %v822
        %1912 = vst.msk [vmem:[%s1842 + $0x94] sm:$0xf] %vm210, %v831
        %1913 = vst.msk [vmem:[%s1842 + $0x98] sm:$0xf] %vm210, %v840
        %v1914 = vld [vmem:[%s1842 + $0x9c] sm:$0x1]
        %v1915 = vsel %vm225, %v841, %v1914
        %1916 = vst [vmem:[%s1842 + $0x9c] sm:$0x1] %v1915
        %v1917 = vld [vmem:[%s1842 + $0xa0] sm:$0xf]
        %v1918 = vsel %vm1844, %v848, %v1917
        %1919 = vst [vmem:[%s1842 + $0xa0] sm:$0xf] %v1918
        %1920 = vst.msk [vmem:[%s1842 + $0xa4] sm:$0xf] %vm210, %v857
        %1921 = vst.msk [vmem:[%s1842 + $0xa8] sm:$0xf] %vm210, %v866
        %1922 = vst.msk [vmem:[%s1842 + $0xac] sm:$0xf] %vm210, %v875
        %v1923 = vld [vmem:[%s1842 + $0xb0] sm:$0x1]
        %v1924 = vsel %vm225, %v876, %v1923
        %1925 = vst [vmem:[%s1842 + $0xb0] sm:$0x1] %v1924
        %v1926 = vld [vmem:[%s1842 + $0xb4] sm:$0xf]
        %v1927 = vsel %vm1844, %v883, %v1926
        %1928 = vst [vmem:[%s1842 + $0xb4] sm:$0xf] %v1927
        %1929 = vst.msk [vmem:[%s1842 + $0xb8] sm:$0xf] %vm210, %v892
        %1930 = vst.msk [vmem:[%s1842 + $0xbc] sm:$0xf] %vm210, %v901
        %1931 = vst.msk [vmem:[%s1842 + $0xc0] sm:$0xf] %vm210, %v910
        %v1932 = vld [vmem:[%s1842 + $0xc4] sm:$0x1]
        %v1933 = vsel %vm225, %v911, %v1932
        %1934 = vst [vmem:[%s1842 + $0xc4] sm:$0x1] %v1933
        %v1935 = vld [vmem:[%s1842 + $0xc8] sm:$0xf]
        %v1936 = vsel %vm1844, %v918, %v1935
        %1937 = vst [vmem:[%s1842 + $0xc8] sm:$0xf] %v1936
        %1938 = vst.msk [vmem:[%s1842 + $0xcc] sm:$0xf] %vm210, %v927
        %1939 = vst.msk [vmem:[%s1842 + $0xd0] sm:$0xf] %vm210, %v936
        %1940 = vst.msk [vmem:[%s1842 + $0xd4] sm:$0xf] %vm210, %v945
        %v1941 = vld [vmem:[%s1842 + $0xd8] sm:$0x1]
        %v1942 = vsel %vm225, %v946, %v1941
        %1943 = vst [vmem:[%s1842 + $0xd8] sm:$0x1] %v1942
        %v1944 = vld [vmem:[%s1842 + $0xdc] sm:$0xf]
        %v1945 = vsel %vm1844, %v953, %v1944
        %1946 = vst [vmem:[%s1842 + $0xdc] sm:$0xf] %v1945
        %1947 = vst.msk [vmem:[%s1842 + $0xe0] sm:$0xf] %vm210, %v962
        %1948 = vst.msk [vmem:[%s1842 + $0xe4] sm:$0xf] %vm210, %v971
        %1949 = vst.msk [vmem:[%s1842 + $0xe8] sm:$0xf] %vm210, %v980
        %v1950 = vld [vmem:[%s1842 + $0xec] sm:$0x1]
        %v1951 = vsel %vm225, %v981, %v1950
        %1952 = vst [vmem:[%s1842 + $0xec] sm:$0x1] %v1951
        %v1953 = vld [vmem:[%s1842 + $0xf0] sm:$0xf]
        %v1954 = vsel %vm1844, %v988, %v1953
        %1955 = vst [vmem:[%s1842 + $0xf0] sm:$0xf] %v1954
        %1956 = vst.msk [vmem:[%s1842 + $0xf4] sm:$0xf] %vm210, %v997
        %1957 = vst.msk [vmem:[%s1842 + $0xf8] sm:$0xf] %vm210, %v1006
        %1958 = vst.msk [vmem:[%s1842 + $0xfc] sm:$0xf] %vm210, %v1015
        %v1959 = vld [vmem:[%s1842 + $0x100] sm:$0x1]
        %v1960 = vsel %vm225, %v1016, %v1959
        %1961 = vst [vmem:[%s1842 + $0x100] sm:$0x1] %v1960
        %v1962 = vld [vmem:[%s1842 + $0x104] sm:$0xf]
        %v1963 = vsel %vm1844, %v1023, %v1962
        %1964 = vst [vmem:[%s1842 + $0x104] sm:$0xf] %v1963
        %1965 = vst.msk [vmem:[%s1842 + $0x108] sm:$0xf] %vm210, %v1032
        %1966 = vst.msk [vmem:[%s1842 + $0x10c] sm:$0xf] %vm210, %v1041
        %1967 = vst.msk [vmem:[%s1842 + $0x110] sm:$0xf] %vm210, %v1050
        %v1968 = vld [vmem:[%s1842 + $0x114] sm:$0x1]
        %v1969 = vsel %vm225, %v1051, %v1968
        %1970 = vst [vmem:[%s1842 + $0x114] sm:$0x1] %v1969
        %v1971 = vld [vmem:[%s1842 + $0x118] sm:$0xf]
        %v1972 = vsel %vm1844, %v1058, %v1971
        %1973 = vst [vmem:[%s1842 + $0x118] sm:$0xf] %v1972
        %1974 = vst.msk [vmem:[%s1842 + $0x11c] sm:$0xf] %vm210, %v1067
        %1975 = vst.msk [vmem:[%s1842 + $0x120] sm:$0xf] %vm210, %v1076
        %1976 = vst.msk [vmem:[%s1842 + $0x124] sm:$0xf] %vm210, %v1085
        %v1977 = vld [vmem:[%s1842 + $0x128] sm:$0x1]
        %v1978 = vsel %vm225, %v1086, %v1977
        %1979 = vst [vmem:[%s1842 + $0x128] sm:$0x1] %v1978
        %v1980 = vld [vmem:[%s1842 + $0x12c] sm:$0xf]
        %v1981 = vsel %vm1844, %v1093, %v1980
        %1982 = vst [vmem:[%s1842 + $0x12c] sm:$0xf] %v1981
        %1983 = vst.msk [vmem:[%s1842 + $0x130] sm:$0xf] %vm210, %v1102
        %1984 = vst.msk [vmem:[%s1842 + $0x134] sm:$0xf] %vm210, %v1111
        %1985 = vst.msk [vmem:[%s1842 + $0x138] sm:$0xf] %vm210, %v1120
        %v1986 = vld [vmem:[%s1842 + $0x13c] sm:$0x1]
        %v1987 = vsel %vm225, %v1121, %v1986
        %1988 = vst [vmem:[%s1842 + $0x13c] sm:$0x1] %v1987
        %v1989 = vld [vmem:[%s1842 + $0x140] sm:$0xf]
        %v1990 = vsel %vm1844, %v1128, %v1989
        %1991 = vst [vmem:[%s1842 + $0x140] sm:$0xf] %v1990
        %1992 = vst.msk [vmem:[%s1842 + $0x144] sm:$0xf] %vm210, %v1137
        %1993 = vst.msk [vmem:[%s1842 + $0x148] sm:$0xf] %vm210, %v1146
        %1994 = vst.msk [vmem:[%s1842 + $0x14c] sm:$0xf] %vm210, %v1155
        %v1995 = vld [vmem:[%s1842 + $0x150] sm:$0x1]
        %v1996 = vsel %vm225, %v1156, %v1995
        %1997 = vst [vmem:[%s1842 + $0x150] sm:$0x1] %v1996
        %v1998 = vld [vmem:[%s1842 + $0x154] sm:$0xf]
        %v1999 = vsel %vm1844, %v1163, %v1998
        %2000 = vst [vmem:[%s1842 + $0x154] sm:$0xf] %v1999
        %2001 = vst.msk [vmem:[%s1842 + $0x158] sm:$0xf] %vm210, %v1172
        %2002 = vst.msk [vmem:[%s1842 + $0x15c] sm:$0xf] %vm210, %v1181
        %2003 = vst.msk [vmem:[%s1842 + $0x160] sm:$0xf] %vm210, %v1190
        %v2004 = vld [vmem:[%s1842 + $0x164] sm:$0x1]
        %v2005 = vsel %vm225, %v1191, %v2004
        %2006 = vst [vmem:[%s1842 + $0x164] sm:$0x1] %v2005
        %v2007 = vld [vmem:[%s1842 + $0x168] sm:$0xf]
        %v2008 = vsel %vm1844, %v1198, %v2007
        %2009 = vst [vmem:[%s1842 + $0x168] sm:$0xf] %v2008
        %2010 = vst.msk [vmem:[%s1842 + $0x16c] sm:$0xf] %vm210, %v1207
        %2011 = vst.msk [vmem:[%s1842 + $0x170] sm:$0xf] %vm210, %v1216
        %2012 = vst.msk [vmem:[%s1842 + $0x174] sm:$0xf] %vm210, %v1225
        %v2013 = vld [vmem:[%s1842 + $0x178] sm:$0x1]
        %v2014 = vsel %vm225, %v1226, %v2013
        %2015 = vst [vmem:[%s1842 + $0x178] sm:$0x1] %v2014
        %v2016 = vld [vmem:[%s1842 + $0x17c] sm:$0xf]
        %v2017 = vsel %vm1844, %v1233, %v2016
        %2018 = vst [vmem:[%s1842 + $0x17c] sm:$0xf] %v2017
        %2019 = vst.msk [vmem:[%s1842 + $0x180] sm:$0xf] %vm210, %v1242
        %2020 = vst.msk [vmem:[%s1842 + $0x184] sm:$0xf] %vm210, %v1251
        %2021 = vst.msk [vmem:[%s1842 + $0x188] sm:$0xf] %vm210, %v1260
        %v2022 = vld [vmem:[%s1842 + $0x18c] sm:$0x1]
        %v2023 = vsel %vm225, %v1261, %v2022
        %2024 = vst [vmem:[%s1842 + $0x18c] sm:$0x1] %v2023
        %v2025 = vld [vmem:[%s1842 + $0x190] sm:$0xf]
        %v2026 = vsel %vm1844, %v1268, %v2025
        %2027 = vst [vmem:[%s1842 + $0x190] sm:$0xf] %v2026
        %2028 = vst.msk [vmem:[%s1842 + $0x194] sm:$0xf] %vm210, %v1277
        %2029 = vst.msk [vmem:[%s1842 + $0x198] sm:$0xf] %vm210, %v1286
        %2030 = vst.msk [vmem:[%s1842 + $0x19c] sm:$0xf] %vm210, %v1295
        %v2031 = vld [vmem:[%s1842 + $0x1a0] sm:$0x1]
        %v2032 = vsel %vm225, %v1296, %v2031
        %2033 = vst [vmem:[%s1842 + $0x1a0] sm:$0x1] %v2032
        %v2034 = vld [vmem:[%s1842 + $0x1a4] sm:$0xf]
        %v2035 = vsel %vm1844, %v1303, %v2034
        %2036 = vst [vmem:[%s1842 + $0x1a4] sm:$0xf] %v2035
        %2037 = vst.msk [vmem:[%s1842 + $0x1a8] sm:$0xf] %vm210, %v1312
        %2038 = vst.msk [vmem:[%s1842 + $0x1ac] sm:$0xf] %vm210, %v1321
        %2039 = vst.msk [vmem:[%s1842 + $0x1b0] sm:$0xf] %vm210, %v1330
        %v2040 = vld [vmem:[%s1842 + $0x1b4] sm:$0x1]
        %v2041 = vsel %vm225, %v1331, %v2040
        %2042 = vst [vmem:[%s1842 + $0x1b4] sm:$0x1] %v2041
        %v2043 = vld [vmem:[%s1842 + $0x1b8] sm:$0xf]
        %v2044 = vsel %vm1844, %v1338, %v2043
        %2045 = vst [vmem:[%s1842 + $0x1b8] sm:$0xf] %v2044
        %2046 = vst.msk [vmem:[%s1842 + $0x1bc] sm:$0xf] %vm210, %v1347
        %2047 = vst.msk [vmem:[%s1842 + $0x1c0] sm:$0xf] %vm210, %v1356
        %2048 = vst.msk [vmem:[%s1842 + $0x1c4] sm:$0xf] %vm210, %v1365
        %v2049 = vld [vmem:[%s1842 + $0x1c8] sm:$0x1]
        %v2050 = vsel %vm225, %v1366, %v2049
        %2051 = vst [vmem:[%s1842 + $0x1c8] sm:$0x1] %v2050
        %v2052 = vld [vmem:[%s1842 + $0x1cc] sm:$0xf]
        %v2053 = vsel %vm1844, %v1373, %v2052
        %2054 = vst [vmem:[%s1842 + $0x1cc] sm:$0xf] %v2053
        %2055 = vst.msk [vmem:[%s1842 + $0x1d0] sm:$0xf] %vm210, %v1382
        %2056 = vst.msk [vmem:[%s1842 + $0x1d4] sm:$0xf] %vm210, %v1391
        %2057 = vst.msk [vmem:[%s1842 + $0x1d8] sm:$0xf] %vm210, %v1400
        %v2058 = vld [vmem:[%s1842 + $0x1dc] sm:$0x1]
        %v2059 = vsel %vm225, %v1401, %v2058
        %2060 = vst [vmem:[%s1842 + $0x1dc] sm:$0x1] %v2059
        %v2061 = vld [vmem:[%s1842 + $0x1e0] sm:$0xf]
        %v2062 = vsel %vm1844, %v1408, %v2061
        %2063 = vst [vmem:[%s1842 + $0x1e0] sm:$0xf] %v2062
        %2064 = vst.msk [vmem:[%s1842 + $0x1e4] sm:$0xf] %vm210, %v1417
        %2065 = vst.msk [vmem:[%s1842 + $0x1e8] sm:$0xf] %vm210, %v1426
        %2066 = vst.msk [vmem:[%s1842 + $0x1ec] sm:$0xf] %vm210, %v1435
        %v2067 = vld [vmem:[%s1842 + $0x1f0] sm:$0x1]
        %v2068 = vsel %vm225, %v1436, %v2067
        %2069 = vst [vmem:[%s1842 + $0x1f0] sm:$0x1] %v2068
        %v2070 = vld [vmem:[%s1842 + $0x1f4] sm:$0xf]
        %v2071 = vsel %vm1844, %v1443, %v2070
        %2072 = vst [vmem:[%s1842 + $0x1f4] sm:$0xf] %v2071
        %2073 = vst.msk [vmem:[%s1842 + $0x1f8] sm:$0xf] %vm210, %v1452
        %2074 = vst.msk [vmem:[%s1842 + $0x1fc] sm:$0xf] %vm210, %v1461
        %2075 = vst.msk [vmem:[%s1842 + $0x200] sm:$0xf] %vm210, %v1470
        %v2076 = vld [vmem:[%s1842 + $0x204] sm:$0x1]
        %v2077 = vsel %vm225, %v1471, %v2076
        %2078 = vst [vmem:[%s1842 + $0x204] sm:$0x1] %v2077
        %v2079 = vld [vmem:[%s1842 + $0x208] sm:$0xf]
        %v2080 = vsel %vm1844, %v1478, %v2079
        %2081 = vst [vmem:[%s1842 + $0x208] sm:$0xf] %v2080
        %2082 = vst.msk [vmem:[%s1842 + $0x20c] sm:$0xf] %vm210, %v1487
        %2083 = vst.msk [vmem:[%s1842 + $0x210] sm:$0xf] %vm210, %v1496
        %2084 = vst.msk [vmem:[%s1842 + $0x214] sm:$0xf] %vm210, %v1505
        %v2085 = vld [vmem:[%s1842 + $0x218] sm:$0x1]
        %v2086 = vsel %vm225, %v1506, %v2085
        %2087 = vst [vmem:[%s1842 + $0x218] sm:$0x1] %v2086
        %v2088 = vld [vmem:[%s1842 + $0x21c] sm:$0xf]
        %v2089 = vsel %vm1844, %v1513, %v2088
        %2090 = vst [vmem:[%s1842 + $0x21c] sm:$0xf] %v2089
        %2091 = vst.msk [vmem:[%s1842 + $0x220] sm:$0xf] %vm210, %v1522
        %2092 = vst.msk [vmem:[%s1842 + $0x224] sm:$0xf] %vm210, %v1531
        %2093 = vst.msk [vmem:[%s1842 + $0x228] sm:$0xf] %vm210, %v1540
        %v2094 = vld [vmem:[%s1842 + $0x22c] sm:$0x1]
        %v2095 = vsel %vm225, %v1541, %v2094
        %2096 = vst [vmem:[%s1842 + $0x22c] sm:$0x1] %v2095
        %v2097 = vld [vmem:[%s1842 + $0x230] sm:$0xf]
        %v2098 = vsel %vm1844, %v1548, %v2097
        %2099 = vst [vmem:[%s1842 + $0x230] sm:$0xf] %v2098
        %2100 = vst.msk [vmem:[%s1842 + $0x234] sm:$0xf] %vm210, %v1557
        %2101 = vst.msk [vmem:[%s1842 + $0x238] sm:$0xf] %vm210, %v1566
        %2102 = vst.msk [vmem:[%s1842 + $0x23c] sm:$0xf] %vm210, %v1575
        %v2103 = vld [vmem:[%s1842 + $0x240] sm:$0x1]
        %v2104 = vsel %vm225, %v1576, %v2103
        %2105 = vst [vmem:[%s1842 + $0x240] sm:$0x1] %v2104
        %v2106 = vld [vmem:[%s1842 + $0x244] sm:$0xf]
        %v2107 = vsel %vm1844, %v1583, %v2106
        %2108 = vst [vmem:[%s1842 + $0x244] sm:$0xf] %v2107
        %2109 = vst.msk [vmem:[%s1842 + $0x248] sm:$0xf] %vm210, %v1592
        %2110 = vst.msk [vmem:[%s1842 + $0x24c] sm:$0xf] %vm210, %v1601
        %2111 = vst.msk [vmem:[%s1842 + $0x250] sm:$0xf] %vm210, %v1610
        %v2112 = vld [vmem:[%s1842 + $0x254] sm:$0x1]
        %v2113 = vsel %vm225, %v1611, %v2112
        %2114 = vst [vmem:[%s1842 + $0x254] sm:$0x1] %v2113
        %v2115 = vld [vmem:[%s1842 + $0x258] sm:$0xf]
        %v2116 = vsel %vm1844, %v1618, %v2115
        %2117 = vst [vmem:[%s1842 + $0x258] sm:$0xf] %v2116
        %2118 = vst.msk [vmem:[%s1842 + $0x25c] sm:$0xf] %vm210, %v1627
        %2119 = vst.msk [vmem:[%s1842 + $0x260] sm:$0xf] %vm210, %v1636
        %2120 = vst.msk [vmem:[%s1842 + $0x264] sm:$0xf] %vm210, %v1645
        %v2121 = vld [vmem:[%s1842 + $0x268] sm:$0x1]
        %v2122 = vsel %vm225, %v1646, %v2121
        %2123 = vst [vmem:[%s1842 + $0x268] sm:$0x1] %v2122
        %v2124 = vld [vmem:[%s1842 + $0x26c] sm:$0xf]
        %v2125 = vsel %vm1844, %v1653, %v2124
        %2126 = vst [vmem:[%s1842 + $0x26c] sm:$0xf] %v2125
        %2127 = vst.msk [vmem:[%s1842 + $0x270] sm:$0xf] %vm210, %v1662
        %2128 = vst.msk [vmem:[%s1842 + $0x274] sm:$0xf] %vm210, %v1671
        %2129 = vst.msk [vmem:[%s1842 + $0x278] sm:$0xf] %vm210, %v1680
        %v2130 = vld [vmem:[%s1842 + $0x27c] sm:$0x1]
        %v2131 = vsel %vm225, %v1681, %v2130
        %2132 = vst [vmem:[%s1842 + $0x27c] sm:$0x1] %v2131
        %v2133 = vld [vmem:[%s2] sm:$0x1]
        %v2134 = vld [vmem:[#allocation2] sm:$0xf]
        %v2135 = vld [vmem:[#allocation2 + $0x4] sm:$0xf]
        %v2136 = vld [vmem:[#allocation2 + $0x8] sm:$0xf]
        %v2137 = vld [vmem:[#allocation2 + $0xc] sm:$0xf]
        %v2138 = vld [vmem:[#allocation2 + $0x10] sm:$0x1]
        %v2139 = vld [vmem:[#allocation2 + $0x14] sm:$0xf]
        %v2140 = vld [vmem:[#allocation2 + $0x18] sm:$0xf]
        %v2141 = vld [vmem:[#allocation2 + $0x1c] sm:$0xf]
        %v2142 = vld [vmem:[#allocation2 + $0x20] sm:$0xf]
        %v2143 = vld [vmem:[#allocation2 + $0x24] sm:$0x1]
        %v2144 = vld [vmem:[#allocation2 + $0x28] sm:$0xf]
        %v2145 = vld [vmem:[#allocation2 + $0x2c] sm:$0xf]
        %v2146 = vld [vmem:[#allocation2 + $0x30] sm:$0xf]
        %v2147 = vld [vmem:[#allocation2 + $0x34] sm:$0xf]
        %v2148 = vld [vmem:[#allocation2 + $0x38] sm:$0x1]
        %v2149 = vld [vmem:[#allocation2 + $0x3c] sm:$0xf]
        %v2150 = vld [vmem:[#allocation2 + $0x40] sm:$0xf]
        %v2151 = vld [vmem:[#allocation2 + $0x44] sm:$0xf]
        %v2152 = vld [vmem:[#allocation2 + $0x48] sm:$0xf]
        %v2153 = vld [vmem:[#allocation2 + $0x4c] sm:$0x1]
        %v2154 = vld [vmem:[#allocation2 + $0x50] sm:$0xf]
        %v2155 = vld [vmem:[#allocation2 + $0x54] sm:$0xf]
        %v2156 = vld [vmem:[#allocation2 + $0x58] sm:$0xf]
        %v2157 = vld [vmem:[#allocation2 + $0x5c] sm:$0xf]
        %v2158 = vld [vmem:[#allocation2 + $0x60] sm:$0x1]
        %v2159 = vld [vmem:[#allocation2 + $0x64] sm:$0xf]
        %v2160 = vld [vmem:[#allocation2 + $0x68] sm:$0xf]
        %v2161 = vld [vmem:[#allocation2 + $0x6c] sm:$0xf]
        %v2162 = vld [vmem:[#allocation2 + $0x70] sm:$0xf]
        %v2163 = vld [vmem:[#allocation2 + $0x74] sm:$0x1]
        %v2164 = vld [vmem:[#allocation2 + $0x78] sm:$0xf]
        %v2165 = vld [vmem:[#allocation2 + $0x7c] sm:$0xf]
        %v2166 = vld [vmem:[#allocation2 + $0x80] sm:$0xf]
        %v2167 = vld [vmem:[#allocation2 + $0x84] sm:$0xf]
        %v2168 = vld [vmem:[#allocation2 + $0x88] sm:$0x1]
        %v2169 = vld [vmem:[#allocation2 + $0x8c] sm:$0xf]
        %v2170 = vld [vmem:[#allocation2 + $0x90] sm:$0xf]
        %v2171 = vld [vmem:[#allocation2 + $0x94] sm:$0xf]
        %v2172 = vld [vmem:[#allocation2 + $0x98] sm:$0xf]
        %v2173 = vld [vmem:[#allocation2 + $0x9c] sm:$0x1]
        %v2174 = vld [vmem:[%s1842] sm:$0xf]
        %v2175 = vld [vmem:[%s1842 + $0x4] sm:$0xf]
        %v2176 = vld [vmem:[%s1842 + $0x8] sm:$0xf]
        %v2177 = vld [vmem:[%s1842 + $0xc] sm:$0xf]
        %v2178 = vld [vmem:[%s1842 + $0x10] sm:$0x1]
        %v2179 = vld [vmem:[%s1842 + $0x14] sm:$0xf]
        %v2180 = vld [vmem:[%s1842 + $0x18] sm:$0xf]
        %v2181 = vld [vmem:[%s1842 + $0x1c] sm:$0xf]
        %v2182 = vld [vmem:[%s1842 + $0x20] sm:$0xf]
        %v2183 = vld [vmem:[%s1842 + $0x24] sm:$0x1]
        %v2184 = vld [vmem:[%s1842 + $0x28] sm:$0xf]
        %v2185 = vld [vmem:[%s1842 + $0x2c] sm:$0xf]
        %v2186 = vld [vmem:[%s1842 + $0x30] sm:$0xf]
        %v2187 = vld [vmem:[%s1842 + $0x34] sm:$0xf]
        %v2188 = vld [vmem:[%s1842 + $0x38] sm:$0x1]
        %v2189 = vld [vmem:[%s1842 + $0x3c] sm:$0xf]
        %v2190 = vld [vmem:[%s1842 + $0x40] sm:$0xf]
        %v2191 = vld [vmem:[%s1842 + $0x44] sm:$0xf]
        %v2192 = vld [vmem:[%s1842 + $0x48] sm:$0xf]
        %v2193 = vld [vmem:[%s1842 + $0x4c] sm:$0x1]
        %v2194 = vld [vmem:[%s1842 + $0x50] sm:$0xf]
        %v2195 = vld [vmem:[%s1842 + $0x54] sm:$0xf]
        %v2196 = vld [vmem:[%s1842 + $0x58] sm:$0xf]
        %v2197 = vld [vmem:[%s1842 + $0x5c] sm:$0xf]
        %v2198 = vld [vmem:[%s1842 + $0x60] sm:$0x1]
        %v2199 = vld [vmem:[%s1842 + $0x64] sm:$0xf]
        %v2200 = vld [vmem:[%s1842 + $0x68] sm:$0xf]
        %v2201 = vld [vmem:[%s1842 + $0x6c] sm:$0xf]
        %v2202 = vld [vmem:[%s1842 + $0x70] sm:$0xf]
        %v2203 = vld [vmem:[%s1842 + $0x74] sm:$0x1]
        %v2204 = vld [vmem:[%s1842 + $0x78] sm:$0xf]
        %v2205 = vld [vmem:[%s1842 + $0x7c] sm:$0xf]
        %v2206 = vld [vmem:[%s1842 + $0x80] sm:$0xf]
        %v2207 = vld [vmem:[%s1842 + $0x84] sm:$0xf]
        %v2208 = vld [vmem:[%s1842 + $0x88] sm:$0x1]
        %v2209 = vld [vmem:[%s1842 + $0x8c] sm:$0xf]
        %v2210 = vld [vmem:[%s1842 + $0x90] sm:$0xf]
        %v2211 = vld [vmem:[%s1842 + $0x94] sm:$0xf]
        %v2212 = vld [vmem:[%s1842 + $0x98] sm:$0xf]
        %v2213 = vld [vmem:[%s1842 + $0x9c] sm:$0x1]
        %s2214 = scalar_lea.vmem [#allocation2], 40
        %v2215 = vld [vmem:[%s2214] sm:$0xf]
        %v2216 = vld [vmem:[%s2214 + $0x4] sm:$0xf]
        %v2217 = vld [vmem:[%s2214 + $0x8] sm:$0xf]
        %v2218 = vld [vmem:[%s2214 + $0xc] sm:$0xf]
        %v2219 = vld [vmem:[%s2214 + $0x10] sm:$0x1]
        %v2220 = vld [vmem:[%s2214 + $0x14] sm:$0xf]
        %v2221 = vld [vmem:[%s2214 + $0x18] sm:$0xf]
        %v2222 = vld [vmem:[%s2214 + $0x1c] sm:$0xf]
        %v2223 = vld [vmem:[%s2214 + $0x20] sm:$0xf]
        %v2224 = vld [vmem:[%s2214 + $0x24] sm:$0x1]
        %v2225 = vld [vmem:[%s2214 + $0x28] sm:$0xf]
        %v2226 = vld [vmem:[%s2214 + $0x2c] sm:$0xf]
        %v2227 = vld [vmem:[%s2214 + $0x30] sm:$0xf]
        %v2228 = vld [vmem:[%s2214 + $0x34] sm:$0xf]
        %v2229 = vld [vmem:[%s2214 + $0x38] sm:$0x1]
        %v2230 = vld [vmem:[%s2214 + $0x3c] sm:$0xf]
        %v2231 = vld [vmem:[%s2214 + $0x40] sm:$0xf]
        %v2232 = vld [vmem:[%s2214 + $0x44] sm:$0xf]
        %v2233 = vld [vmem:[%s2214 + $0x48] sm:$0xf]
        %v2234 = vld [vmem:[%s2214 + $0x4c] sm:$0x1]
        %v2235 = vld [vmem:[%s2214 + $0x50] sm:$0xf]
        %v2236 = vld [vmem:[%s2214 + $0x54] sm:$0xf]
        %v2237 = vld [vmem:[%s2214 + $0x58] sm:$0xf]
        %v2238 = vld [vmem:[%s2214 + $0x5c] sm:$0xf]
        %v2239 = vld [vmem:[%s2214 + $0x60] sm:$0x1]
        %v2240 = vld [vmem:[%s2214 + $0x64] sm:$0xf]
        %v2241 = vld [vmem:[%s2214 + $0x68] sm:$0xf]
        %v2242 = vld [vmem:[%s2214 + $0x6c] sm:$0xf]
        %v2243 = vld [vmem:[%s2214 + $0x70] sm:$0xf]
        %v2244 = vld [vmem:[%s2214 + $0x74] sm:$0x1]
        %v2245 = vld [vmem:[%s2214 + $0x78] sm:$0xf]
        %v2246 = vld [vmem:[%s2214 + $0x7c] sm:$0xf]
        %v2247 = vld [vmem:[%s2214 + $0x80] sm:$0xf]
        %v2248 = vld [vmem:[%s2214 + $0x84] sm:$0xf]
        %v2249 = vld [vmem:[%s2214 + $0x88] sm:$0x1]
        %v2250 = vld [vmem:[%s2214 + $0x8c] sm:$0xf]
        %v2251 = vld [vmem:[%s2214 + $0x90] sm:$0xf]
        %v2252 = vld [vmem:[%s2214 + $0x94] sm:$0xf]
        %v2253 = vld [vmem:[%s2214 + $0x98] sm:$0xf]
        %v2254 = vld [vmem:[%s2214 + $0x9c] sm:$0x1]
        %v2287 = vunpack.c.l.b16 %v2134
        %v2288 = vunpack.c.l.b16 %v2135
        %v2289 = vunpack.c.l.b16 %v2136
        %v2290 = vunpack.c.l.b16 %v2137
        %v2291 = vunpack.c.l.b16 %v2139
        %v2292 = vunpack.c.l.b16 %v2140
        %v2293 = vunpack.c.l.b16 %v2141
        %v2294 = vunpack.c.l.b16 %v2142
        %v2295 = vunpack.c.l.b16 %v2144
        %v2296 = vunpack.c.l.b16 %v2145
        %v2297 = vunpack.c.l.b16 %v2146
        %v2298 = vunpack.c.l.b16 %v2147
        %v2299 = vunpack.c.l.b16 %v2149
        %v2300 = vunpack.c.l.b16 %v2150
        %v2301 = vunpack.c.l.b16 %v2151
        %v2302 = vunpack.c.l.b16 %v2152
        %v2303 = vunpack.c.l.b16 %v2154
        %v2304 = vunpack.c.l.b16 %v2155
        %v2305 = vunpack.c.l.b16 %v2156
        %v2306 = vunpack.c.l.b16 %v2157
        %v2307 = vunpack.c.l.b16 %v2159
        %v2308 = vunpack.c.l.b16 %v2160
        %v2309 = vunpack.c.l.b16 %v2161
        %v2310 = vunpack.c.l.b16 %v2162
        %v2311 = vunpack.c.l.b16 %v2164
        %v2312 = vunpack.c.l.b16 %v2165
        %v2313 = vunpack.c.l.b16 %v2166
        %v2314 = vunpack.c.l.b16 %v2167
        %v2315 = vunpack.c.l.b16 %v2169
        %v2316 = vunpack.c.l.b16 %v2170
        %v2317 = vunpack.c.l.b16 %v2171
        %v2318 = vunpack.c.l.b16 %v2172
        %v2319 = vpack.c.b16 %v2288, %v2287
        %v2320 = vpack.c.b16 %v2290, %v2289
        %v2321 = vpack.c.b16 %v2292, %v2291
        %v2322 = vpack.c.b16 %v2294, %v2293
        %v2323 = vpack.c.b16 %v2296, %v2295
        %v2324 = vpack.c.b16 %v2298, %v2297
        %v2325 = vpack.c.b16 %v2300, %v2299
        %v2326 = vpack.c.b16 %v2302, %v2301
        %v2327 = vpack.c.b16 %v2304, %v2303
        %v2328 = vpack.c.b16 %v2306, %v2305
        %v2329 = vpack.c.b16 %v2308, %v2307
        %v2330 = vpack.c.b16 %v2310, %v2309
        %v2331 = vpack.c.b16 %v2312, %v2311
        %v2332 = vpack.c.b16 %v2314, %v2313
        %v2333 = vpack.c.b16 %v2316, %v2315
        %v2334 = vpack.c.b16 %v2318, %v2317
        %v2343 = vunpack.c.l.b16 %v2138
        %v2344 = vunpack.c.l.b16 %v2143
        %v2345 = vunpack.c.l.b16 %v2148
        %v2346 = vunpack.c.l.b16 %v2153
        %v2347 = vunpack.c.l.b16 %v2158
        %v2348 = vunpack.c.l.b16 %v2163
        %v2349 = vunpack.c.l.b16 %v2168
        %v2350 = vunpack.c.l.b16 %v2173
        %v2351 = vpack.c.b16 %v2343, %v2343
        %v2352 = vpack.c.b16 %v2344, %v2344
        %v2353 = vpack.c.b16 %v2345, %v2345
        %v2354 = vpack.c.b16 %v2346, %v2346
        %v2355 = vpack.c.b16 %v2347, %v2347
        %v2356 = vpack.c.b16 %v2348, %v2348
        %v2357 = vpack.c.b16 %v2349, %v2349
        %v2358 = vpack.c.b16 %v2350, %v2350
        %vm2359 = vsmask.f32 7424
        %v2361 = vshrl.u32 %v2319, 16
        %v2363 = vshll.u32 %v2319, 16
        %v2365 = vrot.slane %v2363, 1
        %v2366 = vor.u32 %v2361, %v2365
        %v2368 = vshll.u32 %v2320, 16
        %v2370 = vrot.slane %v2368, 1
        %v2371 = vsel %vm2359, %v2366, %v2370
        %v2372 = vshrl.u32 %v2320, 16
        %v2374 = vor.u32 %v2372, %v2370
        %v2376 = vshll.u32 %v2351, 16
        %v2378 = vrot.slane %v2376, 1
        %v2379 = vsel %vm2359, %v2374, %v2378
        %v2381 = vshrl.u32 %v2321, 16
        %v2383 = vshll.u32 %v2321, 16
        %v2385 = vrot.slane %v2383, 1
        %v2386 = vor.u32 %v2381, %v2385
        %v2388 = vshll.u32 %v2322, 16
        %v2390 = vrot.slane %v2388, 1
        %v2391 = vsel %vm2359, %v2386, %v2390
        %v2392 = vshrl.u32 %v2322, 16
        %v2394 = vor.u32 %v2392, %v2390
        %v2396 = vshll.u32 %v2352, 16
        %v2398 = vrot.slane %v2396, 1
        %v2399 = vsel %vm2359, %v2394, %v2398
        %v2401 = vshrl.u32 %v2323, 16
        %v2403 = vshll.u32 %v2323, 16
        %v2405 = vrot.slane %v2403, 1
        %v2406 = vor.u32 %v2401, %v2405
        %v2408 = vshll.u32 %v2324, 16
        %v2410 = vrot.slane %v2408, 1
        %v2411 = vsel %vm2359, %v2406, %v2410
        %v2412 = vshrl.u32 %v2324, 16
        %v2414 = vor.u32 %v2412, %v2410
        %v2416 = vshll.u32 %v2353, 16
        %v2418 = vrot.slane %v2416, 1
        %v2419 = vsel %vm2359, %v2414, %v2418
        %v2421 = vshrl.u32 %v2325, 16
        %v2423 = vshll.u32 %v2325, 16
        %v2425 = vrot.slane %v2423, 1
        %v2426 = vor.u32 %v2421, %v2425
        %v2428 = vshll.u32 %v2326, 16
        %v2430 = vrot.slane %v2428, 1
        %v2431 = vsel %vm2359, %v2426, %v2430
        %v2432 = vshrl.u32 %v2326, 16
        %v2434 = vor.u32 %v2432, %v2430
        %v2436 = vshll.u32 %v2354, 16
        %v2438 = vrot.slane %v2436, 1
        %v2439 = vsel %vm2359, %v2434, %v2438
        %v2441 = vshrl.u32 %v2327, 16
        %v2443 = vshll.u32 %v2327, 16
        %v2445 = vrot.slane %v2443, 1
        %v2446 = vor.u32 %v2441, %v2445
        %v2448 = vshll.u32 %v2328, 16
        %v2450 = vrot.slane %v2448, 1
        %v2451 = vsel %vm2359, %v2446, %v2450
        %v2452 = vshrl.u32 %v2328, 16
        %v2454 = vor.u32 %v2452, %v2450
        %v2456 = vshll.u32 %v2355, 16
        %v2458 = vrot.slane %v2456, 1
        %v2459 = vsel %vm2359, %v2454, %v2458
        %v2461 = vshrl.u32 %v2329, 16
        %v2463 = vshll.u32 %v2329, 16
        %v2465 = vrot.slane %v2463, 1
        %v2466 = vor.u32 %v2461, %v2465
        %v2468 = vshll.u32 %v2330, 16
        %v2470 = vrot.slane %v2468, 1
        %v2471 = vsel %vm2359, %v2466, %v2470
        %v2472 = vshrl.u32 %v2330, 16
        %v2474 = vor.u32 %v2472, %v2470
        %v2476 = vshll.u32 %v2356, 16
        %v2478 = vrot.slane %v2476, 1
        %v2479 = vsel %vm2359, %v2474, %v2478
        %v2481 = vshrl.u32 %v2331, 16
        %v2483 = vshll.u32 %v2331, 16
        %v2485 = vrot.slane %v2483, 1
        %v2486 = vor.u32 %v2481, %v2485
        %v2488 = vshll.u32 %v2332, 16
        %v2490 = vrot.slane %v2488, 1
        %v2491 = vsel %vm2359, %v2486, %v2490
        %v2492 = vshrl.u32 %v2332, 16
        %v2494 = vor.u32 %v2492, %v2490
        %v2496 = vshll.u32 %v2357, 16
        %v2498 = vrot.slane %v2496, 1
        %v2499 = vsel %vm2359, %v2494, %v2498
        %v2501 = vshrl.u32 %v2333, 16
        %v2503 = vshll.u32 %v2333, 16
        %v2505 = vrot.slane %v2503, 1
        %v2506 = vor.u32 %v2501, %v2505
        %v2508 = vshll.u32 %v2334, 16
        %v2510 = vrot.slane %v2508, 1
        %v2511 = vsel %vm2359, %v2506, %v2510
        %v2512 = vshrl.u32 %v2334, 16
        %v2514 = vor.u32 %v2512, %v2510
        %v2516 = vshll.u32 %v2358, 16
        %v2518 = vrot.slane %v2516, 1
        %v2519 = vsel %vm2359, %v2514, %v2518
        %2520 = vrot.lane.b32.xlu0 %v2371, 3
        %v2521 = vpop.permute.xlu0 %2520
        %2522 = vrot.lane.b32.xlu0 %v2379, 3
        %v2523 = vpop.permute.xlu0 %2522
        %2524 = vrot.lane.b32.xlu0 %v2391, 3
        %v2525 = vpop.permute.xlu0 %2524
        %2526 = vrot.lane.b32.xlu0 %v2399, 3
        %v2527 = vpop.permute.xlu0 %2526
        %2528 = vrot.lane.b32.xlu0 %v2411, 3
        %v2529 = vpop.permute.xlu0 %2528
        %2530 = vrot.lane.b32.xlu0 %v2419, 3
        %v2531 = vpop.permute.xlu0 %2530
        %2532 = vrot.lane.b32.xlu0 %v2431, 3
        %v2533 = vpop.permute.xlu0 %2532
        %2534 = vrot.lane.b32.xlu0 %v2439, 3
        %v2535 = vpop.permute.xlu0 %2534
        %2536 = vrot.lane.b32.xlu0 %v2451, 3
        %v2537 = vpop.permute.xlu0 %2536
        %2538 = vrot.lane.b32.xlu0 %v2459, 3
        %v2539 = vpop.permute.xlu0 %2538
        %2540 = vrot.lane.b32.xlu0 %v2471, 3
        %v2541 = vpop.permute.xlu0 %2540
        %2542 = vrot.lane.b32.xlu0 %v2479, 3
        %v2543 = vpop.permute.xlu0 %2542
        %2544 = vrot.lane.b32.xlu0 %v2491, 3
        %v2545 = vpop.permute.xlu0 %2544
        %2546 = vrot.lane.b32.xlu0 %v2499, 3
        %v2547 = vpop.permute.xlu0 %2546
        %2548 = vrot.lane.b32.xlu0 %v2511, 3
        %v2549 = vpop.permute.xlu0 %2548
        %2550 = vrot.lane.b32.xlu0 %v2519, 3
        %v2551 = vpop.permute.xlu0 %2550
        %vm2552 = vcmask 1046528
        %v2553 = vrot.slane %v2319, 1
        %v2554 = vrot.slane %v2320, 1
        %v2555 = vsel %vm2552, %v2553, %v2554
        %v2556 = vrot.slane %v2351, 1
        %v2557 = vsel %vm2552, %v2554, %v2556
        %v2558 = vrot.slane %v2321, 1
        %v2559 = vrot.slane %v2322, 1
        %v2560 = vsel %vm2552, %v2558, %v2559
        %v2561 = vrot.slane %v2352, 1
        %v2562 = vsel %vm2552, %v2559, %v2561
        %v2563 = vrot.slane %v2323, 1
        %v2564 = vrot.slane %v2324, 1
        %v2565 = vsel %vm2552, %v2563, %v2564
        %v2566 = vrot.slane %v2353, 1
        %v2567 = vsel %vm2552, %v2564, %v2566
        %v2568 = vrot.slane %v2325, 1
        %v2569 = vrot.slane %v2326, 1
        %v2570 = vsel %vm2552, %v2568, %v2569
        %v2571 = vrot.slane %v2354, 1
        %v2572 = vsel %vm2552, %v2569, %v2571
        %v2573 = vrot.slane %v2327, 1
        %v2574 = vrot.slane %v2328, 1
        %v2575 = vsel %vm2552, %v2573, %v2574
        %v2576 = vrot.slane %v2355, 1
        %v2577 = vsel %vm2552, %v2574, %v2576
        %v2578 = vrot.slane %v2329, 1
        %v2579 = vrot.slane %v2330, 1
        %v2580 = vsel %vm2552, %v2578, %v2579
        %v2581 = vrot.slane %v2356, 1
        %v2582 = vsel %vm2552, %v2579, %v2581
        %v2583 = vrot.slane %v2331, 1
        %v2584 = vrot.slane %v2332, 1
        %v2585 = vsel %vm2552, %v2583, %v2584
        %v2586 = vrot.slane %v2357, 1
        %v2587 = vsel %vm2552, %v2584, %v2586
        %v2588 = vrot.slane %v2333, 1
        %v2589 = vrot.slane %v2334, 1
        %v2590 = vsel %vm2552, %v2588, %v2589
        %v2591 = vrot.slane %v2358, 1
        %v2592 = vsel %vm2552, %v2589, %v2591
        %2593 = vrot.lane.b32.xlu0 %v2555, 6
        %v2594 = vpop.permute.xlu0 %2593
        %2595 = vrot.lane.b32.xlu0 %v2557, 6
        %v2596 = vpop.permute.xlu0 %2595
        %2597 = vrot.lane.b32.xlu0 %v2560, 6
        %v2598 = vpop.permute.xlu0 %2597
        %2599 = vrot.lane.b32.xlu0 %v2562, 6
        %v2600 = vpop.permute.xlu0 %2599
        %2601 = vrot.lane.b32.xlu0 %v2565, 6
        %v2602 = vpop.permute.xlu0 %2601
        %2603 = vrot.lane.b32.xlu0 %v2567, 6
        %v2604 = vpop.permute.xlu0 %2603
        %2605 = vrot.lane.b32.xlu0 %v2570, 6
        %v2606 = vpop.permute.xlu0 %2605
        %2607 = vrot.lane.b32.xlu0 %v2572, 6
        %v2608 = vpop.permute.xlu0 %2607
        %2609 = vrot.lane.b32.xlu0 %v2575, 6
        %v2610 = vpop.permute.xlu0 %2609
        %2611 = vrot.lane.b32.xlu0 %v2577, 6
        %v2612 = vpop.permute.xlu0 %2611
        %2613 = vrot.lane.b32.xlu0 %v2580, 6
        %v2614 = vpop.permute.xlu0 %2613
        %2615 = vrot.lane.b32.xlu0 %v2582, 6
        %v2616 = vpop.permute.xlu0 %2615
        %2617 = vrot.lane.b32.xlu0 %v2585, 6
        %v2618 = vpop.permute.xlu0 %2617
        %2619 = vrot.lane.b32.xlu0 %v2587, 6
        %v2620 = vpop.permute.xlu0 %2619
        %2621 = vrot.lane.b32.xlu0 %v2590, 6
        %v2622 = vpop.permute.xlu0 %2621
        %2623 = vrot.lane.b32.xlu0 %v2592, 6
        %v2624 = vpop.permute.xlu0 %2623
        %v2657 = vunpack.c.l.b16 %v2174
        %v2658 = vunpack.c.l.b16 %v2175
        %v2659 = vunpack.c.l.b16 %v2176
        %v2660 = vunpack.c.l.b16 %v2177
        %v2661 = vunpack.c.l.b16 %v2179
        %v2662 = vunpack.c.l.b16 %v2180
        %v2663 = vunpack.c.l.b16 %v2181
        %v2664 = vunpack.c.l.b16 %v2182
        %v2665 = vunpack.c.l.b16 %v2184
        %v2666 = vunpack.c.l.b16 %v2185
        %v2667 = vunpack.c.l.b16 %v2186
        %v2668 = vunpack.c.l.b16 %v2187
        %v2669 = vunpack.c.l.b16 %v2189
        %v2670 = vunpack.c.l.b16 %v2190
        %v2671 = vunpack.c.l.b16 %v2191
        %v2672 = vunpack.c.l.b16 %v2192
        %v2673 = vunpack.c.l.b16 %v2194
        %v2674 = vunpack.c.l.b16 %v2195
        %v2675 = vunpack.c.l.b16 %v2196
        %v2676 = vunpack.c.l.b16 %v2197
        %v2677 = vunpack.c.l.b16 %v2199
        %v2678 = vunpack.c.l.b16 %v2200
        %v2679 = vunpack.c.l.b16 %v2201
        %v2680 = vunpack.c.l.b16 %v2202
        %v2681 = vunpack.c.l.b16 %v2204
        %v2682 = vunpack.c.l.b16 %v2205
        %v2683 = vunpack.c.l.b16 %v2206
        %v2684 = vunpack.c.l.b16 %v2207
        %v2685 = vunpack.c.l.b16 %v2209
        %v2686 = vunpack.c.l.b16 %v2210
        %v2687 = vunpack.c.l.b16 %v2211
        %v2688 = vunpack.c.l.b16 %v2212
        %v2689 = vpack.c.b16 %v2658, %v2657
        %v2690 = vpack.c.b16 %v2660, %v2659
        %v2691 = vpack.c.b16 %v2662, %v2661
        %v2692 = vpack.c.b16 %v2664, %v2663
        %v2693 = vpack.c.b16 %v2666, %v2665
        %v2694 = vpack.c.b16 %v2668, %v2667
        %v2695 = vpack.c.b16 %v2670, %v2669
        %v2696 = vpack.c.b16 %v2672, %v2671
        %v2697 = vpack.c.b16 %v2674, %v2673
        %v2698 = vpack.c.b16 %v2676, %v2675
        %v2699 = vpack.c.b16 %v2678, %v2677
        %v2700 = vpack.c.b16 %v2680, %v2679
        %v2701 = vpack.c.b16 %v2682, %v2681
        %v2702 = vpack.c.b16 %v2684, %v2683
        %v2703 = vpack.c.b16 %v2686, %v2685
        %v2704 = vpack.c.b16 %v2688, %v2687
        %2705 = vrot.lane.b32.xlu0 %v2689, 9
        %v2706 = vpop.permute.xlu0 %2705
        %2707 = vrot.lane.b32.xlu0 %v2690, 9
        %v2708 = vpop.permute.xlu0 %2707
        %2709 = vrot.lane.b32.xlu0 %v2691, 9
        %v2710 = vpop.permute.xlu0 %2709
        %2711 = vrot.lane.b32.xlu0 %v2692, 9
        %v2712 = vpop.permute.xlu0 %2711
        %2713 = vrot.lane.b32.xlu0 %v2693, 9
        %v2714 = vpop.permute.xlu0 %2713
        %2715 = vrot.lane.b32.xlu0 %v2694, 9
        %v2716 = vpop.permute.xlu0 %2715
        %2717 = vrot.lane.b32.xlu0 %v2695, 9
        %v2718 = vpop.permute.xlu0 %2717
        %2719 = vrot.lane.b32.xlu0 %v2696, 9
        %v2720 = vpop.permute.xlu0 %2719
        %2721 = vrot.lane.b32.xlu0 %v2697, 9
        %v2722 = vpop.permute.xlu0 %2721
        %2723 = vrot.lane.b32.xlu0 %v2698, 9
        %v2724 = vpop.permute.xlu0 %2723
        %2725 = vrot.lane.b32.xlu0 %v2699, 9
        %v2726 = vpop.permute.xlu0 %2725
        %2727 = vrot.lane.b32.xlu0 %v2700, 9
        %v2728 = vpop.permute.xlu0 %2727
        %2729 = vrot.lane.b32.xlu0 %v2701, 9
        %v2730 = vpop.permute.xlu0 %2729
        %2731 = vrot.lane.b32.xlu0 %v2702, 9
        %v2732 = vpop.permute.xlu0 %2731
        %2733 = vrot.lane.b32.xlu0 %v2703, 9
        %v2734 = vpop.permute.xlu0 %2733
        %2735 = vrot.lane.b32.xlu0 %v2704, 9
        %v2736 = vpop.permute.xlu0 %2735
        %v2745 = vunpack.c.l.b16 %v2178
        %v2746 = vunpack.c.l.b16 %v2183
        %v2747 = vunpack.c.l.b16 %v2188
        %v2748 = vunpack.c.l.b16 %v2193
        %v2749 = vunpack.c.l.b16 %v2198
        %v2750 = vunpack.c.l.b16 %v2203
        %v2751 = vunpack.c.l.b16 %v2208
        %v2752 = vunpack.c.l.b16 %v2213
        %v2753 = vpack.c.b16 %v2745, %v2745
        %v2754 = vpack.c.b16 %v2746, %v2746
        %v2755 = vpack.c.b16 %v2747, %v2747
        %v2756 = vpack.c.b16 %v2748, %v2748
        %v2757 = vpack.c.b16 %v2749, %v2749
        %v2758 = vpack.c.b16 %v2750, %v2750
        %v2759 = vpack.c.b16 %v2751, %v2751
        %v2760 = vpack.c.b16 %v2752, %v2752
        %v2762 = vshrl.u32 %v2689, 16
        %v2764 = vshll.u32 %v2689, 16
        %v2766 = vrot.slane %v2764, 1
        %v2767 = vor.u32 %v2762, %v2766
        %v2769 = vshll.u32 %v2690, 16
        %v2771 = vrot.slane %v2769, 1
        %v2772 = vsel %vm2359, %v2767, %v2771
        %v2773 = vshrl.u32 %v2690, 16
        %v2775 = vor.u32 %v2773, %v2771
        %v2777 = vshll.u32 %v2753, 16
        %v2779 = vrot.slane %v2777, 1
        %v2780 = vsel %vm2359, %v2775, %v2779
        %v2782 = vshrl.u32 %v2691, 16
        %v2784 = vshll.u32 %v2691, 16
        %v2786 = vrot.slane %v2784, 1
        %v2787 = vor.u32 %v2782, %v2786
        %v2789 = vshll.u32 %v2692, 16
        %v2791 = vrot.slane %v2789, 1
        %v2792 = vsel %vm2359, %v2787, %v2791
        %v2793 = vshrl.u32 %v2692, 16
        %v2795 = vor.u32 %v2793, %v2791
        %v2797 = vshll.u32 %v2754, 16
        %v2799 = vrot.slane %v2797, 1
        %v2800 = vsel %vm2359, %v2795, %v2799
        %v2802 = vshrl.u32 %v2693, 16
        %v2804 = vshll.u32 %v2693, 16
        %v2806 = vrot.slane %v2804, 1
        %v2807 = vor.u32 %v2802, %v2806
        %v2809 = vshll.u32 %v2694, 16
        %v2811 = vrot.slane %v2809, 1
        %v2812 = vsel %vm2359, %v2807, %v2811
        %v2813 = vshrl.u32 %v2694, 16
        %v2815 = vor.u32 %v2813, %v2811
        %v2817 = vshll.u32 %v2755, 16
        %v2819 = vrot.slane %v2817, 1
        %v2820 = vsel %vm2359, %v2815, %v2819
        %v2822 = vshrl.u32 %v2695, 16
        %v2824 = vshll.u32 %v2695, 16
        %v2826 = vrot.slane %v2824, 1
        %v2827 = vor.u32 %v2822, %v2826
        %v2829 = vshll.u32 %v2696, 16
        %v2831 = vrot.slane %v2829, 1
        %v2832 = vsel %vm2359, %v2827, %v2831
        %v2833 = vshrl.u32 %v2696, 16
        %v2835 = vor.u32 %v2833, %v2831
        %v2837 = vshll.u32 %v2756, 16
        %v2839 = vrot.slane %v2837, 1
        %v2840 = vsel %vm2359, %v2835, %v2839
        %v2842 = vshrl.u32 %v2697, 16
        %v2844 = vshll.u32 %v2697, 16
        %v2846 = vrot.slane %v2844, 1
        %v2847 = vor.u32 %v2842, %v2846
        %v2849 = vshll.u32 %v2698, 16
        %v2851 = vrot.slane %v2849, 1
        %v2852 = vsel %vm2359, %v2847, %v2851
        %v2853 = vshrl.u32 %v2698, 16
        %v2855 = vor.u32 %v2853, %v2851
        %v2857 = vshll.u32 %v2757, 16
        %v2859 = vrot.slane %v2857, 1
        %v2860 = vsel %vm2359, %v2855, %v2859
        %v2862 = vshrl.u32 %v2699, 16
        %v2864 = vshll.u32 %v2699, 16
        %v2866 = vrot.slane %v2864, 1
        %v2867 = vor.u32 %v2862, %v2866
        %v2869 = vshll.u32 %v2700, 16
        %v2871 = vrot.slane %v2869, 1
        %v2872 = vsel %vm2359, %v2867, %v2871
        %v2873 = vshrl.u32 %v2700, 16
        %v2875 = vor.u32 %v2873, %v2871
        %v2877 = vshll.u32 %v2758, 16
        %v2879 = vrot.slane %v2877, 1
        %v2880 = vsel %vm2359, %v2875, %v2879
        %v2882 = vshrl.u32 %v2701, 16
        %v2884 = vshll.u32 %v2701, 16
        %v2886 = vrot.slane %v2884, 1
        %v2887 = vor.u32 %v2882, %v2886
        %v2889 = vshll.u32 %v2702, 16
        %v2891 = vrot.slane %v2889, 1
        %v2892 = vsel %vm2359, %v2887, %v2891
        %v2893 = vshrl.u32 %v2702, 16
        %v2895 = vor.u32 %v2893, %v2891
        %v2897 = vshll.u32 %v2759, 16
        %v2899 = vrot.slane %v2897, 1
        %v2900 = vsel %vm2359, %v2895, %v2899
        %v2902 = vshrl.u32 %v2703, 16
        %v2904 = vshll.u32 %v2703, 16
        %v2906 = vrot.slane %v2904, 1
        %v2907 = vor.u32 %v2902, %v2906
        %v2909 = vshll.u32 %v2704, 16
        %v2911 = vrot.slane %v2909, 1
        %v2912 = vsel %vm2359, %v2907, %v2911
        %v2913 = vshrl.u32 %v2704, 16
        %v2915 = vor.u32 %v2913, %v2911
        %v2917 = vshll.u32 %v2760, 16
        %v2919 = vrot.slane %v2917, 1
        %v2920 = vsel %vm2359, %v2915, %v2919
        %2921 = vrot.lane.b32.xlu0 %v2772, 12
        %v2922 = vpop.permute.xlu0 %2921
        %2923 = vrot.lane.b32.xlu0 %v2780, 12
        %v2924 = vpop.permute.xlu0 %2923
        %2925 = vrot.lane.b32.xlu0 %v2792, 12
        %v2926 = vpop.permute.xlu0 %2925
        %2927 = vrot.lane.b32.xlu0 %v2800, 12
        %v2928 = vpop.permute.xlu0 %2927
        %2929 = vrot.lane.b32.xlu0 %v2812, 12
        %v2930 = vpop.permute.xlu0 %2929
        %2931 = vrot.lane.b32.xlu0 %v2820, 12
        %v2932 = vpop.permute.xlu0 %2931
        %2933 = vrot.lane.b32.xlu0 %v2832, 12
        %v2934 = vpop.permute.xlu0 %2933
        %2935 = vrot.lane.b32.xlu0 %v2840, 12
        %v2936 = vpop.permute.xlu0 %2935
        %2937 = vrot.lane.b32.xlu0 %v2852, 12
        %v2938 = vpop.permute.xlu0 %2937
        %2939 = vrot.lane.b32.xlu0 %v2860, 12
        %v2940 = vpop.permute.xlu0 %2939
        %2941 = vrot.lane.b32.xlu0 %v2872, 12
        %v2942 = vpop.permute.xlu0 %2941
        %2943 = vrot.lane.b32.xlu0 %v2880, 12
        %v2944 = vpop.permute.xlu0 %2943
        %2945 = vrot.lane.b32.xlu0 %v2892, 12
        %v2946 = vpop.permute.xlu0 %2945
        %2947 = vrot.lane.b32.xlu0 %v2900, 12
        %v2948 = vpop.permute.xlu0 %2947
        %2949 = vrot.lane.b32.xlu0 %v2912, 12
        %v2950 = vpop.permute.xlu0 %2949
        %2951 = vrot.lane.b32.xlu0 %v2920, 12
        %v2952 = vpop.permute.xlu0 %2951
        %v2953 = vrot.slane %v2689, 1
        %v2954 = vrot.slane %v2690, 1
        %v2955 = vsel %vm2552, %v2953, %v2954
        %v2956 = vrot.slane %v2753, 1
        %v2957 = vsel %vm2552, %v2954, %v2956
        %v2958 = vrot.slane %v2691, 1
        %v2959 = vrot.slane %v2692, 1
        %v2960 = vsel %vm2552, %v2958, %v2959
        %v2961 = vrot.slane %v2754, 1
        %v2962 = vsel %vm2552, %v2959, %v2961
        %v2963 = vrot.slane %v2693, 1
        %v2964 = vrot.slane %v2694, 1
        %v2965 = vsel %vm2552, %v2963, %v2964
        %v2966 = vrot.slane %v2755, 1
        %v2967 = vsel %vm2552, %v2964, %v2966
        %v2968 = vrot.slane %v2695, 1
        %v2969 = vrot.slane %v2696, 1
        %v2970 = vsel %vm2552, %v2968, %v2969
        %v2971 = vrot.slane %v2756, 1
        %v2972 = vsel %vm2552, %v2969, %v2971
        %v2973 = vrot.slane %v2697, 1
        %v2974 = vrot.slane %v2698, 1
        %v2975 = vsel %vm2552, %v2973, %v2974
        %v2976 = vrot.slane %v2757, 1
        %v2977 = vsel %vm2552, %v2974, %v2976
        %v2978 = vrot.slane %v2699, 1
        %v2979 = vrot.slane %v2700, 1
        %v2980 = vsel %vm2552, %v2978, %v2979
        %v2981 = vrot.slane %v2758, 1
        %v2982 = vsel %vm2552, %v2979, %v2981
        %v2983 = vrot.slane %v2701, 1
        %v2984 = vrot.slane %v2702, 1
        %v2985 = vsel %vm2552, %v2983, %v2984
        %v2986 = vrot.slane %v2759, 1
        %v2987 = vsel %vm2552, %v2984, %v2986
        %v2988 = vrot.slane %v2703, 1
        %v2989 = vrot.slane %v2704, 1
        %v2990 = vsel %vm2552, %v2988, %v2989
        %v2991 = vrot.slane %v2760, 1
        %v2992 = vsel %vm2552, %v2989, %v2991
        %2993 = vrot.lane.b32.xlu0 %v2955, 15
        %v2994 = vpop.permute.xlu0 %2993
        %2995 = vrot.lane.b32.xlu0 %v2957, 15
        %v2996 = vpop.permute.xlu0 %2995
        %2997 = vrot.lane.b32.xlu0 %v2960, 15
        %v2998 = vpop.permute.xlu0 %2997
        %2999 = vrot.lane.b32.xlu0 %v2962, 15
        %v3000 = vpop.permute.xlu0 %2999
        %3001 = vrot.lane.b32.xlu0 %v2965, 15
        %v3002 = vpop.permute.xlu0 %3001
        %3003 = vrot.lane.b32.xlu0 %v2967, 15
        %v3004 = vpop.permute.xlu0 %3003
        %3005 = vrot.lane.b32.xlu0 %v2970, 15
        %v3006 = vpop.permute.xlu0 %3005
        %3007 = vrot.lane.b32.xlu0 %v2972, 15
        %v3008 = vpop.permute.xlu0 %3007
        %3009 = vrot.lane.b32.xlu0 %v2975, 15
        %v3010 = vpop.permute.xlu0 %3009
        %3011 = vrot.lane.b32.xlu0 %v2977, 15
        %v3012 = vpop.permute.xlu0 %3011
        %3013 = vrot.lane.b32.xlu0 %v2980, 15
        %v3014 = vpop.permute.xlu0 %3013
        %3015 = vrot.lane.b32.xlu0 %v2982, 15
        %v3016 = vpop.permute.xlu0 %3015
        %3017 = vrot.lane.b32.xlu0 %v2985, 15
        %v3018 = vpop.permute.xlu0 %3017
        %3019 = vrot.lane.b32.xlu0 %v2987, 15
        %v3020 = vpop.permute.xlu0 %3019
        %3021 = vrot.lane.b32.xlu0 %v2990, 15
        %v3022 = vpop.permute.xlu0 %3021
        %3023 = vrot.lane.b32.xlu0 %v2992, 15
        %v3024 = vpop.permute.xlu0 %3023
        %v3057 = vunpack.c.l.b16 %v2215
        %v3058 = vunpack.c.l.b16 %v2216
        %v3059 = vunpack.c.l.b16 %v2217
        %v3060 = vunpack.c.l.b16 %v2218
        %v3061 = vunpack.c.l.b16 %v2220
        %v3062 = vunpack.c.l.b16 %v2221
        %v3063 = vunpack.c.l.b16 %v2222
        %v3064 = vunpack.c.l.b16 %v2223
        %v3065 = vunpack.c.l.b16 %v2225
        %v3066 = vunpack.c.l.b16 %v2226
        %v3067 = vunpack.c.l.b16 %v2227
        %v3068 = vunpack.c.l.b16 %v2228
        %v3069 = vunpack.c.l.b16 %v2230
        %v3070 = vunpack.c.l.b16 %v2231
        %v3071 = vunpack.c.l.b16 %v2232
        %v3072 = vunpack.c.l.b16 %v2233
        %v3073 = vunpack.c.l.b16 %v2235
        %v3074 = vunpack.c.l.b16 %v2236
        %v3075 = vunpack.c.l.b16 %v2237
        %v3076 = vunpack.c.l.b16 %v2238
        %v3077 = vunpack.c.l.b16 %v2240
        %v3078 = vunpack.c.l.b16 %v2241
        %v3079 = vunpack.c.l.b16 %v2242
        %v3080 = vunpack.c.l.b16 %v2243
        %v3081 = vunpack.c.l.b16 %v2245
        %v3082 = vunpack.c.l.b16 %v2246
        %v3083 = vunpack.c.l.b16 %v2247
        %v3084 = vunpack.c.l.b16 %v2248
        %v3085 = vunpack.c.l.b16 %v2250
        %v3086 = vunpack.c.l.b16 %v2251
        %v3087 = vunpack.c.l.b16 %v2252
        %v3088 = vunpack.c.l.b16 %v2253
        %v3089 = vpack.c.b16 %v3058, %v3057
        %v3090 = vpack.c.b16 %v3060, %v3059
        %v3091 = vpack.c.b16 %v3062, %v3061
        %v3092 = vpack.c.b16 %v3064, %v3063
        %v3093 = vpack.c.b16 %v3066, %v3065
        %v3094 = vpack.c.b16 %v3068, %v3067
        %v3095 = vpack.c.b16 %v3070, %v3069
        %v3096 = vpack.c.b16 %v3072, %v3071
        %v3097 = vpack.c.b16 %v3074, %v3073
        %v3098 = vpack.c.b16 %v3076, %v3075
        %v3099 = vpack.c.b16 %v3078, %v3077
        %v3100 = vpack.c.b16 %v3080, %v3079
        %v3101 = vpack.c.b16 %v3082, %v3081
        %v3102 = vpack.c.b16 %v3084, %v3083
        %v3103 = vpack.c.b16 %v3086, %v3085
        %v3104 = vpack.c.b16 %v3088, %v3087
        %3105 = vrot.lane.b32.xlu0 %v3089, 18
        %v3106 = vpop.permute.xlu0 %3105
        %3107 = vrot.lane.b32.xlu0 %v3090, 18
        %v3108 = vpop.permute.xlu0 %3107
        %3109 = vrot.lane.b32.xlu0 %v3091, 18
        %v3110 = vpop.permute.xlu0 %3109
        %3111 = vrot.lane.b32.xlu0 %v3092, 18
        %v3112 = vpop.permute.xlu0 %3111
        %3113 = vrot.lane.b32.xlu0 %v3093, 18
        %v3114 = vpop.permute.xlu0 %3113
        %3115 = vrot.lane.b32.xlu0 %v3094, 18
        %v3116 = vpop.permute.xlu0 %3115
        %3117 = vrot.lane.b32.xlu0 %v3095, 18
        %v3118 = vpop.permute.xlu0 %3117
        %3119 = vrot.lane.b32.xlu0 %v3096, 18
        %v3120 = vpop.permute.xlu0 %3119
        %3121 = vrot.lane.b32.xlu0 %v3097, 18
        %v3122 = vpop.permute.xlu0 %3121
        %3123 = vrot.lane.b32.xlu0 %v3098, 18
        %v3124 = vpop.permute.xlu0 %3123
        %3125 = vrot.lane.b32.xlu0 %v3099, 18
        %v3126 = vpop.permute.xlu0 %3125
        %3127 = vrot.lane.b32.xlu0 %v3100, 18
        %v3128 = vpop.permute.xlu0 %3127
        %3129 = vrot.lane.b32.xlu0 %v3101, 18
        %v3130 = vpop.permute.xlu0 %3129
        %3131 = vrot.lane.b32.xlu0 %v3102, 18
        %v3132 = vpop.permute.xlu0 %3131
        %3133 = vrot.lane.b32.xlu0 %v3103, 18
        %v3134 = vpop.permute.xlu0 %3133
        %3135 = vrot.lane.b32.xlu0 %v3104, 18
        %v3136 = vpop.permute.xlu0 %3135
        %v3145 = vunpack.c.l.b16 %v2219
        %v3146 = vunpack.c.l.b16 %v2224
        %v3147 = vunpack.c.l.b16 %v2229
        %v3148 = vunpack.c.l.b16 %v2234
        %v3149 = vunpack.c.l.b16 %v2239
        %v3150 = vunpack.c.l.b16 %v2244
        %v3151 = vunpack.c.l.b16 %v2249
        %v3152 = vunpack.c.l.b16 %v2254
        %v3153 = vpack.c.b16 %v3145, %v3145
        %v3154 = vpack.c.b16 %v3146, %v3146
        %v3155 = vpack.c.b16 %v3147, %v3147
        %v3156 = vpack.c.b16 %v3148, %v3148
        %v3157 = vpack.c.b16 %v3149, %v3149
        %v3158 = vpack.c.b16 %v3150, %v3150
        %v3159 = vpack.c.b16 %v3151, %v3151
        %v3160 = vpack.c.b16 %v3152, %v3152
        %v3162 = vshrl.u32 %v3089, 16
        %v3164 = vshll.u32 %v3089, 16
        %v3166 = vrot.slane %v3164, 1
        %v3167 = vor.u32 %v3162, %v3166
        %v3169 = vshll.u32 %v3090, 16
        %v3171 = vrot.slane %v3169, 1
        %v3172 = vsel %vm2359, %v3167, %v3171
        %v3173 = vshrl.u32 %v3090, 16
        %v3175 = vor.u32 %v3173, %v3171
        %v3177 = vshll.u32 %v3153, 16
        %v3179 = vrot.slane %v3177, 1
        %v3180 = vsel %vm2359, %v3175, %v3179
        %v3182 = vshrl.u32 %v3091, 16
        %v3184 = vshll.u32 %v3091, 16
        %v3186 = vrot.slane %v3184, 1
        %v3187 = vor.u32 %v3182, %v3186
        %v3189 = vshll.u32 %v3092, 16
        %v3191 = vrot.slane %v3189, 1
        %v3192 = vsel %vm2359, %v3187, %v3191
        %v3193 = vshrl.u32 %v3092, 16
        %v3195 = vor.u32 %v3193, %v3191
        %v3197 = vshll.u32 %v3154, 16
        %v3199 = vrot.slane %v3197, 1
        %v3200 = vsel %vm2359, %v3195, %v3199
        %v3202 = vshrl.u32 %v3093, 16
        %v3204 = vshll.u32 %v3093, 16
        %v3206 = vrot.slane %v3204, 1
        %v3207 = vor.u32 %v3202, %v3206
        %v3209 = vshll.u32 %v3094, 16
        %v3211 = vrot.slane %v3209, 1
        %v3212 = vsel %vm2359, %v3207, %v3211
        %v3213 = vshrl.u32 %v3094, 16
        %v3215 = vor.u32 %v3213, %v3211
        %v3217 = vshll.u32 %v3155, 16
        %v3219 = vrot.slane %v3217, 1
        %v3220 = vsel %vm2359, %v3215, %v3219
        %v3222 = vshrl.u32 %v3095, 16
        %v3224 = vshll.u32 %v3095, 16
        %v3226 = vrot.slane %v3224, 1
        %v3227 = vor.u32 %v3222, %v3226
        %v3229 = vshll.u32 %v3096, 16
        %v3231 = vrot.slane %v3229, 1
        %v3232 = vsel %vm2359, %v3227, %v3231
        %v3233 = vshrl.u32 %v3096, 16
        %v3235 = vor.u32 %v3233, %v3231
        %v3237 = vshll.u32 %v3156, 16
        %v3239 = vrot.slane %v3237, 1
        %v3240 = vsel %vm2359, %v3235, %v3239
        %v3242 = vshrl.u32 %v3097, 16
        %v3244 = vshll.u32 %v3097, 16
        %v3246 = vrot.slane %v3244, 1
        %v3247 = vor.u32 %v3242, %v3246
        %v3249 = vshll.u32 %v3098, 16
        %v3251 = vrot.slane %v3249, 1
        %v3252 = vsel %vm2359, %v3247, %v3251
        %v3253 = vshrl.u32 %v3098, 16
        %v3255 = vor.u32 %v3253, %v3251
        %v3257 = vshll.u32 %v3157, 16
        %v3259 = vrot.slane %v3257, 1
        %v3260 = vsel %vm2359, %v3255, %v3259
        %v3262 = vshrl.u32 %v3099, 16
        %v3264 = vshll.u32 %v3099, 16
        %v3266 = vrot.slane %v3264, 1
        %v3267 = vor.u32 %v3262, %v3266
        %v3269 = vshll.u32 %v3100, 16
        %v3271 = vrot.slane %v3269, 1
        %v3272 = vsel %vm2359, %v3267, %v3271
        %v3273 = vshrl.u32 %v3100, 16
        %v3275 = vor.u32 %v3273, %v3271
        %v3277 = vshll.u32 %v3158, 16
        %v3279 = vrot.slane %v3277, 1
        %v3280 = vsel %vm2359, %v3275, %v3279
        %v3282 = vshrl.u32 %v3101, 16
        %v3284 = vshll.u32 %v3101, 16
        %v3286 = vrot.slane %v3284, 1
        %v3287 = vor.u32 %v3282, %v3286
        %v3289 = vshll.u32 %v3102, 16
        %v3291 = vrot.slane %v3289, 1
        %v3292 = vsel %vm2359, %v3287, %v3291
        %v3293 = vshrl.u32 %v3102, 16
        %v3295 = vor.u32 %v3293, %v3291
        %v3297 = vshll.u32 %v3159, 16
        %v3299 = vrot.slane %v3297, 1
        %v3300 = vsel %vm2359, %v3295, %v3299
        %v3302 = vshrl.u32 %v3103, 16
        %v3304 = vshll.u32 %v3103, 16
        %v3306 = vrot.slane %v3304, 1
        %v3307 = vor.u32 %v3302, %v3306
        %v3309 = vshll.u32 %v3104, 16
        %v3311 = vrot.slane %v3309, 1
        %v3312 = vsel %vm2359, %v3307, %v3311
        %v3313 = vshrl.u32 %v3104, 16
        %v3315 = vor.u32 %v3313, %v3311
        %v3317 = vshll.u32 %v3160, 16
        %v3319 = vrot.slane %v3317, 1
        %v3320 = vsel %vm2359, %v3315, %v3319
        %3321 = vrot.lane.b32.xlu0 %v3172, 21
        %v3322 = vpop.permute.xlu0 %3321
        %3323 = vrot.lane.b32.xlu0 %v3180, 21
        %v3324 = vpop.permute.xlu0 %3323
        %3325 = vrot.lane.b32.xlu0 %v3192, 21
        %v3326 = vpop.permute.xlu0 %3325
        %3327 = vrot.lane.b32.xlu0 %v3200, 21
        %v3328 = vpop.permute.xlu0 %3327
        %3329 = vrot.lane.b32.xlu0 %v3212, 21
        %v3330 = vpop.permute.xlu0 %3329
        %3331 = vrot.lane.b32.xlu0 %v3220, 21
        %v3332 = vpop.permute.xlu0 %3331
        %3333 = vrot.lane.b32.xlu0 %v3232, 21
        %v3334 = vpop.permute.xlu0 %3333
        %3335 = vrot.lane.b32.xlu0 %v3240, 21
        %v3336 = vpop.permute.xlu0 %3335
        %3337 = vrot.lane.b32.xlu0 %v3252, 21
        %v3338 = vpop.permute.xlu0 %3337
        %3339 = vrot.lane.b32.xlu0 %v3260, 21
        %v3340 = vpop.permute.xlu0 %3339
        %3341 = vrot.lane.b32.xlu0 %v3272, 21
        %v3342 = vpop.permute.xlu0 %3341
        %3343 = vrot.lane.b32.xlu0 %v3280, 21
        %v3344 = vpop.permute.xlu0 %3343
        %3345 = vrot.lane.b32.xlu0 %v3292, 21
        %v3346 = vpop.permute.xlu0 %3345
        %3347 = vrot.lane.b32.xlu0 %v3300, 21
        %v3348 = vpop.permute.xlu0 %3347
        %3349 = vrot.lane.b32.xlu0 %v3312, 21
        %v3350 = vpop.permute.xlu0 %3349
        %3351 = vrot.lane.b32.xlu0 %v3320, 21
        %v3352 = vpop.permute.xlu0 %3351
        %v3353 = vrot.slane %v3089, 1
        %v3354 = vrot.slane %v3090, 1
        %v3355 = vsel %vm2552, %v3353, %v3354
        %v3356 = vrot.slane %v3153, 1
        %v3357 = vsel %vm2552, %v3354, %v3356
        %v3358 = vrot.slane %v3091, 1
        %v3359 = vrot.slane %v3092, 1
        %v3360 = vsel %vm2552, %v3358, %v3359
        %v3361 = vrot.slane %v3154, 1
        %v3362 = vsel %vm2552, %v3359, %v3361
        %v3363 = vrot.slane %v3093, 1
        %v3364 = vrot.slane %v3094, 1
        %v3365 = vsel %vm2552, %v3363, %v3364
        %v3366 = vrot.slane %v3155, 1
        %v3367 = vsel %vm2552, %v3364, %v3366
        %v3368 = vrot.slane %v3095, 1
        %v3369 = vrot.slane %v3096, 1
        %v3370 = vsel %vm2552, %v3368, %v3369
        %v3371 = vrot.slane %v3156, 1
        %v3372 = vsel %vm2552, %v3369, %v3371
        %v3373 = vrot.slane %v3097, 1
        %v3374 = vrot.slane %v3098, 1
        %v3375 = vsel %vm2552, %v3373, %v3374
        %v3376 = vrot.slane %v3157, 1
        %v3377 = vsel %vm2552, %v3374, %v3376
        %v3378 = vrot.slane %v3099, 1
        %v3379 = vrot.slane %v3100, 1
        %v3380 = vsel %vm2552, %v3378, %v3379
        %v3381 = vrot.slane %v3158, 1
        %v3382 = vsel %vm2552, %v3379, %v3381
        %v3383 = vrot.slane %v3101, 1
        %v3384 = vrot.slane %v3102, 1
        %v3385 = vsel %vm2552, %v3383, %v3384
        %v3386 = vrot.slane %v3159, 1
        %v3387 = vsel %vm2552, %v3384, %v3386
        %v3388 = vrot.slane %v3103, 1
        %v3389 = vrot.slane %v3104, 1
        %v3390 = vsel %vm2552, %v3388, %v3389
        %v3391 = vrot.slane %v3160, 1
        %v3392 = vsel %vm2552, %v3389, %v3391
        %3393 = vrot.lane.b32.xlu0 %v3355, 24
        %v3394 = vpop.permute.xlu0 %3393
        %3395 = vrot.lane.b32.xlu0 %v3357, 24
        %v3396 = vpop.permute.xlu0 %3395
        %3397 = vrot.lane.b32.xlu0 %v3360, 24
        %v3398 = vpop.permute.xlu0 %3397
        %3399 = vrot.lane.b32.xlu0 %v3362, 24
        %v3400 = vpop.permute.xlu0 %3399
        %3401 = vrot.lane.b32.xlu0 %v3365, 24
        %v3402 = vpop.permute.xlu0 %3401
        %3403 = vrot.lane.b32.xlu0 %v3367, 24
        %v3404 = vpop.permute.xlu0 %3403
        %3405 = vrot.lane.b32.xlu0 %v3370, 24
        %v3406 = vpop.permute.xlu0 %3405
        %3407 = vrot.lane.b32.xlu0 %v3372, 24
        %v3408 = vpop.permute.xlu0 %3407
        %3409 = vrot.lane.b32.xlu0 %v3375, 24
        %v3410 = vpop.permute.xlu0 %3409
        %3411 = vrot.lane.b32.xlu0 %v3377, 24
        %v3412 = vpop.permute.xlu0 %3411
        %3413 = vrot.lane.b32.xlu0 %v3380, 24
        %v3414 = vpop.permute.xlu0 %3413
        %3415 = vrot.lane.b32.xlu0 %v3382, 24
        %v3416 = vpop.permute.xlu0 %3415
        %3417 = vrot.lane.b32.xlu0 %v3385, 24
        %v3418 = vpop.permute.xlu0 %3417
        %3419 = vrot.lane.b32.xlu0 %v3387, 24
        %v3420 = vpop.permute.xlu0 %3419
        %3421 = vrot.lane.b32.xlu0 %v3390, 24
        %v3422 = vpop.permute.xlu0 %3421
        %3423 = vrot.lane.b32.xlu0 %v3392, 24
        %v3424 = vpop.permute.xlu0 %3423
        %vm3425 = vcmask 23552
        %v3427 = vsel %vm3425, %v2319, %v2521
        %v3429 = vsel %vm3425, %v2320, %v2523
        %v3431 = vsel %vm3425, %v2321, %v2525
        %v3433 = vsel %vm3425, %v2322, %v2527
        %v3435 = vsel %vm3425, %v2323, %v2529
        %v3437 = vsel %vm3425, %v2324, %v2531
        %v3439 = vsel %vm3425, %v2325, %v2533
        %v3441 = vsel %vm3425, %v2326, %v2535
        %v3443 = vsel %vm3425, %v2327, %v2537
        %v3445 = vsel %vm3425, %v2328, %v2539
        %v3447 = vsel %vm3425, %v2329, %v2541
        %v3449 = vsel %vm3425, %v2330, %v2543
        %v3451 = vsel %vm3425, %v2331, %v2545
        %v3453 = vsel %vm3425, %v2332, %v2547
        %v3455 = vsel %vm3425, %v2333, %v2549
        %v3457 = vsel %vm3425, %v2334, %v2551
        %vm3458 = vcmask 48128
        %v3460 = vsel %vm3458, %v3427, %v2594
        %v3462 = vsel %vm3458, %v3429, %v2596
        %v3464 = vsel %vm3458, %v3431, %v2598
        %v3466 = vsel %vm3458, %v3433, %v2600
        %v3468 = vsel %vm3458, %v3435, %v2602
        %v3470 = vsel %vm3458, %v3437, %v2604
        %v3472 = vsel %vm3458, %v3439, %v2606
        %v3474 = vsel %vm3458, %v3441, %v2608
        %v3476 = vsel %vm3458, %v3443, %v2610
        %v3478 = vsel %vm3458, %v3445, %v2612
        %v3480 = vsel %vm3458, %v3447, %v2614
        %v3482 = vsel %vm3458, %v3449, %v2616
        %v3484 = vsel %vm3458, %v3451, %v2618
        %v3486 = vsel %vm3458, %v3453, %v2620
        %v3488 = vsel %vm3458, %v3455, %v2622
        %v3490 = vsel %vm3458, %v3457, %v2624
        %vm3491 = vcmask 72704
        %v3493 = vsel %vm3491, %v3460, %v2706
        %v3495 = vsel %vm3491, %v3462, %v2708
        %v3497 = vsel %vm3491, %v3464, %v2710
        %v3499 = vsel %vm3491, %v3466, %v2712
        %v3501 = vsel %vm3491, %v3468, %v2714
        %v3503 = vsel %vm3491, %v3470, %v2716
        %v3505 = vsel %vm3491, %v3472, %v2718
        %v3507 = vsel %vm3491, %v3474, %v2720
        %v3509 = vsel %vm3491, %v3476, %v2722
        %v3511 = vsel %vm3491, %v3478, %v2724
        %v3513 = vsel %vm3491, %v3480, %v2726
        %v3515 = vsel %vm3491, %v3482, %v2728
        %v3517 = vsel %vm3491, %v3484, %v2730
        %v3519 = vsel %vm3491, %v3486, %v2732
        %v3521 = vsel %vm3491, %v3488, %v2734
        %v3523 = vsel %vm3491, %v3490, %v2736
        %vm3524 = vcmask 97280
        %v3526 = vsel %vm3524, %v3493, %v2922
        %v3528 = vsel %vm3524, %v3495, %v2924
        %v3530 = vsel %vm3524, %v3497, %v2926
        %v3532 = vsel %vm3524, %v3499, %v2928
        %v3534 = vsel %vm3524, %v3501, %v2930
        %v3536 = vsel %vm3524, %v3503, %v2932
        %v3538 = vsel %vm3524, %v3505, %v2934
        %v3540 = vsel %vm3524, %v3507, %v2936
        %v3542 = vsel %vm3524, %v3509, %v2938
        %v3544 = vsel %vm3524, %v3511, %v2940
        %v3546 = vsel %vm3524, %v3513, %v2942
        %v3548 = vsel %vm3524, %v3515, %v2944
        %v3550 = vsel %vm3524, %v3517, %v2946
        %v3552 = vsel %vm3524, %v3519, %v2948
        %v3554 = vsel %vm3524, %v3521, %v2950
        %v3556 = vsel %vm3524, %v3523, %v2952
        %vm3557 = vcmask 121856
        %v3559 = vsel %vm3557, %v3526, %v2994
        %v3561 = vsel %vm3557, %v3528, %v2996
        %v3563 = vsel %vm3557, %v3530, %v2998
        %v3565 = vsel %vm3557, %v3532, %v3000
        %v3567 = vsel %vm3557, %v3534, %v3002
        %v3569 = vsel %vm3557, %v3536, %v3004
        %v3571 = vsel %vm3557, %v3538, %v3006
        %v3573 = vsel %vm3557, %v3540, %v3008
        %v3575 = vsel %vm3557, %v3542, %v3010
        %v3577 = vsel %vm3557, %v3544, %v3012
        %v3579 = vsel %vm3557, %v3546, %v3014
        %v3581 = vsel %vm3557, %v3548, %v3016
        %v3583 = vsel %vm3557, %v3550, %v3018
        %v3585 = vsel %vm3557, %v3552, %v3020
        %v3587 = vsel %vm3557, %v3554, %v3022
        %v3589 = vsel %vm3557, %v3556, %v3024
        %vm3590 = vcmask 146432
        %v3592 = vsel %vm3590, %v3559, %v3106
        %v3594 = vsel %vm3590, %v3561, %v3108
        %v3596 = vsel %vm3590, %v3563, %v3110
        %v3598 = vsel %vm3590, %v3565, %v3112
        %v3600 = vsel %vm3590, %v3567, %v3114
        %v3602 = vsel %vm3590, %v3569, %v3116
        %v3604 = vsel %vm3590, %v3571, %v3118
        %v3606 = vsel %vm3590, %v3573, %v3120
        %v3608 = vsel %vm3590, %v3575, %v3122
        %v3610 = vsel %vm3590, %v3577, %v3124
        %v3612 = vsel %vm3590, %v3579, %v3126
        %v3614 = vsel %vm3590, %v3581, %v3128
        %v3616 = vsel %vm3590, %v3583, %v3130
        %v3618 = vsel %vm3590, %v3585, %v3132
        %v3620 = vsel %vm3590, %v3587, %v3134
        %v3622 = vsel %vm3590, %v3589, %v3136
        %vm3623 = vcmask 171008
        %v3625 = vsel %vm3623, %v3592, %v3322
        %v3627 = vsel %vm3623, %v3594, %v3324
        %v3629 = vsel %vm3623, %v3596, %v3326
        %v3631 = vsel %vm3623, %v3598, %v3328
        %v3633 = vsel %vm3623, %v3600, %v3330
        %v3635 = vsel %vm3623, %v3602, %v3332
        %v3637 = vsel %vm3623, %v3604, %v3334
        %v3639 = vsel %vm3623, %v3606, %v3336
        %v3641 = vsel %vm3623, %v3608, %v3338
        %v3643 = vsel %vm3623, %v3610, %v3340
        %v3645 = vsel %vm3623, %v3612, %v3342
        %v3647 = vsel %vm3623, %v3614, %v3344
        %v3649 = vsel %vm3623, %v3616, %v3346
        %v3651 = vsel %vm3623, %v3618, %v3348
        %v3653 = vsel %vm3623, %v3620, %v3350
        %v3655 = vsel %vm3623, %v3622, %v3352
        %vm3656 = vcmask 195584
        %v3658 = vsel %vm3656, %v3625, %v3394
        %v3660 = vsel %vm3656, %v3627, %v3396
        %v3662 = vsel %vm3656, %v3629, %v3398
        %v3664 = vsel %vm3656, %v3631, %v3400
        %v3666 = vsel %vm3656, %v3633, %v3402
        %v3668 = vsel %vm3656, %v3635, %v3404
        %v3670 = vsel %vm3656, %v3637, %v3406
        %v3672 = vsel %vm3656, %v3639, %v3408
        %v3674 = vsel %vm3656, %v3641, %v3410
        %v3676 = vsel %vm3656, %v3643, %v3412
        %v3678 = vsel %vm3656, %v3645, %v3414
        %v3680 = vsel %vm3656, %v3647, %v3416
        %v3682 = vsel %vm3656, %v3649, %v3418
        %v3684 = vsel %vm3656, %v3651, %v3420
        %v3686 = vsel %vm3656, %v3653, %v3422
        %v3688 = vsel %vm3656, %v3655, %v3424
        %v3689 = vld [vmem:[%s1] sm:$0xf]
        %v3690 = vld [vmem:[%s1 + $0x4] sm:$0xf]
        %v3691 = vld [vmem:[%s1 + $0x8] sm:$0xf]
        %v3692 = vld [vmem:[%s1 + $0xc] sm:$0x3]
        %v3694 = vperm.slane %v2133, 0
        %v3700 = vunpack.c.l.b16 %v3689
        %v3701 = vunpack.c.l.b16 %v3690
        %v3702 = vunpack.c.l.b16 %v3691
        %v3703 = vunpack.c.l.b16 %v3692
        %v3704 = vpack.c.b16 %v3701, %v3700
        %v3705 = vpack.c.b16 %v3703, %v3702
        %vm3707 = vcmask 220160
        %v3708 = vsel %vm3707, %v3658, 0
        %v3710 = vsel %vm3707, %v3660, 0
        %v3712 = vsel %vm3707, %v3662, 0
        %v3714 = vsel %vm3707, %v3664, 0
        %v3716 = vsel %vm3707, %v3666, 0
        %v3718 = vsel %vm3707, %v3668, 0
        %v3720 = vsel %vm3707, %v3670, 0
        %v3722 = vsel %vm3707, %v3672, 0
        %v3724 = vsel %vm3707, %v3674, 0
        %v3726 = vsel %vm3707, %v3676, 0
        %v3728 = vsel %vm3707, %v3678, 0
        %v3730 = vsel %vm3707, %v3680, 0
        %v3732 = vsel %vm3707, %v3682, 0
        %v3734 = vsel %vm3707, %v3684, 0
        %v3736 = vsel %vm3707, %v3686, 0
        %v3738 = vsel %vm3707, %v3688, 0
        %vm3740 = vcmask 1044480
        %vm3741 = vcmask 1045504
        %v3742 = vsel %vm3740, 4294967295, 65535
        %v3743 = vsel %vm3741, %v3742, 0
        %v3745 = vand.u32 %v3705, %v3743
        %3747 = vmatpush.bf16.msra.mxu0 0
        %3748 = vmatpush.bf16.msra.mxu0 0
        %3749 = vmatpush.bf16.msra.mxu0 0
        %3750 = vmatpush.bf16.msra.mxu0 0
        %3751 = vmatpush.bf16.msra.mxu0 0
        %3752 = vmatpush.bf16.msra.mxu0 0
        %3753 = vmatpush.bf16.msra.mxu0 %v3745
        %3754 = vmatpush.bf16.msra.mxu0 %v3704
        %3755 = vmatmul.bf16.gmra.mxu0 %v3708
        %v3756 = vpop.f32.mrf.mxu0
        %v3757 = vadd.f32 %v3694, %v3756
        %v3758 = vpop.f32.mrf.mxu0
        %v3759 = vadd.f32 %v3694, %v3758
        %3760 = vmatmul.bf16.gmra.mxu0 %v3710
        %v3761 = vpop.f32.mrf.mxu0
        %v3762 = vadd.f32 %v3694, %v3761
        %v3763 = vpop.f32.mrf.mxu0
        %v3764 = vadd.f32 %v3694, %v3763
        %3765 = vmatmul.bf16.gmra.mxu0 %v3712
        %v3766 = vpop.f32.mrf.mxu0
        %v3767 = vadd.f32 %v3694, %v3766
        %v3768 = vpop.f32.mrf.mxu0
        %v3769 = vadd.f32 %v3694, %v3768
        %3770 = vmatmul.bf16.gmra.mxu0 %v3714
        %v3771 = vpop.f32.mrf.mxu0
        %v3772 = vadd.f32 %v3694, %v3771
        %v3773 = vpop.f32.mrf.mxu0
        %v3774 = vadd.f32 %v3694, %v3773
        %3775 = vmatmul.bf16.gmra.mxu0 %v3716
        %v3776 = vpop.f32.mrf.mxu0
        %v3777 = vadd.f32 %v3694, %v3776
        %v3778 = vpop.f32.mrf.mxu0
        %v3779 = vadd.f32 %v3694, %v3778
        %3780 = vmatmul.bf16.gmra.mxu0 %v3718
        %v3781 = vpop.f32.mrf.mxu0
        %v3782 = vadd.f32 %v3694, %v3781
        %v3783 = vpop.f32.mrf.mxu0
        %v3784 = vadd.f32 %v3694, %v3783
        %3785 = vmatmul.bf16.gmra.mxu0 %v3720
        %v3786 = vpop.f32.mrf.mxu0
        %v3787 = vadd.f32 %v3694, %v3786
        %v3788 = vpop.f32.mrf.mxu0
        %v3789 = vadd.f32 %v3694, %v3788
        %3790 = vmatmul.bf16.gmra.mxu0 %v3722
        %v3791 = vpop.f32.mrf.mxu0
        %v3792 = vadd.f32 %v3694, %v3791
        %v3793 = vpop.f32.mrf.mxu0
        %v3794 = vadd.f32 %v3694, %v3793
        %3795 = vmatmul.bf16.gmra.mxu0 %v3724
        %v3796 = vpop.f32.mrf.mxu0
        %v3797 = vadd.f32 %v3694, %v3796
        %v3798 = vpop.f32.mrf.mxu0
        %v3799 = vadd.f32 %v3694, %v3798
        %3800 = vmatmul.bf16.gmra.mxu0 %v3726
        %v3801 = vpop.f32.mrf.mxu0
        %v3802 = vadd.f32 %v3694, %v3801
        %v3803 = vpop.f32.mrf.mxu0
        %v3804 = vadd.f32 %v3694, %v3803
        %3805 = vmatmul.bf16.gmra.mxu0 %v3728
        %v3806 = vpop.f32.mrf.mxu0
        %v3807 = vadd.f32 %v3694, %v3806
        %v3808 = vpop.f32.mrf.mxu0
        %v3809 = vadd.f32 %v3694, %v3808
        %3810 = vmatmul.bf16.gmra.mxu0 %v3730
        %v3811 = vpop.f32.mrf.mxu0
        %v3812 = vadd.f32 %v3694, %v3811
        %v3813 = vpop.f32.mrf.mxu0
        %v3814 = vadd.f32 %v3694, %v3813
        %3815 = vmatmul.bf16.gmra.mxu0 %v3732
        %v3816 = vpop.f32.mrf.mxu0
        %v3817 = vadd.f32 %v3694, %v3816
        %v3818 = vpop.f32.mrf.mxu0
        %v3819 = vadd.f32 %v3694, %v3818
        %3820 = vmatmul.bf16.gmra.mxu0 %v3734
        %v3821 = vpop.f32.mrf.mxu0
        %v3822 = vadd.f32 %v3694, %v3821
        %v3823 = vpop.f32.mrf.mxu0
        %v3824 = vadd.f32 %v3694, %v3823
        %3825 = vmatmul.bf16.gmra.mxu0 %v3736
        %v3826 = vpop.f32.mrf.mxu0
        %v3827 = vadd.f32 %v3694, %v3826
        %v3828 = vpop.f32.mrf.mxu0
        %v3829 = vadd.f32 %v3694, %v3828
        %3830 = vmatmul.bf16.gmra.mxu0 %v3738
        %v3831 = vpop.f32.mrf.mxu0
        %v3832 = vadd.f32 %v3694, %v3831
        %v3833 = vpop.f32.mrf.mxu0
        %v3834 = vadd.f32 %v3694, %v3833
        %3835 = vdwg.mxu0
        %vm3836 = vcmp.gt.f32.partialorder %v3757, 0.0
        %vm3837 = vcmp.gt.f32.partialorder %v3759, 0.0
        %vm3838 = vcmp.gt.f32.partialorder %v3762, 0.0
        %vm3839 = vcmp.gt.f32.partialorder %v3764, 0.0
        %vm3840 = vcmp.gt.f32.partialorder %v3767, 0.0
        %vm3841 = vcmp.gt.f32.partialorder %v3769, 0.0
        %vm3842 = vcmp.gt.f32.partialorder %v3772, 0.0
        %vm3843 = vcmp.gt.f32.partialorder %v3774, 0.0
        %vm3844 = vcmp.gt.f32.partialorder %v3777, 0.0
        %vm3845 = vcmp.gt.f32.partialorder %v3779, 0.0
        %vm3846 = vcmp.gt.f32.partialorder %v3782, 0.0
        %vm3847 = vcmp.gt.f32.partialorder %v3784, 0.0
        %vm3848 = vcmp.gt.f32.partialorder %v3787, 0.0
        %vm3849 = vcmp.gt.f32.partialorder %v3789, 0.0
        %vm3850 = vcmp.gt.f32.partialorder %v3792, 0.0
        %vm3851 = vcmp.gt.f32.partialorder %v3794, 0.0
        %vm3852 = vcmp.gt.f32.partialorder %v3797, 0.0
        %vm3853 = vcmp.gt.f32.partialorder %v3799, 0.0
        %vm3854 = vcmp.gt.f32.partialorder %v3802, 0.0
        %vm3855 = vcmp.gt.f32.partialorder %v3804, 0.0
        %vm3856 = vcmp.gt.f32.partialorder %v3807, 0.0
        %vm3857 = vcmp.gt.f32.partialorder %v3809, 0.0
        %vm3858 = vcmp.gt.f32.partialorder %v3812, 0.0
        %vm3859 = vcmp.gt.f32.partialorder %v3814, 0.0
        %vm3860 = vcmp.gt.f32.partialorder %v3817, 0.0
        %vm3861 = vcmp.gt.f32.partialorder %v3819, 0.0
        %vm3862 = vcmp.gt.f32.partialorder %v3822, 0.0
        %vm3863 = vcmp.gt.f32.partialorder %v3824, 0.0
        %vm3864 = vcmp.gt.f32.partialorder %v3827, 0.0
        %vm3865 = vcmp.gt.f32.partialorder %v3829, 0.0
        %vm3866 = vcmp.gt.f32.partialorder %v3832, 0.0
        %vm3867 = vcmp.gt.f32.partialorder %v3834, 0.0
        %v3868 = vmul.f32 %v3757, 0.1
        %v3869 = vmul.f32 %v3759, 0.1
        %v3870 = vmul.f32 %v3762, 0.1
        %v3871 = vmul.f32 %v3764, 0.1
        %v3872 = vmul.f32 %v3767, 0.1
        %v3873 = vmul.f32 %v3769, 0.1
        %v3874 = vmul.f32 %v3772, 0.1
        %v3875 = vmul.f32 %v3774, 0.1
        %v3876 = vmul.f32 %v3777, 0.1
        %v3877 = vmul.f32 %v3779, 0.1
        %v3878 = vmul.f32 %v3782, 0.1
        %v3879 = vmul.f32 %v3784, 0.1
        %v3880 = vmul.f32 %v3787, 0.1
        %v3881 = vmul.f32 %v3789, 0.1
        %v3882 = vmul.f32 %v3792, 0.1
        %v3883 = vmul.f32 %v3794, 0.1
        %v3884 = vmul.f32 %v3797, 0.1
        %v3885 = vmul.f32 %v3799, 0.1
        %v3886 = vmul.f32 %v3802, 0.1
        %v3887 = vmul.f32 %v3804, 0.1
        %v3888 = vmul.f32 %v3807, 0.1
        %v3889 = vmul.f32 %v3809, 0.1
        %v3890 = vmul.f32 %v3812, 0.1
        %v3891 = vmul.f32 %v3814, 0.1
        %v3892 = vmul.f32 %v3817, 0.1
        %v3893 = vmul.f32 %v3819, 0.1
        %v3894 = vmul.f32 %v3822, 0.1
        %v3895 = vmul.f32 %v3824, 0.1
        %v3896 = vmul.f32 %v3827, 0.1
        %v3897 = vmul.f32 %v3829, 0.1
        %v3898 = vmul.f32 %v3832, 0.1
        %v3899 = vmul.f32 %v3834, 0.1
        %v3900 = vsel %vm3836, %v3757, %v3868
        %v3901 = vsel %vm3837, %v3759, %v3869
        %v3902 = vsel %vm3838, %v3762, %v3870
        %v3903 = vsel %vm3839, %v3764, %v3871
        %v3904 = vsel %vm3840, %v3767, %v3872
        %v3905 = vsel %vm3841, %v3769, %v3873
        %v3906 = vsel %vm3842, %v3772, %v3874
        %v3907 = vsel %vm3843, %v3774, %v3875
        %v3908 = vsel %vm3844, %v3777, %v3876
        %v3909 = vsel %vm3845, %v3779, %v3877
        %v3910 = vsel %vm3846, %v3782, %v3878
        %v3911 = vsel %vm3847, %v3784, %v3879
        %v3912 = vsel %vm3848, %v3787, %v3880
        %v3913 = vsel %vm3849, %v3789, %v3881
        %v3914 = vsel %vm3850, %v3792, %v3882
        %v3915 = vsel %vm3851, %v3794, %v3883
        %v3916 = vsel %vm3852, %v3797, %v3884
        %v3917 = vsel %vm3853, %v3799, %v3885
        %v3918 = vsel %vm3854, %v3802, %v3886
        %v3919 = vsel %vm3855, %v3804, %v3887
        %v3920 = vsel %vm3856, %v3807, %v3888
        %v3921 = vsel %vm3857, %v3809, %v3889
        %v3922 = vsel %vm3858, %v3812, %v3890
        %v3923 = vsel %vm3859, %v3814, %v3891
        %v3924 = vsel %vm3860, %v3817, %v3892
        %v3925 = vsel %vm3861, %v3819, %v3893
        %v3926 = vsel %vm3862, %v3822, %v3894
        %v3927 = vsel %vm3863, %v3824, %v3895
        %v3928 = vsel %vm3864, %v3827, %v3896
        %v3929 = vsel %vm3865, %v3829, %v3897
        %v3930 = vsel %vm3866, %v3832, %v3898
        %v3931 = vsel %vm3867, %v3834, %v3899
        %v3932 = vpack.c.bf16 %v3900, %v3900
        %v3933 = vpack.c.bf16 %v3901, %v3901
        %v3934 = vpack.c.bf16 %v3902, %v3902
        %v3935 = vpack.c.bf16 %v3903, %v3903
        %v3936 = vpack.c.bf16 %v3904, %v3904
        %v3937 = vpack.c.bf16 %v3905, %v3905
        %v3938 = vpack.c.bf16 %v3906, %v3906
        %v3939 = vpack.c.bf16 %v3907, %v3907
        %v3940 = vpack.c.bf16 %v3908, %v3908
        %v3941 = vpack.c.bf16 %v3909, %v3909
        %v3942 = vpack.c.bf16 %v3910, %v3910
        %v3943 = vpack.c.bf16 %v3911, %v3911
        %v3944 = vpack.c.bf16 %v3912, %v3912
        %v3945 = vpack.c.bf16 %v3913, %v3913
        %v3946 = vpack.c.bf16 %v3914, %v3914
        %v3947 = vpack.c.bf16 %v3915, %v3915
        %v3948 = vpack.c.bf16 %v3916, %v3916
        %v3949 = vpack.c.bf16 %v3917, %v3917
        %v3950 = vpack.c.bf16 %v3918, %v3918
        %v3951 = vpack.c.bf16 %v3919, %v3919
        %v3952 = vpack.c.bf16 %v3920, %v3920
        %v3953 = vpack.c.bf16 %v3921, %v3921
        %v3954 = vpack.c.bf16 %v3922, %v3922
        %v3955 = vpack.c.bf16 %v3923, %v3923
        %v3956 = vpack.c.bf16 %v3924, %v3924
        %v3957 = vpack.c.bf16 %v3925, %v3925
        %v3958 = vpack.c.bf16 %v3926, %v3926
        %v3959 = vpack.c.bf16 %v3927, %v3927
        %v3960 = vpack.c.bf16 %v3928, %v3928
        %v3961 = vpack.c.bf16 %v3929, %v3929
        %v3962 = vpack.c.bf16 %v3930, %v3930
        %v3963 = vpack.c.bf16 %v3931, %v3931
        %vm3964 = vcmask 125952
        %3965 = vst.msk [vmem:[%s208] sm:$0xf] %vm3964, %v3932
        %3966 = vst.msk [vmem:[%s208 + $0x4] sm:$0xf] %vm3964, %v3933
        %3967 = vst.msk [vmem:[%s208 + $0x8] sm:$0xf] %vm3964, %v3934
        %3968 = vst.msk [vmem:[%s208 + $0xc] sm:$0xf] %vm3964, %v3935
        %3969 = vst.msk [vmem:[%s208 + $0x10] sm:$0xf] %vm3964, %v3936
        %3970 = vst.msk [vmem:[%s208 + $0x14] sm:$0xf] %vm3964, %v3937
        %3971 = vst.msk [vmem:[%s208 + $0x18] sm:$0xf] %vm3964, %v3938
        %3972 = vst.msk [vmem:[%s208 + $0x1c] sm:$0xf] %vm3964, %v3939
        %3973 = vst.msk [vmem:[%s208 + $0x20] sm:$0xf] %vm3964, %v3940
        %3974 = vst.msk [vmem:[%s208 + $0x24] sm:$0xf] %vm3964, %v3941
        %3975 = vst.msk [vmem:[%s208 + $0x28] sm:$0xf] %vm3964, %v3942
        %3976 = vst.msk [vmem:[%s208 + $0x2c] sm:$0xf] %vm3964, %v3943
        %3977 = vst.msk [vmem:[%s208 + $0x30] sm:$0xf] %vm3964, %v3944
        %3978 = vst.msk [vmem:[%s208 + $0x34] sm:$0xf] %vm3964, %v3945
        %3979 = vst.msk [vmem:[%s208 + $0x38] sm:$0xf] %vm3964, %v3946
        %3980 = vst.msk [vmem:[%s208 + $0x3c] sm:$0xf] %vm3964, %v3947
        %3981 = vst.msk [vmem:[%s208 + $0x40] sm:$0xf] %vm3964, %v3948
        %3982 = vst.msk [vmem:[%s208 + $0x44] sm:$0xf] %vm3964, %v3949
        %3983 = vst.msk [vmem:[%s208 + $0x48] sm:$0xf] %vm3964, %v3950
        %3984 = vst.msk [vmem:[%s208 + $0x4c] sm:$0xf] %vm3964, %v3951
        %3985 = vst.msk [vmem:[%s208 + $0x50] sm:$0xf] %vm3964, %v3952
        %3986 = vst.msk [vmem:[%s208 + $0x54] sm:$0xf] %vm3964, %v3953
        %3987 = vst.msk [vmem:[%s208 + $0x58] sm:$0xf] %vm3964, %v3954
        %3988 = vst.msk [vmem:[%s208 + $0x5c] sm:$0xf] %vm3964, %v3955
        %3989 = vst.msk [vmem:[%s208 + $0x60] sm:$0xf] %vm3964, %v3956
        %3990 = vst.msk [vmem:[%s208 + $0x64] sm:$0xf] %vm3964, %v3957
        %3991 = vst.msk [vmem:[%s208 + $0x68] sm:$0xf] %vm3964, %v3958
        %3992 = vst.msk [vmem:[%s208 + $0x6c] sm:$0xf] %vm3964, %v3959
        %3993 = vst.msk [vmem:[%s208 + $0x70] sm:$0xf] %vm3964, %v3960
        %3994 = vst.msk [vmem:[%s208 + $0x74] sm:$0xf] %vm3964, %v3961
        %3995 = vst.msk [vmem:[%s208 + $0x78] sm:$0xf] %vm3964, %v3962
        %3996 = vst.msk [vmem:[%s208 + $0x7c] sm:$0xf] %vm3964, %v3963
        %v3997 = vmax.f32 %v3900, %v3904
        %v3998 = vmax.f32 %v3901, %v3905
        %v3999 = vmax.f32 %v3902, %v3906
        %v4000 = vmax.f32 %v3903, %v3907
        %v4001 = vmax.f32 %v3908, %v3912
        %v4002 = vmax.f32 %v3909, %v3913
        %v4003 = vmax.f32 %v3910, %v3914
        %v4004 = vmax.f32 %v3911, %v3915
        %v4005 = vmax.f32 %v3916, %v3920
        %v4006 = vmax.f32 %v3917, %v3921
        %v4007 = vmax.f32 %v3918, %v3922
        %v4008 = vmax.f32 %v3919, %v3923
        %v4009 = vmax.f32 %v3924, %v3928
        %v4010 = vmax.f32 %v3925, %v3929
        %v4011 = vmax.f32 %v3926, %v3930
        %v4012 = vmax.f32 %v3927, %v3931
        %v4029 = vrot.slane %v3997, 2
        %v4030 = vrot.slane %v3997, 4
        %v4031 = vrot.slane %v3997, 6
        %v4032 = vrot.slane %v3998, 2
        %v4033 = vrot.slane %v3998, 4
        %v4034 = vrot.slane %v3998, 6
        %v4035 = vrot.slane %v3999, 2
        %v4036 = vrot.slane %v3999, 4
        %v4037 = vrot.slane %v3999, 6
        %v4038 = vrot.slane %v4000, 2
        %v4039 = vrot.slane %v4000, 4
        %v4040 = vrot.slane %v4000, 6
        %v4041 = vrot.slane %v4001, 2
        %v4042 = vrot.slane %v4001, 4
        %v4043 = vrot.slane %v4001, 6
        %v4044 = vrot.slane %v4002, 2
        %v4045 = vrot.slane %v4002, 4
        %v4046 = vrot.slane %v4002, 6
        %v4047 = vrot.slane %v4003, 2
        %v4048 = vrot.slane %v4003, 4
        %v4049 = vrot.slane %v4003, 6
        %v4050 = vrot.slane %v4004, 2
        %v4051 = vrot.slane %v4004, 4
        %v4052 = vrot.slane %v4004, 6
        %v4053 = vrot.slane %v4005, 2
        %v4054 = vrot.slane %v4005, 4
        %v4055 = vrot.slane %v4005, 6
        %v4056 = vrot.slane %v4006, 2
        %v4057 = vrot.slane %v4006, 4
        %v4058 = vrot.slane %v4006, 6
        %v4059 = vrot.slane %v4007, 2
        %v4060 = vrot.slane %v4007, 4
        %v4061 = vrot.slane %v4007, 6
        %v4062 = vrot.slane %v4008, 2
        %v4063 = vrot.slane %v4008, 4
        %v4064 = vrot.slane %v4008, 6
        %v4065 = vrot.slane %v4009, 2
        %v4066 = vrot.slane %v4009, 4
        %v4067 = vrot.slane %v4009, 6
        %v4068 = vrot.slane %v4010, 2
        %v4069 = vrot.slane %v4010, 4
        %v4070 = vrot.slane %v4010, 6
        %v4071 = vrot.slane %v4011, 2
        %v4072 = vrot.slane %v4011, 4
        %v4073 = vrot.slane %v4011, 6
        %v4074 = vrot.slane %v4012, 2
        %v4075 = vrot.slane %v4012, 4
        %v4076 = vrot.slane %v4012, 6
        %v4125 = vrot.slane %v3997, 7
        %v4126 = vrot.slane %v4125, 2
        %v4127 = vrot.slane %v4029, 7
        %v4128 = vrot.slane %v4127, 2
        %v4129 = vrot.slane %v4030, 7
        %v4130 = vrot.slane %v4129, 2
        %v4131 = vrot.slane %v4031, 7
        %v4132 = vrot.slane %v4131, 2
        %v4133 = vrot.slane %v3998, 7
        %v4134 = vrot.slane %v4133, 2
        %v4135 = vrot.slane %v4032, 7
        %v4136 = vrot.slane %v4135, 2
        %v4137 = vrot.slane %v4033, 7
        %v4138 = vrot.slane %v4137, 2
        %v4139 = vrot.slane %v4034, 7
        %v4140 = vrot.slane %v4139, 2
        %v4141 = vrot.slane %v3999, 7
        %v4142 = vrot.slane %v4141, 2
        %v4143 = vrot.slane %v4035, 7
        %v4144 = vrot.slane %v4143, 2
        %v4145 = vrot.slane %v4036, 7
        %v4146 = vrot.slane %v4145, 2
        %v4147 = vrot.slane %v4037, 7
        %v4148 = vrot.slane %v4147, 2
        %v4149 = vrot.slane %v4000, 7
        %v4150 = vrot.slane %v4149, 2
        %v4151 = vrot.slane %v4038, 7
        %v4152 = vrot.slane %v4151, 2
        %v4153 = vrot.slane %v4039, 7
        %v4154 = vrot.slane %v4153, 2
        %v4155 = vrot.slane %v4040, 7
        %v4156 = vrot.slane %v4155, 2
        %v4157 = vrot.slane %v4001, 7
        %v4158 = vrot.slane %v4157, 2
        %v4159 = vrot.slane %v4041, 7
        %v4160 = vrot.slane %v4159, 2
        %v4161 = vrot.slane %v4042, 7
        %v4162 = vrot.slane %v4161, 2
        %v4163 = vrot.slane %v4043, 7
        %v4164 = vrot.slane %v4163, 2
        %v4165 = vrot.slane %v4002, 7
        %v4166 = vrot.slane %v4165, 2
        %v4167 = vrot.slane %v4044, 7
        %v4168 = vrot.slane %v4167, 2
        %v4169 = vrot.slane %v4045, 7
        %v4170 = vrot.slane %v4169, 2
        %v4171 = vrot.slane %v4046, 7
        %v4172 = vrot.slane %v4171, 2
        %v4173 = vrot.slane %v4003, 7
        %v4174 = vrot.slane %v4173, 2
        %v4175 = vrot.slane %v4047, 7
        %v4176 = vrot.slane %v4175, 2
        %v4177 = vrot.slane %v4048, 7
        %v4178 = vrot.slane %v4177, 2
        %v4179 = vrot.slane %v4049, 7
        %v4180 = vrot.slane %v4179, 2
        %v4181 = vrot.slane %v4004, 7
        %v4182 = vrot.slane %v4181, 2
        %v4183 = vrot.slane %v4050, 7
        %v4184 = vrot.slane %v4183, 2
        %v4185 = vrot.slane %v4051, 7
        %v4186 = vrot.slane %v4185, 2
        %v4187 = vrot.slane %v4052, 7
        %v4188 = vrot.slane %v4187, 2
        %v4189 = vrot.slane %v4005, 7
        %v4190 = vrot.slane %v4189, 2
        %v4191 = vrot.slane %v4053, 7
        %v4192 = vrot.slane %v4191, 2
        %v4193 = vrot.slane %v4054, 7
        %v4194 = vrot.slane %v4193, 2
        %v4195 = vrot.slane %v4055, 7
        %v4196 = vrot.slane %v4195, 2
        %v4197 = vrot.slane %v4006, 7
        %v4198 = vrot.slane %v4197, 2
        %v4199 = vrot.slane %v4056, 7
        %v4200 = vrot.slane %v4199, 2
        %v4201 = vrot.slane %v4057, 7
        %v4202 = vrot.slane %v4201, 2
        %v4203 = vrot.slane %v4058, 7
        %v4204 = vrot.slane %v4203, 2
        %v4205 = vrot.slane %v4007, 7
        %v4206 = vrot.slane %v4205, 2
        %v4207 = vrot.slane %v4059, 7
        %v4208 = vrot.slane %v4207, 2
        %v4209 = vrot.slane %v4060, 7
        %v4210 = vrot.slane %v4209, 2
        %v4211 = vrot.slane %v4061, 7
        %v4212 = vrot.slane %v4211, 2
        %v4213 = vrot.slane %v4008, 7
        %v4214 = vrot.slane %v4213, 2
        %v4215 = vrot.slane %v4062, 7
        %v4216 = vrot.slane %v4215, 2
        %v4217 = vrot.slane %v4063, 7
        %v4218 = vrot.slane %v4217, 2
        %v4219 = vrot.slane %v4064, 7
        %v4220 = vrot.slane %v4219, 2
        %v4221 = vrot.slane %v4009, 7
        %v4222 = vrot.slane %v4221, 2
        %v4223 = vrot.slane %v4065, 7
        %v4224 = vrot.slane %v4223, 2
        %v4225 = vrot.slane %v4066, 7
        %v4226 = vrot.slane %v4225, 2
        %v4227 = vrot.slane %v4067, 7
        %v4228 = vrot.slane %v4227, 2
        %v4229 = vrot.slane %v4010, 7
        %v4230 = vrot.slane %v4229, 2
        %v4231 = vrot.slane %v4068, 7
        %v4232 = vrot.slane %v4231, 2
        %v4233 = vrot.slane %v4069, 7
        %v4234 = vrot.slane %v4233, 2
        %v4235 = vrot.slane %v4070, 7
        %v4236 = vrot.slane %v4235, 2
        %v4237 = vrot.slane %v4011, 7
        %v4238 = vrot.slane %v4237, 2
        %v4239 = vrot.slane %v4071, 7
        %v4240 = vrot.slane %v4239, 2
        %v4241 = vrot.slane %v4072, 7
        %v4242 = vrot.slane %v4241, 2
        %v4243 = vrot.slane %v4073, 7
        %v4244 = vrot.slane %v4243, 2
        %v4245 = vrot.slane %v4012, 7
        %v4246 = vrot.slane %v4245, 2
        %v4247 = vrot.slane %v4074, 7
        %v4248 = vrot.slane %v4247, 2
        %v4249 = vrot.slane %v4075, 7
        %v4250 = vrot.slane %v4249, 2
        %v4251 = vrot.slane %v4076, 7
        %v4252 = vrot.slane %v4251, 2
        %v4317 = vmax.f32 %v3997, %v4126
        %v4318 = vmax.f32 %v4029, %v4128
        %v4319 = vmax.f32 %v4030, %v4130
        %v4320 = vmax.f32 %v4031, %v4132
        %v4321 = vmax.f32 %v3998, %v4134
        %v4322 = vmax.f32 %v4032, %v4136
        %v4323 = vmax.f32 %v4033, %v4138
        %v4324 = vmax.f32 %v4034, %v4140
        %v4325 = vmax.f32 %v3999, %v4142
        %v4326 = vmax.f32 %v4035, %v4144
        %v4327 = vmax.f32 %v4036, %v4146
        %v4328 = vmax.f32 %v4037, %v4148
        %v4329 = vmax.f32 %v4000, %v4150
        %v4330 = vmax.f32 %v4038, %v4152
        %v4331 = vmax.f32 %v4039, %v4154
        %v4332 = vmax.f32 %v4040, %v4156
        %v4333 = vmax.f32 %v4001, %v4158
        %v4334 = vmax.f32 %v4041, %v4160
        %v4335 = vmax.f32 %v4042, %v4162
        %v4336 = vmax.f32 %v4043, %v4164
        %v4337 = vmax.f32 %v4002, %v4166
        %v4338 = vmax.f32 %v4044, %v4168
        %v4339 = vmax.f32 %v4045, %v4170
        %v4340 = vmax.f32 %v4046, %v4172
        %v4341 = vmax.f32 %v4003, %v4174
        %v4342 = vmax.f32 %v4047, %v4176
        %v4343 = vmax.f32 %v4048, %v4178
        %v4344 = vmax.f32 %v4049, %v4180
        %v4345 = vmax.f32 %v4004, %v4182
        %v4346 = vmax.f32 %v4050, %v4184
        %v4347 = vmax.f32 %v4051, %v4186
        %v4348 = vmax.f32 %v4052, %v4188
        %v4349 = vmax.f32 %v4005, %v4190
        %v4350 = vmax.f32 %v4053, %v4192
        %v4351 = vmax.f32 %v4054, %v4194
        %v4352 = vmax.f32 %v4055, %v4196
        %v4353 = vmax.f32 %v4006, %v4198
        %v4354 = vmax.f32 %v4056, %v4200
        %v4355 = vmax.f32 %v4057, %v4202
        %v4356 = vmax.f32 %v4058, %v4204
        %v4357 = vmax.f32 %v4007, %v4206
        %v4358 = vmax.f32 %v4059, %v4208
        %v4359 = vmax.f32 %v4060, %v4210
        %v4360 = vmax.f32 %v4061, %v4212
        %v4361 = vmax.f32 %v4008, %v4214
        %v4362 = vmax.f32 %v4062, %v4216
        %v4363 = vmax.f32 %v4063, %v4218
        %v4364 = vmax.f32 %v4064, %v4220
        %v4365 = vmax.f32 %v4009, %v4222
        %v4366 = vmax.f32 %v4065, %v4224
        %v4367 = vmax.f32 %v4066, %v4226
        %v4368 = vmax.f32 %v4067, %v4228
        %v4369 = vmax.f32 %v4010, %v4230
        %v4370 = vmax.f32 %v4068, %v4232
        %v4371 = vmax.f32 %v4069, %v4234
        %v4372 = vmax.f32 %v4070, %v4236
        %v4373 = vmax.f32 %v4011, %v4238
        %v4374 = vmax.f32 %v4071, %v4240
        %v4375 = vmax.f32 %v4072, %v4242
        %v4376 = vmax.f32 %v4073, %v4244
        %v4377 = vmax.f32 %v4012, %v4246
        %v4378 = vmax.f32 %v4074, %v4248
        %v4379 = vmax.f32 %v4075, %v4250
        %v4380 = vmax.f32 %v4076, %v4252
        %v4381 = vpack.c.bf16 %v4317, %v4317
        %v4382 = vpack.c.bf16 %v4318, %v4318
        %v4383 = vpack.c.bf16 %v4319, %v4319
        %v4384 = vpack.c.bf16 %v4320, %v4320
        %v4385 = vpack.c.bf16 %v4321, %v4321
        %v4386 = vpack.c.bf16 %v4322, %v4322
        %v4387 = vpack.c.bf16 %v4323, %v4323
        %v4388 = vpack.c.bf16 %v4324, %v4324
        %v4389 = vpack.c.bf16 %v4325, %v4325
        %v4390 = vpack.c.bf16 %v4326, %v4326
        %v4391 = vpack.c.bf16 %v4327, %v4327
        %v4392 = vpack.c.bf16 %v4328, %v4328
        %v4393 = vpack.c.bf16 %v4329, %v4329
        %v4394 = vpack.c.bf16 %v4330, %v4330
        %v4395 = vpack.c.bf16 %v4331, %v4331
        %v4396 = vpack.c.bf16 %v4332, %v4332
        %v4397 = vpack.c.bf16 %v4333, %v4333
        %v4398 = vpack.c.bf16 %v4334, %v4334
        %v4399 = vpack.c.bf16 %v4335, %v4335
        %v4400 = vpack.c.bf16 %v4336, %v4336
        %v4401 = vpack.c.bf16 %v4337, %v4337
        %v4402 = vpack.c.bf16 %v4338, %v4338
        %v4403 = vpack.c.bf16 %v4339, %v4339
        %v4404 = vpack.c.bf16 %v4340, %v4340
        %v4405 = vpack.c.bf16 %v4341, %v4341
        %v4406 = vpack.c.bf16 %v4342, %v4342
        %v4407 = vpack.c.bf16 %v4343, %v4343
        %v4408 = vpack.c.bf16 %v4344, %v4344
        %v4409 = vpack.c.bf16 %v4345, %v4345
        %v4410 = vpack.c.bf16 %v4346, %v4346
        %v4411 = vpack.c.bf16 %v4347, %v4347
        %v4412 = vpack.c.bf16 %v4348, %v4348
        %v4413 = vpack.c.bf16 %v4349, %v4349
        %v4414 = vpack.c.bf16 %v4350, %v4350
        %v4415 = vpack.c.bf16 %v4351, %v4351
        %v4416 = vpack.c.bf16 %v4352, %v4352
        %v4417 = vpack.c.bf16 %v4353, %v4353
        %v4418 = vpack.c.bf16 %v4354, %v4354
        %v4419 = vpack.c.bf16 %v4355, %v4355
        %v4420 = vpack.c.bf16 %v4356, %v4356
        %v4421 = vpack.c.bf16 %v4357, %v4357
        %v4422 = vpack.c.bf16 %v4358, %v4358
        %v4423 = vpack.c.bf16 %v4359, %v4359
        %v4424 = vpack.c.bf16 %v4360, %v4360
        %v4425 = vpack.c.bf16 %v4361, %v4361
        %v4426 = vpack.c.bf16 %v4362, %v4362
        %v4427 = vpack.c.bf16 %v4363, %v4363
        %v4428 = vpack.c.bf16 %v4364, %v4364
        %v4429 = vpack.c.bf16 %v4365, %v4365
        %v4430 = vpack.c.bf16 %v4366, %v4366
        %v4431 = vpack.c.bf16 %v4367, %v4367
        %v4432 = vpack.c.bf16 %v4368, %v4368
        %v4433 = vpack.c.bf16 %v4369, %v4369
        %v4434 = vpack.c.bf16 %v4370, %v4370
        %v4435 = vpack.c.bf16 %v4371, %v4371
        %v4436 = vpack.c.bf16 %v4372, %v4372
        %v4437 = vpack.c.bf16 %v4373, %v4373
        %v4438 = vpack.c.bf16 %v4374, %v4374
        %v4439 = vpack.c.bf16 %v4375, %v4375
        %v4440 = vpack.c.bf16 %v4376, %v4376
        %v4441 = vpack.c.bf16 %v4377, %v4377
        %v4442 = vpack.c.bf16 %v4378, %v4378
        %v4443 = vpack.c.bf16 %v4379, %v4379
        %v4444 = vpack.c.bf16 %v4380, %v4380
        %v4509 = vunpack.c.l.b16 %v4381
        %v4510 = vunpack.c.l.b16 %v4382
        %v4511 = vunpack.c.l.b16 %v4383
        %v4512 = vunpack.c.l.b16 %v4384
        %v4513 = vunpack.c.l.b16 %v4385
        %v4514 = vunpack.c.l.b16 %v4386
        %v4515 = vunpack.c.l.b16 %v4387
        %v4516 = vunpack.c.l.b16 %v4388
        %v4517 = vunpack.c.l.b16 %v4389
        %v4518 = vunpack.c.l.b16 %v4390
        %v4519 = vunpack.c.l.b16 %v4391
        %v4520 = vunpack.c.l.b16 %v4392
        %v4521 = vunpack.c.l.b16 %v4393
        %v4522 = vunpack.c.l.b16 %v4394
        %v4523 = vunpack.c.l.b16 %v4395
        %v4524 = vunpack.c.l.b16 %v4396
        %v4525 = vunpack.c.l.b16 %v4397
        %v4526 = vunpack.c.l.b16 %v4398
        %v4527 = vunpack.c.l.b16 %v4399
        %v4528 = vunpack.c.l.b16 %v4400
        %v4529 = vunpack.c.l.b16 %v4401
        %v4530 = vunpack.c.l.b16 %v4402
        %v4531 = vunpack.c.l.b16 %v4403
        %v4532 = vunpack.c.l.b16 %v4404
        %v4533 = vunpack.c.l.b16 %v4405
        %v4534 = vunpack.c.l.b16 %v4406
        %v4535 = vunpack.c.l.b16 %v4407
        %v4536 = vunpack.c.l.b16 %v4408
        %v4537 = vunpack.c.l.b16 %v4409
        %v4538 = vunpack.c.l.b16 %v4410
        %v4539 = vunpack.c.l.b16 %v4411
        %v4540 = vunpack.c.l.b16 %v4412
        %v4541 = vunpack.c.l.b16 %v4413
        %v4542 = vunpack.c.l.b16 %v4414
        %v4543 = vunpack.c.l.b16 %v4415
        %v4544 = vunpack.c.l.b16 %v4416
        %v4545 = vunpack.c.l.b16 %v4417
        %v4546 = vunpack.c.l.b16 %v4418
        %v4547 = vunpack.c.l.b16 %v4419
        %v4548 = vunpack.c.l.b16 %v4420
        %v4549 = vunpack.c.l.b16 %v4421
        %v4550 = vunpack.c.l.b16 %v4422
        %v4551 = vunpack.c.l.b16 %v4423
        %v4552 = vunpack.c.l.b16 %v4424
        %v4553 = vunpack.c.l.b16 %v4425
        %v4554 = vunpack.c.l.b16 %v4426
        %v4555 = vunpack.c.l.b16 %v4427
        %v4556 = vunpack.c.l.b16 %v4428
        %v4557 = vunpack.c.l.b16 %v4429
        %v4558 = vunpack.c.l.b16 %v4430
        %v4559 = vunpack.c.l.b16 %v4431
        %v4560 = vunpack.c.l.b16 %v4432
        %v4561 = vunpack.c.l.b16 %v4433
        %v4562 = vunpack.c.l.b16 %v4434
        %v4563 = vunpack.c.l.b16 %v4435
        %v4564 = vunpack.c.l.b16 %v4436
        %v4565 = vunpack.c.l.b16 %v4437
        %v4566 = vunpack.c.l.b16 %v4438
        %v4567 = vunpack.c.l.b16 %v4439
        %v4568 = vunpack.c.l.b16 %v4440
        %v4569 = vunpack.c.l.b16 %v4441
        %v4570 = vunpack.c.l.b16 %v4442
        %v4571 = vunpack.c.l.b16 %v4443
        %v4572 = vunpack.c.l.b16 %v4444
        %v4573 = vrot.slane %v4510, 7
        %vm4574 = vcmask 1041409
        %v4575 = vsel %vm4574, %v4573, %v4509
        %v4576 = vrot.slane %v4511, 6
        %vm4577 = vcmask 1042434
        %v4578 = vsel %vm4577, %v4576, %v4575
        %v4579 = vrot.slane %v4512, 5
        %vm4580 = vcmask 1043459
        %v4581 = vsel %vm4580, %v4579, %v4578
        %v4582 = vrot.slane %v4513, 4
        %vm4583 = vcmask 1044484
        %v4584 = vsel %vm4583, %v4582, %v4581
        %v4585 = vrot.slane %v4514, 3
        %vm4586 = vcmask 1045509
        %v4587 = vsel %vm4586, %v4585, %v4584
        %v4588 = vrot.slane %v4515, 2
        %vm4589 = vcmask 1046534
        %v4590 = vsel %vm4589, %v4588, %v4587
        %v4591 = vrot.slane %v4516, 1
        %vm4592 = vcmask 1047559
        %v4593 = vsel %vm4592, %v4591, %v4590
        %v4594 = vrot.slane %v4518, 7
        %v4595 = vsel %vm4574, %v4594, %v4517
        %v4596 = vrot.slane %v4519, 6
        %v4597 = vsel %vm4577, %v4596, %v4595
        %v4598 = vrot.slane %v4520, 5
        %v4599 = vsel %vm4580, %v4598, %v4597
        %v4600 = vrot.slane %v4521, 4
        %v4601 = vsel %vm4583, %v4600, %v4599
        %v4602 = vrot.slane %v4522, 3
        %v4603 = vsel %vm4586, %v4602, %v4601
        %v4604 = vrot.slane %v4523, 2
        %v4605 = vsel %vm4589, %v4604, %v4603
        %v4606 = vrot.slane %v4524, 1
        %v4607 = vsel %vm4592, %v4606, %v4605
        %v4608 = vrot.slane %v4526, 7
        %v4609 = vsel %vm4574, %v4608, %v4525
        %v4610 = vrot.slane %v4527, 6
        %v4611 = vsel %vm4577, %v4610, %v4609
        %v4612 = vrot.slane %v4528, 5
        %v4613 = vsel %vm4580, %v4612, %v4611
        %v4614 = vrot.slane %v4529, 4
        %v4615 = vsel %vm4583, %v4614, %v4613
        %v4616 = vrot.slane %v4530, 3
        %v4617 = vsel %vm4586, %v4616, %v4615
        %v4618 = vrot.slane %v4531, 2
        %v4619 = vsel %vm4589, %v4618, %v4617
        %v4620 = vrot.slane %v4532, 1
        %v4621 = vsel %vm4592, %v4620, %v4619
        %v4622 = vrot.slane %v4534, 7
        %v4623 = vsel %vm4574, %v4622, %v4533
        %v4624 = vrot.slane %v4535, 6
        %v4625 = vsel %vm4577, %v4624, %v4623
        %v4626 = vrot.slane %v4536, 5
        %v4627 = vsel %vm4580, %v4626, %v4625
        %v4628 = vrot.slane %v4537, 4
        %v4629 = vsel %vm4583, %v4628, %v4627
        %v4630 = vrot.slane %v4538, 3
        %v4631 = vsel %vm4586, %v4630, %v4629
        %v4632 = vrot.slane %v4539, 2
        %v4633 = vsel %vm4589, %v4632, %v4631
        %v4634 = vrot.slane %v4540, 1
        %v4635 = vsel %vm4592, %v4634, %v4633
        %v4636 = vrot.slane %v4542, 7
        %v4637 = vsel %vm4574, %v4636, %v4541
        %v4638 = vrot.slane %v4543, 6
        %v4639 = vsel %vm4577, %v4638, %v4637
        %v4640 = vrot.slane %v4544, 5
        %v4641 = vsel %vm4580, %v4640, %v4639
        %v4642 = vrot.slane %v4545, 4
        %v4643 = vsel %vm4583, %v4642, %v4641
        %v4644 = vrot.slane %v4546, 3
        %v4645 = vsel %vm4586, %v4644, %v4643
        %v4646 = vrot.slane %v4547, 2
        %v4647 = vsel %vm4589, %v4646, %v4645
        %v4648 = vrot.slane %v4548, 1
        %v4649 = vsel %vm4592, %v4648, %v4647
        %v4650 = vrot.slane %v4550, 7
        %v4651 = vsel %vm4574, %v4650, %v4549
        %v4652 = vrot.slane %v4551, 6
        %v4653 = vsel %vm4577, %v4652, %v4651
        %v4654 = vrot.slane %v4552, 5
        %v4655 = vsel %vm4580, %v4654, %v4653
        %v4656 = vrot.slane %v4553, 4
        %v4657 = vsel %vm4583, %v4656, %v4655
        %v4658 = vrot.slane %v4554, 3
        %v4659 = vsel %vm4586, %v4658, %v4657
        %v4660 = vrot.slane %v4555, 2
        %v4661 = vsel %vm4589, %v4660, %v4659
        %v4662 = vrot.slane %v4556, 1
        %v4663 = vsel %vm4592, %v4662, %v4661
        %v4664 = vrot.slane %v4558, 7
        %v4665 = vsel %vm4574, %v4664, %v4557
        %v4666 = vrot.slane %v4559, 6
        %v4667 = vsel %vm4577, %v4666, %v4665
        %v4668 = vrot.slane %v4560, 5
        %v4669 = vsel %vm4580, %v4668, %v4667
        %v4670 = vrot.slane %v4561, 4
        %v4671 = vsel %vm4583, %v4670, %v4669
        %v4672 = vrot.slane %v4562, 3
        %v4673 = vsel %vm4586, %v4672, %v4671
        %v4674 = vrot.slane %v4563, 2
        %v4675 = vsel %vm4589, %v4674, %v4673
        %v4676 = vrot.slane %v4564, 1
        %v4677 = vsel %vm4592, %v4676, %v4675
        %v4678 = vrot.slane %v4566, 7
        %v4679 = vsel %vm4574, %v4678, %v4565
        %v4680 = vrot.slane %v4567, 6
        %v4681 = vsel %vm4577, %v4680, %v4679
        %v4682 = vrot.slane %v4568, 5
        %v4683 = vsel %vm4580, %v4682, %v4681
        %v4684 = vrot.slane %v4569, 4
        %v4685 = vsel %vm4583, %v4684, %v4683
        %v4686 = vrot.slane %v4570, 3
        %v4687 = vsel %vm4586, %v4686, %v4685
        %v4688 = vrot.slane %v4571, 2
        %v4689 = vsel %vm4589, %v4688, %v4687
        %v4690 = vrot.slane %v4572, 1
        %v4691 = vsel %vm4592, %v4690, %v4689
        %v4692 = vpack.c.b16 %v4593, %v4593
        %v4693 = vpack.c.b16 %v4607, %v4607
        %v4694 = vpack.c.b16 %v4621, %v4621
        %v4695 = vpack.c.b16 %v4635, %v4635
        %v4696 = vpack.c.b16 %v4649, %v4649
        %v4697 = vpack.c.b16 %v4663, %v4663
        %v4698 = vpack.c.b16 %v4677, %v4677
        %v4699 = vpack.c.b16 %v4691, %v4691
        %4708 = vst.msk [vmem:[%s191] sm:$0xf] %vm3964, %v4692
        %4709 = vst.msk [vmem:[%s191 + $0x4] sm:$0xf] %vm3964, %v4693
        %4710 = vst.msk [vmem:[%s191 + $0x8] sm:$0xf] %vm3964, %v4694
        %4711 = vst.msk [vmem:[%s191 + $0xc] sm:$0xf] %vm3964, %v4695
        %4712 = vst.msk [vmem:[%s191 + $0x10] sm:$0xf] %vm3964, %v4696
        %4713 = vst.msk [vmem:[%s191 + $0x14] sm:$0xf] %vm3964, %v4697
        %4714 = vst.msk [vmem:[%s191 + $0x18] sm:$0xf] %vm3964, %v4698
        %4715 = vst.msk [vmem:[%s191 + $0x1c] sm:$0xf] %vm3964, %v4699
        %s4716 = scalar_lea.vmem [#allocation2], 160
        %v4717 = vld [vmem:[%s4716] sm:$0xf]
        %v4718 = vld [vmem:[%s4716 + $0x4] sm:$0xf]
        %v4719 = vld [vmem:[%s4716 + $0x8] sm:$0xf]
        %v4720 = vld [vmem:[%s4716 + $0xc] sm:$0xf]
        %v4721 = vld [vmem:[%s4716 + $0x10] sm:$0x1]
        %v4722 = vld [vmem:[%s4716 + $0x14] sm:$0xf]
        %v4723 = vld [vmem:[%s4716 + $0x18] sm:$0xf]
        %v4724 = vld [vmem:[%s4716 + $0x1c] sm:$0xf]
        %v4725 = vld [vmem:[%s4716 + $0x20] sm:$0xf]
        %v4726 = vld [vmem:[%s4716 + $0x24] sm:$0x1]
        %v4727 = vld [vmem:[%s4716 + $0x28] sm:$0xf]
        %v4728 = vld [vmem:[%s4716 + $0x2c] sm:$0xf]
        %v4729 = vld [vmem:[%s4716 + $0x30] sm:$0xf]
        %v4730 = vld [vmem:[%s4716 + $0x34] sm:$0xf]
        %v4731 = vld [vmem:[%s4716 + $0x38] sm:$0x1]
        %v4732 = vld [vmem:[%s4716 + $0x3c] sm:$0xf]
        %v4733 = vld [vmem:[%s4716 + $0x40] sm:$0xf]
        %v4734 = vld [vmem:[%s4716 + $0x44] sm:$0xf]
        %v4735 = vld [vmem:[%s4716 + $0x48] sm:$0xf]
        %v4736 = vld [vmem:[%s4716 + $0x4c] sm:$0x1]
        %v4737 = vld [vmem:[%s4716 + $0x50] sm:$0xf]
        %v4738 = vld [vmem:[%s4716 + $0x54] sm:$0xf]
        %v4739 = vld [vmem:[%s4716 + $0x58] sm:$0xf]
        %v4740 = vld [vmem:[%s4716 + $0x5c] sm:$0xf]
        %v4741 = vld [vmem:[%s4716 + $0x60] sm:$0x1]
        %v4742 = vld [vmem:[%s4716 + $0x64] sm:$0xf]
        %v4743 = vld [vmem:[%s4716 + $0x68] sm:$0xf]
        %v4744 = vld [vmem:[%s4716 + $0x6c] sm:$0xf]
        %v4745 = vld [vmem:[%s4716 + $0x70] sm:$0xf]
        %v4746 = vld [vmem:[%s4716 + $0x74] sm:$0x1]
        %v4747 = vld [vmem:[%s4716 + $0x78] sm:$0xf]
        %v4748 = vld [vmem:[%s4716 + $0x7c] sm:$0xf]
        %v4749 = vld [vmem:[%s4716 + $0x80] sm:$0xf]
        %v4750 = vld [vmem:[%s4716 + $0x84] sm:$0xf]
        %v4751 = vld [vmem:[%s4716 + $0x88] sm:$0x1]
        %v4752 = vld [vmem:[%s4716 + $0x8c] sm:$0xf]
        %v4753 = vld [vmem:[%s4716 + $0x90] sm:$0xf]
        %v4754 = vld [vmem:[%s4716 + $0x94] sm:$0xf]
        %v4755 = vld [vmem:[%s4716 + $0x98] sm:$0xf]
        %v4756 = vld [vmem:[%s4716 + $0x9c] sm:$0x1]
        %s4757 = scalar_lea.vmem [#allocation2], 180
        %v4758 = vld [vmem:[%s4757] sm:$0xf]
        %v4759 = vld [vmem:[%s4757 + $0x4] sm:$0xf]
        %v4760 = vld [vmem:[%s4757 + $0x8] sm:$0xf]
        %v4761 = vld [vmem:[%s4757 + $0xc] sm:$0xf]
        %v4762 = vld [vmem:[%s4757 + $0x10] sm:$0x1]
        %v4763 = vld [vmem:[%s4757 + $0x14] sm:$0xf]
        %v4764 = vld [vmem:[%s4757 + $0x18] sm:$0xf]
        %v4765 = vld [vmem:[%s4757 + $0x1c] sm:$0xf]
        %v4766 = vld [vmem:[%s4757 + $0x20] sm:$0xf]
        %v4767 = vld [vmem:[%s4757 + $0x24] sm:$0x1]
        %v4768 = vld [vmem:[%s4757 + $0x28] sm:$0xf]
        %v4769 = vld [vmem:[%s4757 + $0x2c] sm:$0xf]
        %v4770 = vld [vmem:[%s4757 + $0x30] sm:$0xf]
        %v4771 = vld [vmem:[%s4757 + $0x34] sm:$0xf]
        %v4772 = vld [vmem:[%s4757 + $0x38] sm:$0x1]
        %v4773 = vld [vmem:[%s4757 + $0x3c] sm:$0xf]
        %v4774 = vld [vmem:[%s4757 + $0x40] sm:$0xf]
        %v4775 = vld [vmem:[%s4757 + $0x44] sm:$0xf]
        %v4776 = vld [vmem:[%s4757 + $0x48] sm:$0xf]
        %v4777 = vld [vmem:[%s4757 + $0x4c] sm:$0x1]
        %v4778 = vld [vmem:[%s4757 + $0x50] sm:$0xf]
        %v4779 = vld [vmem:[%s4757 + $0x54] sm:$0xf]
        %v4780 = vld [vmem:[%s4757 + $0x58] sm:$0xf]
        %v4781 = vld [vmem:[%s4757 + $0x5c] sm:$0xf]
        %v4782 = vld [vmem:[%s4757 + $0x60] sm:$0x1]
        %v4783 = vld [vmem:[%s4757 + $0x64] sm:$0xf]
        %v4784 = vld [vmem:[%s4757 + $0x68] sm:$0xf]
        %v4785 = vld [vmem:[%s4757 + $0x6c] sm:$0xf]
        %v4786 = vld [vmem:[%s4757 + $0x70] sm:$0xf]
        %v4787 = vld [vmem:[%s4757 + $0x74] sm:$0x1]
        %v4788 = vld [vmem:[%s4757 + $0x78] sm:$0xf]
        %v4789 = vld [vmem:[%s4757 + $0x7c] sm:$0xf]
        %v4790 = vld [vmem:[%s4757 + $0x80] sm:$0xf]
        %v4791 = vld [vmem:[%s4757 + $0x84] sm:$0xf]
        %v4792 = vld [vmem:[%s4757 + $0x88] sm:$0x1]
        %v4793 = vld [vmem:[%s4757 + $0x8c] sm:$0xf]
        %v4794 = vld [vmem:[%s4757 + $0x90] sm:$0xf]
        %v4795 = vld [vmem:[%s4757 + $0x94] sm:$0xf]
        %v4796 = vld [vmem:[%s4757 + $0x98] sm:$0xf]
        %v4797 = vld [vmem:[%s4757 + $0x9c] sm:$0x1]
        %s4798 = scalar_lea.vmem [#allocation2], 200
        %v4799 = vld [vmem:[%s4798] sm:$0xf]
        %v4800 = vld [vmem:[%s4798 + $0x4] sm:$0xf]
        %v4801 = vld [vmem:[%s4798 + $0x8] sm:$0xf]
        %v4802 = vld [vmem:[%s4798 + $0xc] sm:$0xf]
        %v4803 = vld [vmem:[%s4798 + $0x10] sm:$0x1]
        %v4804 = vld [vmem:[%s4798 + $0x14] sm:$0xf]
        %v4805 = vld [vmem:[%s4798 + $0x18] sm:$0xf]
        %v4806 = vld [vmem:[%s4798 + $0x1c] sm:$0xf]
        %v4807 = vld [vmem:[%s4798 + $0x20] sm:$0xf]
        %v4808 = vld [vmem:[%s4798 + $0x24] sm:$0x1]
        %v4809 = vld [vmem:[%s4798 + $0x28] sm:$0xf]
        %v4810 = vld [vmem:[%s4798 + $0x2c] sm:$0xf]
        %v4811 = vld [vmem:[%s4798 + $0x30] sm:$0xf]
        %v4812 = vld [vmem:[%s4798 + $0x34] sm:$0xf]
        %v4813 = vld [vmem:[%s4798 + $0x38] sm:$0x1]
        %v4814 = vld [vmem:[%s4798 + $0x3c] sm:$0xf]
        %v4815 = vld [vmem:[%s4798 + $0x40] sm:$0xf]
        %v4816 = vld [vmem:[%s4798 + $0x44] sm:$0xf]
        %v4817 = vld [vmem:[%s4798 + $0x48] sm:$0xf]
        %v4818 = vld [vmem:[%s4798 + $0x4c] sm:$0x1]
        %v4819 = vld [vmem:[%s4798 + $0x50] sm:$0xf]
        %v4820 = vld [vmem:[%s4798 + $0x54] sm:$0xf]
        %v4821 = vld [vmem:[%s4798 + $0x58] sm:$0xf]
        %v4822 = vld [vmem:[%s4798 + $0x5c] sm:$0xf]
        %v4823 = vld [vmem:[%s4798 + $0x60] sm:$0x1]
        %v4824 = vld [vmem:[%s4798 + $0x64] sm:$0xf]
        %v4825 = vld [vmem:[%s4798 + $0x68] sm:$0xf]
        %v4826 = vld [vmem:[%s4798 + $0x6c] sm:$0xf]
        %v4827 = vld [vmem:[%s4798 + $0x70] sm:$0xf]
        %v4828 = vld [vmem:[%s4798 + $0x74] sm:$0x1]
        %v4829 = vld [vmem:[%s4798 + $0x78] sm:$0xf]
        %v4830 = vld [vmem:[%s4798 + $0x7c] sm:$0xf]
        %v4831 = vld [vmem:[%s4798 + $0x80] sm:$0xf]
        %v4832 = vld [vmem:[%s4798 + $0x84] sm:$0xf]
        %v4833 = vld [vmem:[%s4798 + $0x88] sm:$0x1]
        %v4834 = vld [vmem:[%s4798 + $0x8c] sm:$0xf]
        %v4835 = vld [vmem:[%s4798 + $0x90] sm:$0xf]
        %v4836 = vld [vmem:[%s4798 + $0x94] sm:$0xf]
        %v4837 = vld [vmem:[%s4798 + $0x98] sm:$0xf]
        %v4838 = vld [vmem:[%s4798 + $0x9c] sm:$0x1]
        %v4871 = vunpack.c.l.b16 %v4717
        %v4872 = vunpack.c.l.b16 %v4718
        %v4873 = vunpack.c.l.b16 %v4719
        %v4874 = vunpack.c.l.b16 %v4720
        %v4875 = vunpack.c.l.b16 %v4722
        %v4876 = vunpack.c.l.b16 %v4723
        %v4877 = vunpack.c.l.b16 %v4724
        %v4878 = vunpack.c.l.b16 %v4725
        %v4879 = vunpack.c.l.b16 %v4727
        %v4880 = vunpack.c.l.b16 %v4728
        %v4881 = vunpack.c.l.b16 %v4729
        %v4882 = vunpack.c.l.b16 %v4730
        %v4883 = vunpack.c.l.b16 %v4732
        %v4884 = vunpack.c.l.b16 %v4733
        %v4885 = vunpack.c.l.b16 %v4734
        %v4886 = vunpack.c.l.b16 %v4735
        %v4887 = vunpack.c.l.b16 %v4737
        %v4888 = vunpack.c.l.b16 %v4738
        %v4889 = vunpack.c.l.b16 %v4739
        %v4890 = vunpack.c.l.b16 %v4740
        %v4891 = vunpack.c.l.b16 %v4742
        %v4892 = vunpack.c.l.b16 %v4743
        %v4893 = vunpack.c.l.b16 %v4744
        %v4894 = vunpack.c.l.b16 %v4745
        %v4895 = vunpack.c.l.b16 %v4747
        %v4896 = vunpack.c.l.b16 %v4748
        %v4897 = vunpack.c.l.b16 %v4749
        %v4898 = vunpack.c.l.b16 %v4750
        %v4899 = vunpack.c.l.b16 %v4752
        %v4900 = vunpack.c.l.b16 %v4753
        %v4901 = vunpack.c.l.b16 %v4754
        %v4902 = vunpack.c.l.b16 %v4755
        %v4903 = vpack.c.b16 %v4872, %v4871
        %v4904 = vpack.c.b16 %v4874, %v4873
        %v4905 = vpack.c.b16 %v4876, %v4875
        %v4906 = vpack.c.b16 %v4878, %v4877
        %v4907 = vpack.c.b16 %v4880, %v4879
        %v4908 = vpack.c.b16 %v4882, %v4881
        %v4909 = vpack.c.b16 %v4884, %v4883
        %v4910 = vpack.c.b16 %v4886, %v4885
        %v4911 = vpack.c.b16 %v4888, %v4887
        %v4912 = vpack.c.b16 %v4890, %v4889
        %v4913 = vpack.c.b16 %v4892, %v4891
        %v4914 = vpack.c.b16 %v4894, %v4893
        %v4915 = vpack.c.b16 %v4896, %v4895
        %v4916 = vpack.c.b16 %v4898, %v4897
        %v4917 = vpack.c.b16 %v4900, %v4899
        %v4918 = vpack.c.b16 %v4902, %v4901
        %v4927 = vunpack.c.l.b16 %v4721
        %v4928 = vunpack.c.l.b16 %v4726
        %v4929 = vunpack.c.l.b16 %v4731
        %v4930 = vunpack.c.l.b16 %v4736
        %v4931 = vunpack.c.l.b16 %v4741
        %v4932 = vunpack.c.l.b16 %v4746
        %v4933 = vunpack.c.l.b16 %v4751
        %v4934 = vunpack.c.l.b16 %v4756
        %v4935 = vpack.c.b16 %v4927, %v4927
        %v4936 = vpack.c.b16 %v4928, %v4928
        %v4937 = vpack.c.b16 %v4929, %v4929
        %v4938 = vpack.c.b16 %v4930, %v4930
        %v4939 = vpack.c.b16 %v4931, %v4931
        %v4940 = vpack.c.b16 %v4932, %v4932
        %v4941 = vpack.c.b16 %v4933, %v4933
        %v4942 = vpack.c.b16 %v4934, %v4934
        %v4944 = vshrl.u32 %v4903, 16
        %v4946 = vshll.u32 %v4903, 16
        %v4948 = vrot.slane %v4946, 1
        %v4949 = vor.u32 %v4944, %v4948
        %v4951 = vshll.u32 %v4904, 16
        %v4953 = vrot.slane %v4951, 1
        %v4954 = vsel %vm2359, %v4949, %v4953
        %v4955 = vshrl.u32 %v4904, 16
        %v4957 = vor.u32 %v4955, %v4953
        %v4959 = vshll.u32 %v4935, 16
        %v4961 = vrot.slane %v4959, 1
        %v4962 = vsel %vm2359, %v4957, %v4961
        %v4964 = vshrl.u32 %v4905, 16
        %v4966 = vshll.u32 %v4905, 16
        %v4968 = vrot.slane %v4966, 1
        %v4969 = vor.u32 %v4964, %v4968
        %v4971 = vshll.u32 %v4906, 16
        %v4973 = vrot.slane %v4971, 1
        %v4974 = vsel %vm2359, %v4969, %v4973
        %v4975 = vshrl.u32 %v4906, 16
        %v4977 = vor.u32 %v4975, %v4973
        %v4979 = vshll.u32 %v4936, 16
        %v4981 = vrot.slane %v4979, 1
        %v4982 = vsel %vm2359, %v4977, %v4981
        %v4984 = vshrl.u32 %v4907, 16
        %v4986 = vshll.u32 %v4907, 16
        %v4988 = vrot.slane %v4986, 1
        %v4989 = vor.u32 %v4984, %v4988
        %v4991 = vshll.u32 %v4908, 16
        %v4993 = vrot.slane %v4991, 1
        %v4994 = vsel %vm2359, %v4989, %v4993
        %v4995 = vshrl.u32 %v4908, 16
        %v4997 = vor.u32 %v4995, %v4993
        %v4999 = vshll.u32 %v4937, 16
        %v5001 = vrot.slane %v4999, 1
        %v5002 = vsel %vm2359, %v4997, %v5001
        %v5004 = vshrl.u32 %v4909, 16
        %v5006 = vshll.u32 %v4909, 16
        %v5008 = vrot.slane %v5006, 1
        %v5009 = vor.u32 %v5004, %v5008
        %v5011 = vshll.u32 %v4910, 16
        %v5013 = vrot.slane %v5011, 1
        %v5014 = vsel %vm2359, %v5009, %v5013
        %v5015 = vshrl.u32 %v4910, 16
        %v5017 = vor.u32 %v5015, %v5013
        %v5019 = vshll.u32 %v4938, 16
        %v5021 = vrot.slane %v5019, 1
        %v5022 = vsel %vm2359, %v5017, %v5021
        %v5024 = vshrl.u32 %v4911, 16
        %v5026 = vshll.u32 %v4911, 16
        %v5028 = vrot.slane %v5026, 1
        %v5029 = vor.u32 %v5024, %v5028
        %v5031 = vshll.u32 %v4912, 16
        %v5033 = vrot.slane %v5031, 1
        %v5034 = vsel %vm2359, %v5029, %v5033
        %v5035 = vshrl.u32 %v4912, 16
        %v5037 = vor.u32 %v5035, %v5033
        %v5039 = vshll.u32 %v4939, 16
        %v5041 = vrot.slane %v5039, 1
        %v5042 = vsel %vm2359, %v5037, %v5041
        %v5044 = vshrl.u32 %v4913, 16
        %v5046 = vshll.u32 %v4913, 16
        %v5048 = vrot.slane %v5046, 1
        %v5049 = vor.u32 %v5044, %v5048
        %v5051 = vshll.u32 %v4914, 16
        %v5053 = vrot.slane %v5051, 1
        %v5054 = vsel %vm2359, %v5049, %v5053
        %v5055 = vshrl.u32 %v4914, 16
        %v5057 = vor.u32 %v5055, %v5053
        %v5059 = vshll.u32 %v4940, 16
        %v5061 = vrot.slane %v5059, 1
        %v5062 = vsel %vm2359, %v5057, %v5061
        %v5064 = vshrl.u32 %v4915, 16
        %v5066 = vshll.u32 %v4915, 16
        %v5068 = vrot.slane %v5066, 1
        %v5069 = vor.u32 %v5064, %v5068
        %v5071 = vshll.u32 %v4916, 16
        %v5073 = vrot.slane %v5071, 1
        %v5074 = vsel %vm2359, %v5069, %v5073
        %v5075 = vshrl.u32 %v4916, 16
        %v5077 = vor.u32 %v5075, %v5073
        %v5079 = vshll.u32 %v4941, 16
        %v5081 = vrot.slane %v5079, 1
        %v5082 = vsel %vm2359, %v5077, %v5081
        %v5084 = vshrl.u32 %v4917, 16
        %v5086 = vshll.u32 %v4917, 16
        %v5088 = vrot.slane %v5086, 1
        %v5089 = vor.u32 %v5084, %v5088
        %v5091 = vshll.u32 %v4918, 16
        %v5093 = vrot.slane %v5091, 1
        %v5094 = vsel %vm2359, %v5089, %v5093
        %v5095 = vshrl.u32 %v4918, 16
        %v5097 = vor.u32 %v5095, %v5093
        %v5099 = vshll.u32 %v4942, 16
        %v5101 = vrot.slane %v5099, 1
        %v5102 = vsel %vm2359, %v5097, %v5101
        %5103 = vrot.lane.b32.xlu0 %v4954, 3
        %v5104 = vpop.permute.xlu0 %5103
        %5105 = vrot.lane.b32.xlu0 %v4962, 3
        %v5106 = vpop.permute.xlu0 %5105
        %5107 = vrot.lane.b32.xlu0 %v4974, 3
        %v5108 = vpop.permute.xlu0 %5107
        %5109 = vrot.lane.b32.xlu0 %v4982, 3
        %v5110 = vpop.permute.xlu0 %5109
        %5111 = vrot.lane.b32.xlu0 %v4994, 3
        %v5112 = vpop.permute.xlu0 %5111
        %5113 = vrot.lane.b32.xlu0 %v5002, 3
        %v5114 = vpop.permute.xlu0 %5113
        %5115 = vrot.lane.b32.xlu0 %v5014, 3
        %v5116 = vpop.permute.xlu0 %5115
        %5117 = vrot.lane.b32.xlu0 %v5022, 3
        %v5118 = vpop.permute.xlu0 %5117
        %5119 = vrot.lane.b32.xlu0 %v5034, 3
        %v5120 = vpop.permute.xlu0 %5119
        %5121 = vrot.lane.b32.xlu0 %v5042, 3
        %v5122 = vpop.permute.xlu0 %5121
        %5123 = vrot.lane.b32.xlu0 %v5054, 3
        %v5124 = vpop.permute.xlu0 %5123
        %5125 = vrot.lane.b32.xlu0 %v5062, 3
        %v5126 = vpop.permute.xlu0 %5125
        %5127 = vrot.lane.b32.xlu0 %v5074, 3
        %v5128 = vpop.permute.xlu0 %5127
        %5129 = vrot.lane.b32.xlu0 %v5082, 3
        %v5130 = vpop.permute.xlu0 %5129
        %5131 = vrot.lane.b32.xlu0 %v5094, 3
        %v5132 = vpop.permute.xlu0 %5131
        %5133 = vrot.lane.b32.xlu0 %v5102, 3
        %v5134 = vpop.permute.xlu0 %5133
        %v5135 = vrot.slane %v4903, 1
        %v5136 = vrot.slane %v4904, 1
        %v5137 = vsel %vm2552, %v5135, %v5136
        %v5138 = vrot.slane %v4935, 1
        %v5139 = vsel %vm2552, %v5136, %v5138
        %v5140 = vrot.slane %v4905, 1
        %v5141 = vrot.slane %v4906, 1
        %v5142 = vsel %vm2552, %v5140, %v5141
        %v5143 = vrot.slane %v4936, 1
        %v5144 = vsel %vm2552, %v5141, %v5143
        %v5145 = vrot.slane %v4907, 1
        %v5146 = vrot.slane %v4908, 1
        %v5147 = vsel %vm2552, %v5145, %v5146
        %v5148 = vrot.slane %v4937, 1
        %v5149 = vsel %vm2552, %v5146, %v5148
        %v5150 = vrot.slane %v4909, 1
        %v5151 = vrot.slane %v4910, 1
        %v5152 = vsel %vm2552, %v5150, %v5151
        %v5153 = vrot.slane %v4938, 1
        %v5154 = vsel %vm2552, %v5151, %v5153
        %v5155 = vrot.slane %v4911, 1
        %v5156 = vrot.slane %v4912, 1
        %v5157 = vsel %vm2552, %v5155, %v5156
        %v5158 = vrot.slane %v4939, 1
        %v5159 = vsel %vm2552, %v5156, %v5158
        %v5160 = vrot.slane %v4913, 1
        %v5161 = vrot.slane %v4914, 1
        %v5162 = vsel %vm2552, %v5160, %v5161
        %v5163 = vrot.slane %v4940, 1
        %v5164 = vsel %vm2552, %v5161, %v5163
        %v5165 = vrot.slane %v4915, 1
        %v5166 = vrot.slane %v4916, 1
        %v5167 = vsel %vm2552, %v5165, %v5166
        %v5168 = vrot.slane %v4941, 1
        %v5169 = vsel %vm2552, %v5166, %v5168
        %v5170 = vrot.slane %v4917, 1
        %v5171 = vrot.slane %v4918, 1
        %v5172 = vsel %vm2552, %v5170, %v5171
        %v5173 = vrot.slane %v4942, 1
        %v5174 = vsel %vm2552, %v5171, %v5173
        %5175 = vrot.lane.b32.xlu0 %v5137, 6
        %v5176 = vpop.permute.xlu0 %5175
        %5177 = vrot.lane.b32.xlu0 %v5139, 6
        %v5178 = vpop.permute.xlu0 %5177
        %5179 = vrot.lane.b32.xlu0 %v5142, 6
        %v5180 = vpop.permute.xlu0 %5179
        %5181 = vrot.lane.b32.xlu0 %v5144, 6
        %v5182 = vpop.permute.xlu0 %5181
        %5183 = vrot.lane.b32.xlu0 %v5147, 6
        %v5184 = vpop.permute.xlu0 %5183
        %5185 = vrot.lane.b32.xlu0 %v5149, 6
        %v5186 = vpop.permute.xlu0 %5185
        %5187 = vrot.lane.b32.xlu0 %v5152, 6
        %v5188 = vpop.permute.xlu0 %5187
        %5189 = vrot.lane.b32.xlu0 %v5154, 6
        %v5190 = vpop.permute.xlu0 %5189
        %5191 = vrot.lane.b32.xlu0 %v5157, 6
        %v5192 = vpop.permute.xlu0 %5191
        %5193 = vrot.lane.b32.xlu0 %v5159, 6
        %v5194 = vpop.permute.xlu0 %5193
        %5195 = vrot.lane.b32.xlu0 %v5162, 6
        %v5196 = vpop.permute.xlu0 %5195
        %5197 = vrot.lane.b32.xlu0 %v5164, 6
        %v5198 = vpop.permute.xlu0 %5197
        %5199 = vrot.lane.b32.xlu0 %v5167, 6
        %v5200 = vpop.permute.xlu0 %5199
        %5201 = vrot.lane.b32.xlu0 %v5169, 6
        %v5202 = vpop.permute.xlu0 %5201
        %5203 = vrot.lane.b32.xlu0 %v5172, 6
        %v5204 = vpop.permute.xlu0 %5203
        %5205 = vrot.lane.b32.xlu0 %v5174, 6
        %v5206 = vpop.permute.xlu0 %5205
        %v5239 = vunpack.c.l.b16 %v4758
        %v5240 = vunpack.c.l.b16 %v4759
        %v5241 = vunpack.c.l.b16 %v4760
        %v5242 = vunpack.c.l.b16 %v4761
        %v5243 = vunpack.c.l.b16 %v4763
        %v5244 = vunpack.c.l.b16 %v4764
        %v5245 = vunpack.c.l.b16 %v4765
        %v5246 = vunpack.c.l.b16 %v4766
        %v5247 = vunpack.c.l.b16 %v4768
        %v5248 = vunpack.c.l.b16 %v4769
        %v5249 = vunpack.c.l.b16 %v4770
        %v5250 = vunpack.c.l.b16 %v4771
        %v5251 = vunpack.c.l.b16 %v4773
        %v5252 = vunpack.c.l.b16 %v4774
        %v5253 = vunpack.c.l.b16 %v4775
        %v5254 = vunpack.c.l.b16 %v4776
        %v5255 = vunpack.c.l.b16 %v4778
        %v5256 = vunpack.c.l.b16 %v4779
        %v5257 = vunpack.c.l.b16 %v4780
        %v5258 = vunpack.c.l.b16 %v4781
        %v5259 = vunpack.c.l.b16 %v4783
        %v5260 = vunpack.c.l.b16 %v4784
        %v5261 = vunpack.c.l.b16 %v4785
        %v5262 = vunpack.c.l.b16 %v4786
        %v5263 = vunpack.c.l.b16 %v4788
        %v5264 = vunpack.c.l.b16 %v4789
        %v5265 = vunpack.c.l.b16 %v4790
        %v5266 = vunpack.c.l.b16 %v4791
        %v5267 = vunpack.c.l.b16 %v4793
        %v5268 = vunpack.c.l.b16 %v4794
        %v5269 = vunpack.c.l.b16 %v4795
        %v5270 = vunpack.c.l.b16 %v4796
        %v5271 = vpack.c.b16 %v5240, %v5239
        %v5272 = vpack.c.b16 %v5242, %v5241
        %v5273 = vpack.c.b16 %v5244, %v5243
        %v5274 = vpack.c.b16 %v5246, %v5245
        %v5275 = vpack.c.b16 %v5248, %v5247
        %v5276 = vpack.c.b16 %v5250, %v5249
        %v5277 = vpack.c.b16 %v5252, %v5251
        %v5278 = vpack.c.b16 %v5254, %v5253
        %v5279 = vpack.c.b16 %v5256, %v5255
        %v5280 = vpack.c.b16 %v5258, %v5257
        %v5281 = vpack.c.b16 %v5260, %v5259
        %v5282 = vpack.c.b16 %v5262, %v5261
        %v5283 = vpack.c.b16 %v5264, %v5263
        %v5284 = vpack.c.b16 %v5266, %v5265
        %v5285 = vpack.c.b16 %v5268, %v5267
        %v5286 = vpack.c.b16 %v5270, %v5269
        %5287 = vrot.lane.b32.xlu0 %v5271, 9
        %v5288 = vpop.permute.xlu0 %5287
        %5289 = vrot.lane.b32.xlu0 %v5272, 9
        %v5290 = vpop.permute.xlu0 %5289
        %5291 = vrot.lane.b32.xlu0 %v5273, 9
        %v5292 = vpop.permute.xlu0 %5291
        %5293 = vrot.lane.b32.xlu0 %v5274, 9
        %v5294 = vpop.permute.xlu0 %5293
        %5295 = vrot.lane.b32.xlu0 %v5275, 9
        %v5296 = vpop.permute.xlu0 %5295
        %5297 = vrot.lane.b32.xlu0 %v5276, 9
        %v5298 = vpop.permute.xlu0 %5297
        %5299 = vrot.lane.b32.xlu0 %v5277, 9
        %v5300 = vpop.permute.xlu0 %5299
        %5301 = vrot.lane.b32.xlu0 %v5278, 9
        %v5302 = vpop.permute.xlu0 %5301
        %5303 = vrot.lane.b32.xlu0 %v5279, 9
        %v5304 = vpop.permute.xlu0 %5303
        %5305 = vrot.lane.b32.xlu0 %v5280, 9
        %v5306 = vpop.permute.xlu0 %5305
        %5307 = vrot.lane.b32.xlu0 %v5281, 9
        %v5308 = vpop.permute.xlu0 %5307
        %5309 = vrot.lane.b32.xlu0 %v5282, 9
        %v5310 = vpop.permute.xlu0 %5309
        %5311 = vrot.lane.b32.xlu0 %v5283, 9
        %v5312 = vpop.permute.xlu0 %5311
        %5313 = vrot.lane.b32.xlu0 %v5284, 9
        %v5314 = vpop.permute.xlu0 %5313
        %5315 = vrot.lane.b32.xlu0 %v5285, 9
        %v5316 = vpop.permute.xlu0 %5315
        %5317 = vrot.lane.b32.xlu0 %v5286, 9
        %v5318 = vpop.permute.xlu0 %5317
        %v5327 = vunpack.c.l.b16 %v4762
        %v5328 = vunpack.c.l.b16 %v4767
        %v5329 = vunpack.c.l.b16 %v4772
        %v5330 = vunpack.c.l.b16 %v4777
        %v5331 = vunpack.c.l.b16 %v4782
        %v5332 = vunpack.c.l.b16 %v4787
        %v5333 = vunpack.c.l.b16 %v4792
        %v5334 = vunpack.c.l.b16 %v4797
        %v5335 = vpack.c.b16 %v5327, %v5327
        %v5336 = vpack.c.b16 %v5328, %v5328
        %v5337 = vpack.c.b16 %v5329, %v5329
        %v5338 = vpack.c.b16 %v5330, %v5330
        %v5339 = vpack.c.b16 %v5331, %v5331
        %v5340 = vpack.c.b16 %v5332, %v5332
        %v5341 = vpack.c.b16 %v5333, %v5333
        %v5342 = vpack.c.b16 %v5334, %v5334
        %v5344 = vshrl.u32 %v5271, 16
        %v5346 = vshll.u32 %v5271, 16
        %v5348 = vrot.slane %v5346, 1
        %v5349 = vor.u32 %v5344, %v5348
        %v5351 = vshll.u32 %v5272, 16
        %v5353 = vrot.slane %v5351, 1
        %v5354 = vsel %vm2359, %v5349, %v5353
        %v5355 = vshrl.u32 %v5272, 16
        %v5357 = vor.u32 %v5355, %v5353
        %v5359 = vshll.u32 %v5335, 16
        %v5361 = vrot.slane %v5359, 1
        %v5362 = vsel %vm2359, %v5357, %v5361
        %v5364 = vshrl.u32 %v5273, 16
        %v5366 = vshll.u32 %v5273, 16
        %v5368 = vrot.slane %v5366, 1
        %v5369 = vor.u32 %v5364, %v5368
        %v5371 = vshll.u32 %v5274, 16
        %v5373 = vrot.slane %v5371, 1
        %v5374 = vsel %vm2359, %v5369, %v5373
        %v5375 = vshrl.u32 %v5274, 16
        %v5377 = vor.u32 %v5375, %v5373
        %v5379 = vshll.u32 %v5336, 16
        %v5381 = vrot.slane %v5379, 1
        %v5382 = vsel %vm2359, %v5377, %v5381
        %v5384 = vshrl.u32 %v5275, 16
        %v5386 = vshll.u32 %v5275, 16
        %v5388 = vrot.slane %v5386, 1
        %v5389 = vor.u32 %v5384, %v5388
        %v5391 = vshll.u32 %v5276, 16
        %v5393 = vrot.slane %v5391, 1
        %v5394 = vsel %vm2359, %v5389, %v5393
        %v5395 = vshrl.u32 %v5276, 16
        %v5397 = vor.u32 %v5395, %v5393
        %v5399 = vshll.u32 %v5337, 16
        %v5401 = vrot.slane %v5399, 1
        %v5402 = vsel %vm2359, %v5397, %v5401
        %v5404 = vshrl.u32 %v5277, 16
        %v5406 = vshll.u32 %v5277, 16
        %v5408 = vrot.slane %v5406, 1
        %v5409 = vor.u32 %v5404, %v5408
        %v5411 = vshll.u32 %v5278, 16
        %v5413 = vrot.slane %v5411, 1
        %v5414 = vsel %vm2359, %v5409, %v5413
        %v5415 = vshrl.u32 %v5278, 16
        %v5417 = vor.u32 %v5415, %v5413
        %v5419 = vshll.u32 %v5338, 16
        %v5421 = vrot.slane %v5419, 1
        %v5422 = vsel %vm2359, %v5417, %v5421
        %v5424 = vshrl.u32 %v5279, 16
        %v5426 = vshll.u32 %v5279, 16
        %v5428 = vrot.slane %v5426, 1
        %v5429 = vor.u32 %v5424, %v5428
        %v5431 = vshll.u32 %v5280, 16
        %v5433 = vrot.slane %v5431, 1
        %v5434 = vsel %vm2359, %v5429, %v5433
        %v5435 = vshrl.u32 %v5280, 16
        %v5437 = vor.u32 %v5435, %v5433
        %v5439 = vshll.u32 %v5339, 16
        %v5441 = vrot.slane %v5439, 1
        %v5442 = vsel %vm2359, %v5437, %v5441
        %v5444 = vshrl.u32 %v5281, 16
        %v5446 = vshll.u32 %v5281, 16
        %v5448 = vrot.slane %v5446, 1
        %v5449 = vor.u32 %v5444, %v5448
        %v5451 = vshll.u32 %v5282, 16
        %v5453 = vrot.slane %v5451, 1
        %v5454 = vsel %vm2359, %v5449, %v5453
        %v5455 = vshrl.u32 %v5282, 16
        %v5457 = vor.u32 %v5455, %v5453
        %v5459 = vshll.u32 %v5340, 16
        %v5461 = vrot.slane %v5459, 1
        %v5462 = vsel %vm2359, %v5457, %v5461
        %v5464 = vshrl.u32 %v5283, 16
        %v5466 = vshll.u32 %v5283, 16
        %v5468 = vrot.slane %v5466, 1
        %v5469 = vor.u32 %v5464, %v5468
        %v5471 = vshll.u32 %v5284, 16
        %v5473 = vrot.slane %v5471, 1
        %v5474 = vsel %vm2359, %v5469, %v5473
        %v5475 = vshrl.u32 %v5284, 16
        %v5477 = vor.u32 %v5475, %v5473
        %v5479 = vshll.u32 %v5341, 16
        %v5481 = vrot.slane %v5479, 1
        %v5482 = vsel %vm2359, %v5477, %v5481
        %v5484 = vshrl.u32 %v5285, 16
        %v5486 = vshll.u32 %v5285, 16
        %v5488 = vrot.slane %v5486, 1
        %v5489 = vor.u32 %v5484, %v5488
        %v5491 = vshll.u32 %v5286, 16
        %v5493 = vrot.slane %v5491, 1
        %v5494 = vsel %vm2359, %v5489, %v5493
        %v5495 = vshrl.u32 %v5286, 16
        %v5497 = vor.u32 %v5495, %v5493
        %v5499 = vshll.u32 %v5342, 16
        %v5501 = vrot.slane %v5499, 1
        %v5502 = vsel %vm2359, %v5497, %v5501
        %5503 = vrot.lane.b32.xlu0 %v5354, 12
        %v5504 = vpop.permute.xlu0 %5503
        %5505 = vrot.lane.b32.xlu0 %v5362, 12
        %v5506 = vpop.permute.xlu0 %5505
        %5507 = vrot.lane.b32.xlu0 %v5374, 12
        %v5508 = vpop.permute.xlu0 %5507
        %5509 = vrot.lane.b32.xlu0 %v5382, 12
        %v5510 = vpop.permute.xlu0 %5509
        %5511 = vrot.lane.b32.xlu0 %v5394, 12
        %v5512 = vpop.permute.xlu0 %5511
        %5513 = vrot.lane.b32.xlu0 %v5402, 12
        %v5514 = vpop.permute.xlu0 %5513
        %5515 = vrot.lane.b32.xlu0 %v5414, 12
        %v5516 = vpop.permute.xlu0 %5515
        %5517 = vrot.lane.b32.xlu0 %v5422, 12
        %v5518 = vpop.permute.xlu0 %5517
        %5519 = vrot.lane.b32.xlu0 %v5434, 12
        %v5520 = vpop.permute.xlu0 %5519
        %5521 = vrot.lane.b32.xlu0 %v5442, 12
        %v5522 = vpop.permute.xlu0 %5521
        %5523 = vrot.lane.b32.xlu0 %v5454, 12
        %v5524 = vpop.permute.xlu0 %5523
        %5525 = vrot.lane.b32.xlu0 %v5462, 12
        %v5526 = vpop.permute.xlu0 %5525
        %5527 = vrot.lane.b32.xlu0 %v5474, 12
        %v5528 = vpop.permute.xlu0 %5527
        %5529 = vrot.lane.b32.xlu0 %v5482, 12
        %v5530 = vpop.permute.xlu0 %5529
        %5531 = vrot.lane.b32.xlu0 %v5494, 12
        %v5532 = vpop.permute.xlu0 %5531
        %5533 = vrot.lane.b32.xlu0 %v5502, 12
        %v5534 = vpop.permute.xlu0 %5533
        %v5535 = vrot.slane %v5271, 1
        %v5536 = vrot.slane %v5272, 1
        %v5537 = vsel %vm2552, %v5535, %v5536
        %v5538 = vrot.slane %v5335, 1
        %v5539 = vsel %vm2552, %v5536, %v5538
        %v5540 = vrot.slane %v5273, 1
        %v5541 = vrot.slane %v5274, 1
        %v5542 = vsel %vm2552, %v5540, %v5541
        %v5543 = vrot.slane %v5336, 1
        %v5544 = vsel %vm2552, %v5541, %v5543
        %v5545 = vrot.slane %v5275, 1
        %v5546 = vrot.slane %v5276, 1
        %v5547 = vsel %vm2552, %v5545, %v5546
        %v5548 = vrot.slane %v5337, 1
        %v5549 = vsel %vm2552, %v5546, %v5548
        %v5550 = vrot.slane %v5277, 1
        %v5551 = vrot.slane %v5278, 1
        %v5552 = vsel %vm2552, %v5550, %v5551
        %v5553 = vrot.slane %v5338, 1
        %v5554 = vsel %vm2552, %v5551, %v5553
        %v5555 = vrot.slane %v5279, 1
        %v5556 = vrot.slane %v5280, 1
        %v5557 = vsel %vm2552, %v5555, %v5556
        %v5558 = vrot.slane %v5339, 1
        %v5559 = vsel %vm2552, %v5556, %v5558
        %v5560 = vrot.slane %v5281, 1
        %v5561 = vrot.slane %v5282, 1
        %v5562 = vsel %vm2552, %v5560, %v5561
        %v5563 = vrot.slane %v5340, 1
        %v5564 = vsel %vm2552, %v5561, %v5563
        %v5565 = vrot.slane %v5283, 1
        %v5566 = vrot.slane %v5284, 1
        %v5567 = vsel %vm2552, %v5565, %v5566
        %v5568 = vrot.slane %v5341, 1
        %v5569 = vsel %vm2552, %v5566, %v5568
        %v5570 = vrot.slane %v5285, 1
        %v5571 = vrot.slane %v5286, 1
        %v5572 = vsel %vm2552, %v5570, %v5571
        %v5573 = vrot.slane %v5342, 1
        %v5574 = vsel %vm2552, %v5571, %v5573
        %5575 = vrot.lane.b32.xlu0 %v5537, 15
        %v5576 = vpop.permute.xlu0 %5575
        %5577 = vrot.lane.b32.xlu0 %v5539, 15
        %v5578 = vpop.permute.xlu0 %5577
        %5579 = vrot.lane.b32.xlu0 %v5542, 15
        %v5580 = vpop.permute.xlu0 %5579
        %5581 = vrot.lane.b32.xlu0 %v5544, 15
        %v5582 = vpop.permute.xlu0 %5581
        %5583 = vrot.lane.b32.xlu0 %v5547, 15
        %v5584 = vpop.permute.xlu0 %5583
        %5585 = vrot.lane.b32.xlu0 %v5549, 15
        %v5586 = vpop.permute.xlu0 %5585
        %5587 = vrot.lane.b32.xlu0 %v5552, 15
        %v5588 = vpop.permute.xlu0 %5587
        %5589 = vrot.lane.b32.xlu0 %v5554, 15
        %v5590 = vpop.permute.xlu0 %5589
        %5591 = vrot.lane.b32.xlu0 %v5557, 15
        %v5592 = vpop.permute.xlu0 %5591
        %5593 = vrot.lane.b32.xlu0 %v5559, 15
        %v5594 = vpop.permute.xlu0 %5593
        %5595 = vrot.lane.b32.xlu0 %v5562, 15
        %v5596 = vpop.permute.xlu0 %5595
        %5597 = vrot.lane.b32.xlu0 %v5564, 15
        %v5598 = vpop.permute.xlu0 %5597
        %5599 = vrot.lane.b32.xlu0 %v5567, 15
        %v5600 = vpop.permute.xlu0 %5599
        %5601 = vrot.lane.b32.xlu0 %v5569, 15
        %v5602 = vpop.permute.xlu0 %5601
        %5603 = vrot.lane.b32.xlu0 %v5572, 15
        %v5604 = vpop.permute.xlu0 %5603
        %5605 = vrot.lane.b32.xlu0 %v5574, 15
        %v5606 = vpop.permute.xlu0 %5605
        %v5639 = vunpack.c.l.b16 %v4799
        %v5640 = vunpack.c.l.b16 %v4800
        %v5641 = vunpack.c.l.b16 %v4801
        %v5642 = vunpack.c.l.b16 %v4802
        %v5643 = vunpack.c.l.b16 %v4804
        %v5644 = vunpack.c.l.b16 %v4805
        %v5645 = vunpack.c.l.b16 %v4806
        %v5646 = vunpack.c.l.b16 %v4807
        %v5647 = vunpack.c.l.b16 %v4809
        %v5648 = vunpack.c.l.b16 %v4810
        %v5649 = vunpack.c.l.b16 %v4811
        %v5650 = vunpack.c.l.b16 %v4812
        %v5651 = vunpack.c.l.b16 %v4814
        %v5652 = vunpack.c.l.b16 %v4815
        %v5653 = vunpack.c.l.b16 %v4816
        %v5654 = vunpack.c.l.b16 %v4817
        %v5655 = vunpack.c.l.b16 %v4819
        %v5656 = vunpack.c.l.b16 %v4820
        %v5657 = vunpack.c.l.b16 %v4821
        %v5658 = vunpack.c.l.b16 %v4822
        %v5659 = vunpack.c.l.b16 %v4824
        %v5660 = vunpack.c.l.b16 %v4825
        %v5661 = vunpack.c.l.b16 %v4826
        %v5662 = vunpack.c.l.b16 %v4827
        %v5663 = vunpack.c.l.b16 %v4829
        %v5664 = vunpack.c.l.b16 %v4830
        %v5665 = vunpack.c.l.b16 %v4831
        %v5666 = vunpack.c.l.b16 %v4832
        %v5667 = vunpack.c.l.b16 %v4834
        %v5668 = vunpack.c.l.b16 %v4835
        %v5669 = vunpack.c.l.b16 %v4836
        %v5670 = vunpack.c.l.b16 %v4837
        %v5671 = vpack.c.b16 %v5640, %v5639
        %v5672 = vpack.c.b16 %v5642, %v5641
        %v5673 = vpack.c.b16 %v5644, %v5643
        %v5674 = vpack.c.b16 %v5646, %v5645
        %v5675 = vpack.c.b16 %v5648, %v5647
        %v5676 = vpack.c.b16 %v5650, %v5649
        %v5677 = vpack.c.b16 %v5652, %v5651
        %v5678 = vpack.c.b16 %v5654, %v5653
        %v5679 = vpack.c.b16 %v5656, %v5655
        %v5680 = vpack.c.b16 %v5658, %v5657
        %v5681 = vpack.c.b16 %v5660, %v5659
        %v5682 = vpack.c.b16 %v5662, %v5661
        %v5683 = vpack.c.b16 %v5664, %v5663
        %v5684 = vpack.c.b16 %v5666, %v5665
        %v5685 = vpack.c.b16 %v5668, %v5667
        %v5686 = vpack.c.b16 %v5670, %v5669
        %5687 = vrot.lane.b32.xlu0 %v5671, 18
        %v5688 = vpop.permute.xlu0 %5687
        %5689 = vrot.lane.b32.xlu0 %v5672, 18
        %v5690 = vpop.permute.xlu0 %5689
        %5691 = vrot.lane.b32.xlu0 %v5673, 18
        %v5692 = vpop.permute.xlu0 %5691
        %5693 = vrot.lane.b32.xlu0 %v5674, 18
        %v5694 = vpop.permute.xlu0 %5693
        %5695 = vrot.lane.b32.xlu0 %v5675, 18
        %v5696 = vpop.permute.xlu0 %5695
        %5697 = vrot.lane.b32.xlu0 %v5676, 18
        %v5698 = vpop.permute.xlu0 %5697
        %5699 = vrot.lane.b32.xlu0 %v5677, 18
        %v5700 = vpop.permute.xlu0 %5699
        %5701 = vrot.lane.b32.xlu0 %v5678, 18
        %v5702 = vpop.permute.xlu0 %5701
        %5703 = vrot.lane.b32.xlu0 %v5679, 18
        %v5704 = vpop.permute.xlu0 %5703
        %5705 = vrot.lane.b32.xlu0 %v5680, 18
        %v5706 = vpop.permute.xlu0 %5705
        %5707 = vrot.lane.b32.xlu0 %v5681, 18
        %v5708 = vpop.permute.xlu0 %5707
        %5709 = vrot.lane.b32.xlu0 %v5682, 18
        %v5710 = vpop.permute.xlu0 %5709
        %5711 = vrot.lane.b32.xlu0 %v5683, 18
        %v5712 = vpop.permute.xlu0 %5711
        %5713 = vrot.lane.b32.xlu0 %v5684, 18
        %v5714 = vpop.permute.xlu0 %5713
        %5715 = vrot.lane.b32.xlu0 %v5685, 18
        %v5716 = vpop.permute.xlu0 %5715
        %5717 = vrot.lane.b32.xlu0 %v5686, 18
        %v5718 = vpop.permute.xlu0 %5717
        %v5727 = vunpack.c.l.b16 %v4803
        %v5728 = vunpack.c.l.b16 %v4808
        %v5729 = vunpack.c.l.b16 %v4813
        %v5730 = vunpack.c.l.b16 %v4818
        %v5731 = vunpack.c.l.b16 %v4823
        %v5732 = vunpack.c.l.b16 %v4828
        %v5733 = vunpack.c.l.b16 %v4833
        %v5734 = vunpack.c.l.b16 %v4838
        %v5735 = vpack.c.b16 %v5727, %v5727
        %v5736 = vpack.c.b16 %v5728, %v5728
        %v5737 = vpack.c.b16 %v5729, %v5729
        %v5738 = vpack.c.b16 %v5730, %v5730
        %v5739 = vpack.c.b16 %v5731, %v5731
        %v5740 = vpack.c.b16 %v5732, %v5732
        %v5741 = vpack.c.b16 %v5733, %v5733
        %v5742 = vpack.c.b16 %v5734, %v5734
        %v5744 = vshrl.u32 %v5671, 16
        %v5746 = vshll.u32 %v5671, 16
        %v5748 = vrot.slane %v5746, 1
        %v5749 = vor.u32 %v5744, %v5748
        %v5751 = vshll.u32 %v5672, 16
        %v5753 = vrot.slane %v5751, 1
        %v5754 = vsel %vm2359, %v5749, %v5753
        %v5755 = vshrl.u32 %v5672, 16
        %v5757 = vor.u32 %v5755, %v5753
        %v5759 = vshll.u32 %v5735, 16
        %v5761 = vrot.slane %v5759, 1
        %v5762 = vsel %vm2359, %v5757, %v5761
        %v5764 = vshrl.u32 %v5673, 16
        %v5766 = vshll.u32 %v5673, 16
        %v5768 = vrot.slane %v5766, 1
        %v5769 = vor.u32 %v5764, %v5768
        %v5771 = vshll.u32 %v5674, 16
        %v5773 = vrot.slane %v5771, 1
        %v5774 = vsel %vm2359, %v5769, %v5773
        %v5775 = vshrl.u32 %v5674, 16
        %v5777 = vor.u32 %v5775, %v5773
        %v5779 = vshll.u32 %v5736, 16
        %v5781 = vrot.slane %v5779, 1
        %v5782 = vsel %vm2359, %v5777, %v5781
        %v5784 = vshrl.u32 %v5675, 16
        %v5786 = vshll.u32 %v5675, 16
        %v5788 = vrot.slane %v5786, 1
        %v5789 = vor.u32 %v5784, %v5788
        %v5791 = vshll.u32 %v5676, 16
        %v5793 = vrot.slane %v5791, 1
        %v5794 = vsel %vm2359, %v5789, %v5793
        %v5795 = vshrl.u32 %v5676, 16
        %v5797 = vor.u32 %v5795, %v5793
        %v5799 = vshll.u32 %v5737, 16
        %v5801 = vrot.slane %v5799, 1
        %v5802 = vsel %vm2359, %v5797, %v5801
        %v5804 = vshrl.u32 %v5677, 16
        %v5806 = vshll.u32 %v5677, 16
        %v5808 = vrot.slane %v5806, 1
        %v5809 = vor.u32 %v5804, %v5808
        %v5811 = vshll.u32 %v5678, 16
        %v5813 = vrot.slane %v5811, 1
        %v5814 = vsel %vm2359, %v5809, %v5813
        %v5815 = vshrl.u32 %v5678, 16
        %v5817 = vor.u32 %v5815, %v5813
        %v5819 = vshll.u32 %v5738, 16
        %v5821 = vrot.slane %v5819, 1
        %v5822 = vsel %vm2359, %v5817, %v5821
        %v5824 = vshrl.u32 %v5679, 16
        %v5826 = vshll.u32 %v5679, 16
        %v5828 = vrot.slane %v5826, 1
        %v5829 = vor.u32 %v5824, %v5828
        %v5831 = vshll.u32 %v5680, 16
        %v5833 = vrot.slane %v5831, 1
        %v5834 = vsel %vm2359, %v5829, %v5833
        %v5835 = vshrl.u32 %v5680, 16
        %v5837 = vor.u32 %v5835, %v5833
        %v5839 = vshll.u32 %v5739, 16
        %v5841 = vrot.slane %v5839, 1
        %v5842 = vsel %vm2359, %v5837, %v5841
        %v5844 = vshrl.u32 %v5681, 16
        %v5846 = vshll.u32 %v5681, 16
        %v5848 = vrot.slane %v5846, 1
        %v5849 = vor.u32 %v5844, %v5848
        %v5851 = vshll.u32 %v5682, 16
        %v5853 = vrot.slane %v5851, 1
        %v5854 = vsel %vm2359, %v5849, %v5853
        %v5855 = vshrl.u32 %v5682, 16
        %v5857 = vor.u32 %v5855, %v5853
        %v5859 = vshll.u32 %v5740, 16
        %v5861 = vrot.slane %v5859, 1
        %v5862 = vsel %vm2359, %v5857, %v5861
        %v5864 = vshrl.u32 %v5683, 16
        %v5866 = vshll.u32 %v5683, 16
        %v5868 = vrot.slane %v5866, 1
        %v5869 = vor.u32 %v5864, %v5868
        %v5871 = vshll.u32 %v5684, 16
        %v5873 = vrot.slane %v5871, 1
        %v5874 = vsel %vm2359, %v5869, %v5873
        %v5875 = vshrl.u32 %v5684, 16
        %v5877 = vor.u32 %v5875, %v5873
        %v5879 = vshll.u32 %v5741, 16
        %v5881 = vrot.slane %v5879, 1
        %v5882 = vsel %vm2359, %v5877, %v5881
        %v5884 = vshrl.u32 %v5685, 16
        %v5886 = vshll.u32 %v5685, 16
        %v5888 = vrot.slane %v5886, 1
        %v5889 = vor.u32 %v5884, %v5888
        %v5891 = vshll.u32 %v5686, 16
        %v5893 = vrot.slane %v5891, 1
        %v5894 = vsel %vm2359, %v5889, %v5893
        %v5895 = vshrl.u32 %v5686, 16
        %v5897 = vor.u32 %v5895, %v5893
        %v5899 = vshll.u32 %v5742, 16
        %v5901 = vrot.slane %v5899, 1
        %v5902 = vsel %vm2359, %v5897, %v5901
        %5903 = vrot.lane.b32.xlu0 %v5754, 21
        %v5904 = vpop.permute.xlu0 %5903
        %5905 = vrot.lane.b32.xlu0 %v5762, 21
        %v5906 = vpop.permute.xlu0 %5905
        %5907 = vrot.lane.b32.xlu0 %v5774, 21
        %v5908 = vpop.permute.xlu0 %5907
        %5909 = vrot.lane.b32.xlu0 %v5782, 21
        %v5910 = vpop.permute.xlu0 %5909
        %5911 = vrot.lane.b32.xlu0 %v5794, 21
        %v5912 = vpop.permute.xlu0 %5911
        %5913 = vrot.lane.b32.xlu0 %v5802, 21
        %v5914 = vpop.permute.xlu0 %5913
        %5915 = vrot.lane.b32.xlu0 %v5814, 21
        %v5916 = vpop.permute.xlu0 %5915
        %5917 = vrot.lane.b32.xlu0 %v5822, 21
        %v5918 = vpop.permute.xlu0 %5917
        %5919 = vrot.lane.b32.xlu0 %v5834, 21
        %v5920 = vpop.permute.xlu0 %5919
        %5921 = vrot.lane.b32.xlu0 %v5842, 21
        %v5922 = vpop.permute.xlu0 %5921
        %5923 = vrot.lane.b32.xlu0 %v5854, 21
        %v5924 = vpop.permute.xlu0 %5923
        %5925 = vrot.lane.b32.xlu0 %v5862, 21
        %v5926 = vpop.permute.xlu0 %5925
        %5927 = vrot.lane.b32.xlu0 %v5874, 21
        %v5928 = vpop.permute.xlu0 %5927
        %5929 = vrot.lane.b32.xlu0 %v5882, 21
        %v5930 = vpop.permute.xlu0 %5929
        %5931 = vrot.lane.b32.xlu0 %v5894, 21
        %v5932 = vpop.permute.xlu0 %5931
        %5933 = vrot.lane.b32.xlu0 %v5902, 21
        %v5934 = vpop.permute.xlu0 %5933
        %v5935 = vrot.slane %v5671, 1
        %v5936 = vrot.slane %v5672, 1
        %v5937 = vsel %vm2552, %v5935, %v5936
        %v5938 = vrot.slane %v5735, 1
        %v5939 = vsel %vm2552, %v5936, %v5938
        %v5940 = vrot.slane %v5673, 1
        %v5941 = vrot.slane %v5674, 1
        %v5942 = vsel %vm2552, %v5940, %v5941
        %v5943 = vrot.slane %v5736, 1
        %v5944 = vsel %vm2552, %v5941, %v5943
        %v5945 = vrot.slane %v5675, 1
        %v5946 = vrot.slane %v5676, 1
        %v5947 = vsel %vm2552, %v5945, %v5946
        %v5948 = vrot.slane %v5737, 1
        %v5949 = vsel %vm2552, %v5946, %v5948
        %v5950 = vrot.slane %v5677, 1
        %v5951 = vrot.slane %v5678, 1
        %v5952 = vsel %vm2552, %v5950, %v5951
        %v5953 = vrot.slane %v5738, 1
        %v5954 = vsel %vm2552, %v5951, %v5953
        %v5955 = vrot.slane %v5679, 1
        %v5956 = vrot.slane %v5680, 1
        %v5957 = vsel %vm2552, %v5955, %v5956
        %v5958 = vrot.slane %v5739, 1
        %v5959 = vsel %vm2552, %v5956, %v5958
        %v5960 = vrot.slane %v5681, 1
        %v5961 = vrot.slane %v5682, 1
        %v5962 = vsel %vm2552, %v5960, %v5961
        %v5963 = vrot.slane %v5740, 1
        %v5964 = vsel %vm2552, %v5961, %v5963
        %v5965 = vrot.slane %v5683, 1
        %v5966 = vrot.slane %v5684, 1
        %v5967 = vsel %vm2552, %v5965, %v5966
        %v5968 = vrot.slane %v5741, 1
        %v5969 = vsel %vm2552, %v5966, %v5968
        %v5970 = vrot.slane %v5685, 1
        %v5971 = vrot.slane %v5686, 1
        %v5972 = vsel %vm2552, %v5970, %v5971
        %v5973 = vrot.slane %v5742, 1
        %v5974 = vsel %vm2552, %v5971, %v5973
        %5975 = vrot.lane.b32.xlu0 %v5937, 24
        %v5976 = vpop.permute.xlu0 %5975
        %5977 = vrot.lane.b32.xlu0 %v5939, 24
        %v5978 = vpop.permute.xlu0 %5977
        %5979 = vrot.lane.b32.xlu0 %v5942, 24
        %v5980 = vpop.permute.xlu0 %5979
        %5981 = vrot.lane.b32.xlu0 %v5944, 24
        %v5982 = vpop.permute.xlu0 %5981
        %5983 = vrot.lane.b32.xlu0 %v5947, 24
        %v5984 = vpop.permute.xlu0 %5983
        %5985 = vrot.lane.b32.xlu0 %v5949, 24
        %v5986 = vpop.permute.xlu0 %5985
        %5987 = vrot.lane.b32.xlu0 %v5952, 24
        %v5988 = vpop.permute.xlu0 %5987
        %5989 = vrot.lane.b32.xlu0 %v5954, 24
        %v5990 = vpop.permute.xlu0 %5989
        %5991 = vrot.lane.b32.xlu0 %v5957, 24
        %v5992 = vpop.permute.xlu0 %5991
        %5993 = vrot.lane.b32.xlu0 %v5959, 24
        %v5994 = vpop.permute.xlu0 %5993
        %5995 = vrot.lane.b32.xlu0 %v5962, 24
        %v5996 = vpop.permute.xlu0 %5995
        %5997 = vrot.lane.b32.xlu0 %v5964, 24
        %v5998 = vpop.permute.xlu0 %5997
        %5999 = vrot.lane.b32.xlu0 %v5967, 24
        %v6000 = vpop.permute.xlu0 %5999
        %6001 = vrot.lane.b32.xlu0 %v5969, 24
        %v6002 = vpop.permute.xlu0 %6001
        %6003 = vrot.lane.b32.xlu0 %v5972, 24
        %v6004 = vpop.permute.xlu0 %6003
        %6005 = vrot.lane.b32.xlu0 %v5974, 24
        %v6006 = vpop.permute.xlu0 %6005
        %v6008 = vsel %vm3425, %v4903, %v5104
        %v6010 = vsel %vm3425, %v4904, %v5106
        %v6012 = vsel %vm3425, %v4905, %v5108
        %v6014 = vsel %vm3425, %v4906, %v5110
        %v6016 = vsel %vm3425, %v4907, %v5112
        %v6018 = vsel %vm3425, %v4908, %v5114
        %v6020 = vsel %vm3425, %v4909, %v5116
        %v6022 = vsel %vm3425, %v4910, %v5118
        %v6024 = vsel %vm3425, %v4911, %v5120
        %v6026 = vsel %vm3425, %v4912, %v5122
        %v6028 = vsel %vm3425, %v4913, %v5124
        %v6030 = vsel %vm3425, %v4914, %v5126
        %v6032 = vsel %vm3425, %v4915, %v5128
        %v6034 = vsel %vm3425, %v4916, %v5130
        %v6036 = vsel %vm3425, %v4917, %v5132
        %v6038 = vsel %vm3425, %v4918, %v5134
        %v6040 = vsel %vm3458, %v6008, %v5176
        %v6042 = vsel %vm3458, %v6010, %v5178
        %v6044 = vsel %vm3458, %v6012, %v5180
        %v6046 = vsel %vm3458, %v6014, %v5182
        %v6048 = vsel %vm3458, %v6016, %v5184
        %v6050 = vsel %vm3458, %v6018, %v5186
        %v6052 = vsel %vm3458, %v6020, %v5188
        %v6054 = vsel %vm3458, %v6022, %v5190
        %v6056 = vsel %vm3458, %v6024, %v5192
        %v6058 = vsel %vm3458, %v6026, %v5194
        %v6060 = vsel %vm3458, %v6028, %v5196
        %v6062 = vsel %vm3458, %v6030, %v5198
        %v6064 = vsel %vm3458, %v6032, %v5200
        %v6066 = vsel %vm3458, %v6034, %v5202
        %v6068 = vsel %vm3458, %v6036, %v5204
        %v6070 = vsel %vm3458, %v6038, %v5206
        %v6072 = vsel %vm3491, %v6040, %v5288
        %v6074 = vsel %vm3491, %v6042, %v5290
        %v6076 = vsel %vm3491, %v6044, %v5292
        %v6078 = vsel %vm3491, %v6046, %v5294
        %v6080 = vsel %vm3491, %v6048, %v5296
        %v6082 = vsel %vm3491, %v6050, %v5298
        %v6084 = vsel %vm3491, %v6052, %v5300
        %v6086 = vsel %vm3491, %v6054, %v5302
        %v6088 = vsel %vm3491, %v6056, %v5304
        %v6090 = vsel %vm3491, %v6058, %v5306
        %v6092 = vsel %vm3491, %v6060, %v5308
        %v6094 = vsel %vm3491, %v6062, %v5310
        %v6096 = vsel %vm3491, %v6064, %v5312
        %v6098 = vsel %vm3491, %v6066, %v5314
        %v6100 = vsel %vm3491, %v6068, %v5316
        %v6102 = vsel %vm3491, %v6070, %v5318
        %v6104 = vsel %vm3524, %v6072, %v5504
        %v6106 = vsel %vm3524, %v6074, %v5506
        %v6108 = vsel %vm3524, %v6076, %v5508
        %v6110 = vsel %vm3524, %v6078, %v5510
        %v6112 = vsel %vm3524, %v6080, %v5512
        %v6114 = vsel %vm3524, %v6082, %v5514
        %v6116 = vsel %vm3524, %v6084, %v5516
        %v6118 = vsel %vm3524, %v6086, %v5518
        %v6120 = vsel %vm3524, %v6088, %v5520
        %v6122 = vsel %vm3524, %v6090, %v5522
        %v6124 = vsel %vm3524, %v6092, %v5524
        %v6126 = vsel %vm3524, %v6094, %v5526
        %v6128 = vsel %vm3524, %v6096, %v5528
        %v6130 = vsel %vm3524, %v6098, %v5530
        %v6132 = vsel %vm3524, %v6100, %v5532
        %v6134 = vsel %vm3524, %v6102, %v5534
        %v6136 = vsel %vm3557, %v6104, %v5576
        %v6138 = vsel %vm3557, %v6106, %v5578
        %v6140 = vsel %vm3557, %v6108, %v5580
        %v6142 = vsel %vm3557, %v6110, %v5582
        %v6144 = vsel %vm3557, %v6112, %v5584
        %v6146 = vsel %vm3557, %v6114, %v5586
        %v6148 = vsel %vm3557, %v6116, %v5588
        %v6150 = vsel %vm3557, %v6118, %v5590
        %v6152 = vsel %vm3557, %v6120, %v5592
        %v6154 = vsel %vm3557, %v6122, %v5594
        %v6156 = vsel %vm3557, %v6124, %v5596
        %v6158 = vsel %vm3557, %v6126, %v5598
        %v6160 = vsel %vm3557, %v6128, %v5600
        %v6162 = vsel %vm3557, %v6130, %v5602
        %v6164 = vsel %vm3557, %v6132, %v5604
        %v6166 = vsel %vm3557, %v6134, %v5606
        %v6168 = vsel %vm3590, %v6136, %v5688
        %v6170 = vsel %vm3590, %v6138, %v5690
        %v6172 = vsel %vm3590, %v6140, %v5692
        %v6174 = vsel %vm3590, %v6142, %v5694
        %v6176 = vsel %vm3590, %v6144, %v5696
        %v6178 = vsel %vm3590, %v6146, %v5698
        %v6180 = vsel %vm3590, %v6148, %v5700
        %v6182 = vsel %vm3590, %v6150, %v5702
        %v6184 = vsel %vm3590, %v6152, %v5704
        %v6186 = vsel %vm3590, %v6154, %v5706
        %v6188 = vsel %vm3590, %v6156, %v5708
        %v6190 = vsel %vm3590, %v6158, %v5710
        %v6192 = vsel %vm3590, %v6160, %v5712
        %v6194 = vsel %vm3590, %v6162, %v5714
        %v6196 = vsel %vm3590, %v6164, %v5716
        %v6198 = vsel %vm3590, %v6166, %v5718
        %v6200 = vsel %vm3623, %v6168, %v5904
        %v6202 = vsel %vm3623, %v6170, %v5906
        %v6204 = vsel %vm3623, %v6172, %v5908
        %v6206 = vsel %vm3623, %v6174, %v5910
        %v6208 = vsel %vm3623, %v6176, %v5912
        %v6210 = vsel %vm3623, %v6178, %v5914
        %v6212 = vsel %vm3623, %v6180, %v5916
        %v6214 = vsel %vm3623, %v6182, %v5918
        %v6216 = vsel %vm3623, %v6184, %v5920
        %v6218 = vsel %vm3623, %v6186, %v5922
        %v6220 = vsel %vm3623, %v6188, %v5924
        %v6222 = vsel %vm3623, %v6190, %v5926
        %v6224 = vsel %vm3623, %v6192, %v5928
        %v6226 = vsel %vm3623, %v6194, %v5930
        %v6228 = vsel %vm3623, %v6196, %v5932
        %v6230 = vsel %vm3623, %v6198, %v5934
        %v6232 = vsel %vm3656, %v6200, %v5976
        %v6234 = vsel %vm3656, %v6202, %v5978
        %v6236 = vsel %vm3656, %v6204, %v5980
        %v6238 = vsel %vm3656, %v6206, %v5982
        %v6240 = vsel %vm3656, %v6208, %v5984
        %v6242 = vsel %vm3656, %v6210, %v5986
        %v6244 = vsel %vm3656, %v6212, %v5988
        %v6246 = vsel %vm3656, %v6214, %v5990
        %v6248 = vsel %vm3656, %v6216, %v5992
        %v6250 = vsel %vm3656, %v6218, %v5994
        %v6252 = vsel %vm3656, %v6220, %v5996
        %v6254 = vsel %vm3656, %v6222, %v5998
        %v6256 = vsel %vm3656, %v6224, %v6000
        %v6258 = vsel %vm3656, %v6226, %v6002
        %v6260 = vsel %vm3656, %v6228, %v6004
        %v6262 = vsel %vm3656, %v6230, %v6006
        %v6263 = vld [vmem:[%s1] sm:$0xf]
        %v6264 = vld [vmem:[%s1 + $0x4] sm:$0xf]
        %v6265 = vld [vmem:[%s1 + $0x8] sm:$0xf]
        %v6266 = vld [vmem:[%s1 + $0xc] sm:$0x3]
        %v6271 = vunpack.c.l.b16 %v6263
        %v6272 = vunpack.c.l.b16 %v6264
        %v6273 = vunpack.c.l.b16 %v6265
        %v6274 = vunpack.c.l.b16 %v6266
        %v6275 = vpack.c.b16 %v6272, %v6271
        %v6276 = vpack.c.b16 %v6274, %v6273
        %v6278 = vsel %vm3707, %v6232, 0
        %v6280 = vsel %vm3707, %v6234, 0
        %v6282 = vsel %vm3707, %v6236, 0
        %v6284 = vsel %vm3707, %v6238, 0
        %v6286 = vsel %vm3707, %v6240, 0
        %v6288 = vsel %vm3707, %v6242, 0
        %v6290 = vsel %vm3707, %v6244, 0
        %v6292 = vsel %vm3707, %v6246, 0
        %v6294 = vsel %vm3707, %v6248, 0
        %v6296 = vsel %vm3707, %v6250, 0
        %v6298 = vsel %vm3707, %v6252, 0
        %v6300 = vsel %vm3707, %v6254, 0
        %v6302 = vsel %vm3707, %v6256, 0
        %v6304 = vsel %vm3707, %v6258, 0
        %v6306 = vsel %vm3707, %v6260, 0
        %v6308 = vsel %vm3707, %v6262, 0
        %v6311 = vand.u32 %v6276, %v3743
        %6313 = vmatpush.bf16.msra.mxu0 0
        %6314 = vmatpush.bf16.msra.mxu0 0
        %6315 = vmatpush.bf16.msra.mxu0 0
        %6316 = vmatpush.bf16.msra.mxu0 0
        %6317 = vmatpush.bf16.msra.mxu0 0
        %6318 = vmatpush.bf16.msra.mxu0 0
        %6319 = vmatpush.bf16.msra.mxu0 %v6311
        %6320 = vmatpush.bf16.msra.mxu0 %v6275
        %6321 = vmatmul.bf16.gmra.mxu0 %v6278
        %v6322 = vpop.f32.mrf.mxu0
        %v6323 = vadd.f32 %v3694, %v6322
        %v6324 = vpop.f32.mrf.mxu0
        %v6325 = vadd.f32 %v3694, %v6324
        %6326 = vmatmul.bf16.gmra.mxu0 %v6280
        %v6327 = vpop.f32.mrf.mxu0
        %v6328 = vadd.f32 %v3694, %v6327
        %v6329 = vpop.f32.mrf.mxu0
        %v6330 = vadd.f32 %v3694, %v6329
        %6331 = vmatmul.bf16.gmra.mxu0 %v6282
        %v6332 = vpop.f32.mrf.mxu0
        %v6333 = vadd.f32 %v3694, %v6332
        %v6334 = vpop.f32.mrf.mxu0
        %v6335 = vadd.f32 %v3694, %v6334
        %6336 = vmatmul.bf16.gmra.mxu0 %v6284
        %v6337 = vpop.f32.mrf.mxu0
        %v6338 = vadd.f32 %v3694, %v6337
        %v6339 = vpop.f32.mrf.mxu0
        %v6340 = vadd.f32 %v3694, %v6339
        %6341 = vmatmul.bf16.gmra.mxu0 %v6286
        %v6342 = vpop.f32.mrf.mxu0
        %v6343 = vadd.f32 %v3694, %v6342
        %v6344 = vpop.f32.mrf.mxu0
        %v6345 = vadd.f32 %v3694, %v6344
        %6346 = vmatmul.bf16.gmra.mxu0 %v6288
        %v6347 = vpop.f32.mrf.mxu0
        %v6348 = vadd.f32 %v3694, %v6347
        %v6349 = vpop.f32.mrf.mxu0
        %v6350 = vadd.f32 %v3694, %v6349
        %6351 = vmatmul.bf16.gmra.mxu0 %v6290
        %v6352 = vpop.f32.mrf.mxu0
        %v6353 = vadd.f32 %v3694, %v6352
        %v6354 = vpop.f32.mrf.mxu0
        %v6355 = vadd.f32 %v3694, %v6354
        %6356 = vmatmul.bf16.gmra.mxu0 %v6292
        %v6357 = vpop.f32.mrf.mxu0
        %v6358 = vadd.f32 %v3694, %v6357
        %v6359 = vpop.f32.mrf.mxu0
        %v6360 = vadd.f32 %v3694, %v6359
        %6361 = vmatmul.bf16.gmra.mxu0 %v6294
        %v6362 = vpop.f32.mrf.mxu0
        %v6363 = vadd.f32 %v3694, %v6362
        %v6364 = vpop.f32.mrf.mxu0
        %v6365 = vadd.f32 %v3694, %v6364
        %6366 = vmatmul.bf16.gmra.mxu0 %v6296
        %v6367 = vpop.f32.mrf.mxu0
        %v6368 = vadd.f32 %v3694, %v6367
        %v6369 = vpop.f32.mrf.mxu0
        %v6370 = vadd.f32 %v3694, %v6369
        %6371 = vmatmul.bf16.gmra.mxu0 %v6298
        %v6372 = vpop.f32.mrf.mxu0
        %v6373 = vadd.f32 %v3694, %v6372
        %v6374 = vpop.f32.mrf.mxu0
        %v6375 = vadd.f32 %v3694, %v6374
        %6376 = vmatmul.bf16.gmra.mxu0 %v6300
        %v6377 = vpop.f32.mrf.mxu0
        %v6378 = vadd.f32 %v3694, %v6377
        %v6379 = vpop.f32.mrf.mxu0
        %v6380 = vadd.f32 %v3694, %v6379
        %6381 = vmatmul.bf16.gmra.mxu0 %v6302
        %v6382 = vpop.f32.mrf.mxu0
        %v6383 = vadd.f32 %v3694, %v6382
        %v6384 = vpop.f32.mrf.mxu0
        %v6385 = vadd.f32 %v3694, %v6384
        %6386 = vmatmul.bf16.gmra.mxu0 %v6304
        %v6387 = vpop.f32.mrf.mxu0
        %v6388 = vadd.f32 %v3694, %v6387
        %v6389 = vpop.f32.mrf.mxu0
        %v6390 = vadd.f32 %v3694, %v6389
        %6391 = vmatmul.bf16.gmra.mxu0 %v6306
        %v6392 = vpop.f32.mrf.mxu0
        %v6393 = vadd.f32 %v3694, %v6392
        %v6394 = vpop.f32.mrf.mxu0
        %v6395 = vadd.f32 %v3694, %v6394
        %6396 = vmatmul.bf16.gmra.mxu0 %v6308
        %v6397 = vpop.f32.mrf.mxu0
        %v6398 = vadd.f32 %v3694, %v6397
        %v6399 = vpop.f32.mrf.mxu0
        %v6400 = vadd.f32 %v3694, %v6399
        %6401 = vdwg.mxu0
        %vm6402 = vcmp.gt.f32.partialorder %v6323, 0.0
        %vm6403 = vcmp.gt.f32.partialorder %v6325, 0.0
        %vm6404 = vcmp.gt.f32.partialorder %v6328, 0.0
        %vm6405 = vcmp.gt.f32.partialorder %v6330, 0.0
        %vm6406 = vcmp.gt.f32.partialorder %v6333, 0.0
        %vm6407 = vcmp.gt.f32.partialorder %v6335, 0.0
        %vm6408 = vcmp.gt.f32.partialorder %v6338, 0.0
        %vm6409 = vcmp.gt.f32.partialorder %v6340, 0.0
        %vm6410 = vcmp.gt.f32.partialorder %v6343, 0.0
        %vm6411 = vcmp.gt.f32.partialorder %v6345, 0.0
        %vm6412 = vcmp.gt.f32.partialorder %v6348, 0.0
        %vm6413 = vcmp.gt.f32.partialorder %v6350, 0.0
        %vm6414 = vcmp.gt.f32.partialorder %v6353, 0.0
        %vm6415 = vcmp.gt.f32.partialorder %v6355, 0.0
        %vm6416 = vcmp.gt.f32.partialorder %v6358, 0.0
        %vm6417 = vcmp.gt.f32.partialorder %v6360, 0.0
        %vm6418 = vcmp.gt.f32.partialorder %v6363, 0.0
        %vm6419 = vcmp.gt.f32.partialorder %v6365, 0.0
        %vm6420 = vcmp.gt.f32.partialorder %v6368, 0.0
        %vm6421 = vcmp.gt.f32.partialorder %v6370, 0.0
        %vm6422 = vcmp.gt.f32.partialorder %v6373, 0.0
        %vm6423 = vcmp.gt.f32.partialorder %v6375, 0.0
        %vm6424 = vcmp.gt.f32.partialorder %v6378, 0.0
        %vm6425 = vcmp.gt.f32.partialorder %v6380, 0.0
        %vm6426 = vcmp.gt.f32.partialorder %v6383, 0.0
        %vm6427 = vcmp.gt.f32.partialorder %v6385, 0.0
        %vm6428 = vcmp.gt.f32.partialorder %v6388, 0.0
        %vm6429 = vcmp.gt.f32.partialorder %v6390, 0.0
        %vm6430 = vcmp.gt.f32.partialorder %v6393, 0.0
        %vm6431 = vcmp.gt.f32.partialorder %v6395, 0.0
        %vm6432 = vcmp.gt.f32.partialorder %v6398, 0.0
        %vm6433 = vcmp.gt.f32.partialorder %v6400, 0.0
        %v6434 = vmul.f32 %v6323, 0.1
        %v6435 = vmul.f32 %v6325, 0.1
        %v6436 = vmul.f32 %v6328, 0.1
        %v6437 = vmul.f32 %v6330, 0.1
        %v6438 = vmul.f32 %v6333, 0.1
        %v6439 = vmul.f32 %v6335, 0.1
        %v6440 = vmul.f32 %v6338, 0.1
        %v6441 = vmul.f32 %v6340, 0.1
        %v6442 = vmul.f32 %v6343, 0.1
        %v6443 = vmul.f32 %v6345, 0.1
        %v6444 = vmul.f32 %v6348, 0.1
        %v6445 = vmul.f32 %v6350, 0.1
        %v6446 = vmul.f32 %v6353, 0.1
        %v6447 = vmul.f32 %v6355, 0.1
        %v6448 = vmul.f32 %v6358, 0.1
        %v6449 = vmul.f32 %v6360, 0.1
        %v6450 = vmul.f32 %v6363, 0.1
        %v6451 = vmul.f32 %v6365, 0.1
        %v6452 = vmul.f32 %v6368, 0.1
        %v6453 = vmul.f32 %v6370, 0.1
        %v6454 = vmul.f32 %v6373, 0.1
        %v6455 = vmul.f32 %v6375, 0.1
        %v6456 = vmul.f32 %v6378, 0.1
        %v6457 = vmul.f32 %v6380, 0.1
        %v6458 = vmul.f32 %v6383, 0.1
        %v6459 = vmul.f32 %v6385, 0.1
        %v6460 = vmul.f32 %v6388, 0.1
        %v6461 = vmul.f32 %v6390, 0.1
        %v6462 = vmul.f32 %v6393, 0.1
        %v6463 = vmul.f32 %v6395, 0.1
        %v6464 = vmul.f32 %v6398, 0.1
        %v6465 = vmul.f32 %v6400, 0.1
        %v6466 = vsel %vm6402, %v6323, %v6434
        %v6467 = vsel %vm6403, %v6325, %v6435
        %v6468 = vsel %vm6404, %v6328, %v6436
        %v6469 = vsel %vm6405, %v6330, %v6437
        %v6470 = vsel %vm6406, %v6333, %v6438
        %v6471 = vsel %vm6407, %v6335, %v6439
        %v6472 = vsel %vm6408, %v6338, %v6440
        %v6473 = vsel %vm6409, %v6340, %v6441
        %v6474 = vsel %vm6410, %v6343, %v6442
        %v6475 = vsel %vm6411, %v6345, %v6443
        %v6476 = vsel %vm6412, %v6348, %v6444
        %v6477 = vsel %vm6413, %v6350, %v6445
        %v6478 = vsel %vm6414, %v6353, %v6446
        %v6479 = vsel %vm6415, %v6355, %v6447
        %v6480 = vsel %vm6416, %v6358, %v6448
        %v6481 = vsel %vm6417, %v6360, %v6449
        %v6482 = vsel %vm6418, %v6363, %v6450
        %v6483 = vsel %vm6419, %v6365, %v6451
        %v6484 = vsel %vm6420, %v6368, %v6452
        %v6485 = vsel %vm6421, %v6370, %v6453
        %v6486 = vsel %vm6422, %v6373, %v6454
        %v6487 = vsel %vm6423, %v6375, %v6455
        %v6488 = vsel %vm6424, %v6378, %v6456
        %v6489 = vsel %vm6425, %v6380, %v6457
        %v6490 = vsel %vm6426, %v6383, %v6458
        %v6491 = vsel %vm6427, %v6385, %v6459
        %v6492 = vsel %vm6428, %v6388, %v6460
        %v6493 = vsel %vm6429, %v6390, %v6461
        %v6494 = vsel %vm6430, %v6393, %v6462
        %v6495 = vsel %vm6431, %v6395, %v6463
        %v6496 = vsel %vm6432, %v6398, %v6464
        %v6497 = vsel %vm6433, %v6400, %v6465
        %v6498 = vpack.c.bf16 %v6466, %v6466
        %v6499 = vpack.c.bf16 %v6467, %v6467
        %v6500 = vpack.c.bf16 %v6468, %v6468
        %v6501 = vpack.c.bf16 %v6469, %v6469
        %v6502 = vpack.c.bf16 %v6470, %v6470
        %v6503 = vpack.c.bf16 %v6471, %v6471
        %v6504 = vpack.c.bf16 %v6472, %v6472
        %v6505 = vpack.c.bf16 %v6473, %v6473
        %v6506 = vpack.c.bf16 %v6474, %v6474
        %v6507 = vpack.c.bf16 %v6475, %v6475
        %v6508 = vpack.c.bf16 %v6476, %v6476
        %v6509 = vpack.c.bf16 %v6477, %v6477
        %v6510 = vpack.c.bf16 %v6478, %v6478
        %v6511 = vpack.c.bf16 %v6479, %v6479
        %v6512 = vpack.c.bf16 %v6480, %v6480
        %v6513 = vpack.c.bf16 %v6481, %v6481
        %v6514 = vpack.c.bf16 %v6482, %v6482
        %v6515 = vpack.c.bf16 %v6483, %v6483
        %v6516 = vpack.c.bf16 %v6484, %v6484
        %v6517 = vpack.c.bf16 %v6485, %v6485
        %v6518 = vpack.c.bf16 %v6486, %v6486
        %v6519 = vpack.c.bf16 %v6487, %v6487
        %v6520 = vpack.c.bf16 %v6488, %v6488
        %v6521 = vpack.c.bf16 %v6489, %v6489
        %v6522 = vpack.c.bf16 %v6490, %v6490
        %v6523 = vpack.c.bf16 %v6491, %v6491
        %v6524 = vpack.c.bf16 %v6492, %v6492
        %v6525 = vpack.c.bf16 %v6493, %v6493
        %v6526 = vpack.c.bf16 %v6494, %v6494
        %v6527 = vpack.c.bf16 %v6495, %v6495
        %v6528 = vpack.c.bf16 %v6496, %v6496
        %v6529 = vpack.c.bf16 %v6497, %v6497
        %s6530 = scalar_lea.vmem %s208, 128
        %6531 = vst.msk [vmem:[%s6530] sm:$0xf] %vm3964, %v6498
        %6532 = vst.msk [vmem:[%s6530 + $0x4] sm:$0xf] %vm3964, %v6499
        %6533 = vst.msk [vmem:[%s6530 + $0x8] sm:$0xf] %vm3964, %v6500
        %6534 = vst.msk [vmem:[%s6530 + $0xc] sm:$0xf] %vm3964, %v6501
        %6535 = vst.msk [vmem:[%s6530 + $0x10] sm:$0xf] %vm3964, %v6502
        %6536 = vst.msk [vmem:[%s6530 + $0x14] sm:$0xf] %vm3964, %v6503
        %6537 = vst.msk [vmem:[%s6530 + $0x18] sm:$0xf] %vm3964, %v6504
        %6538 = vst.msk [vmem:[%s6530 + $0x1c] sm:$0xf] %vm3964, %v6505
        %6539 = vst.msk [vmem:[%s6530 + $0x20] sm:$0xf] %vm3964, %v6506
        %6540 = vst.msk [vmem:[%s6530 + $0x24] sm:$0xf] %vm3964, %v6507
        %6541 = vst.msk [vmem:[%s6530 + $0x28] sm:$0xf] %vm3964, %v6508
        %6542 = vst.msk [vmem:[%s6530 + $0x2c] sm:$0xf] %vm3964, %v6509
        %6543 = vst.msk [vmem:[%s6530 + $0x30] sm:$0xf] %vm3964, %v6510
        %6544 = vst.msk [vmem:[%s6530 + $0x34] sm:$0xf] %vm3964, %v6511
        %6545 = vst.msk [vmem:[%s6530 + $0x38] sm:$0xf] %vm3964, %v6512
        %6546 = vst.msk [vmem:[%s6530 + $0x3c] sm:$0xf] %vm3964, %v6513
        %6547 = vst.msk [vmem:[%s6530 + $0x40] sm:$0xf] %vm3964, %v6514
        %6548 = vst.msk [vmem:[%s6530 + $0x44] sm:$0xf] %vm3964, %v6515
        %6549 = vst.msk [vmem:[%s6530 + $0x48] sm:$0xf] %vm3964, %v6516
        %6550 = vst.msk [vmem:[%s6530 + $0x4c] sm:$0xf] %vm3964, %v6517
        %6551 = vst.msk [vmem:[%s6530 + $0x50] sm:$0xf] %vm3964, %v6518
        %6552 = vst.msk [vmem:[%s6530 + $0x54] sm:$0xf] %vm3964, %v6519
        %6553 = vst.msk [vmem:[%s6530 + $0x58] sm:$0xf] %vm3964, %v6520
        %6554 = vst.msk [vmem:[%s6530 + $0x5c] sm:$0xf] %vm3964, %v6521
        %6555 = vst.msk [vmem:[%s6530 + $0x60] sm:$0xf] %vm3964, %v6522
        %6556 = vst.msk [vmem:[%s6530 + $0x64] sm:$0xf] %vm3964, %v6523
        %6557 = vst.msk [vmem:[%s6530 + $0x68] sm:$0xf] %vm3964, %v6524
        %6558 = vst.msk [vmem:[%s6530 + $0x6c] sm:$0xf] %vm3964, %v6525
        %6559 = vst.msk [vmem:[%s6530 + $0x70] sm:$0xf] %vm3964, %v6526
        %6560 = vst.msk [vmem:[%s6530 + $0x74] sm:$0xf] %vm3964, %v6527
        %6561 = vst.msk [vmem:[%s6530 + $0x78] sm:$0xf] %vm3964, %v6528
        %6562 = vst.msk [vmem:[%s6530 + $0x7c] sm:$0xf] %vm3964, %v6529
        %v6563 = vmax.f32 %v6466, %v6470
        %v6564 = vmax.f32 %v6467, %v6471
        %v6565 = vmax.f32 %v6468, %v6472
        %v6566 = vmax.f32 %v6469, %v6473
        %v6567 = vmax.f32 %v6474, %v6478
        %v6568 = vmax.f32 %v6475, %v6479
        %v6569 = vmax.f32 %v6476, %v6480
        %v6570 = vmax.f32 %v6477, %v6481
        %v6571 = vmax.f32 %v6482, %v6486
        %v6572 = vmax.f32 %v6483, %v6487
        %v6573 = vmax.f32 %v6484, %v6488
        %v6574 = vmax.f32 %v6485, %v6489
        %v6575 = vmax.f32 %v6490, %v6494
        %v6576 = vmax.f32 %v6491, %v6495
        %v6577 = vmax.f32 %v6492, %v6496
        %v6578 = vmax.f32 %v6493, %v6497
        %v6595 = vrot.slane %v6563, 2
        %v6596 = vrot.slane %v6563, 4
        %v6597 = vrot.slane %v6563, 6
        %v6598 = vrot.slane %v6564, 2
        %v6599 = vrot.slane %v6564, 4
        %v6600 = vrot.slane %v6564, 6
        %v6601 = vrot.slane %v6565, 2
        %v6602 = vrot.slane %v6565, 4
        %v6603 = vrot.slane %v6565, 6
        %v6604 = vrot.slane %v6566, 2
        %v6605 = vrot.slane %v6566, 4
        %v6606 = vrot.slane %v6566, 6
        %v6607 = vrot.slane %v6567, 2
        %v6608 = vrot.slane %v6567, 4
        %v6609 = vrot.slane %v6567, 6
        %v6610 = vrot.slane %v6568, 2
        %v6611 = vrot.slane %v6568, 4
        %v6612 = vrot.slane %v6568, 6
        %v6613 = vrot.slane %v6569, 2
        %v6614 = vrot.slane %v6569, 4
        %v6615 = vrot.slane %v6569, 6
        %v6616 = vrot.slane %v6570, 2
        %v6617 = vrot.slane %v6570, 4
        %v6618 = vrot.slane %v6570, 6
        %v6619 = vrot.slane %v6571, 2
        %v6620 = vrot.slane %v6571, 4
        %v6621 = vrot.slane %v6571, 6
        %v6622 = vrot.slane %v6572, 2
        %v6623 = vrot.slane %v6572, 4
        %v6624 = vrot.slane %v6572, 6
        %v6625 = vrot.slane %v6573, 2
        %v6626 = vrot.slane %v6573, 4
        %v6627 = vrot.slane %v6573, 6
        %v6628 = vrot.slane %v6574, 2
        %v6629 = vrot.slane %v6574, 4
        %v6630 = vrot.slane %v6574, 6
        %v6631 = vrot.slane %v6575, 2
        %v6632 = vrot.slane %v6575, 4
        %v6633 = vrot.slane %v6575, 6
        %v6634 = vrot.slane %v6576, 2
        %v6635 = vrot.slane %v6576, 4
        %v6636 = vrot.slane %v6576, 6
        %v6637 = vrot.slane %v6577, 2
        %v6638 = vrot.slane %v6577, 4
        %v6639 = vrot.slane %v6577, 6
        %v6640 = vrot.slane %v6578, 2
        %v6641 = vrot.slane %v6578, 4
        %v6642 = vrot.slane %v6578, 6
        %v6691 = vrot.slane %v6563, 7
        %v6692 = vrot.slane %v6691, 2
        %v6693 = vrot.slane %v6595, 7
        %v6694 = vrot.slane %v6693, 2
        %v6695 = vrot.slane %v6596, 7
        %v6696 = vrot.slane %v6695, 2
        %v6697 = vrot.slane %v6597, 7
        %v6698 = vrot.slane %v6697, 2
        %v6699 = vrot.slane %v6564, 7
        %v6700 = vrot.slane %v6699, 2
        %v6701 = vrot.slane %v6598, 7
        %v6702 = vrot.slane %v6701, 2
        %v6703 = vrot.slane %v6599, 7
        %v6704 = vrot.slane %v6703, 2
        %v6705 = vrot.slane %v6600, 7
        %v6706 = vrot.slane %v6705, 2
        %v6707 = vrot.slane %v6565, 7
        %v6708 = vrot.slane %v6707, 2
        %v6709 = vrot.slane %v6601, 7
        %v6710 = vrot.slane %v6709, 2
        %v6711 = vrot.slane %v6602, 7
        %v6712 = vrot.slane %v6711, 2
        %v6713 = vrot.slane %v6603, 7
        %v6714 = vrot.slane %v6713, 2
        %v6715 = vrot.slane %v6566, 7
        %v6716 = vrot.slane %v6715, 2
        %v6717 = vrot.slane %v6604, 7
        %v6718 = vrot.slane %v6717, 2
        %v6719 = vrot.slane %v6605, 7
        %v6720 = vrot.slane %v6719, 2
        %v6721 = vrot.slane %v6606, 7
        %v6722 = vrot.slane %v6721, 2
        %v6723 = vrot.slane %v6567, 7
        %v6724 = vrot.slane %v6723, 2
        %v6725 = vrot.slane %v6607, 7
        %v6726 = vrot.slane %v6725, 2
        %v6727 = vrot.slane %v6608, 7
        %v6728 = vrot.slane %v6727, 2
        %v6729 = vrot.slane %v6609, 7
        %v6730 = vrot.slane %v6729, 2
        %v6731 = vrot.slane %v6568, 7
        %v6732 = vrot.slane %v6731, 2
        %v6733 = vrot.slane %v6610, 7
        %v6734 = vrot.slane %v6733, 2
        %v6735 = vrot.slane %v6611, 7
        %v6736 = vrot.slane %v6735, 2
        %v6737 = vrot.slane %v6612, 7
        %v6738 = vrot.slane %v6737, 2
        %v6739 = vrot.slane %v6569, 7
        %v6740 = vrot.slane %v6739, 2
        %v6741 = vrot.slane %v6613, 7
        %v6742 = vrot.slane %v6741, 2
        %v6743 = vrot.slane %v6614, 7
        %v6744 = vrot.slane %v6743, 2
        %v6745 = vrot.slane %v6615, 7
        %v6746 = vrot.slane %v6745, 2
        %v6747 = vrot.slane %v6570, 7
        %v6748 = vrot.slane %v6747, 2
        %v6749 = vrot.slane %v6616, 7
        %v6750 = vrot.slane %v6749, 2
        %v6751 = vrot.slane %v6617, 7
        %v6752 = vrot.slane %v6751, 2
        %v6753 = vrot.slane %v6618, 7
        %v6754 = vrot.slane %v6753, 2
        %v6755 = vrot.slane %v6571, 7
        %v6756 = vrot.slane %v6755, 2
        %v6757 = vrot.slane %v6619, 7
        %v6758 = vrot.slane %v6757, 2
        %v6759 = vrot.slane %v6620, 7
        %v6760 = vrot.slane %v6759, 2
        %v6761 = vrot.slane %v6621, 7
        %v6762 = vrot.slane %v6761, 2
        %v6763 = vrot.slane %v6572, 7
        %v6764 = vrot.slane %v6763, 2
        %v6765 = vrot.slane %v6622, 7
        %v6766 = vrot.slane %v6765, 2
        %v6767 = vrot.slane %v6623, 7
        %v6768 = vrot.slane %v6767, 2
        %v6769 = vrot.slane %v6624, 7
        %v6770 = vrot.slane %v6769, 2
        %v6771 = vrot.slane %v6573, 7
        %v6772 = vrot.slane %v6771, 2
        %v6773 = vrot.slane %v6625, 7
        %v6774 = vrot.slane %v6773, 2
        %v6775 = vrot.slane %v6626, 7
        %v6776 = vrot.slane %v6775, 2
        %v6777 = vrot.slane %v6627, 7
        %v6778 = vrot.slane %v6777, 2
        %v6779 = vrot.slane %v6574, 7
        %v6780 = vrot.slane %v6779, 2
        %v6781 = vrot.slane %v6628, 7
        %v6782 = vrot.slane %v6781, 2
        %v6783 = vrot.slane %v6629, 7
        %v6784 = vrot.slane %v6783, 2
        %v6785 = vrot.slane %v6630, 7
        %v6786 = vrot.slane %v6785, 2
        %v6787 = vrot.slane %v6575, 7
        %v6788 = vrot.slane %v6787, 2
        %v6789 = vrot.slane %v6631, 7
        %v6790 = vrot.slane %v6789, 2
        %v6791 = vrot.slane %v6632, 7
        %v6792 = vrot.slane %v6791, 2
        %v6793 = vrot.slane %v6633, 7
        %v6794 = vrot.slane %v6793, 2
        %v6795 = vrot.slane %v6576, 7
        %v6796 = vrot.slane %v6795, 2
        %v6797 = vrot.slane %v6634, 7
        %v6798 = vrot.slane %v6797, 2
        %v6799 = vrot.slane %v6635, 7
        %v6800 = vrot.slane %v6799, 2
        %v6801 = vrot.slane %v6636, 7
        %v6802 = vrot.slane %v6801, 2
        %v6803 = vrot.slane %v6577, 7
        %v6804 = vrot.slane %v6803, 2
        %v6805 = vrot.slane %v6637, 7
        %v6806 = vrot.slane %v6805, 2
        %v6807 = vrot.slane %v6638, 7
        %v6808 = vrot.slane %v6807, 2
        %v6809 = vrot.slane %v6639, 7
        %v6810 = vrot.slane %v6809, 2
        %v6811 = vrot.slane %v6578, 7
        %v6812 = vrot.slane %v6811, 2
        %v6813 = vrot.slane %v6640, 7
        %v6814 = vrot.slane %v6813, 2
        %v6815 = vrot.slane %v6641, 7
        %v6816 = vrot.slane %v6815, 2
        %v6817 = vrot.slane %v6642, 7
        %v6818 = vrot.slane %v6817, 2
        %v6883 = vmax.f32 %v6563, %v6692
        %v6884 = vmax.f32 %v6595, %v6694
        %v6885 = vmax.f32 %v6596, %v6696
        %v6886 = vmax.f32 %v6597, %v6698
        %v6887 = vmax.f32 %v6564, %v6700
        %v6888 = vmax.f32 %v6598, %v6702
        %v6889 = vmax.f32 %v6599, %v6704
        %v6890 = vmax.f32 %v6600, %v6706
        %v6891 = vmax.f32 %v6565, %v6708
        %v6892 = vmax.f32 %v6601, %v6710
        %v6893 = vmax.f32 %v6602, %v6712
        %v6894 = vmax.f32 %v6603, %v6714
        %v6895 = vmax.f32 %v6566, %v6716
        %v6896 = vmax.f32 %v6604, %v6718
        %v6897 = vmax.f32 %v6605, %v6720
        %v6898 = vmax.f32 %v6606, %v6722
        %v6899 = vmax.f32 %v6567, %v6724
        %v6900 = vmax.f32 %v6607, %v6726
        %v6901 = vmax.f32 %v6608, %v6728
        %v6902 = vmax.f32 %v6609, %v6730
        %v6903 = vmax.f32 %v6568, %v6732
        %v6904 = vmax.f32 %v6610, %v6734
        %v6905 = vmax.f32 %v6611, %v6736
        %v6906 = vmax.f32 %v6612, %v6738
        %v6907 = vmax.f32 %v6569, %v6740
        %v6908 = vmax.f32 %v6613, %v6742
        %v6909 = vmax.f32 %v6614, %v6744
        %v6910 = vmax.f32 %v6615, %v6746
        %v6911 = vmax.f32 %v6570, %v6748
        %v6912 = vmax.f32 %v6616, %v6750
        %v6913 = vmax.f32 %v6617, %v6752
        %v6914 = vmax.f32 %v6618, %v6754
        %v6915 = vmax.f32 %v6571, %v6756
        %v6916 = vmax.f32 %v6619, %v6758
        %v6917 = vmax.f32 %v6620, %v6760
        %v6918 = vmax.f32 %v6621, %v6762
        %v6919 = vmax.f32 %v6572, %v6764
        %v6920 = vmax.f32 %v6622, %v6766
        %v6921 = vmax.f32 %v6623, %v6768
        %v6922 = vmax.f32 %v6624, %v6770
        %v6923 = vmax.f32 %v6573, %v6772
        %v6924 = vmax.f32 %v6625, %v6774
        %v6925 = vmax.f32 %v6626, %v6776
        %v6926 = vmax.f32 %v6627, %v6778
        %v6927 = vmax.f32 %v6574, %v6780
        %v6928 = vmax.f32 %v6628, %v6782
        %v6929 = vmax.f32 %v6629, %v6784
        %v6930 = vmax.f32 %v6630, %v6786
        %v6931 = vmax.f32 %v6575, %v6788
        %v6932 = vmax.f32 %v6631, %v6790
        %v6933 = vmax.f32 %v6632, %v6792
        %v6934 = vmax.f32 %v6633, %v6794
        %v6935 = vmax.f32 %v6576, %v6796
        %v6936 = vmax.f32 %v6634, %v6798
        %v6937 = vmax.f32 %v6635, %v6800
        %v6938 = vmax.f32 %v6636, %v6802
        %v6939 = vmax.f32 %v6577, %v6804
        %v6940 = vmax.f32 %v6637, %v6806
        %v6941 = vmax.f32 %v6638, %v6808
        %v6942 = vmax.f32 %v6639, %v6810
        %v6943 = vmax.f32 %v6578, %v6812
        %v6944 = vmax.f32 %v6640, %v6814
        %v6945 = vmax.f32 %v6641, %v6816
        %v6946 = vmax.f32 %v6642, %v6818
        %v6947 = vpack.c.bf16 %v6883, %v6883
        %v6948 = vpack.c.bf16 %v6884, %v6884
        %v6949 = vpack.c.bf16 %v6885, %v6885
        %v6950 = vpack.c.bf16 %v6886, %v6886
        %v6951 = vpack.c.bf16 %v6887, %v6887
        %v6952 = vpack.c.bf16 %v6888, %v6888
        %v6953 = vpack.c.bf16 %v6889, %v6889
        %v6954 = vpack.c.bf16 %v6890, %v6890
        %v6955 = vpack.c.bf16 %v6891, %v6891
        %v6956 = vpack.c.bf16 %v6892, %v6892
        %v6957 = vpack.c.bf16 %v6893, %v6893
        %v6958 = vpack.c.bf16 %v6894, %v6894
        %v6959 = vpack.c.bf16 %v6895, %v6895
        %v6960 = vpack.c.bf16 %v6896, %v6896
        %v6961 = vpack.c.bf16 %v6897, %v6897
        %v6962 = vpack.c.bf16 %v6898, %v6898
        %v6963 = vpack.c.bf16 %v6899, %v6899
        %v6964 = vpack.c.bf16 %v6900, %v6900
        %v6965 = vpack.c.bf16 %v6901, %v6901
        %v6966 = vpack.c.bf16 %v6902, %v6902
        %v6967 = vpack.c.bf16 %v6903, %v6903
        %v6968 = vpack.c.bf16 %v6904, %v6904
        %v6969 = vpack.c.bf16 %v6905, %v6905
        %v6970 = vpack.c.bf16 %v6906, %v6906
        %v6971 = vpack.c.bf16 %v6907, %v6907
        %v6972 = vpack.c.bf16 %v6908, %v6908
        %v6973 = vpack.c.bf16 %v6909, %v6909
        %v6974 = vpack.c.bf16 %v6910, %v6910
        %v6975 = vpack.c.bf16 %v6911, %v6911
        %v6976 = vpack.c.bf16 %v6912, %v6912
        %v6977 = vpack.c.bf16 %v6913, %v6913
        %v6978 = vpack.c.bf16 %v6914, %v6914
        %v6979 = vpack.c.bf16 %v6915, %v6915
        %v6980 = vpack.c.bf16 %v6916, %v6916
        %v6981 = vpack.c.bf16 %v6917, %v6917
        %v6982 = vpack.c.bf16 %v6918, %v6918
        %v6983 = vpack.c.bf16 %v6919, %v6919
        %v6984 = vpack.c.bf16 %v6920, %v6920
        %v6985 = vpack.c.bf16 %v6921, %v6921
        %v6986 = vpack.c.bf16 %v6922, %v6922
        %v6987 = vpack.c.bf16 %v6923, %v6923
        %v6988 = vpack.c.bf16 %v6924, %v6924
        %v6989 = vpack.c.bf16 %v6925, %v6925
        %v6990 = vpack.c.bf16 %v6926, %v6926
        %v6991 = vpack.c.bf16 %v6927, %v6927
        %v6992 = vpack.c.bf16 %v6928, %v6928
        %v6993 = vpack.c.bf16 %v6929, %v6929
        %v6994 = vpack.c.bf16 %v6930, %v6930
        %v6995 = vpack.c.bf16 %v6931, %v6931
        %v6996 = vpack.c.bf16 %v6932, %v6932
        %v6997 = vpack.c.bf16 %v6933, %v6933
        %v6998 = vpack.c.bf16 %v6934, %v6934
        %v6999 = vpack.c.bf16 %v6935, %v6935
        %v7000 = vpack.c.bf16 %v6936, %v6936
        %v7001 = vpack.c.bf16 %v6937, %v6937
        %v7002 = vpack.c.bf16 %v6938, %v6938
        %v7003 = vpack.c.bf16 %v6939, %v6939
        %v7004 = vpack.c.bf16 %v6940, %v6940
        %v7005 = vpack.c.bf16 %v6941, %v6941
        %v7006 = vpack.c.bf16 %v6942, %v6942
        %v7007 = vpack.c.bf16 %v6943, %v6943
        %v7008 = vpack.c.bf16 %v6944, %v6944
        %v7009 = vpack.c.bf16 %v6945, %v6945
        %v7010 = vpack.c.bf16 %v6946, %v6946
        %v7075 = vunpack.c.l.b16 %v6947
        %v7076 = vunpack.c.l.b16 %v6948
        %v7077 = vunpack.c.l.b16 %v6949
        %v7078 = vunpack.c.l.b16 %v6950
        %v7079 = vunpack.c.l.b16 %v6951
        %v7080 = vunpack.c.l.b16 %v6952
        %v7081 = vunpack.c.l.b16 %v6953
        %v7082 = vunpack.c.l.b16 %v6954
        %v7083 = vunpack.c.l.b16 %v6955
        %v7084 = vunpack.c.l.b16 %v6956
        %v7085 = vunpack.c.l.b16 %v6957
        %v7086 = vunpack.c.l.b16 %v6958
        %v7087 = vunpack.c.l.b16 %v6959
        %v7088 = vunpack.c.l.b16 %v6960
        %v7089 = vunpack.c.l.b16 %v6961
        %v7090 = vunpack.c.l.b16 %v6962
        %v7091 = vunpack.c.l.b16 %v6963
        %v7092 = vunpack.c.l.b16 %v6964
        %v7093 = vunpack.c.l.b16 %v6965
        %v7094 = vunpack.c.l.b16 %v6966
        %v7095 = vunpack.c.l.b16 %v6967
        %v7096 = vunpack.c.l.b16 %v6968
        %v7097 = vunpack.c.l.b16 %v6969
        %v7098 = vunpack.c.l.b16 %v6970
        %v7099 = vunpack.c.l.b16 %v6971
        %v7100 = vunpack.c.l.b16 %v6972
        %v7101 = vunpack.c.l.b16 %v6973
        %v7102 = vunpack.c.l.b16 %v6974
        %v7103 = vunpack.c.l.b16 %v6975
        %v7104 = vunpack.c.l.b16 %v6976
        %v7105 = vunpack.c.l.b16 %v6977
        %v7106 = vunpack.c.l.b16 %v6978
        %v7107 = vunpack.c.l.b16 %v6979
        %v7108 = vunpack.c.l.b16 %v6980
        %v7109 = vunpack.c.l.b16 %v6981
        %v7110 = vunpack.c.l.b16 %v6982
        %v7111 = vunpack.c.l.b16 %v6983
        %v7112 = vunpack.c.l.b16 %v6984
        %v7113 = vunpack.c.l.b16 %v6985
        %v7114 = vunpack.c.l.b16 %v6986
        %v7115 = vunpack.c.l.b16 %v6987
        %v7116 = vunpack.c.l.b16 %v6988
        %v7117 = vunpack.c.l.b16 %v6989
        %v7118 = vunpack.c.l.b16 %v6990
        %v7119 = vunpack.c.l.b16 %v6991
        %v7120 = vunpack.c.l.b16 %v6992
        %v7121 = vunpack.c.l.b16 %v6993
        %v7122 = vunpack.c.l.b16 %v6994
        %v7123 = vunpack.c.l.b16 %v6995
        %v7124 = vunpack.c.l.b16 %v6996
        %v7125 = vunpack.c.l.b16 %v6997
        %v7126 = vunpack.c.l.b16 %v6998
        %v7127 = vunpack.c.l.b16 %v6999
        %v7128 = vunpack.c.l.b16 %v7000
        %v7129 = vunpack.c.l.b16 %v7001
        %v7130 = vunpack.c.l.b16 %v7002
        %v7131 = vunpack.c.l.b16 %v7003
        %v7132 = vunpack.c.l.b16 %v7004
        %v7133 = vunpack.c.l.b16 %v7005
        %v7134 = vunpack.c.l.b16 %v7006
        %v7135 = vunpack.c.l.b16 %v7007
        %v7136 = vunpack.c.l.b16 %v7008
        %v7137 = vunpack.c.l.b16 %v7009
        %v7138 = vunpack.c.l.b16 %v7010
        %v7139 = vrot.slane %v7076, 7
        %v7140 = vsel %vm4574, %v7139, %v7075
        %v7141 = vrot.slane %v7077, 6
        %v7142 = vsel %vm4577, %v7141, %v7140
        %v7143 = vrot.slane %v7078, 5
        %v7144 = vsel %vm4580, %v7143, %v7142
        %v7145 = vrot.slane %v7079, 4
        %v7146 = vsel %vm4583, %v7145, %v7144
        %v7147 = vrot.slane %v7080, 3
        %v7148 = vsel %vm4586, %v7147, %v7146
        %v7149 = vrot.slane %v7081, 2
        %v7150 = vsel %vm4589, %v7149, %v7148
        %v7151 = vrot.slane %v7082, 1
        %v7152 = vsel %vm4592, %v7151, %v7150
        %v7153 = vrot.slane %v7084, 7
        %v7154 = vsel %vm4574, %v7153, %v7083
        %v7155 = vrot.slane %v7085, 6
        %v7156 = vsel %vm4577, %v7155, %v7154
        %v7157 = vrot.slane %v7086, 5
        %v7158 = vsel %vm4580, %v7157, %v7156
        %v7159 = vrot.slane %v7087, 4
        %v7160 = vsel %vm4583, %v7159, %v7158
        %v7161 = vrot.slane %v7088, 3
        %v7162 = vsel %vm4586, %v7161, %v7160
        %v7163 = vrot.slane %v7089, 2
        %v7164 = vsel %vm4589, %v7163, %v7162
        %v7165 = vrot.slane %v7090, 1
        %v7166 = vsel %vm4592, %v7165, %v7164
        %v7167 = vrot.slane %v7092, 7
        %v7168 = vsel %vm4574, %v7167, %v7091
        %v7169 = vrot.slane %v7093, 6
        %v7170 = vsel %vm4577, %v7169, %v7168
        %v7171 = vrot.slane %v7094, 5
        %v7172 = vsel %vm4580, %v7171, %v7170
        %v7173 = vrot.slane %v7095, 4
        %v7174 = vsel %vm4583, %v7173, %v7172
        %v7175 = vrot.slane %v7096, 3
        %v7176 = vsel %vm4586, %v7175, %v7174
        %v7177 = vrot.slane %v7097, 2
        %v7178 = vsel %vm4589, %v7177, %v7176
        %v7179 = vrot.slane %v7098, 1
        %v7180 = vsel %vm4592, %v7179, %v7178
        %v7181 = vrot.slane %v7100, 7
        %v7182 = vsel %vm4574, %v7181, %v7099
        %v7183 = vrot.slane %v7101, 6
        %v7184 = vsel %vm4577, %v7183, %v7182
        %v7185 = vrot.slane %v7102, 5
        %v7186 = vsel %vm4580, %v7185, %v7184
        %v7187 = vrot.slane %v7103, 4
        %v7188 = vsel %vm4583, %v7187, %v7186
        %v7189 = vrot.slane %v7104, 3
        %v7190 = vsel %vm4586, %v7189, %v7188
        %v7191 = vrot.slane %v7105, 2
        %v7192 = vsel %vm4589, %v7191, %v7190
        %v7193 = vrot.slane %v7106, 1
        %v7194 = vsel %vm4592, %v7193, %v7192
        %v7195 = vrot.slane %v7108, 7
        %v7196 = vsel %vm4574, %v7195, %v7107
        %v7197 = vrot.slane %v7109, 6
        %v7198 = vsel %vm4577, %v7197, %v7196
        %v7199 = vrot.slane %v7110, 5
        %v7200 = vsel %vm4580, %v7199, %v7198
        %v7201 = vrot.slane %v7111, 4
        %v7202 = vsel %vm4583, %v7201, %v7200
        %v7203 = vrot.slane %v7112, 3
        %v7204 = vsel %vm4586, %v7203, %v7202
        %v7205 = vrot.slane %v7113, 2
        %v7206 = vsel %vm4589, %v7205, %v7204
        %v7207 = vrot.slane %v7114, 1
        %v7208 = vsel %vm4592, %v7207, %v7206
        %v7209 = vrot.slane %v7116, 7
        %v7210 = vsel %vm4574, %v7209, %v7115
        %v7211 = vrot.slane %v7117, 6
        %v7212 = vsel %vm4577, %v7211, %v7210
        %v7213 = vrot.slane %v7118, 5
        %v7214 = vsel %vm4580, %v7213, %v7212
        %v7215 = vrot.slane %v7119, 4
        %v7216 = vsel %vm4583, %v7215, %v7214
        %v7217 = vrot.slane %v7120, 3
        %v7218 = vsel %vm4586, %v7217, %v7216
        %v7219 = vrot.slane %v7121, 2
        %v7220 = vsel %vm4589, %v7219, %v7218
        %v7221 = vrot.slane %v7122, 1
        %v7222 = vsel %vm4592, %v7221, %v7220
        %v7223 = vrot.slane %v7124, 7
        %v7224 = vsel %vm4574, %v7223, %v7123
        %v7225 = vrot.slane %v7125, 6
        %v7226 = vsel %vm4577, %v7225, %v7224
        %v7227 = vrot.slane %v7126, 5
        %v7228 = vsel %vm4580, %v7227, %v7226
        %v7229 = vrot.slane %v7127, 4
        %v7230 = vsel %vm4583, %v7229, %v7228
        %v7231 = vrot.slane %v7128, 3
        %v7232 = vsel %vm4586, %v7231, %v7230
        %v7233 = vrot.slane %v7129, 2
        %v7234 = vsel %vm4589, %v7233, %v7232
        %v7235 = vrot.slane %v7130, 1
        %v7236 = vsel %vm4592, %v7235, %v7234
        %v7237 = vrot.slane %v7132, 7
        %v7238 = vsel %vm4574, %v7237, %v7131
        %v7239 = vrot.slane %v7133, 6
        %v7240 = vsel %vm4577, %v7239, %v7238
        %v7241 = vrot.slane %v7134, 5
        %v7242 = vsel %vm4580, %v7241, %v7240
        %v7243 = vrot.slane %v7135, 4
        %v7244 = vsel %vm4583, %v7243, %v7242
        %v7245 = vrot.slane %v7136, 3
        %v7246 = vsel %vm4586, %v7245, %v7244
        %v7247 = vrot.slane %v7137, 2
        %v7248 = vsel %vm4589, %v7247, %v7246
        %v7249 = vrot.slane %v7138, 1
        %v7250 = vsel %vm4592, %v7249, %v7248
        %v7251 = vpack.c.b16 %v7152, %v7152
        %v7252 = vpack.c.b16 %v7166, %v7166
        %v7253 = vpack.c.b16 %v7180, %v7180
        %v7254 = vpack.c.b16 %v7194, %v7194
        %v7255 = vpack.c.b16 %v7208, %v7208
        %v7256 = vpack.c.b16 %v7222, %v7222
        %v7257 = vpack.c.b16 %v7236, %v7236
        %v7258 = vpack.c.b16 %v7250, %v7250
        %s7267 = scalar_lea.vmem %s191, 32 [#allocation3]
        %7268 = vst.msk [vmem:[%s7267] sm:$0xf] %vm3964, %v7251
        %7269 = vst.msk [vmem:[%s7267 + $0x4] sm:$0xf] %vm3964, %v7252
        %7270 = vst.msk [vmem:[%s7267 + $0x8] sm:$0xf] %vm3964, %v7253
        %7271 = vst.msk [vmem:[%s7267 + $0xc] sm:$0xf] %vm3964, %v7254
        %7272 = vst.msk [vmem:[%s7267 + $0x10] sm:$0xf] %vm3964, %v7255
        %7273 = vst.msk [vmem:[%s7267 + $0x14] sm:$0xf] %vm3964, %v7256
        %7274 = vst.msk [vmem:[%s7267 + $0x18] sm:$0xf] %vm3964, %v7257
        %7275 = vst.msk [vmem:[%s7267 + $0x1c] sm:$0xf] %vm3964, %v7258
        %s7276 = scalar_lea.vmem [#allocation2], 320
        %v7277 = vld [vmem:[%s7276] sm:$0xf]
        %v7278 = vld [vmem:[%s7276 + $0x4] sm:$0xf]
        %v7279 = vld [vmem:[%s7276 + $0x8] sm:$0xf]
        %v7280 = vld [vmem:[%s7276 + $0xc] sm:$0xf]
        %v7281 = vld [vmem:[%s7276 + $0x10] sm:$0x1]
        %v7282 = vld [vmem:[%s7276 + $0x14] sm:$0xf]
        %v7283 = vld [vmem:[%s7276 + $0x18] sm:$0xf]
        %v7284 = vld [vmem:[%s7276 + $0x1c] sm:$0xf]
        %v7285 = vld [vmem:[%s7276 + $0x20] sm:$0xf]
        %v7286 = vld [vmem:[%s7276 + $0x24] sm:$0x1]
        %v7287 = vld [vmem:[%s7276 + $0x28] sm:$0xf]
        %v7288 = vld [vmem:[%s7276 + $0x2c] sm:$0xf]
        %v7289 = vld [vmem:[%s7276 + $0x30] sm:$0xf]
        %v7290 = vld [vmem:[%s7276 + $0x34] sm:$0xf]
        %v7291 = vld [vmem:[%s7276 + $0x38] sm:$0x1]
        %v7292 = vld [vmem:[%s7276 + $0x3c] sm:$0xf]
        %v7293 = vld [vmem:[%s7276 + $0x40] sm:$0xf]
        %v7294 = vld [vmem:[%s7276 + $0x44] sm:$0xf]
        %v7295 = vld [vmem:[%s7276 + $0x48] sm:$0xf]
        %v7296 = vld [vmem:[%s7276 + $0x4c] sm:$0x1]
        %v7297 = vld [vmem:[%s7276 + $0x50] sm:$0xf]
        %v7298 = vld [vmem:[%s7276 + $0x54] sm:$0xf]
        %v7299 = vld [vmem:[%s7276 + $0x58] sm:$0xf]
        %v7300 = vld [vmem:[%s7276 + $0x5c] sm:$0xf]
        %v7301 = vld [vmem:[%s7276 + $0x60] sm:$0x1]
        %v7302 = vld [vmem:[%s7276 + $0x64] sm:$0xf]
        %v7303 = vld [vmem:[%s7276 + $0x68] sm:$0xf]
        %v7304 = vld [vmem:[%s7276 + $0x6c] sm:$0xf]
        %v7305 = vld [vmem:[%s7276 + $0x70] sm:$0xf]
        %v7306 = vld [vmem:[%s7276 + $0x74] sm:$0x1]
        %v7307 = vld [vmem:[%s7276 + $0x78] sm:$0xf]
        %v7308 = vld [vmem:[%s7276 + $0x7c] sm:$0xf]
        %v7309 = vld [vmem:[%s7276 + $0x80] sm:$0xf]
        %v7310 = vld [vmem:[%s7276 + $0x84] sm:$0xf]
        %v7311 = vld [vmem:[%s7276 + $0x88] sm:$0x1]
        %v7312 = vld [vmem:[%s7276 + $0x8c] sm:$0xf]
        %v7313 = vld [vmem:[%s7276 + $0x90] sm:$0xf]
        %v7314 = vld [vmem:[%s7276 + $0x94] sm:$0xf]
        %v7315 = vld [vmem:[%s7276 + $0x98] sm:$0xf]
        %v7316 = vld [vmem:[%s7276 + $0x9c] sm:$0x1]
        %s7317 = scalar_lea.vmem [#allocation2], 340
        %v7318 = vld [vmem:[%s7317] sm:$0xf]
        %v7319 = vld [vmem:[%s7317 + $0x4] sm:$0xf]
        %v7320 = vld [vmem:[%s7317 + $0x8] sm:$0xf]
        %v7321 = vld [vmem:[%s7317 + $0xc] sm:$0xf]
        %v7322 = vld [vmem:[%s7317 + $0x10] sm:$0x1]
        %v7323 = vld [vmem:[%s7317 + $0x14] sm:$0xf]
        %v7324 = vld [vmem:[%s7317 + $0x18] sm:$0xf]
        %v7325 = vld [vmem:[%s7317 + $0x1c] sm:$0xf]
        %v7326 = vld [vmem:[%s7317 + $0x20] sm:$0xf]
        %v7327 = vld [vmem:[%s7317 + $0x24] sm:$0x1]
        %v7328 = vld [vmem:[%s7317 + $0x28] sm:$0xf]
        %v7329 = vld [vmem:[%s7317 + $0x2c] sm:$0xf]
        %v7330 = vld [vmem:[%s7317 + $0x30] sm:$0xf]
        %v7331 = vld [vmem:[%s7317 + $0x34] sm:$0xf]
        %v7332 = vld [vmem:[%s7317 + $0x38] sm:$0x1]
        %v7333 = vld [vmem:[%s7317 + $0x3c] sm:$0xf]
        %v7334 = vld [vmem:[%s7317 + $0x40] sm:$0xf]
        %v7335 = vld [vmem:[%s7317 + $0x44] sm:$0xf]
        %v7336 = vld [vmem:[%s7317 + $0x48] sm:$0xf]
        %v7337 = vld [vmem:[%s7317 + $0x4c] sm:$0x1]
        %v7338 = vld [vmem:[%s7317 + $0x50] sm:$0xf]
        %v7339 = vld [vmem:[%s7317 + $0x54] sm:$0xf]
        %v7340 = vld [vmem:[%s7317 + $0x58] sm:$0xf]
        %v7341 = vld [vmem:[%s7317 + $0x5c] sm:$0xf]
        %v7342 = vld [vmem:[%s7317 + $0x60] sm:$0x1]
        %v7343 = vld [vmem:[%s7317 + $0x64] sm:$0xf]
        %v7344 = vld [vmem:[%s7317 + $0x68] sm:$0xf]
        %v7345 = vld [vmem:[%s7317 + $0x6c] sm:$0xf]
        %v7346 = vld [vmem:[%s7317 + $0x70] sm:$0xf]
        %v7347 = vld [vmem:[%s7317 + $0x74] sm:$0x1]
        %v7348 = vld [vmem:[%s7317 + $0x78] sm:$0xf]
        %v7349 = vld [vmem:[%s7317 + $0x7c] sm:$0xf]
        %v7350 = vld [vmem:[%s7317 + $0x80] sm:$0xf]
        %v7351 = vld [vmem:[%s7317 + $0x84] sm:$0xf]
        %v7352 = vld [vmem:[%s7317 + $0x88] sm:$0x1]
        %v7353 = vld [vmem:[%s7317 + $0x8c] sm:$0xf]
        %v7354 = vld [vmem:[%s7317 + $0x90] sm:$0xf]
        %v7355 = vld [vmem:[%s7317 + $0x94] sm:$0xf]
        %v7356 = vld [vmem:[%s7317 + $0x98] sm:$0xf]
        %v7357 = vld [vmem:[%s7317 + $0x9c] sm:$0x1]
        %s7358 = scalar_lea.vmem [#allocation2], 360
        %v7359 = vld [vmem:[%s7358] sm:$0xf]
        %v7360 = vld [vmem:[%s7358 + $0x4] sm:$0xf]
        %v7361 = vld [vmem:[%s7358 + $0x8] sm:$0xf]
        %v7362 = vld [vmem:[%s7358 + $0xc] sm:$0xf]
        %v7363 = vld [vmem:[%s7358 + $0x10] sm:$0x1]
        %v7364 = vld [vmem:[%s7358 + $0x14] sm:$0xf]
        %v7365 = vld [vmem:[%s7358 + $0x18] sm:$0xf]
        %v7366 = vld [vmem:[%s7358 + $0x1c] sm:$0xf]
        %v7367 = vld [vmem:[%s7358 + $0x20] sm:$0xf]
        %v7368 = vld [vmem:[%s7358 + $0x24] sm:$0x1]
        %v7369 = vld [vmem:[%s7358 + $0x28] sm:$0xf]
        %v7370 = vld [vmem:[%s7358 + $0x2c] sm:$0xf]
        %v7371 = vld [vmem:[%s7358 + $0x30] sm:$0xf]
        %v7372 = vld [vmem:[%s7358 + $0x34] sm:$0xf]
        %v7373 = vld [vmem:[%s7358 + $0x38] sm:$0x1]
        %v7374 = vld [vmem:[%s7358 + $0x3c] sm:$0xf]
        %v7375 = vld [vmem:[%s7358 + $0x40] sm:$0xf]
        %v7376 = vld [vmem:[%s7358 + $0x44] sm:$0xf]
        %v7377 = vld [vmem:[%s7358 + $0x48] sm:$0xf]
        %v7378 = vld [vmem:[%s7358 + $0x4c] sm:$0x1]
        %v7379 = vld [vmem:[%s7358 + $0x50] sm:$0xf]
        %v7380 = vld [vmem:[%s7358 + $0x54] sm:$0xf]
        %v7381 = vld [vmem:[%s7358 + $0x58] sm:$0xf]
        %v7382 = vld [vmem:[%s7358 + $0x5c] sm:$0xf]
        %v7383 = vld [vmem:[%s7358 + $0x60] sm:$0x1]
        %v7384 = vld [vmem:[%s7358 + $0x64] sm:$0xf]
        %v7385 = vld [vmem:[%s7358 + $0x68] sm:$0xf]
        %v7386 = vld [vmem:[%s7358 + $0x6c] sm:$0xf]
        %v7387 = vld [vmem:[%s7358 + $0x70] sm:$0xf]
        %v7388 = vld [vmem:[%s7358 + $0x74] sm:$0x1]
        %v7389 = vld [vmem:[%s7358 + $0x78] sm:$0xf]
        %v7390 = vld [vmem:[%s7358 + $0x7c] sm:$0xf]
        %v7391 = vld [vmem:[%s7358 + $0x80] sm:$0xf]
        %v7392 = vld [vmem:[%s7358 + $0x84] sm:$0xf]
        %v7393 = vld [vmem:[%s7358 + $0x88] sm:$0x1]
        %v7394 = vld [vmem:[%s7358 + $0x8c] sm:$0xf]
        %v7395 = vld [vmem:[%s7358 + $0x90] sm:$0xf]
        %v7396 = vld [vmem:[%s7358 + $0x94] sm:$0xf]
        %v7397 = vld [vmem:[%s7358 + $0x98] sm:$0xf]
        %v7398 = vld [vmem:[%s7358 + $0x9c] sm:$0x1]
        %v7431 = vunpack.c.l.b16 %v7277
        %v7432 = vunpack.c.l.b16 %v7278
        %v7433 = vunpack.c.l.b16 %v7279
        %v7434 = vunpack.c.l.b16 %v7280
        %v7435 = vunpack.c.l.b16 %v7282
        %v7436 = vunpack.c.l.b16 %v7283
        %v7437 = vunpack.c.l.b16 %v7284
        %v7438 = vunpack.c.l.b16 %v7285
        %v7439 = vunpack.c.l.b16 %v7287
        %v7440 = vunpack.c.l.b16 %v7288
        %v7441 = vunpack.c.l.b16 %v7289
        %v7442 = vunpack.c.l.b16 %v7290
        %v7443 = vunpack.c.l.b16 %v7292
        %v7444 = vunpack.c.l.b16 %v7293
        %v7445 = vunpack.c.l.b16 %v7294
        %v7446 = vunpack.c.l.b16 %v7295
        %v7447 = vunpack.c.l.b16 %v7297
        %v7448 = vunpack.c.l.b16 %v7298
        %v7449 = vunpack.c.l.b16 %v7299
        %v7450 = vunpack.c.l.b16 %v7300
        %v7451 = vunpack.c.l.b16 %v7302
        %v7452 = vunpack.c.l.b16 %v7303
        %v7453 = vunpack.c.l.b16 %v7304
        %v7454 = vunpack.c.l.b16 %v7305
        %v7455 = vunpack.c.l.b16 %v7307
        %v7456 = vunpack.c.l.b16 %v7308
        %v7457 = vunpack.c.l.b16 %v7309
        %v7458 = vunpack.c.l.b16 %v7310
        %v7459 = vunpack.c.l.b16 %v7312
        %v7460 = vunpack.c.l.b16 %v7313
        %v7461 = vunpack.c.l.b16 %v7314
        %v7462 = vunpack.c.l.b16 %v7315
        %v7463 = vpack.c.b16 %v7432, %v7431
        %v7464 = vpack.c.b16 %v7434, %v7433
        %v7465 = vpack.c.b16 %v7436, %v7435
        %v7466 = vpack.c.b16 %v7438, %v7437
        %v7467 = vpack.c.b16 %v7440, %v7439
        %v7468 = vpack.c.b16 %v7442, %v7441
        %v7469 = vpack.c.b16 %v7444, %v7443
        %v7470 = vpack.c.b16 %v7446, %v7445
        %v7471 = vpack.c.b16 %v7448, %v7447
        %v7472 = vpack.c.b16 %v7450, %v7449
        %v7473 = vpack.c.b16 %v7452, %v7451
        %v7474 = vpack.c.b16 %v7454, %v7453
        %v7475 = vpack.c.b16 %v7456, %v7455
        %v7476 = vpack.c.b16 %v7458, %v7457
        %v7477 = vpack.c.b16 %v7460, %v7459
        %v7478 = vpack.c.b16 %v7462, %v7461
        %v7487 = vunpack.c.l.b16 %v7281
        %v7488 = vunpack.c.l.b16 %v7286
        %v7489 = vunpack.c.l.b16 %v7291
        %v7490 = vunpack.c.l.b16 %v7296
        %v7491 = vunpack.c.l.b16 %v7301
        %v7492 = vunpack.c.l.b16 %v7306
        %v7493 = vunpack.c.l.b16 %v7311
        %v7494 = vunpack.c.l.b16 %v7316
        %v7495 = vpack.c.b16 %v7487, %v7487
        %v7496 = vpack.c.b16 %v7488, %v7488
        %v7497 = vpack.c.b16 %v7489, %v7489
        %v7498 = vpack.c.b16 %v7490, %v7490
        %v7499 = vpack.c.b16 %v7491, %v7491
        %v7500 = vpack.c.b16 %v7492, %v7492
        %v7501 = vpack.c.b16 %v7493, %v7493
        %v7502 = vpack.c.b16 %v7494, %v7494
        %v7504 = vshrl.u32 %v7463, 16
        %v7506 = vshll.u32 %v7463, 16
        %v7508 = vrot.slane %v7506, 1
        %v7509 = vor.u32 %v7504, %v7508
        %v7511 = vshll.u32 %v7464, 16
        %v7513 = vrot.slane %v7511, 1
        %v7514 = vsel %vm2359, %v7509, %v7513
        %v7515 = vshrl.u32 %v7464, 16
        %v7517 = vor.u32 %v7515, %v7513
        %v7519 = vshll.u32 %v7495, 16
        %v7521 = vrot.slane %v7519, 1
        %v7522 = vsel %vm2359, %v7517, %v7521
        %v7524 = vshrl.u32 %v7465, 16
        %v7526 = vshll.u32 %v7465, 16
        %v7528 = vrot.slane %v7526, 1
        %v7529 = vor.u32 %v7524, %v7528
        %v7531 = vshll.u32 %v7466, 16
        %v7533 = vrot.slane %v7531, 1
        %v7534 = vsel %vm2359, %v7529, %v7533
        %v7535 = vshrl.u32 %v7466, 16
        %v7537 = vor.u32 %v7535, %v7533
        %v7539 = vshll.u32 %v7496, 16
        %v7541 = vrot.slane %v7539, 1
        %v7542 = vsel %vm2359, %v7537, %v7541
        %v7544 = vshrl.u32 %v7467, 16
        %v7546 = vshll.u32 %v7467, 16
        %v7548 = vrot.slane %v7546, 1
        %v7549 = vor.u32 %v7544, %v7548
        %v7551 = vshll.u32 %v7468, 16
        %v7553 = vrot.slane %v7551, 1
        %v7554 = vsel %vm2359, %v7549, %v7553
        %v7555 = vshrl.u32 %v7468, 16
        %v7557 = vor.u32 %v7555, %v7553
        %v7559 = vshll.u32 %v7497, 16
        %v7561 = vrot.slane %v7559, 1
        %v7562 = vsel %vm2359, %v7557, %v7561
        %v7564 = vshrl.u32 %v7469, 16
        %v7566 = vshll.u32 %v7469, 16
        %v7568 = vrot.slane %v7566, 1
        %v7569 = vor.u32 %v7564, %v7568
        %v7571 = vshll.u32 %v7470, 16
        %v7573 = vrot.slane %v7571, 1
        %v7574 = vsel %vm2359, %v7569, %v7573
        %v7575 = vshrl.u32 %v7470, 16
        %v7577 = vor.u32 %v7575, %v7573
        %v7579 = vshll.u32 %v7498, 16
        %v7581 = vrot.slane %v7579, 1
        %v7582 = vsel %vm2359, %v7577, %v7581
        %v7584 = vshrl.u32 %v7471, 16
        %v7586 = vshll.u32 %v7471, 16
        %v7588 = vrot.slane %v7586, 1
        %v7589 = vor.u32 %v7584, %v7588
        %v7591 = vshll.u32 %v7472, 16
        %v7593 = vrot.slane %v7591, 1
        %v7594 = vsel %vm2359, %v7589, %v7593
        %v7595 = vshrl.u32 %v7472, 16
        %v7597 = vor.u32 %v7595, %v7593
        %v7599 = vshll.u32 %v7499, 16
        %v7601 = vrot.slane %v7599, 1
        %v7602 = vsel %vm2359, %v7597, %v7601
        %v7604 = vshrl.u32 %v7473, 16
        %v7606 = vshll.u32 %v7473, 16
        %v7608 = vrot.slane %v7606, 1
        %v7609 = vor.u32 %v7604, %v7608
        %v7611 = vshll.u32 %v7474, 16
        %v7613 = vrot.slane %v7611, 1
        %v7614 = vsel %vm2359, %v7609, %v7613
        %v7615 = vshrl.u32 %v7474, 16
        %v7617 = vor.u32 %v7615, %v7613
        %v7619 = vshll.u32 %v7500, 16
        %v7621 = vrot.slane %v7619, 1
        %v7622 = vsel %vm2359, %v7617, %v7621
        %v7624 = vshrl.u32 %v7475, 16
        %v7626 = vshll.u32 %v7475, 16
        %v7628 = vrot.slane %v7626, 1
        %v7629 = vor.u32 %v7624, %v7628
        %v7631 = vshll.u32 %v7476, 16
        %v7633 = vrot.slane %v7631, 1
        %v7634 = vsel %vm2359, %v7629, %v7633
        %v7635 = vshrl.u32 %v7476, 16
        %v7637 = vor.u32 %v7635, %v7633
        %v7639 = vshll.u32 %v7501, 16
        %v7641 = vrot.slane %v7639, 1
        %v7642 = vsel %vm2359, %v7637, %v7641
        %v7644 = vshrl.u32 %v7477, 16
        %v7646 = vshll.u32 %v7477, 16
        %v7648 = vrot.slane %v7646, 1
        %v7649 = vor.u32 %v7644, %v7648
        %v7651 = vshll.u32 %v7478, 16
        %v7653 = vrot.slane %v7651, 1
        %v7654 = vsel %vm2359, %v7649, %v7653
        %v7655 = vshrl.u32 %v7478, 16
        %v7657 = vor.u32 %v7655, %v7653
        %v7659 = vshll.u32 %v7502, 16
        %v7661 = vrot.slane %v7659, 1
        %v7662 = vsel %vm2359, %v7657, %v7661
        %7663 = vrot.lane.b32.xlu0 %v7514, 3
        %v7664 = vpop.permute.xlu0 %7663
        %7665 = vrot.lane.b32.xlu0 %v7522, 3
        %v7666 = vpop.permute.xlu0 %7665
        %7667 = vrot.lane.b32.xlu0 %v7534, 3
        %v7668 = vpop.permute.xlu0 %7667
        %7669 = vrot.lane.b32.xlu0 %v7542, 3
        %v7670 = vpop.permute.xlu0 %7669
        %7671 = vrot.lane.b32.xlu0 %v7554, 3
        %v7672 = vpop.permute.xlu0 %7671
        %7673 = vrot.lane.b32.xlu0 %v7562, 3
        %v7674 = vpop.permute.xlu0 %7673
        %7675 = vrot.lane.b32.xlu0 %v7574, 3
        %v7676 = vpop.permute.xlu0 %7675
        %7677 = vrot.lane.b32.xlu0 %v7582, 3
        %v7678 = vpop.permute.xlu0 %7677
        %7679 = vrot.lane.b32.xlu0 %v7594, 3
        %v7680 = vpop.permute.xlu0 %7679
        %7681 = vrot.lane.b32.xlu0 %v7602, 3
        %v7682 = vpop.permute.xlu0 %7681
        %7683 = vrot.lane.b32.xlu0 %v7614, 3
        %v7684 = vpop.permute.xlu0 %7683
        %7685 = vrot.lane.b32.xlu0 %v7622, 3
        %v7686 = vpop.permute.xlu0 %7685
        %7687 = vrot.lane.b32.xlu0 %v7634, 3
        %v7688 = vpop.permute.xlu0 %7687
        %7689 = vrot.lane.b32.xlu0 %v7642, 3
        %v7690 = vpop.permute.xlu0 %7689
        %7691 = vrot.lane.b32.xlu0 %v7654, 3
        %v7692 = vpop.permute.xlu0 %7691
        %7693 = vrot.lane.b32.xlu0 %v7662, 3
        %v7694 = vpop.permute.xlu0 %7693
        %v7695 = vrot.slane %v7463, 1
        %v7696 = vrot.slane %v7464, 1
        %v7697 = vsel %vm2552, %v7695, %v7696
        %v7698 = vrot.slane %v7495, 1
        %v7699 = vsel %vm2552, %v7696, %v7698
        %v7700 = vrot.slane %v7465, 1
        %v7701 = vrot.slane %v7466, 1
        %v7702 = vsel %vm2552, %v7700, %v7701
        %v7703 = vrot.slane %v7496, 1
        %v7704 = vsel %vm2552, %v7701, %v7703
        %v7705 = vrot.slane %v7467, 1
        %v7706 = vrot.slane %v7468, 1
        %v7707 = vsel %vm2552, %v7705, %v7706
        %v7708 = vrot.slane %v7497, 1
        %v7709 = vsel %vm2552, %v7706, %v7708
        %v7710 = vrot.slane %v7469, 1
        %v7711 = vrot.slane %v7470, 1
        %v7712 = vsel %vm2552, %v7710, %v7711
        %v7713 = vrot.slane %v7498, 1
        %v7714 = vsel %vm2552, %v7711, %v7713
        %v7715 = vrot.slane %v7471, 1
        %v7716 = vrot.slane %v7472, 1
        %v7717 = vsel %vm2552, %v7715, %v7716
        %v7718 = vrot.slane %v7499, 1
        %v7719 = vsel %vm2552, %v7716, %v7718
        %v7720 = vrot.slane %v7473, 1
        %v7721 = vrot.slane %v7474, 1
        %v7722 = vsel %vm2552, %v7720, %v7721
        %v7723 = vrot.slane %v7500, 1
        %v7724 = vsel %vm2552, %v7721, %v7723
        %v7725 = vrot.slane %v7475, 1
        %v7726 = vrot.slane %v7476, 1
        %v7727 = vsel %vm2552, %v7725, %v7726
        %v7728 = vrot.slane %v7501, 1
        %v7729 = vsel %vm2552, %v7726, %v7728
        %v7730 = vrot.slane %v7477, 1
        %v7731 = vrot.slane %v7478, 1
        %v7732 = vsel %vm2552, %v7730, %v7731
        %v7733 = vrot.slane %v7502, 1
        %v7734 = vsel %vm2552, %v7731, %v7733
        %7735 = vrot.lane.b32.xlu0 %v7697, 6
        %v7736 = vpop.permute.xlu0 %7735
        %7737 = vrot.lane.b32.xlu0 %v7699, 6
        %v7738 = vpop.permute.xlu0 %7737
        %7739 = vrot.lane.b32.xlu0 %v7702, 6
        %v7740 = vpop.permute.xlu0 %7739
        %7741 = vrot.lane.b32.xlu0 %v7704, 6
        %v7742 = vpop.permute.xlu0 %7741
        %7743 = vrot.lane.b32.xlu0 %v7707, 6
        %v7744 = vpop.permute.xlu0 %7743
        %7745 = vrot.lane.b32.xlu0 %v7709, 6
        %v7746 = vpop.permute.xlu0 %7745
        %7747 = vrot.lane.b32.xlu0 %v7712, 6
        %v7748 = vpop.permute.xlu0 %7747
        %7749 = vrot.lane.b32.xlu0 %v7714, 6
        %v7750 = vpop.permute.xlu0 %7749
        %7751 = vrot.lane.b32.xlu0 %v7717, 6
        %v7752 = vpop.permute.xlu0 %7751
        %7753 = vrot.lane.b32.xlu0 %v7719, 6
        %v7754 = vpop.permute.xlu0 %7753
        %7755 = vrot.lane.b32.xlu0 %v7722, 6
        %v7756 = vpop.permute.xlu0 %7755
        %7757 = vrot.lane.b32.xlu0 %v7724, 6
        %v7758 = vpop.permute.xlu0 %7757
        %7759 = vrot.lane.b32.xlu0 %v7727, 6
        %v7760 = vpop.permute.xlu0 %7759
        %7761 = vrot.lane.b32.xlu0 %v7729, 6
        %v7762 = vpop.permute.xlu0 %7761
        %7763 = vrot.lane.b32.xlu0 %v7732, 6
        %v7764 = vpop.permute.xlu0 %7763
        %7765 = vrot.lane.b32.xlu0 %v7734, 6
        %v7766 = vpop.permute.xlu0 %7765
        %v7799 = vunpack.c.l.b16 %v7318
        %v7800 = vunpack.c.l.b16 %v7319
        %v7801 = vunpack.c.l.b16 %v7320
        %v7802 = vunpack.c.l.b16 %v7321
        %v7803 = vunpack.c.l.b16 %v7323
        %v7804 = vunpack.c.l.b16 %v7324
        %v7805 = vunpack.c.l.b16 %v7325
        %v7806 = vunpack.c.l.b16 %v7326
        %v7807 = vunpack.c.l.b16 %v7328
        %v7808 = vunpack.c.l.b16 %v7329
        %v7809 = vunpack.c.l.b16 %v7330
        %v7810 = vunpack.c.l.b16 %v7331
        %v7811 = vunpack.c.l.b16 %v7333
        %v7812 = vunpack.c.l.b16 %v7334
        %v7813 = vunpack.c.l.b16 %v7335
        %v7814 = vunpack.c.l.b16 %v7336
        %v7815 = vunpack.c.l.b16 %v7338
        %v7816 = vunpack.c.l.b16 %v7339
        %v7817 = vunpack.c.l.b16 %v7340
        %v7818 = vunpack.c.l.b16 %v7341
        %v7819 = vunpack.c.l.b16 %v7343
        %v7820 = vunpack.c.l.b16 %v7344
        %v7821 = vunpack.c.l.b16 %v7345
        %v7822 = vunpack.c.l.b16 %v7346
        %v7823 = vunpack.c.l.b16 %v7348
        %v7824 = vunpack.c.l.b16 %v7349
        %v7825 = vunpack.c.l.b16 %v7350
        %v7826 = vunpack.c.l.b16 %v7351
        %v7827 = vunpack.c.l.b16 %v7353
        %v7828 = vunpack.c.l.b16 %v7354
        %v7829 = vunpack.c.l.b16 %v7355
        %v7830 = vunpack.c.l.b16 %v7356
        %v7831 = vpack.c.b16 %v7800, %v7799
        %v7832 = vpack.c.b16 %v7802, %v7801
        %v7833 = vpack.c.b16 %v7804, %v7803
        %v7834 = vpack.c.b16 %v7806, %v7805
        %v7835 = vpack.c.b16 %v7808, %v7807
        %v7836 = vpack.c.b16 %v7810, %v7809
        %v7837 = vpack.c.b16 %v7812, %v7811
        %v7838 = vpack.c.b16 %v7814, %v7813
        %v7839 = vpack.c.b16 %v7816, %v7815
        %v7840 = vpack.c.b16 %v7818, %v7817
        %v7841 = vpack.c.b16 %v7820, %v7819
        %v7842 = vpack.c.b16 %v7822, %v7821
        %v7843 = vpack.c.b16 %v7824, %v7823
        %v7844 = vpack.c.b16 %v7826, %v7825
        %v7845 = vpack.c.b16 %v7828, %v7827
        %v7846 = vpack.c.b16 %v7830, %v7829
        %7847 = vrot.lane.b32.xlu0 %v7831, 9
        %v7848 = vpop.permute.xlu0 %7847
        %7849 = vrot.lane.b32.xlu0 %v7832, 9
        %v7850 = vpop.permute.xlu0 %7849
        %7851 = vrot.lane.b32.xlu0 %v7833, 9
        %v7852 = vpop.permute.xlu0 %7851
        %7853 = vrot.lane.b32.xlu0 %v7834, 9
        %v7854 = vpop.permute.xlu0 %7853
        %7855 = vrot.lane.b32.xlu0 %v7835, 9
        %v7856 = vpop.permute.xlu0 %7855
        %7857 = vrot.lane.b32.xlu0 %v7836, 9
        %v7858 = vpop.permute.xlu0 %7857
        %7859 = vrot.lane.b32.xlu0 %v7837, 9
        %v7860 = vpop.permute.xlu0 %7859
        %7861 = vrot.lane.b32.xlu0 %v7838, 9
        %v7862 = vpop.permute.xlu0 %7861
        %7863 = vrot.lane.b32.xlu0 %v7839, 9
        %v7864 = vpop.permute.xlu0 %7863
        %7865 = vrot.lane.b32.xlu0 %v7840, 9
        %v7866 = vpop.permute.xlu0 %7865
        %7867 = vrot.lane.b32.xlu0 %v7841, 9
        %v7868 = vpop.permute.xlu0 %7867
        %7869 = vrot.lane.b32.xlu0 %v7842, 9
        %v7870 = vpop.permute.xlu0 %7869
        %7871 = vrot.lane.b32.xlu0 %v7843, 9
        %v7872 = vpop.permute.xlu0 %7871
        %7873 = vrot.lane.b32.xlu0 %v7844, 9
        %v7874 = vpop.permute.xlu0 %7873
        %7875 = vrot.lane.b32.xlu0 %v7845, 9
        %v7876 = vpop.permute.xlu0 %7875
        %7877 = vrot.lane.b32.xlu0 %v7846, 9
        %v7878 = vpop.permute.xlu0 %7877
        %v7887 = vunpack.c.l.b16 %v7322
        %v7888 = vunpack.c.l.b16 %v7327
        %v7889 = vunpack.c.l.b16 %v7332
        %v7890 = vunpack.c.l.b16 %v7337
        %v7891 = vunpack.c.l.b16 %v7342
        %v7892 = vunpack.c.l.b16 %v7347
        %v7893 = vunpack.c.l.b16 %v7352
        %v7894 = vunpack.c.l.b16 %v7357
        %v7895 = vpack.c.b16 %v7887, %v7887
        %v7896 = vpack.c.b16 %v7888, %v7888
        %v7897 = vpack.c.b16 %v7889, %v7889
        %v7898 = vpack.c.b16 %v7890, %v7890
        %v7899 = vpack.c.b16 %v7891, %v7891
        %v7900 = vpack.c.b16 %v7892, %v7892
        %v7901 = vpack.c.b16 %v7893, %v7893
        %v7902 = vpack.c.b16 %v7894, %v7894
        %v7904 = vshrl.u32 %v7831, 16
        %v7906 = vshll.u32 %v7831, 16
        %v7908 = vrot.slane %v7906, 1
        %v7909 = vor.u32 %v7904, %v7908
        %v7911 = vshll.u32 %v7832, 16
        %v7913 = vrot.slane %v7911, 1
        %v7914 = vsel %vm2359, %v7909, %v7913
        %v7915 = vshrl.u32 %v7832, 16
        %v7917 = vor.u32 %v7915, %v7913
        %v7919 = vshll.u32 %v7895, 16
        %v7921 = vrot.slane %v7919, 1
        %v7922 = vsel %vm2359, %v7917, %v7921
        %v7924 = vshrl.u32 %v7833, 16
        %v7926 = vshll.u32 %v7833, 16
        %v7928 = vrot.slane %v7926, 1
        %v7929 = vor.u32 %v7924, %v7928
        %v7931 = vshll.u32 %v7834, 16
        %v7933 = vrot.slane %v7931, 1
        %v7934 = vsel %vm2359, %v7929, %v7933
        %v7935 = vshrl.u32 %v7834, 16
        %v7937 = vor.u32 %v7935, %v7933
        %v7939 = vshll.u32 %v7896, 16
        %v7941 = vrot.slane %v7939, 1
        %v7942 = vsel %vm2359, %v7937, %v7941
        %v7944 = vshrl.u32 %v7835, 16
        %v7946 = vshll.u32 %v7835, 16
        %v7948 = vrot.slane %v7946, 1
        %v7949 = vor.u32 %v7944, %v7948
        %v7951 = vshll.u32 %v7836, 16
        %v7953 = vrot.slane %v7951, 1
        %v7954 = vsel %vm2359, %v7949, %v7953
        %v7955 = vshrl.u32 %v7836, 16
        %v7957 = vor.u32 %v7955, %v7953
        %v7959 = vshll.u32 %v7897, 16
        %v7961 = vrot.slane %v7959, 1
        %v7962 = vsel %vm2359, %v7957, %v7961
        %v7964 = vshrl.u32 %v7837, 16
        %v7966 = vshll.u32 %v7837, 16
        %v7968 = vrot.slane %v7966, 1
        %v7969 = vor.u32 %v7964, %v7968
        %v7971 = vshll.u32 %v7838, 16
        %v7973 = vrot.slane %v7971, 1
        %v7974 = vsel %vm2359, %v7969, %v7973
        %v7975 = vshrl.u32 %v7838, 16
        %v7977 = vor.u32 %v7975, %v7973
        %v7979 = vshll.u32 %v7898, 16
        %v7981 = vrot.slane %v7979, 1
        %v7982 = vsel %vm2359, %v7977, %v7981
        %v7984 = vshrl.u32 %v7839, 16
        %v7986 = vshll.u32 %v7839, 16
        %v7988 = vrot.slane %v7986, 1
        %v7989 = vor.u32 %v7984, %v7988
        %v7991 = vshll.u32 %v7840, 16
        %v7993 = vrot.slane %v7991, 1
        %v7994 = vsel %vm2359, %v7989, %v7993
        %v7995 = vshrl.u32 %v7840, 16
        %v7997 = vor.u32 %v7995, %v7993
        %v7999 = vshll.u32 %v7899, 16
        %v8001 = vrot.slane %v7999, 1
        %v8002 = vsel %vm2359, %v7997, %v8001
        %v8004 = vshrl.u32 %v7841, 16
        %v8006 = vshll.u32 %v7841, 16
        %v8008 = vrot.slane %v8006, 1
        %v8009 = vor.u32 %v8004, %v8008
        %v8011 = vshll.u32 %v7842, 16
        %v8013 = vrot.slane %v8011, 1
        %v8014 = vsel %vm2359, %v8009, %v8013
        %v8015 = vshrl.u32 %v7842, 16
        %v8017 = vor.u32 %v8015, %v8013
        %v8019 = vshll.u32 %v7900, 16
        %v8021 = vrot.slane %v8019, 1
        %v8022 = vsel %vm2359, %v8017, %v8021
        %v8024 = vshrl.u32 %v7843, 16
        %v8026 = vshll.u32 %v7843, 16
        %v8028 = vrot.slane %v8026, 1
        %v8029 = vor.u32 %v8024, %v8028
        %v8031 = vshll.u32 %v7844, 16
        %v8033 = vrot.slane %v8031, 1
        %v8034 = vsel %vm2359, %v8029, %v8033
        %v8035 = vshrl.u32 %v7844, 16
        %v8037 = vor.u32 %v8035, %v8033
        %v8039 = vshll.u32 %v7901, 16
        %v8041 = vrot.slane %v8039, 1
        %v8042 = vsel %vm2359, %v8037, %v8041
        %v8044 = vshrl.u32 %v7845, 16
        %v8046 = vshll.u32 %v7845, 16
        %v8048 = vrot.slane %v8046, 1
        %v8049 = vor.u32 %v8044, %v8048
        %v8051 = vshll.u32 %v7846, 16
        %v8053 = vrot.slane %v8051, 1
        %v8054 = vsel %vm2359, %v8049, %v8053
        %v8055 = vshrl.u32 %v7846, 16
        %v8057 = vor.u32 %v8055, %v8053
        %v8059 = vshll.u32 %v7902, 16
        %v8061 = vrot.slane %v8059, 1
        %v8062 = vsel %vm2359, %v8057, %v8061
        %8063 = vrot.lane.b32.xlu0 %v7914, 12
        %v8064 = vpop.permute.xlu0 %8063
        %8065 = vrot.lane.b32.xlu0 %v7922, 12
        %v8066 = vpop.permute.xlu0 %8065
        %8067 = vrot.lane.b32.xlu0 %v7934, 12
        %v8068 = vpop.permute.xlu0 %8067
        %8069 = vrot.lane.b32.xlu0 %v7942, 12
        %v8070 = vpop.permute.xlu0 %8069
        %8071 = vrot.lane.b32.xlu0 %v7954, 12
        %v8072 = vpop.permute.xlu0 %8071
        %8073 = vrot.lane.b32.xlu0 %v7962, 12
        %v8074 = vpop.permute.xlu0 %8073
        %8075 = vrot.lane.b32.xlu0 %v7974, 12
        %v8076 = vpop.permute.xlu0 %8075
        %8077 = vrot.lane.b32.xlu0 %v7982, 12
        %v8078 = vpop.permute.xlu0 %8077
        %8079 = vrot.lane.b32.xlu0 %v7994, 12
        %v8080 = vpop.permute.xlu0 %8079
        %8081 = vrot.lane.b32.xlu0 %v8002, 12
        %v8082 = vpop.permute.xlu0 %8081
        %8083 = vrot.lane.b32.xlu0 %v8014, 12
        %v8084 = vpop.permute.xlu0 %8083
        %8085 = vrot.lane.b32.xlu0 %v8022, 12
        %v8086 = vpop.permute.xlu0 %8085
        %8087 = vrot.lane.b32.xlu0 %v8034, 12
        %v8088 = vpop.permute.xlu0 %8087
        %8089 = vrot.lane.b32.xlu0 %v8042, 12
        %v8090 = vpop.permute.xlu0 %8089
        %8091 = vrot.lane.b32.xlu0 %v8054, 12
        %v8092 = vpop.permute.xlu0 %8091
        %8093 = vrot.lane.b32.xlu0 %v8062, 12
        %v8094 = vpop.permute.xlu0 %8093
        %v8095 = vrot.slane %v7831, 1
        %v8096 = vrot.slane %v7832, 1
        %v8097 = vsel %vm2552, %v8095, %v8096
        %v8098 = vrot.slane %v7895, 1
        %v8099 = vsel %vm2552, %v8096, %v8098
        %v8100 = vrot.slane %v7833, 1
        %v8101 = vrot.slane %v7834, 1
        %v8102 = vsel %vm2552, %v8100, %v8101
        %v8103 = vrot.slane %v7896, 1
        %v8104 = vsel %vm2552, %v8101, %v8103
        %v8105 = vrot.slane %v7835, 1
        %v8106 = vrot.slane %v7836, 1
        %v8107 = vsel %vm2552, %v8105, %v8106
        %v8108 = vrot.slane %v7897, 1
        %v8109 = vsel %vm2552, %v8106, %v8108
        %v8110 = vrot.slane %v7837, 1
        %v8111 = vrot.slane %v7838, 1
        %v8112 = vsel %vm2552, %v8110, %v8111
        %v8113 = vrot.slane %v7898, 1
        %v8114 = vsel %vm2552, %v8111, %v8113
        %v8115 = vrot.slane %v7839, 1
        %v8116 = vrot.slane %v7840, 1
        %v8117 = vsel %vm2552, %v8115, %v8116
        %v8118 = vrot.slane %v7899, 1
        %v8119 = vsel %vm2552, %v8116, %v8118
        %v8120 = vrot.slane %v7841, 1
        %v8121 = vrot.slane %v7842, 1
        %v8122 = vsel %vm2552, %v8120, %v8121
        %v8123 = vrot.slane %v7900, 1
        %v8124 = vsel %vm2552, %v8121, %v8123
        %v8125 = vrot.slane %v7843, 1
        %v8126 = vrot.slane %v7844, 1
        %v8127 = vsel %vm2552, %v8125, %v8126
        %v8128 = vrot.slane %v7901, 1
        %v8129 = vsel %vm2552, %v8126, %v8128
        %v8130 = vrot.slane %v7845, 1
        %v8131 = vrot.slane %v7846, 1
        %v8132 = vsel %vm2552, %v8130, %v8131
        %v8133 = vrot.slane %v7902, 1
        %v8134 = vsel %vm2552, %v8131, %v8133
        %8135 = vrot.lane.b32.xlu0 %v8097, 15
        %v8136 = vpop.permute.xlu0 %8135
        %8137 = vrot.lane.b32.xlu0 %v8099, 15
        %v8138 = vpop.permute.xlu0 %8137
        %8139 = vrot.lane.b32.xlu0 %v8102, 15
        %v8140 = vpop.permute.xlu0 %8139
        %8141 = vrot.lane.b32.xlu0 %v8104, 15
        %v8142 = vpop.permute.xlu0 %8141
        %8143 = vrot.lane.b32.xlu0 %v8107, 15
        %v8144 = vpop.permute.xlu0 %8143
        %8145 = vrot.lane.b32.xlu0 %v8109, 15
        %v8146 = vpop.permute.xlu0 %8145
        %8147 = vrot.lane.b32.xlu0 %v8112, 15
        %v8148 = vpop.permute.xlu0 %8147
        %8149 = vrot.lane.b32.xlu0 %v8114, 15
        %v8150 = vpop.permute.xlu0 %8149
        %8151 = vrot.lane.b32.xlu0 %v8117, 15
        %v8152 = vpop.permute.xlu0 %8151
        %8153 = vrot.lane.b32.xlu0 %v8119, 15
        %v8154 = vpop.permute.xlu0 %8153
        %8155 = vrot.lane.b32.xlu0 %v8122, 15
        %v8156 = vpop.permute.xlu0 %8155
        %8157 = vrot.lane.b32.xlu0 %v8124, 15
        %v8158 = vpop.permute.xlu0 %8157
        %8159 = vrot.lane.b32.xlu0 %v8127, 15
        %v8160 = vpop.permute.xlu0 %8159
        %8161 = vrot.lane.b32.xlu0 %v8129, 15
        %v8162 = vpop.permute.xlu0 %8161
        %8163 = vrot.lane.b32.xlu0 %v8132, 15
        %v8164 = vpop.permute.xlu0 %8163
        %8165 = vrot.lane.b32.xlu0 %v8134, 15
        %v8166 = vpop.permute.xlu0 %8165
        %v8199 = vunpack.c.l.b16 %v7359
        %v8200 = vunpack.c.l.b16 %v7360
        %v8201 = vunpack.c.l.b16 %v7361
        %v8202 = vunpack.c.l.b16 %v7362
        %v8203 = vunpack.c.l.b16 %v7364
        %v8204 = vunpack.c.l.b16 %v7365
        %v8205 = vunpack.c.l.b16 %v7366
        %v8206 = vunpack.c.l.b16 %v7367
        %v8207 = vunpack.c.l.b16 %v7369
        %v8208 = vunpack.c.l.b16 %v7370
        %v8209 = vunpack.c.l.b16 %v7371
        %v8210 = vunpack.c.l.b16 %v7372
        %v8211 = vunpack.c.l.b16 %v7374
        %v8212 = vunpack.c.l.b16 %v7375
        %v8213 = vunpack.c.l.b16 %v7376
        %v8214 = vunpack.c.l.b16 %v7377
        %v8215 = vunpack.c.l.b16 %v7379
        %v8216 = vunpack.c.l.b16 %v7380
        %v8217 = vunpack.c.l.b16 %v7381
        %v8218 = vunpack.c.l.b16 %v7382
        %v8219 = vunpack.c.l.b16 %v7384
        %v8220 = vunpack.c.l.b16 %v7385
        %v8221 = vunpack.c.l.b16 %v7386
        %v8222 = vunpack.c.l.b16 %v7387
        %v8223 = vunpack.c.l.b16 %v7389
        %v8224 = vunpack.c.l.b16 %v7390
        %v8225 = vunpack.c.l.b16 %v7391
        %v8226 = vunpack.c.l.b16 %v7392
        %v8227 = vunpack.c.l.b16 %v7394
        %v8228 = vunpack.c.l.b16 %v7395
        %v8229 = vunpack.c.l.b16 %v7396
        %v8230 = vunpack.c.l.b16 %v7397
        %v8231 = vpack.c.b16 %v8200, %v8199
        %v8232 = vpack.c.b16 %v8202, %v8201
        %v8233 = vpack.c.b16 %v8204, %v8203
        %v8234 = vpack.c.b16 %v8206, %v8205
        %v8235 = vpack.c.b16 %v8208, %v8207
        %v8236 = vpack.c.b16 %v8210, %v8209
        %v8237 = vpack.c.b16 %v8212, %v8211
        %v8238 = vpack.c.b16 %v8214, %v8213
        %v8239 = vpack.c.b16 %v8216, %v8215
        %v8240 = vpack.c.b16 %v8218, %v8217
        %v8241 = vpack.c.b16 %v8220, %v8219
        %v8242 = vpack.c.b16 %v8222, %v8221
        %v8243 = vpack.c.b16 %v8224, %v8223
        %v8244 = vpack.c.b16 %v8226, %v8225
        %v8245 = vpack.c.b16 %v8228, %v8227
        %v8246 = vpack.c.b16 %v8230, %v8229
        %8247 = vrot.lane.b32.xlu0 %v8231, 18
        %v8248 = vpop.permute.xlu0 %8247
        %8249 = vrot.lane.b32.xlu0 %v8232, 18
        %v8250 = vpop.permute.xlu0 %8249
        %8251 = vrot.lane.b32.xlu0 %v8233, 18
        %v8252 = vpop.permute.xlu0 %8251
        %8253 = vrot.lane.b32.xlu0 %v8234, 18
        %v8254 = vpop.permute.xlu0 %8253
        %8255 = vrot.lane.b32.xlu0 %v8235, 18
        %v8256 = vpop.permute.xlu0 %8255
        %8257 = vrot.lane.b32.xlu0 %v8236, 18
        %v8258 = vpop.permute.xlu0 %8257
        %8259 = vrot.lane.b32.xlu0 %v8237, 18
        %v8260 = vpop.permute.xlu0 %8259
        %8261 = vrot.lane.b32.xlu0 %v8238, 18
        %v8262 = vpop.permute.xlu0 %8261
        %8263 = vrot.lane.b32.xlu0 %v8239, 18
        %v8264 = vpop.permute.xlu0 %8263
        %8265 = vrot.lane.b32.xlu0 %v8240, 18
        %v8266 = vpop.permute.xlu0 %8265
        %8267 = vrot.lane.b32.xlu0 %v8241, 18
        %v8268 = vpop.permute.xlu0 %8267
        %8269 = vrot.lane.b32.xlu0 %v8242, 18
        %v8270 = vpop.permute.xlu0 %8269
        %8271 = vrot.lane.b32.xlu0 %v8243, 18
        %v8272 = vpop.permute.xlu0 %8271
        %8273 = vrot.lane.b32.xlu0 %v8244, 18
        %v8274 = vpop.permute.xlu0 %8273
        %8275 = vrot.lane.b32.xlu0 %v8245, 18
        %v8276 = vpop.permute.xlu0 %8275
        %8277 = vrot.lane.b32.xlu0 %v8246, 18
        %v8278 = vpop.permute.xlu0 %8277
        %v8287 = vunpack.c.l.b16 %v7363
        %v8288 = vunpack.c.l.b16 %v7368
        %v8289 = vunpack.c.l.b16 %v7373
        %v8290 = vunpack.c.l.b16 %v7378
        %v8291 = vunpack.c.l.b16 %v7383
        %v8292 = vunpack.c.l.b16 %v7388
        %v8293 = vunpack.c.l.b16 %v7393
        %v8294 = vunpack.c.l.b16 %v7398
        %v8295 = vpack.c.b16 %v8287, %v8287
        %v8296 = vpack.c.b16 %v8288, %v8288
        %v8297 = vpack.c.b16 %v8289, %v8289
        %v8298 = vpack.c.b16 %v8290, %v8290
        %v8299 = vpack.c.b16 %v8291, %v8291
        %v8300 = vpack.c.b16 %v8292, %v8292
        %v8301 = vpack.c.b16 %v8293, %v8293
        %v8302 = vpack.c.b16 %v8294, %v8294
        %v8304 = vshrl.u32 %v8231, 16
        %v8306 = vshll.u32 %v8231, 16
        %v8308 = vrot.slane %v8306, 1
        %v8309 = vor.u32 %v8304, %v8308
        %v8311 = vshll.u32 %v8232, 16
        %v8313 = vrot.slane %v8311, 1
        %v8314 = vsel %vm2359, %v8309, %v8313
        %v8315 = vshrl.u32 %v8232, 16
        %v8317 = vor.u32 %v8315, %v8313
        %v8319 = vshll.u32 %v8295, 16
        %v8321 = vrot.slane %v8319, 1
        %v8322 = vsel %vm2359, %v8317, %v8321
        %v8324 = vshrl.u32 %v8233, 16
        %v8326 = vshll.u32 %v8233, 16
        %v8328 = vrot.slane %v8326, 1
        %v8329 = vor.u32 %v8324, %v8328
        %v8331 = vshll.u32 %v8234, 16
        %v8333 = vrot.slane %v8331, 1
        %v8334 = vsel %vm2359, %v8329, %v8333
        %v8335 = vshrl.u32 %v8234, 16
        %v8337 = vor.u32 %v8335, %v8333
        %v8339 = vshll.u32 %v8296, 16
        %v8341 = vrot.slane %v8339, 1
        %v8342 = vsel %vm2359, %v8337, %v8341
        %v8344 = vshrl.u32 %v8235, 16
        %v8346 = vshll.u32 %v8235, 16
        %v8348 = vrot.slane %v8346, 1
        %v8349 = vor.u32 %v8344, %v8348
        %v8351 = vshll.u32 %v8236, 16
        %v8353 = vrot.slane %v8351, 1
        %v8354 = vsel %vm2359, %v8349, %v8353
        %v8355 = vshrl.u32 %v8236, 16
        %v8357 = vor.u32 %v8355, %v8353
        %v8359 = vshll.u32 %v8297, 16
        %v8361 = vrot.slane %v8359, 1
        %v8362 = vsel %vm2359, %v8357, %v8361
        %v8364 = vshrl.u32 %v8237, 16
        %v8366 = vshll.u32 %v8237, 16
        %v8368 = vrot.slane %v8366, 1
        %v8369 = vor.u32 %v8364, %v8368
        %v8371 = vshll.u32 %v8238, 16
        %v8373 = vrot.slane %v8371, 1
        %v8374 = vsel %vm2359, %v8369, %v8373
        %v8375 = vshrl.u32 %v8238, 16
        %v8377 = vor.u32 %v8375, %v8373
        %v8379 = vshll.u32 %v8298, 16
        %v8381 = vrot.slane %v8379, 1
        %v8382 = vsel %vm2359, %v8377, %v8381
        %v8384 = vshrl.u32 %v8239, 16
        %v8386 = vshll.u32 %v8239, 16
        %v8388 = vrot.slane %v8386, 1
        %v8389 = vor.u32 %v8384, %v8388
        %v8391 = vshll.u32 %v8240, 16
        %v8393 = vrot.slane %v8391, 1
        %v8394 = vsel %vm2359, %v8389, %v8393
        %v8395 = vshrl.u32 %v8240, 16
        %v8397 = vor.u32 %v8395, %v8393
        %v8399 = vshll.u32 %v8299, 16
        %v8401 = vrot.slane %v8399, 1
        %v8402 = vsel %vm2359, %v8397, %v8401
        %v8404 = vshrl.u32 %v8241, 16
        %v8406 = vshll.u32 %v8241, 16
        %v8408 = vrot.slane %v8406, 1
        %v8409 = vor.u32 %v8404, %v8408
        %v8411 = vshll.u32 %v8242, 16
        %v8413 = vrot.slane %v8411, 1
        %v8414 = vsel %vm2359, %v8409, %v8413
        %v8415 = vshrl.u32 %v8242, 16
        %v8417 = vor.u32 %v8415, %v8413
        %v8419 = vshll.u32 %v8300, 16
        %v8421 = vrot.slane %v8419, 1
        %v8422 = vsel %vm2359, %v8417, %v8421
        %v8424 = vshrl.u32 %v8243, 16
        %v8426 = vshll.u32 %v8243, 16
        %v8428 = vrot.slane %v8426, 1
        %v8429 = vor.u32 %v8424, %v8428
        %v8431 = vshll.u32 %v8244, 16
        %v8433 = vrot.slane %v8431, 1
        %v8434 = vsel %vm2359, %v8429, %v8433
        %v8435 = vshrl.u32 %v8244, 16
        %v8437 = vor.u32 %v8435, %v8433
        %v8439 = vshll.u32 %v8301, 16
        %v8441 = vrot.slane %v8439, 1
        %v8442 = vsel %vm2359, %v8437, %v8441
        %v8444 = vshrl.u32 %v8245, 16
        %v8446 = vshll.u32 %v8245, 16
        %v8448 = vrot.slane %v8446, 1
        %v8449 = vor.u32 %v8444, %v8448
        %v8451 = vshll.u32 %v8246, 16
        %v8453 = vrot.slane %v8451, 1
        %v8454 = vsel %vm2359, %v8449, %v8453
        %v8455 = vshrl.u32 %v8246, 16
        %v8457 = vor.u32 %v8455, %v8453
        %v8459 = vshll.u32 %v8302, 16
        %v8461 = vrot.slane %v8459, 1
        %v8462 = vsel %vm2359, %v8457, %v8461
        %8463 = vrot.lane.b32.xlu0 %v8314, 21
        %v8464 = vpop.permute.xlu0 %8463
        %8465 = vrot.lane.b32.xlu0 %v8322, 21
        %v8466 = vpop.permute.xlu0 %8465
        %8467 = vrot.lane.b32.xlu0 %v8334, 21
        %v8468 = vpop.permute.xlu0 %8467
        %8469 = vrot.lane.b32.xlu0 %v8342, 21
        %v8470 = vpop.permute.xlu0 %8469
        %8471 = vrot.lane.b32.xlu0 %v8354, 21
        %v8472 = vpop.permute.xlu0 %8471
        %8473 = vrot.lane.b32.xlu0 %v8362, 21
        %v8474 = vpop.permute.xlu0 %8473
        %8475 = vrot.lane.b32.xlu0 %v8374, 21
        %v8476 = vpop.permute.xlu0 %8475
        %8477 = vrot.lane.b32.xlu0 %v8382, 21
        %v8478 = vpop.permute.xlu0 %8477
        %8479 = vrot.lane.b32.xlu0 %v8394, 21
        %v8480 = vpop.permute.xlu0 %8479
        %8481 = vrot.lane.b32.xlu0 %v8402, 21
        %v8482 = vpop.permute.xlu0 %8481
        %8483 = vrot.lane.b32.xlu0 %v8414, 21
        %v8484 = vpop.permute.xlu0 %8483
        %8485 = vrot.lane.b32.xlu0 %v8422, 21
        %v8486 = vpop.permute.xlu0 %8485
        %8487 = vrot.lane.b32.xlu0 %v8434, 21
        %v8488 = vpop.permute.xlu0 %8487
        %8489 = vrot.lane.b32.xlu0 %v8442, 21
        %v8490 = vpop.permute.xlu0 %8489
        %8491 = vrot.lane.b32.xlu0 %v8454, 21
        %v8492 = vpop.permute.xlu0 %8491
        %8493 = vrot.lane.b32.xlu0 %v8462, 21
        %v8494 = vpop.permute.xlu0 %8493
        %v8495 = vrot.slane %v8231, 1
        %v8496 = vrot.slane %v8232, 1
        %v8497 = vsel %vm2552, %v8495, %v8496
        %v8498 = vrot.slane %v8295, 1
        %v8499 = vsel %vm2552, %v8496, %v8498
        %v8500 = vrot.slane %v8233, 1
        %v8501 = vrot.slane %v8234, 1
        %v8502 = vsel %vm2552, %v8500, %v8501
        %v8503 = vrot.slane %v8296, 1
        %v8504 = vsel %vm2552, %v8501, %v8503
        %v8505 = vrot.slane %v8235, 1
        %v8506 = vrot.slane %v8236, 1
        %v8507 = vsel %vm2552, %v8505, %v8506
        %v8508 = vrot.slane %v8297, 1
        %v8509 = vsel %vm2552, %v8506, %v8508
        %v8510 = vrot.slane %v8237, 1
        %v8511 = vrot.slane %v8238, 1
        %v8512 = vsel %vm2552, %v8510, %v8511
        %v8513 = vrot.slane %v8298, 1
        %v8514 = vsel %vm2552, %v8511, %v8513
        %v8515 = vrot.slane %v8239, 1
        %v8516 = vrot.slane %v8240, 1
        %v8517 = vsel %vm2552, %v8515, %v8516
        %v8518 = vrot.slane %v8299, 1
        %v8519 = vsel %vm2552, %v8516, %v8518
        %v8520 = vrot.slane %v8241, 1
        %v8521 = vrot.slane %v8242, 1
        %v8522 = vsel %vm2552, %v8520, %v8521
        %v8523 = vrot.slane %v8300, 1
        %v8524 = vsel %vm2552, %v8521, %v8523
        %v8525 = vrot.slane %v8243, 1
        %v8526 = vrot.slane %v8244, 1
        %v8527 = vsel %vm2552, %v8525, %v8526
        %v8528 = vrot.slane %v8301, 1
        %v8529 = vsel %vm2552, %v8526, %v8528
        %v8530 = vrot.slane %v8245, 1
        %v8531 = vrot.slane %v8246, 1
        %v8532 = vsel %vm2552, %v8530, %v8531
        %v8533 = vrot.slane %v8302, 1
        %v8534 = vsel %vm2552, %v8531, %v8533
        %8535 = vrot.lane.b32.xlu0 %v8497, 24
        %v8536 = vpop.permute.xlu0 %8535
        %8537 = vrot.lane.b32.xlu0 %v8499, 24
        %v8538 = vpop.permute.xlu0 %8537
        %8539 = vrot.lane.b32.xlu0 %v8502, 24
        %v8540 = vpop.permute.xlu0 %8539
        %8541 = vrot.lane.b32.xlu0 %v8504, 24
        %v8542 = vpop.permute.xlu0 %8541
        %8543 = vrot.lane.b32.xlu0 %v8507, 24
        %v8544 = vpop.permute.xlu0 %8543
        %8545 = vrot.lane.b32.xlu0 %v8509, 24
        %v8546 = vpop.permute.xlu0 %8545
        %8547 = vrot.lane.b32.xlu0 %v8512, 24
        %v8548 = vpop.permute.xlu0 %8547
        %8549 = vrot.lane.b32.xlu0 %v8514, 24
        %v8550 = vpop.permute.xlu0 %8549
        %8551 = vrot.lane.b32.xlu0 %v8517, 24
        %v8552 = vpop.permute.xlu0 %8551
        %8553 = vrot.lane.b32.xlu0 %v8519, 24
        %v8554 = vpop.permute.xlu0 %8553
        %8555 = vrot.lane.b32.xlu0 %v8522, 24
        %v8556 = vpop.permute.xlu0 %8555
        %8557 = vrot.lane.b32.xlu0 %v8524, 24
        %v8558 = vpop.permute.xlu0 %8557
        %8559 = vrot.lane.b32.xlu0 %v8527, 24
        %v8560 = vpop.permute.xlu0 %8559
        %8561 = vrot.lane.b32.xlu0 %v8529, 24
        %v8562 = vpop.permute.xlu0 %8561
        %8563 = vrot.lane.b32.xlu0 %v8532, 24
        %v8564 = vpop.permute.xlu0 %8563
        %8565 = vrot.lane.b32.xlu0 %v8534, 24
        %v8566 = vpop.permute.xlu0 %8565
        %v8568 = vsel %vm3425, %v7463, %v7664
        %v8570 = vsel %vm3425, %v7464, %v7666
        %v8572 = vsel %vm3425, %v7465, %v7668
        %v8574 = vsel %vm3425, %v7466, %v7670
        %v8576 = vsel %vm3425, %v7467, %v7672
        %v8578 = vsel %vm3425, %v7468, %v7674
        %v8580 = vsel %vm3425, %v7469, %v7676
        %v8582 = vsel %vm3425, %v7470, %v7678
        %v8584 = vsel %vm3425, %v7471, %v7680
        %v8586 = vsel %vm3425, %v7472, %v7682
        %v8588 = vsel %vm3425, %v7473, %v7684
        %v8590 = vsel %vm3425, %v7474, %v7686
        %v8592 = vsel %vm3425, %v7475, %v7688
        %v8594 = vsel %vm3425, %v7476, %v7690
        %v8596 = vsel %vm3425, %v7477, %v7692
        %v8598 = vsel %vm3425, %v7478, %v7694
        %v8600 = vsel %vm3458, %v8568, %v7736
        %v8602 = vsel %vm3458, %v8570, %v7738
        %v8604 = vsel %vm3458, %v8572, %v7740
        %v8606 = vsel %vm3458, %v8574, %v7742
        %v8608 = vsel %vm3458, %v8576, %v7744
        %v8610 = vsel %vm3458, %v8578, %v7746
        %v8612 = vsel %vm3458, %v8580, %v7748
        %v8614 = vsel %vm3458, %v8582, %v7750
        %v8616 = vsel %vm3458, %v8584, %v7752
        %v8618 = vsel %vm3458, %v8586, %v7754
        %v8620 = vsel %vm3458, %v8588, %v7756
        %v8622 = vsel %vm3458, %v8590, %v7758
        %v8624 = vsel %vm3458, %v8592, %v7760
        %v8626 = vsel %vm3458, %v8594, %v7762
        %v8628 = vsel %vm3458, %v8596, %v7764
        %v8630 = vsel %vm3458, %v8598, %v7766
        %v8632 = vsel %vm3491, %v8600, %v7848
        %v8634 = vsel %vm3491, %v8602, %v7850
        %v8636 = vsel %vm3491, %v8604, %v7852
        %v8638 = vsel %vm3491, %v8606, %v7854
        %v8640 = vsel %vm3491, %v8608, %v7856
        %v8642 = vsel %vm3491, %v8610, %v7858
        %v8644 = vsel %vm3491, %v8612, %v7860
        %v8646 = vsel %vm3491, %v8614, %v7862
        %v8648 = vsel %vm3491, %v8616, %v7864
        %v8650 = vsel %vm3491, %v8618, %v7866
        %v8652 = vsel %vm3491, %v8620, %v7868
        %v8654 = vsel %vm3491, %v8622, %v7870
        %v8656 = vsel %vm3491, %v8624, %v7872
        %v8658 = vsel %vm3491, %v8626, %v7874
        %v8660 = vsel %vm3491, %v8628, %v7876
        %v8662 = vsel %vm3491, %v8630, %v7878
        %v8664 = vsel %vm3524, %v8632, %v8064
        %v8666 = vsel %vm3524, %v8634, %v8066
        %v8668 = vsel %vm3524, %v8636, %v8068
        %v8670 = vsel %vm3524, %v8638, %v8070
        %v8672 = vsel %vm3524, %v8640, %v8072
        %v8674 = vsel %vm3524, %v8642, %v8074
        %v8676 = vsel %vm3524, %v8644, %v8076
        %v8678 = vsel %vm3524, %v8646, %v8078
        %v8680 = vsel %vm3524, %v8648, %v8080
        %v8682 = vsel %vm3524, %v8650, %v8082
        %v8684 = vsel %vm3524, %v8652, %v8084
        %v8686 = vsel %vm3524, %v8654, %v8086
        %v8688 = vsel %vm3524, %v8656, %v8088
        %v8690 = vsel %vm3524, %v8658, %v8090
        %v8692 = vsel %vm3524, %v8660, %v8092
        %v8694 = vsel %vm3524, %v8662, %v8094
        %v8696 = vsel %vm3557, %v8664, %v8136
        %v8698 = vsel %vm3557, %v8666, %v8138
        %v8700 = vsel %vm3557, %v8668, %v8140
        %v8702 = vsel %vm3557, %v8670, %v8142
        %v8704 = vsel %vm3557, %v8672, %v8144
        %v8706 = vsel %vm3557, %v8674, %v8146
        %v8708 = vsel %vm3557, %v8676, %v8148
        %v8710 = vsel %vm3557, %v8678, %v8150
        %v8712 = vsel %vm3557, %v8680, %v8152
        %v8714 = vsel %vm3557, %v8682, %v8154
        %v8716 = vsel %vm3557, %v8684, %v8156
        %v8718 = vsel %vm3557, %v8686, %v8158
        %v8720 = vsel %vm3557, %v8688, %v8160
        %v8722 = vsel %vm3557, %v8690, %v8162
        %v8724 = vsel %vm3557, %v8692, %v8164
        %v8726 = vsel %vm3557, %v8694, %v8166
        %v8728 = vsel %vm3590, %v8696, %v8248
        %v8730 = vsel %vm3590, %v8698, %v8250
        %v8732 = vsel %vm3590, %v8700, %v8252
        %v8734 = vsel %vm3590, %v8702, %v8254
        %v8736 = vsel %vm3590, %v8704, %v8256
        %v8738 = vsel %vm3590, %v8706, %v8258
        %v8740 = vsel %vm3590, %v8708, %v8260
        %v8742 = vsel %vm3590, %v8710, %v8262
        %v8744 = vsel %vm3590, %v8712, %v8264
        %v8746 = vsel %vm3590, %v8714, %v8266
        %v8748 = vsel %vm3590, %v8716, %v8268
        %v8750 = vsel %vm3590, %v8718, %v8270
        %v8752 = vsel %vm3590, %v8720, %v8272
        %v8754 = vsel %vm3590, %v8722, %v8274
        %v8756 = vsel %vm3590, %v8724, %v8276
        %v8758 = vsel %vm3590, %v8726, %v8278
        %v8760 = vsel %vm3623, %v8728, %v8464
        %v8762 = vsel %vm3623, %v8730, %v8466
        %v8764 = vsel %vm3623, %v8732, %v8468
        %v8766 = vsel %vm3623, %v8734, %v8470
        %v8768 = vsel %vm3623, %v8736, %v8472
        %v8770 = vsel %vm3623, %v8738, %v8474
        %v8772 = vsel %vm3623, %v8740, %v8476
        %v8774 = vsel %vm3623, %v8742, %v8478
        %v8776 = vsel %vm3623, %v8744, %v8480
        %v8778 = vsel %vm3623, %v8746, %v8482
        %v8780 = vsel %vm3623, %v8748, %v8484
        %v8782 = vsel %vm3623, %v8750, %v8486
        %v8784 = vsel %vm3623, %v8752, %v8488
        %v8786 = vsel %vm3623, %v8754, %v8490
        %v8788 = vsel %vm3623, %v8756, %v8492
        %v8790 = vsel %vm3623, %v8758, %v8494
        %v8792 = vsel %vm3656, %v8760, %v8536
        %v8794 = vsel %vm3656, %v8762, %v8538
        %v8796 = vsel %vm3656, %v8764, %v8540
        %v8798 = vsel %vm3656, %v8766, %v8542
        %v8800 = vsel %vm3656, %v8768, %v8544
        %v8802 = vsel %vm3656, %v8770, %v8546
        %v8804 = vsel %vm3656, %v8772, %v8548
        %v8806 = vsel %vm3656, %v8774, %v8550
        %v8808 = vsel %vm3656, %v8776, %v8552
        %v8810 = vsel %vm3656, %v8778, %v8554
        %v8812 = vsel %vm3656, %v8780, %v8556
        %v8814 = vsel %vm3656, %v8782, %v8558
        %v8816 = vsel %vm3656, %v8784, %v8560
        %v8818 = vsel %vm3656, %v8786, %v8562
        %v8820 = vsel %vm3656, %v8788, %v8564
        %v8822 = vsel %vm3656, %v8790, %v8566
        %v8823 = vld [vmem:[%s1] sm:$0xf]
        %v8824 = vld [vmem:[%s1 + $0x4] sm:$0xf]
        %v8825 = vld [vmem:[%s1 + $0x8] sm:$0xf]
        %v8826 = vld [vmem:[%s1 + $0xc] sm:$0x3]
        %v8831 = vunpack.c.l.b16 %v8823
        %v8832 = vunpack.c.l.b16 %v8824
        %v8833 = vunpack.c.l.b16 %v8825
        %v8834 = vunpack.c.l.b16 %v8826
        %v8835 = vpack.c.b16 %v8832, %v8831
        %v8836 = vpack.c.b16 %v8834, %v8833
        %v8838 = vsel %vm3707, %v8792, 0
        %v8840 = vsel %vm3707, %v8794, 0
        %v8842 = vsel %vm3707, %v8796, 0
        %v8844 = vsel %vm3707, %v8798, 0
        %v8846 = vsel %vm3707, %v8800, 0
        %v8848 = vsel %vm3707, %v8802, 0
        %v8850 = vsel %vm3707, %v8804, 0
        %v8852 = vsel %vm3707, %v8806, 0
        %v8854 = vsel %vm3707, %v8808, 0
        %v8856 = vsel %vm3707, %v8810, 0
        %v8858 = vsel %vm3707, %v8812, 0
        %v8860 = vsel %vm3707, %v8814, 0
        %v8862 = vsel %vm3707, %v8816, 0
        %v8864 = vsel %vm3707, %v8818, 0
        %v8866 = vsel %vm3707, %v8820, 0
        %v8868 = vsel %vm3707, %v8822, 0
        %v8871 = vand.u32 %v8836, %v3743
        %8873 = vmatpush.bf16.msra.mxu0 0
        %8874 = vmatpush.bf16.msra.mxu0 0
        %8875 = vmatpush.bf16.msra.mxu0 0
        %8876 = vmatpush.bf16.msra.mxu0 0
        %8877 = vmatpush.bf16.msra.mxu0 0
        %8878 = vmatpush.bf16.msra.mxu0 0
        %8879 = vmatpush.bf16.msra.mxu0 %v8871
        %8880 = vmatpush.bf16.msra.mxu0 %v8835
        %8881 = vmatmul.bf16.gmra.mxu0 %v8838
        %v8882 = vpop.f32.mrf.mxu0
        %v8883 = vadd.f32 %v3694, %v8882
        %v8884 = vpop.f32.mrf.mxu0
        %v8885 = vadd.f32 %v3694, %v8884
        %8886 = vmatmul.bf16.gmra.mxu0 %v8840
        %v8887 = vpop.f32.mrf.mxu0
        %v8888 = vadd.f32 %v3694, %v8887
        %v8889 = vpop.f32.mrf.mxu0
        %v8890 = vadd.f32 %v3694, %v8889
        %8891 = vmatmul.bf16.gmra.mxu0 %v8842
        %v8892 = vpop.f32.mrf.mxu0
        %v8893 = vadd.f32 %v3694, %v8892
        %v8894 = vpop.f32.mrf.mxu0
        %v8895 = vadd.f32 %v3694, %v8894
        %8896 = vmatmul.bf16.gmra.mxu0 %v8844
        %v8897 = vpop.f32.mrf.mxu0
        %v8898 = vadd.f32 %v3694, %v8897
        %v8899 = vpop.f32.mrf.mxu0
        %v8900 = vadd.f32 %v3694, %v8899
        %8901 = vmatmul.bf16.gmra.mxu0 %v8846
        %v8902 = vpop.f32.mrf.mxu0
        %v8903 = vadd.f32 %v3694, %v8902
        %v8904 = vpop.f32.mrf.mxu0
        %v8905 = vadd.f32 %v3694, %v8904
        %8906 = vmatmul.bf16.gmra.mxu0 %v8848
        %v8907 = vpop.f32.mrf.mxu0
        %v8908 = vadd.f32 %v3694, %v8907
        %v8909 = vpop.f32.mrf.mxu0
        %v8910 = vadd.f32 %v3694, %v8909
        %8911 = vmatmul.bf16.gmra.mxu0 %v8850
        %v8912 = vpop.f32.mrf.mxu0
        %v8913 = vadd.f32 %v3694, %v8912
        %v8914 = vpop.f32.mrf.mxu0
        %v8915 = vadd.f32 %v3694, %v8914
        %8916 = vmatmul.bf16.gmra.mxu0 %v8852
        %v8917 = vpop.f32.mrf.mxu0
        %v8918 = vadd.f32 %v3694, %v8917
        %v8919 = vpop.f32.mrf.mxu0
        %v8920 = vadd.f32 %v3694, %v8919
        %8921 = vmatmul.bf16.gmra.mxu0 %v8854
        %v8922 = vpop.f32.mrf.mxu0
        %v8923 = vadd.f32 %v3694, %v8922
        %v8924 = vpop.f32.mrf.mxu0
        %v8925 = vadd.f32 %v3694, %v8924
        %8926 = vmatmul.bf16.gmra.mxu0 %v8856
        %v8927 = vpop.f32.mrf.mxu0
        %v8928 = vadd.f32 %v3694, %v8927
        %v8929 = vpop.f32.mrf.mxu0
        %v8930 = vadd.f32 %v3694, %v8929
        %8931 = vmatmul.bf16.gmra.mxu0 %v8858
        %v8932 = vpop.f32.mrf.mxu0
        %v8933 = vadd.f32 %v3694, %v8932
        %v8934 = vpop.f32.mrf.mxu0
        %v8935 = vadd.f32 %v3694, %v8934
        %8936 = vmatmul.bf16.gmra.mxu0 %v8860
        %v8937 = vpop.f32.mrf.mxu0
        %v8938 = vadd.f32 %v3694, %v8937
        %v8939 = vpop.f32.mrf.mxu0
        %v8940 = vadd.f32 %v3694, %v8939
        %8941 = vmatmul.bf16.gmra.mxu0 %v8862
        %v8942 = vpop.f32.mrf.mxu0
        %v8943 = vadd.f32 %v3694, %v8942
        %v8944 = vpop.f32.mrf.mxu0
        %v8945 = vadd.f32 %v3694, %v8944
        %8946 = vmatmul.bf16.gmra.mxu0 %v8864
        %v8947 = vpop.f32.mrf.mxu0
        %v8948 = vadd.f32 %v3694, %v8947
        %v8949 = vpop.f32.mrf.mxu0
        %v8950 = vadd.f32 %v3694, %v8949
        %8951 = vmatmul.bf16.gmra.mxu0 %v8866
        %v8952 = vpop.f32.mrf.mxu0
        %v8953 = vadd.f32 %v3694, %v8952
        %v8954 = vpop.f32.mrf.mxu0
        %v8955 = vadd.f32 %v3694, %v8954
        %8956 = vmatmul.bf16.gmra.mxu0 %v8868
        %v8957 = vpop.f32.mrf.mxu0
        %v8958 = vadd.f32 %v3694, %v8957
        %v8959 = vpop.f32.mrf.mxu0
        %v8960 = vadd.f32 %v3694, %v8959
        %8961 = vdwg.mxu0
        %vm8962 = vcmp.gt.f32.partialorder %v8883, 0.0
        %vm8963 = vcmp.gt.f32.partialorder %v8885, 0.0
        %vm8964 = vcmp.gt.f32.partialorder %v8888, 0.0
        %vm8965 = vcmp.gt.f32.partialorder %v8890, 0.0
        %vm8966 = vcmp.gt.f32.partialorder %v8893, 0.0
        %vm8967 = vcmp.gt.f32.partialorder %v8895, 0.0
        %vm8968 = vcmp.gt.f32.partialorder %v8898, 0.0
        %vm8969 = vcmp.gt.f32.partialorder %v8900, 0.0
        %vm8970 = vcmp.gt.f32.partialorder %v8903, 0.0
        %vm8971 = vcmp.gt.f32.partialorder %v8905, 0.0
        %vm8972 = vcmp.gt.f32.partialorder %v8908, 0.0
        %vm8973 = vcmp.gt.f32.partialorder %v8910, 0.0
        %vm8974 = vcmp.gt.f32.partialorder %v8913, 0.0
        %vm8975 = vcmp.gt.f32.partialorder %v8915, 0.0
        %vm8976 = vcmp.gt.f32.partialorder %v8918, 0.0
        %vm8977 = vcmp.gt.f32.partialorder %v8920, 0.0
        %vm8978 = vcmp.gt.f32.partialorder %v8923, 0.0
        %vm8979 = vcmp.gt.f32.partialorder %v8925, 0.0
        %vm8980 = vcmp.gt.f32.partialorder %v8928, 0.0
        %vm8981 = vcmp.gt.f32.partialorder %v8930, 0.0
        %vm8982 = vcmp.gt.f32.partialorder %v8933, 0.0
        %vm8983 = vcmp.gt.f32.partialorder %v8935, 0.0
        %vm8984 = vcmp.gt.f32.partialorder %v8938, 0.0
        %vm8985 = vcmp.gt.f32.partialorder %v8940, 0.0
        %vm8986 = vcmp.gt.f32.partialorder %v8943, 0.0
        %vm8987 = vcmp.gt.f32.partialorder %v8945, 0.0
        %vm8988 = vcmp.gt.f32.partialorder %v8948, 0.0
        %vm8989 = vcmp.gt.f32.partialorder %v8950, 0.0
        %vm8990 = vcmp.gt.f32.partialorder %v8953, 0.0
        %vm8991 = vcmp.gt.f32.partialorder %v8955, 0.0
        %vm8992 = vcmp.gt.f32.partialorder %v8958, 0.0
        %vm8993 = vcmp.gt.f32.partialorder %v8960, 0.0
        %v8994 = vmul.f32 %v8883, 0.1
        %v8995 = vmul.f32 %v8885, 0.1
        %v8996 = vmul.f32 %v8888, 0.1
        %v8997 = vmul.f32 %v8890, 0.1
        %v8998 = vmul.f32 %v8893, 0.1
        %v8999 = vmul.f32 %v8895, 0.1
        %v9000 = vmul.f32 %v8898, 0.1
        %v9001 = vmul.f32 %v8900, 0.1
        %v9002 = vmul.f32 %v8903, 0.1
        %v9003 = vmul.f32 %v8905, 0.1
        %v9004 = vmul.f32 %v8908, 0.1
        %v9005 = vmul.f32 %v8910, 0.1
        %v9006 = vmul.f32 %v8913, 0.1
        %v9007 = vmul.f32 %v8915, 0.1
        %v9008 = vmul.f32 %v8918, 0.1
        %v9009 = vmul.f32 %v8920, 0.1
        %v9010 = vmul.f32 %v8923, 0.1
        %v9011 = vmul.f32 %v8925, 0.1
        %v9012 = vmul.f32 %v8928, 0.1
        %v9013 = vmul.f32 %v8930, 0.1
        %v9014 = vmul.f32 %v8933, 0.1
        %v9015 = vmul.f32 %v8935, 0.1
        %v9016 = vmul.f32 %v8938, 0.1
        %v9017 = vmul.f32 %v8940, 0.1
        %v9018 = vmul.f32 %v8943, 0.1
        %v9019 = vmul.f32 %v8945, 0.1
        %v9020 = vmul.f32 %v8948, 0.1
        %v9021 = vmul.f32 %v8950, 0.1
        %v9022 = vmul.f32 %v8953, 0.1
        %v9023 = vmul.f32 %v8955, 0.1
        %v9024 = vmul.f32 %v8958, 0.1
        %v9025 = vmul.f32 %v8960, 0.1
        %v9026 = vsel %vm8962, %v8883, %v8994
        %v9027 = vsel %vm8963, %v8885, %v8995
        %v9028 = vsel %vm8964, %v8888, %v8996
        %v9029 = vsel %vm8965, %v8890, %v8997
        %v9030 = vsel %vm8966, %v8893, %v8998
        %v9031 = vsel %vm8967, %v8895, %v8999
        %v9032 = vsel %vm8968, %v8898, %v9000
        %v9033 = vsel %vm8969, %v8900, %v9001
        %v9034 = vsel %vm8970, %v8903, %v9002
        %v9035 = vsel %vm8971, %v8905, %v9003
        %v9036 = vsel %vm8972, %v8908, %v9004
        %v9037 = vsel %vm8973, %v8910, %v9005
        %v9038 = vsel %vm8974, %v8913, %v9006
        %v9039 = vsel %vm8975, %v8915, %v9007
        %v9040 = vsel %vm8976, %v8918, %v9008
        %v9041 = vsel %vm8977, %v8920, %v9009
        %v9042 = vsel %vm8978, %v8923, %v9010
        %v9043 = vsel %vm8979, %v8925, %v9011
        %v9044 = vsel %vm8980, %v8928, %v9012
        %v9045 = vsel %vm8981, %v8930, %v9013
        %v9046 = vsel %vm8982, %v8933, %v9014
        %v9047 = vsel %vm8983, %v8935, %v9015
        %v9048 = vsel %vm8984, %v8938, %v9016
        %v9049 = vsel %vm8985, %v8940, %v9017
        %v9050 = vsel %vm8986, %v8943, %v9018
        %v9051 = vsel %vm8987, %v8945, %v9019
        %v9052 = vsel %vm8988, %v8948, %v9020
        %v9053 = vsel %vm8989, %v8950, %v9021
        %v9054 = vsel %vm8990, %v8953, %v9022
        %v9055 = vsel %vm8991, %v8955, %v9023
        %v9056 = vsel %vm8992, %v8958, %v9024
        %v9057 = vsel %vm8993, %v8960, %v9025
        %v9058 = vpack.c.bf16 %v9026, %v9026
        %v9059 = vpack.c.bf16 %v9027, %v9027
        %v9060 = vpack.c.bf16 %v9028, %v9028
        %v9061 = vpack.c.bf16 %v9029, %v9029
        %v9062 = vpack.c.bf16 %v9030, %v9030
        %v9063 = vpack.c.bf16 %v9031, %v9031
        %v9064 = vpack.c.bf16 %v9032, %v9032
        %v9065 = vpack.c.bf16 %v9033, %v9033
        %v9066 = vpack.c.bf16 %v9034, %v9034
        %v9067 = vpack.c.bf16 %v9035, %v9035
        %v9068 = vpack.c.bf16 %v9036, %v9036
        %v9069 = vpack.c.bf16 %v9037, %v9037
        %v9070 = vpack.c.bf16 %v9038, %v9038
        %v9071 = vpack.c.bf16 %v9039, %v9039
        %v9072 = vpack.c.bf16 %v9040, %v9040
        %v9073 = vpack.c.bf16 %v9041, %v9041
        %v9074 = vpack.c.bf16 %v9042, %v9042
        %v9075 = vpack.c.bf16 %v9043, %v9043
        %v9076 = vpack.c.bf16 %v9044, %v9044
        %v9077 = vpack.c.bf16 %v9045, %v9045
        %v9078 = vpack.c.bf16 %v9046, %v9046
        %v9079 = vpack.c.bf16 %v9047, %v9047
        %v9080 = vpack.c.bf16 %v9048, %v9048
        %v9081 = vpack.c.bf16 %v9049, %v9049
        %v9082 = vpack.c.bf16 %v9050, %v9050
        %v9083 = vpack.c.bf16 %v9051, %v9051
        %v9084 = vpack.c.bf16 %v9052, %v9052
        %v9085 = vpack.c.bf16 %v9053, %v9053
        %v9086 = vpack.c.bf16 %v9054, %v9054
        %v9087 = vpack.c.bf16 %v9055, %v9055
        %v9088 = vpack.c.bf16 %v9056, %v9056
        %v9089 = vpack.c.bf16 %v9057, %v9057
        %s9090 = scalar_lea.vmem %s208, 256
        %9091 = vst.msk [vmem:[%s9090] sm:$0xf] %vm3964, %v9058
        %9092 = vst.msk [vmem:[%s9090 + $0x4] sm:$0xf] %vm3964, %v9059
        %9093 = vst.msk [vmem:[%s9090 + $0x8] sm:$0xf] %vm3964, %v9060
        %9094 = vst.msk [vmem:[%s9090 + $0xc] sm:$0xf] %vm3964, %v9061
        %9095 = vst.msk [vmem:[%s9090 + $0x10] sm:$0xf] %vm3964, %v9062
        %9096 = vst.msk [vmem:[%s9090 + $0x14] sm:$0xf] %vm3964, %v9063
        %9097 = vst.msk [vmem:[%s9090 + $0x18] sm:$0xf] %vm3964, %v9064
        %9098 = vst.msk [vmem:[%s9090 + $0x1c] sm:$0xf] %vm3964, %v9065
        %9099 = vst.msk [vmem:[%s9090 + $0x20] sm:$0xf] %vm3964, %v9066
        %9100 = vst.msk [vmem:[%s9090 + $0x24] sm:$0xf] %vm3964, %v9067
        %9101 = vst.msk [vmem:[%s9090 + $0x28] sm:$0xf] %vm3964, %v9068
        %9102 = vst.msk [vmem:[%s9090 + $0x2c] sm:$0xf] %vm3964, %v9069
        %9103 = vst.msk [vmem:[%s9090 + $0x30] sm:$0xf] %vm3964, %v9070
        %9104 = vst.msk [vmem:[%s9090 + $0x34] sm:$0xf] %vm3964, %v9071
        %9105 = vst.msk [vmem:[%s9090 + $0x38] sm:$0xf] %vm3964, %v9072
        %9106 = vst.msk [vmem:[%s9090 + $0x3c] sm:$0xf] %vm3964, %v9073
        %9107 = vst.msk [vmem:[%s9090 + $0x40] sm:$0xf] %vm3964, %v9074
        %9108 = vst.msk [vmem:[%s9090 + $0x44] sm:$0xf] %vm3964, %v9075
        %9109 = vst.msk [vmem:[%s9090 + $0x48] sm:$0xf] %vm3964, %v9076
        %9110 = vst.msk [vmem:[%s9090 + $0x4c] sm:$0xf] %vm3964, %v9077
        %9111 = vst.msk [vmem:[%s9090 + $0x50] sm:$0xf] %vm3964, %v9078
        %9112 = vst.msk [vmem:[%s9090 + $0x54] sm:$0xf] %vm3964, %v9079
        %9113 = vst.msk [vmem:[%s9090 + $0x58] sm:$0xf] %vm3964, %v9080
        %9114 = vst.msk [vmem:[%s9090 + $0x5c] sm:$0xf] %vm3964, %v9081
        %9115 = vst.msk [vmem:[%s9090 + $0x60] sm:$0xf] %vm3964, %v9082
        %9116 = vst.msk [vmem:[%s9090 + $0x64] sm:$0xf] %vm3964, %v9083
        %9117 = vst.msk [vmem:[%s9090 + $0x68] sm:$0xf] %vm3964, %v9084
        %9118 = vst.msk [vmem:[%s9090 + $0x6c] sm:$0xf] %vm3964, %v9085
        %9119 = vst.msk [vmem:[%s9090 + $0x70] sm:$0xf] %vm3964, %v9086
        %9120 = vst.msk [vmem:[%s9090 + $0x74] sm:$0xf] %vm3964, %v9087
        %9121 = vst.msk [vmem:[%s9090 + $0x78] sm:$0xf] %vm3964, %v9088
        %9122 = vst.msk [vmem:[%s9090 + $0x7c] sm:$0xf] %vm3964, %v9089
        %v9123 = vmax.f32 %v9026, %v9030
        %v9124 = vmax.f32 %v9027, %v9031
        %v9125 = vmax.f32 %v9028, %v9032
        %v9126 = vmax.f32 %v9029, %v9033
        %v9127 = vmax.f32 %v9034, %v9038
        %v9128 = vmax.f32 %v9035, %v9039
        %v9129 = vmax.f32 %v9036, %v9040
        %v9130 = vmax.f32 %v9037, %v9041
        %v9131 = vmax.f32 %v9042, %v9046
        %v9132 = vmax.f32 %v9043, %v9047
        %v9133 = vmax.f32 %v9044, %v9048
        %v9134 = vmax.f32 %v9045, %v9049
        %v9135 = vmax.f32 %v9050, %v9054
        %v9136 = vmax.f32 %v9051, %v9055
        %v9137 = vmax.f32 %v9052, %v9056
        %v9138 = vmax.f32 %v9053, %v9057
        %v9155 = vrot.slane %v9123, 2
        %v9156 = vrot.slane %v9123, 4
        %v9157 = vrot.slane %v9123, 6
        %v9158 = vrot.slane %v9124, 2
        %v9159 = vrot.slane %v9124, 4
        %v9160 = vrot.slane %v9124, 6
        %v9161 = vrot.slane %v9125, 2
        %v9162 = vrot.slane %v9125, 4
        %v9163 = vrot.slane %v9125, 6
        %v9164 = vrot.slane %v9126, 2
        %v9165 = vrot.slane %v9126, 4
        %v9166 = vrot.slane %v9126, 6
        %v9167 = vrot.slane %v9127, 2
        %v9168 = vrot.slane %v9127, 4
        %v9169 = vrot.slane %v9127, 6
        %v9170 = vrot.slane %v9128, 2
        %v9171 = vrot.slane %v9128, 4
        %v9172 = vrot.slane %v9128, 6
        %v9173 = vrot.slane %v9129, 2
        %v9174 = vrot.slane %v9129, 4
        %v9175 = vrot.slane %v9129, 6
        %v9176 = vrot.slane %v9130, 2
        %v9177 = vrot.slane %v9130, 4
        %v9178 = vrot.slane %v9130, 6
        %v9179 = vrot.slane %v9131, 2
        %v9180 = vrot.slane %v9131, 4
        %v9181 = vrot.slane %v9131, 6
        %v9182 = vrot.slane %v9132, 2
        %v9183 = vrot.slane %v9132, 4
        %v9184 = vrot.slane %v9132, 6
        %v9185 = vrot.slane %v9133, 2
        %v9186 = vrot.slane %v9133, 4
        %v9187 = vrot.slane %v9133, 6
        %v9188 = vrot.slane %v9134, 2
        %v9189 = vrot.slane %v9134, 4
        %v9190 = vrot.slane %v9134, 6
        %v9191 = vrot.slane %v9135, 2
        %v9192 = vrot.slane %v9135, 4
        %v9193 = vrot.slane %v9135, 6
        %v9194 = vrot.slane %v9136, 2
        %v9195 = vrot.slane %v9136, 4
        %v9196 = vrot.slane %v9136, 6
        %v9197 = vrot.slane %v9137, 2
        %v9198 = vrot.slane %v9137, 4
        %v9199 = vrot.slane %v9137, 6
        %v9200 = vrot.slane %v9138, 2
        %v9201 = vrot.slane %v9138, 4
        %v9202 = vrot.slane %v9138, 6
        %v9251 = vrot.slane %v9123, 7
        %v9252 = vrot.slane %v9251, 2
        %v9253 = vrot.slane %v9155, 7
        %v9254 = vrot.slane %v9253, 2
        %v9255 = vrot.slane %v9156, 7
        %v9256 = vrot.slane %v9255, 2
        %v9257 = vrot.slane %v9157, 7
        %v9258 = vrot.slane %v9257, 2
        %v9259 = vrot.slane %v9124, 7
        %v9260 = vrot.slane %v9259, 2
        %v9261 = vrot.slane %v9158, 7
        %v9262 = vrot.slane %v9261, 2
        %v9263 = vrot.slane %v9159, 7
        %v9264 = vrot.slane %v9263, 2
        %v9265 = vrot.slane %v9160, 7
        %v9266 = vrot.slane %v9265, 2
        %v9267 = vrot.slane %v9125, 7
        %v9268 = vrot.slane %v9267, 2
        %v9269 = vrot.slane %v9161, 7
        %v9270 = vrot.slane %v9269, 2
        %v9271 = vrot.slane %v9162, 7
        %v9272 = vrot.slane %v9271, 2
        %v9273 = vrot.slane %v9163, 7
        %v9274 = vrot.slane %v9273, 2
        %v9275 = vrot.slane %v9126, 7
        %v9276 = vrot.slane %v9275, 2
        %v9277 = vrot.slane %v9164, 7
        %v9278 = vrot.slane %v9277, 2
        %v9279 = vrot.slane %v9165, 7
        %v9280 = vrot.slane %v9279, 2
        %v9281 = vrot.slane %v9166, 7
        %v9282 = vrot.slane %v9281, 2
        %v9283 = vrot.slane %v9127, 7
        %v9284 = vrot.slane %v9283, 2
        %v9285 = vrot.slane %v9167, 7
        %v9286 = vrot.slane %v9285, 2
        %v9287 = vrot.slane %v9168, 7
        %v9288 = vrot.slane %v9287, 2
        %v9289 = vrot.slane %v9169, 7
        %v9290 = vrot.slane %v9289, 2
        %v9291 = vrot.slane %v9128, 7
        %v9292 = vrot.slane %v9291, 2
        %v9293 = vrot.slane %v9170, 7
        %v9294 = vrot.slane %v9293, 2
        %v9295 = vrot.slane %v9171, 7
        %v9296 = vrot.slane %v9295, 2
        %v9297 = vrot.slane %v9172, 7
        %v9298 = vrot.slane %v9297, 2
        %v9299 = vrot.slane %v9129, 7
        %v9300 = vrot.slane %v9299, 2
        %v9301 = vrot.slane %v9173, 7
        %v9302 = vrot.slane %v9301, 2
        %v9303 = vrot.slane %v9174, 7
        %v9304 = vrot.slane %v9303, 2
        %v9305 = vrot.slane %v9175, 7
        %v9306 = vrot.slane %v9305, 2
        %v9307 = vrot.slane %v9130, 7
        %v9308 = vrot.slane %v9307, 2
        %v9309 = vrot.slane %v9176, 7
        %v9310 = vrot.slane %v9309, 2
        %v9311 = vrot.slane %v9177, 7
        %v9312 = vrot.slane %v9311, 2
        %v9313 = vrot.slane %v9178, 7
        %v9314 = vrot.slane %v9313, 2
        %v9315 = vrot.slane %v9131, 7
        %v9316 = vrot.slane %v9315, 2
        %v9317 = vrot.slane %v9179, 7
        %v9318 = vrot.slane %v9317, 2
        %v9319 = vrot.slane %v9180, 7
        %v9320 = vrot.slane %v9319, 2
        %v9321 = vrot.slane %v9181, 7
        %v9322 = vrot.slane %v9321, 2
        %v9323 = vrot.slane %v9132, 7
        %v9324 = vrot.slane %v9323, 2
        %v9325 = vrot.slane %v9182, 7
        %v9326 = vrot.slane %v9325, 2
        %v9327 = vrot.slane %v9183, 7
        %v9328 = vrot.slane %v9327, 2
        %v9329 = vrot.slane %v9184, 7
        %v9330 = vrot.slane %v9329, 2
        %v9331 = vrot.slane %v9133, 7
        %v9332 = vrot.slane %v9331, 2
        %v9333 = vrot.slane %v9185, 7
        %v9334 = vrot.slane %v9333, 2
        %v9335 = vrot.slane %v9186, 7
        %v9336 = vrot.slane %v9335, 2
        %v9337 = vrot.slane %v9187, 7
        %v9338 = vrot.slane %v9337, 2
        %v9339 = vrot.slane %v9134, 7
        %v9340 = vrot.slane %v9339, 2
        %v9341 = vrot.slane %v9188, 7
        %v9342 = vrot.slane %v9341, 2
        %v9343 = vrot.slane %v9189, 7
        %v9344 = vrot.slane %v9343, 2
        %v9345 = vrot.slane %v9190, 7
        %v9346 = vrot.slane %v9345, 2
        %v9347 = vrot.slane %v9135, 7
        %v9348 = vrot.slane %v9347, 2
        %v9349 = vrot.slane %v9191, 7
        %v9350 = vrot.slane %v9349, 2
        %v9351 = vrot.slane %v9192, 7
        %v9352 = vrot.slane %v9351, 2
        %v9353 = vrot.slane %v9193, 7
        %v9354 = vrot.slane %v9353, 2
        %v9355 = vrot.slane %v9136, 7
        %v9356 = vrot.slane %v9355, 2
        %v9357 = vrot.slane %v9194, 7
        %v9358 = vrot.slane %v9357, 2
        %v9359 = vrot.slane %v9195, 7
        %v9360 = vrot.slane %v9359, 2
        %v9361 = vrot.slane %v9196, 7
        %v9362 = vrot.slane %v9361, 2
        %v9363 = vrot.slane %v9137, 7
        %v9364 = vrot.slane %v9363, 2
        %v9365 = vrot.slane %v9197, 7
        %v9366 = vrot.slane %v9365, 2
        %v9367 = vrot.slane %v9198, 7
        %v9368 = vrot.slane %v9367, 2
        %v9369 = vrot.slane %v9199, 7
        %v9370 = vrot.slane %v9369, 2
        %v9371 = vrot.slane %v9138, 7
        %v9372 = vrot.slane %v9371, 2
        %v9373 = vrot.slane %v9200, 7
        %v9374 = vrot.slane %v9373, 2
        %v9375 = vrot.slane %v9201, 7
        %v9376 = vrot.slane %v9375, 2
        %v9377 = vrot.slane %v9202, 7
        %v9378 = vrot.slane %v9377, 2
        %v9443 = vmax.f32 %v9123, %v9252
        %v9444 = vmax.f32 %v9155, %v9254
        %v9445 = vmax.f32 %v9156, %v9256
        %v9446 = vmax.f32 %v9157, %v9258
        %v9447 = vmax.f32 %v9124, %v9260
        %v9448 = vmax.f32 %v9158, %v9262
        %v9449 = vmax.f32 %v9159, %v9264
        %v9450 = vmax.f32 %v9160, %v9266
        %v9451 = vmax.f32 %v9125, %v9268
        %v9452 = vmax.f32 %v9161, %v9270
        %v9453 = vmax.f32 %v9162, %v9272
        %v9454 = vmax.f32 %v9163, %v9274
        %v9455 = vmax.f32 %v9126, %v9276
        %v9456 = vmax.f32 %v9164, %v9278
        %v9457 = vmax.f32 %v9165, %v9280
        %v9458 = vmax.f32 %v9166, %v9282
        %v9459 = vmax.f32 %v9127, %v9284
        %v9460 = vmax.f32 %v9167, %v9286
        %v9461 = vmax.f32 %v9168, %v9288
        %v9462 = vmax.f32 %v9169, %v9290
        %v9463 = vmax.f32 %v9128, %v9292
        %v9464 = vmax.f32 %v9170, %v9294
        %v9465 = vmax.f32 %v9171, %v9296
        %v9466 = vmax.f32 %v9172, %v9298
        %v9467 = vmax.f32 %v9129, %v9300
        %v9468 = vmax.f32 %v9173, %v9302
        %v9469 = vmax.f32 %v9174, %v9304
        %v9470 = vmax.f32 %v9175, %v9306
        %v9471 = vmax.f32 %v9130, %v9308
        %v9472 = vmax.f32 %v9176, %v9310
        %v9473 = vmax.f32 %v9177, %v9312
        %v9474 = vmax.f32 %v9178, %v9314
        %v9475 = vmax.f32 %v9131, %v9316
        %v9476 = vmax.f32 %v9179, %v9318
        %v9477 = vmax.f32 %v9180, %v9320
        %v9478 = vmax.f32 %v9181, %v9322
        %v9479 = vmax.f32 %v9132, %v9324
        %v9480 = vmax.f32 %v9182, %v9326
        %v9481 = vmax.f32 %v9183, %v9328
        %v9482 = vmax.f32 %v9184, %v9330
        %v9483 = vmax.f32 %v9133, %v9332
        %v9484 = vmax.f32 %v9185, %v9334
        %v9485 = vmax.f32 %v9186, %v9336
        %v9486 = vmax.f32 %v9187, %v9338
        %v9487 = vmax.f32 %v9134, %v9340
        %v9488 = vmax.f32 %v9188, %v9342
        %v9489 = vmax.f32 %v9189, %v9344
        %v9490 = vmax.f32 %v9190, %v9346
        %v9491 = vmax.f32 %v9135, %v9348
        %v9492 = vmax.f32 %v9191, %v9350
        %v9493 = vmax.f32 %v9192, %v9352
        %v9494 = vmax.f32 %v9193, %v9354
        %v9495 = vmax.f32 %v9136, %v9356
        %v9496 = vmax.f32 %v9194, %v9358
        %v9497 = vmax.f32 %v9195, %v9360
        %v9498 = vmax.f32 %v9196, %v9362
        %v9499 = vmax.f32 %v9137, %v9364
        %v9500 = vmax.f32 %v9197, %v9366
        %v9501 = vmax.f32 %v9198, %v9368
        %v9502 = vmax.f32 %v9199, %v9370
        %v9503 = vmax.f32 %v9138, %v9372
        %v9504 = vmax.f32 %v9200, %v9374
        %v9505 = vmax.f32 %v9201, %v9376
        %v9506 = vmax.f32 %v9202, %v9378
        %v9507 = vpack.c.bf16 %v9443, %v9443
        %v9508 = vpack.c.bf16 %v9444, %v9444
        %v9509 = vpack.c.bf16 %v9445, %v9445
        %v9510 = vpack.c.bf16 %v9446, %v9446
        %v9511 = vpack.c.bf16 %v9447, %v9447
        %v9512 = vpack.c.bf16 %v9448, %v9448
        %v9513 = vpack.c.bf16 %v9449, %v9449
        %v9514 = vpack.c.bf16 %v9450, %v9450
        %v9515 = vpack.c.bf16 %v9451, %v9451
        %v9516 = vpack.c.bf16 %v9452, %v9452
        %v9517 = vpack.c.bf16 %v9453, %v9453
        %v9518 = vpack.c.bf16 %v9454, %v9454
        %v9519 = vpack.c.bf16 %v9455, %v9455
        %v9520 = vpack.c.bf16 %v9456, %v9456
        %v9521 = vpack.c.bf16 %v9457, %v9457
        %v9522 = vpack.c.bf16 %v9458, %v9458
        %v9523 = vpack.c.bf16 %v9459, %v9459
        %v9524 = vpack.c.bf16 %v9460, %v9460
        %v9525 = vpack.c.bf16 %v9461, %v9461
        %v9526 = vpack.c.bf16 %v9462, %v9462
        %v9527 = vpack.c.bf16 %v9463, %v9463
        %v9528 = vpack.c.bf16 %v9464, %v9464
        %v9529 = vpack.c.bf16 %v9465, %v9465
        %v9530 = vpack.c.bf16 %v9466, %v9466
        %v9531 = vpack.c.bf16 %v9467, %v9467
        %v9532 = vpack.c.bf16 %v9468, %v9468
        %v9533 = vpack.c.bf16 %v9469, %v9469
        %v9534 = vpack.c.bf16 %v9470, %v9470
        %v9535 = vpack.c.bf16 %v9471, %v9471
        %v9536 = vpack.c.bf16 %v9472, %v9472
        %v9537 = vpack.c.bf16 %v9473, %v9473
        %v9538 = vpack.c.bf16 %v9474, %v9474
        %v9539 = vpack.c.bf16 %v9475, %v9475
        %v9540 = vpack.c.bf16 %v9476, %v9476
        %v9541 = vpack.c.bf16 %v9477, %v9477
        %v9542 = vpack.c.bf16 %v9478, %v9478
        %v9543 = vpack.c.bf16 %v9479, %v9479
        %v9544 = vpack.c.bf16 %v9480, %v9480
        %v9545 = vpack.c.bf16 %v9481, %v9481
        %v9546 = vpack.c.bf16 %v9482, %v9482
        %v9547 = vpack.c.bf16 %v9483, %v9483
        %v9548 = vpack.c.bf16 %v9484, %v9484
        %v9549 = vpack.c.bf16 %v9485, %v9485
        %v9550 = vpack.c.bf16 %v9486, %v9486
        %v9551 = vpack.c.bf16 %v9487, %v9487
        %v9552 = vpack.c.bf16 %v9488, %v9488
        %v9553 = vpack.c.bf16 %v9489, %v9489
        %v9554 = vpack.c.bf16 %v9490, %v9490
        %v9555 = vpack.c.bf16 %v9491, %v9491
        %v9556 = vpack.c.bf16 %v9492, %v9492
        %v9557 = vpack.c.bf16 %v9493, %v9493
        %v9558 = vpack.c.bf16 %v9494, %v9494
        %v9559 = vpack.c.bf16 %v9495, %v9495
        %v9560 = vpack.c.bf16 %v9496, %v9496
        %v9561 = vpack.c.bf16 %v9497, %v9497
        %v9562 = vpack.c.bf16 %v9498, %v9498
        %v9563 = vpack.c.bf16 %v9499, %v9499
        %v9564 = vpack.c.bf16 %v9500, %v9500
        %v9565 = vpack.c.bf16 %v9501, %v9501
        %v9566 = vpack.c.bf16 %v9502, %v9502
        %v9567 = vpack.c.bf16 %v9503, %v9503
        %v9568 = vpack.c.bf16 %v9504, %v9504
        %v9569 = vpack.c.bf16 %v9505, %v9505
        %v9570 = vpack.c.bf16 %v9506, %v9506
        %v9635 = vunpack.c.l.b16 %v9507
        %v9636 = vunpack.c.l.b16 %v9508
        %v9637 = vunpack.c.l.b16 %v9509
        %v9638 = vunpack.c.l.b16 %v9510
        %v9639 = vunpack.c.l.b16 %v9511
        %v9640 = vunpack.c.l.b16 %v9512
        %v9641 = vunpack.c.l.b16 %v9513
        %v9642 = vunpack.c.l.b16 %v9514
        %v9643 = vunpack.c.l.b16 %v9515
        %v9644 = vunpack.c.l.b16 %v9516
        %v9645 = vunpack.c.l.b16 %v9517
        %v9646 = vunpack.c.l.b16 %v9518
        %v9647 = vunpack.c.l.b16 %v9519
        %v9648 = vunpack.c.l.b16 %v9520
        %v9649 = vunpack.c.l.b16 %v9521
        %v9650 = vunpack.c.l.b16 %v9522
        %v9651 = vunpack.c.l.b16 %v9523
        %v9652 = vunpack.c.l.b16 %v9524
        %v9653 = vunpack.c.l.b16 %v9525
        %v9654 = vunpack.c.l.b16 %v9526
        %v9655 = vunpack.c.l.b16 %v9527
        %v9656 = vunpack.c.l.b16 %v9528
        %v9657 = vunpack.c.l.b16 %v9529
        %v9658 = vunpack.c.l.b16 %v9530
        %v9659 = vunpack.c.l.b16 %v9531
        %v9660 = vunpack.c.l.b16 %v9532
        %v9661 = vunpack.c.l.b16 %v9533
        %v9662 = vunpack.c.l.b16 %v9534
        %v9663 = vunpack.c.l.b16 %v9535
        %v9664 = vunpack.c.l.b16 %v9536
        %v9665 = vunpack.c.l.b16 %v9537
        %v9666 = vunpack.c.l.b16 %v9538
        %v9667 = vunpack.c.l.b16 %v9539
        %v9668 = vunpack.c.l.b16 %v9540
        %v9669 = vunpack.c.l.b16 %v9541
        %v9670 = vunpack.c.l.b16 %v9542
        %v9671 = vunpack.c.l.b16 %v9543
        %v9672 = vunpack.c.l.b16 %v9544
        %v9673 = vunpack.c.l.b16 %v9545
        %v9674 = vunpack.c.l.b16 %v9546
        %v9675 = vunpack.c.l.b16 %v9547
        %v9676 = vunpack.c.l.b16 %v9548
        %v9677 = vunpack.c.l.b16 %v9549
        %v9678 = vunpack.c.l.b16 %v9550
        %v9679 = vunpack.c.l.b16 %v9551
        %v9680 = vunpack.c.l.b16 %v9552
        %v9681 = vunpack.c.l.b16 %v9553
        %v9682 = vunpack.c.l.b16 %v9554
        %v9683 = vunpack.c.l.b16 %v9555
        %v9684 = vunpack.c.l.b16 %v9556
        %v9685 = vunpack.c.l.b16 %v9557
        %v9686 = vunpack.c.l.b16 %v9558
        %v9687 = vunpack.c.l.b16 %v9559
        %v9688 = vunpack.c.l.b16 %v9560
        %v9689 = vunpack.c.l.b16 %v9561
        %v9690 = vunpack.c.l.b16 %v9562
        %v9691 = vunpack.c.l.b16 %v9563
        %v9692 = vunpack.c.l.b16 %v9564
        %v9693 = vunpack.c.l.b16 %v9565
        %v9694 = vunpack.c.l.b16 %v9566
        %v9695 = vunpack.c.l.b16 %v9567
        %v9696 = vunpack.c.l.b16 %v9568
        %v9697 = vunpack.c.l.b16 %v9569
        %v9698 = vunpack.c.l.b16 %v9570
        %v9699 = vrot.slane %v9636, 7
        %v9700 = vsel %vm4574, %v9699, %v9635
        %v9701 = vrot.slane %v9637, 6
        %v9702 = vsel %vm4577, %v9701, %v9700
        %v9703 = vrot.slane %v9638, 5
        %v9704 = vsel %vm4580, %v9703, %v9702
        %v9705 = vrot.slane %v9639, 4
        %v9706 = vsel %vm4583, %v9705, %v9704
        %v9707 = vrot.slane %v9640, 3
        %v9708 = vsel %vm4586, %v9707, %v9706
        %v9709 = vrot.slane %v9641, 2
        %v9710 = vsel %vm4589, %v9709, %v9708
        %v9711 = vrot.slane %v9642, 1
        %v9712 = vsel %vm4592, %v9711, %v9710
        %v9713 = vrot.slane %v9644, 7
        %v9714 = vsel %vm4574, %v9713, %v9643
        %v9715 = vrot.slane %v9645, 6
        %v9716 = vsel %vm4577, %v9715, %v9714
        %v9717 = vrot.slane %v9646, 5
        %v9718 = vsel %vm4580, %v9717, %v9716
        %v9719 = vrot.slane %v9647, 4
        %v9720 = vsel %vm4583, %v9719, %v9718
        %v9721 = vrot.slane %v9648, 3
        %v9722 = vsel %vm4586, %v9721, %v9720
        %v9723 = vrot.slane %v9649, 2
        %v9724 = vsel %vm4589, %v9723, %v9722
        %v9725 = vrot.slane %v9650, 1
        %v9726 = vsel %vm4592, %v9725, %v9724
        %v9727 = vrot.slane %v9652, 7
        %v9728 = vsel %vm4574, %v9727, %v9651
        %v9729 = vrot.slane %v9653, 6
        %v9730 = vsel %vm4577, %v9729, %v9728
        %v9731 = vrot.slane %v9654, 5
        %v9732 = vsel %vm4580, %v9731, %v9730
        %v9733 = vrot.slane %v9655, 4
        %v9734 = vsel %vm4583, %v9733, %v9732
        %v9735 = vrot.slane %v9656, 3
        %v9736 = vsel %vm4586, %v9735, %v9734
        %v9737 = vrot.slane %v9657, 2
        %v9738 = vsel %vm4589, %v9737, %v9736
        %v9739 = vrot.slane %v9658, 1
        %v9740 = vsel %vm4592, %v9739, %v9738
        %v9741 = vrot.slane %v9660, 7
        %v9742 = vsel %vm4574, %v9741, %v9659
        %v9743 = vrot.slane %v9661, 6
        %v9744 = vsel %vm4577, %v9743, %v9742
        %v9745 = vrot.slane %v9662, 5
        %v9746 = vsel %vm4580, %v9745, %v9744
        %v9747 = vrot.slane %v9663, 4
        %v9748 = vsel %vm4583, %v9747, %v9746
        %v9749 = vrot.slane %v9664, 3
        %v9750 = vsel %vm4586, %v9749, %v9748
        %v9751 = vrot.slane %v9665, 2
        %v9752 = vsel %vm4589, %v9751, %v9750
        %v9753 = vrot.slane %v9666, 1
        %v9754 = vsel %vm4592, %v9753, %v9752
        %v9755 = vrot.slane %v9668, 7
        %v9756 = vsel %vm4574, %v9755, %v9667
        %v9757 = vrot.slane %v9669, 6
        %v9758 = vsel %vm4577, %v9757, %v9756
        %v9759 = vrot.slane %v9670, 5
        %v9760 = vsel %vm4580, %v9759, %v9758
        %v9761 = vrot.slane %v9671, 4
        %v9762 = vsel %vm4583, %v9761, %v9760
        %v9763 = vrot.slane %v9672, 3
        %v9764 = vsel %vm4586, %v9763, %v9762
        %v9765 = vrot.slane %v9673, 2
        %v9766 = vsel %vm4589, %v9765, %v9764
        %v9767 = vrot.slane %v9674, 1
        %v9768 = vsel %vm4592, %v9767, %v9766
        %v9769 = vrot.slane %v9676, 7
        %v9770 = vsel %vm4574, %v9769, %v9675
        %v9771 = vrot.slane %v9677, 6
        %v9772 = vsel %vm4577, %v9771, %v9770
        %v9773 = vrot.slane %v9678, 5
        %v9774 = vsel %vm4580, %v9773, %v9772
        %v9775 = vrot.slane %v9679, 4
        %v9776 = vsel %vm4583, %v9775, %v9774
        %v9777 = vrot.slane %v9680, 3
        %v9778 = vsel %vm4586, %v9777, %v9776
        %v9779 = vrot.slane %v9681, 2
        %v9780 = vsel %vm4589, %v9779, %v9778
        %v9781 = vrot.slane %v9682, 1
        %v9782 = vsel %vm4592, %v9781, %v9780
        %v9783 = vrot.slane %v9684, 7
        %v9784 = vsel %vm4574, %v9783, %v9683
        %v9785 = vrot.slane %v9685, 6
        %v9786 = vsel %vm4577, %v9785, %v9784
        %v9787 = vrot.slane %v9686, 5
        %v9788 = vsel %vm4580, %v9787, %v9786
        %v9789 = vrot.slane %v9687, 4
        %v9790 = vsel %vm4583, %v9789, %v9788
        %v9791 = vrot.slane %v9688, 3
        %v9792 = vsel %vm4586, %v9791, %v9790
        %v9793 = vrot.slane %v9689, 2
        %v9794 = vsel %vm4589, %v9793, %v9792
        %v9795 = vrot.slane %v9690, 1
        %v9796 = vsel %vm4592, %v9795, %v9794
        %v9797 = vrot.slane %v9692, 7
        %v9798 = vsel %vm4574, %v9797, %v9691
        %v9799 = vrot.slane %v9693, 6
        %v9800 = vsel %vm4577, %v9799, %v9798
        %v9801 = vrot.slane %v9694, 5
        %v9802 = vsel %vm4580, %v9801, %v9800
        %v9803 = vrot.slane %v9695, 4
        %v9804 = vsel %vm4583, %v9803, %v9802
        %v9805 = vrot.slane %v9696, 3
        %v9806 = vsel %vm4586, %v9805, %v9804
        %v9807 = vrot.slane %v9697, 2
        %v9808 = vsel %vm4589, %v9807, %v9806
        %v9809 = vrot.slane %v9698, 1
        %v9810 = vsel %vm4592, %v9809, %v9808
        %v9811 = vpack.c.b16 %v9712, %v9712
        %v9812 = vpack.c.b16 %v9726, %v9726
        %v9813 = vpack.c.b16 %v9740, %v9740
        %v9814 = vpack.c.b16 %v9754, %v9754
        %v9815 = vpack.c.b16 %v9768, %v9768
        %v9816 = vpack.c.b16 %v9782, %v9782
        %v9817 = vpack.c.b16 %v9796, %v9796
        %v9818 = vpack.c.b16 %v9810, %v9810
        %s9827 = scalar_lea.vmem %s191, 64 [#allocation3]
        %9828 = vst.msk [vmem:[%s9827] sm:$0xf] %vm3964, %v9811
        %9829 = vst.msk [vmem:[%s9827 + $0x4] sm:$0xf] %vm3964, %v9812
        %9830 = vst.msk [vmem:[%s9827 + $0x8] sm:$0xf] %vm3964, %v9813
        %9831 = vst.msk [vmem:[%s9827 + $0xc] sm:$0xf] %vm3964, %v9814
        %9832 = vst.msk [vmem:[%s9827 + $0x10] sm:$0xf] %vm3964, %v9815
        %9833 = vst.msk [vmem:[%s9827 + $0x14] sm:$0xf] %vm3964, %v9816
        %9834 = vst.msk [vmem:[%s9827 + $0x18] sm:$0xf] %vm3964, %v9817
        %9835 = vst.msk [vmem:[%s9827 + $0x1c] sm:$0xf] %vm3964, %v9818
        %s9836 = scalar_lea.vmem [#allocation2], 480
        %v9837 = vld [vmem:[%s9836] sm:$0xf]
        %v9838 = vld [vmem:[%s9836 + $0x4] sm:$0xf]
        %v9839 = vld [vmem:[%s9836 + $0x8] sm:$0xf]
        %v9840 = vld [vmem:[%s9836 + $0xc] sm:$0xf]
        %v9841 = vld [vmem:[%s9836 + $0x10] sm:$0x1]
        %v9842 = vld [vmem:[%s9836 + $0x14] sm:$0xf]
        %v9843 = vld [vmem:[%s9836 + $0x18] sm:$0xf]
        %v9844 = vld [vmem:[%s9836 + $0x1c] sm:$0xf]
        %v9845 = vld [vmem:[%s9836 + $0x20] sm:$0xf]
        %v9846 = vld [vmem:[%s9836 + $0x24] sm:$0x1]
        %v9847 = vld [vmem:[%s9836 + $0x28] sm:$0xf]
        %v9848 = vld [vmem:[%s9836 + $0x2c] sm:$0xf]
        %v9849 = vld [vmem:[%s9836 + $0x30] sm:$0xf]
        %v9850 = vld [vmem:[%s9836 + $0x34] sm:$0xf]
        %v9851 = vld [vmem:[%s9836 + $0x38] sm:$0x1]
        %v9852 = vld [vmem:[%s9836 + $0x3c] sm:$0xf]
        %v9853 = vld [vmem:[%s9836 + $0x40] sm:$0xf]
        %v9854 = vld [vmem:[%s9836 + $0x44] sm:$0xf]
        %v9855 = vld [vmem:[%s9836 + $0x48] sm:$0xf]
        %v9856 = vld [vmem:[%s9836 + $0x4c] sm:$0x1]
        %v9857 = vld [vmem:[%s9836 + $0x50] sm:$0xf]
        %v9858 = vld [vmem:[%s9836 + $0x54] sm:$0xf]
        %v9859 = vld [vmem:[%s9836 + $0x58] sm:$0xf]
        %v9860 = vld [vmem:[%s9836 + $0x5c] sm:$0xf]
        %v9861 = vld [vmem:[%s9836 + $0x60] sm:$0x1]
        %v9862 = vld [vmem:[%s9836 + $0x64] sm:$0xf]
        %v9863 = vld [vmem:[%s9836 + $0x68] sm:$0xf]
        %v9864 = vld [vmem:[%s9836 + $0x6c] sm:$0xf]
        %v9865 = vld [vmem:[%s9836 + $0x70] sm:$0xf]
        %v9866 = vld [vmem:[%s9836 + $0x74] sm:$0x1]
        %v9867 = vld [vmem:[%s9836 + $0x78] sm:$0xf]
        %v9868 = vld [vmem:[%s9836 + $0x7c] sm:$0xf]
        %v9869 = vld [vmem:[%s9836 + $0x80] sm:$0xf]
        %v9870 = vld [vmem:[%s9836 + $0x84] sm:$0xf]
        %v9871 = vld [vmem:[%s9836 + $0x88] sm:$0x1]
        %v9872 = vld [vmem:[%s9836 + $0x8c] sm:$0xf]
        %v9873 = vld [vmem:[%s9836 + $0x90] sm:$0xf]
        %v9874 = vld [vmem:[%s9836 + $0x94] sm:$0xf]
        %v9875 = vld [vmem:[%s9836 + $0x98] sm:$0xf]
        %v9876 = vld [vmem:[%s9836 + $0x9c] sm:$0x1]
        %s9877 = scalar_lea.vmem [#allocation2], 500
        %v9878 = vld [vmem:[%s9877] sm:$0xf]
        %v9879 = vld [vmem:[%s9877 + $0x4] sm:$0xf]
        %v9880 = vld [vmem:[%s9877 + $0x8] sm:$0xf]
        %v9881 = vld [vmem:[%s9877 + $0xc] sm:$0xf]
        %v9882 = vld [vmem:[%s9877 + $0x10] sm:$0x1]
        %v9883 = vld [vmem:[%s9877 + $0x14] sm:$0xf]
        %v9884 = vld [vmem:[%s9877 + $0x18] sm:$0xf]
        %v9885 = vld [vmem:[%s9877 + $0x1c] sm:$0xf]
        %v9886 = vld [vmem:[%s9877 + $0x20] sm:$0xf]
        %v9887 = vld [vmem:[%s9877 + $0x24] sm:$0x1]
        %v9888 = vld [vmem:[%s9877 + $0x28] sm:$0xf]
        %v9889 = vld [vmem:[%s9877 + $0x2c] sm:$0xf]
        %v9890 = vld [vmem:[%s9877 + $0x30] sm:$0xf]
        %v9891 = vld [vmem:[%s9877 + $0x34] sm:$0xf]
        %v9892 = vld [vmem:[%s9877 + $0x38] sm:$0x1]
        %v9893 = vld [vmem:[%s9877 + $0x3c] sm:$0xf]
        %v9894 = vld [vmem:[%s9877 + $0x40] sm:$0xf]
        %v9895 = vld [vmem:[%s9877 + $0x44] sm:$0xf]
        %v9896 = vld [vmem:[%s9877 + $0x48] sm:$0xf]
        %v9897 = vld [vmem:[%s9877 + $0x4c] sm:$0x1]
        %v9898 = vld [vmem:[%s9877 + $0x50] sm:$0xf]
        %v9899 = vld [vmem:[%s9877 + $0x54] sm:$0xf]
        %v9900 = vld [vmem:[%s9877 + $0x58] sm:$0xf]
        %v9901 = vld [vmem:[%s9877 + $0x5c] sm:$0xf]
        %v9902 = vld [vmem:[%s9877 + $0x60] sm:$0x1]
        %v9903 = vld [vmem:[%s9877 + $0x64] sm:$0xf]
        %v9904 = vld [vmem:[%s9877 + $0x68] sm:$0xf]
        %v9905 = vld [vmem:[%s9877 + $0x6c] sm:$0xf]
        %v9906 = vld [vmem:[%s9877 + $0x70] sm:$0xf]
        %v9907 = vld [vmem:[%s9877 + $0x74] sm:$0x1]
        %v9908 = vld [vmem:[%s9877 + $0x78] sm:$0xf]
        %v9909 = vld [vmem:[%s9877 + $0x7c] sm:$0xf]
        %v9910 = vld [vmem:[%s9877 + $0x80] sm:$0xf]
        %v9911 = vld [vmem:[%s9877 + $0x84] sm:$0xf]
        %v9912 = vld [vmem:[%s9877 + $0x88] sm:$0x1]
        %v9913 = vld [vmem:[%s9877 + $0x8c] sm:$0xf]
        %v9914 = vld [vmem:[%s9877 + $0x90] sm:$0xf]
        %v9915 = vld [vmem:[%s9877 + $0x94] sm:$0xf]
        %v9916 = vld [vmem:[%s9877 + $0x98] sm:$0xf]
        %v9917 = vld [vmem:[%s9877 + $0x9c] sm:$0x1]
        %s9918 = scalar_lea.vmem [#allocation2], 520
        %v9919 = vld [vmem:[%s9918] sm:$0xf]
        %v9920 = vld [vmem:[%s9918 + $0x4] sm:$0xf]
        %v9921 = vld [vmem:[%s9918 + $0x8] sm:$0xf]
        %v9922 = vld [vmem:[%s9918 + $0xc] sm:$0xf]
        %v9923 = vld [vmem:[%s9918 + $0x10] sm:$0x1]
        %v9924 = vld [vmem:[%s9918 + $0x14] sm:$0xf]
        %v9925 = vld [vmem:[%s9918 + $0x18] sm:$0xf]
        %v9926 = vld [vmem:[%s9918 + $0x1c] sm:$0xf]
        %v9927 = vld [vmem:[%s9918 + $0x20] sm:$0xf]
        %v9928 = vld [vmem:[%s9918 + $0x24] sm:$0x1]
        %v9929 = vld [vmem:[%s9918 + $0x28] sm:$0xf]
        %v9930 = vld [vmem:[%s9918 + $0x2c] sm:$0xf]
        %v9931 = vld [vmem:[%s9918 + $0x30] sm:$0xf]
        %v9932 = vld [vmem:[%s9918 + $0x34] sm:$0xf]
        %v9933 = vld [vmem:[%s9918 + $0x38] sm:$0x1]
        %v9934 = vld [vmem:[%s9918 + $0x3c] sm:$0xf]
        %v9935 = vld [vmem:[%s9918 + $0x40] sm:$0xf]
        %v9936 = vld [vmem:[%s9918 + $0x44] sm:$0xf]
        %v9937 = vld [vmem:[%s9918 + $0x48] sm:$0xf]
        %v9938 = vld [vmem:[%s9918 + $0x4c] sm:$0x1]
        %v9939 = vld [vmem:[%s9918 + $0x50] sm:$0xf]
        %v9940 = vld [vmem:[%s9918 + $0x54] sm:$0xf]
        %v9941 = vld [vmem:[%s9918 + $0x58] sm:$0xf]
        %v9942 = vld [vmem:[%s9918 + $0x5c] sm:$0xf]
        %v9943 = vld [vmem:[%s9918 + $0x60] sm:$0x1]
        %v9944 = vld [vmem:[%s9918 + $0x64] sm:$0xf]
        %v9945 = vld [vmem:[%s9918 + $0x68] sm:$0xf]
        %v9946 = vld [vmem:[%s9918 + $0x6c] sm:$0xf]
        %v9947 = vld [vmem:[%s9918 + $0x70] sm:$0xf]
        %v9948 = vld [vmem:[%s9918 + $0x74] sm:$0x1]
        %v9949 = vld [vmem:[%s9918 + $0x78] sm:$0xf]
        %v9950 = vld [vmem:[%s9918 + $0x7c] sm:$0xf]
        %v9951 = vld [vmem:[%s9918 + $0x80] sm:$0xf]
        %v9952 = vld [vmem:[%s9918 + $0x84] sm:$0xf]
        %v9953 = vld [vmem:[%s9918 + $0x88] sm:$0x1]
        %v9954 = vld [vmem:[%s9918 + $0x8c] sm:$0xf]
        %v9955 = vld [vmem:[%s9918 + $0x90] sm:$0xf]
        %v9956 = vld [vmem:[%s9918 + $0x94] sm:$0xf]
        %v9957 = vld [vmem:[%s9918 + $0x98] sm:$0xf]
        %v9958 = vld [vmem:[%s9918 + $0x9c] sm:$0x1]
        %v9991 = vunpack.c.l.b16 %v9837
        %v9992 = vunpack.c.l.b16 %v9838
        %v9993 = vunpack.c.l.b16 %v9839
        %v9994 = vunpack.c.l.b16 %v9840
        %v9995 = vunpack.c.l.b16 %v9842
        %v9996 = vunpack.c.l.b16 %v9843
        %v9997 = vunpack.c.l.b16 %v9844
        %v9998 = vunpack.c.l.b16 %v9845
        %v9999 = vunpack.c.l.b16 %v9847
        %v10000 = vunpack.c.l.b16 %v9848
        %v10001 = vunpack.c.l.b16 %v9849
        %v10002 = vunpack.c.l.b16 %v9850
        %v10003 = vunpack.c.l.b16 %v9852
        %v10004 = vunpack.c.l.b16 %v9853
        %v10005 = vunpack.c.l.b16 %v9854
        %v10006 = vunpack.c.l.b16 %v9855
        %v10007 = vunpack.c.l.b16 %v9857
        %v10008 = vunpack.c.l.b16 %v9858
        %v10009 = vunpack.c.l.b16 %v9859
        %v10010 = vunpack.c.l.b16 %v9860
        %v10011 = vunpack.c.l.b16 %v9862
        %v10012 = vunpack.c.l.b16 %v9863
        %v10013 = vunpack.c.l.b16 %v9864
        %v10014 = vunpack.c.l.b16 %v9865
        %v10015 = vunpack.c.l.b16 %v9867
        %v10016 = vunpack.c.l.b16 %v9868
        %v10017 = vunpack.c.l.b16 %v9869
        %v10018 = vunpack.c.l.b16 %v9870
        %v10019 = vunpack.c.l.b16 %v9872
        %v10020 = vunpack.c.l.b16 %v9873
        %v10021 = vunpack.c.l.b16 %v9874
        %v10022 = vunpack.c.l.b16 %v9875
        %v10023 = vpack.c.b16 %v9992, %v9991
        %v10024 = vpack.c.b16 %v9994, %v9993
        %v10025 = vpack.c.b16 %v9996, %v9995
        %v10026 = vpack.c.b16 %v9998, %v9997
        %v10027 = vpack.c.b16 %v10000, %v9999
        %v10028 = vpack.c.b16 %v10002, %v10001
        %v10029 = vpack.c.b16 %v10004, %v10003
        %v10030 = vpack.c.b16 %v10006, %v10005
        %v10031 = vpack.c.b16 %v10008, %v10007
        %v10032 = vpack.c.b16 %v10010, %v10009
        %v10033 = vpack.c.b16 %v10012, %v10011
        %v10034 = vpack.c.b16 %v10014, %v10013
        %v10035 = vpack.c.b16 %v10016, %v10015
        %v10036 = vpack.c.b16 %v10018, %v10017
        %v10037 = vpack.c.b16 %v10020, %v10019
        %v10038 = vpack.c.b16 %v10022, %v10021
        %v10047 = vunpack.c.l.b16 %v9841
        %v10048 = vunpack.c.l.b16 %v9846
        %v10049 = vunpack.c.l.b16 %v9851
        %v10050 = vunpack.c.l.b16 %v9856
        %v10051 = vunpack.c.l.b16 %v9861
        %v10052 = vunpack.c.l.b16 %v9866
        %v10053 = vunpack.c.l.b16 %v9871
        %v10054 = vunpack.c.l.b16 %v9876
        %v10055 = vpack.c.b16 %v10047, %v10047
        %v10056 = vpack.c.b16 %v10048, %v10048
        %v10057 = vpack.c.b16 %v10049, %v10049
        %v10058 = vpack.c.b16 %v10050, %v10050
        %v10059 = vpack.c.b16 %v10051, %v10051
        %v10060 = vpack.c.b16 %v10052, %v10052
        %v10061 = vpack.c.b16 %v10053, %v10053
        %v10062 = vpack.c.b16 %v10054, %v10054
        %v10064 = vshrl.u32 %v10023, 16
        %v10066 = vshll.u32 %v10023, 16
        %v10068 = vrot.slane %v10066, 1
        %v10069 = vor.u32 %v10064, %v10068
        %v10071 = vshll.u32 %v10024, 16
        %v10073 = vrot.slane %v10071, 1
        %v10074 = vsel %vm2359, %v10069, %v10073
        %v10075 = vshrl.u32 %v10024, 16
        %v10077 = vor.u32 %v10075, %v10073
        %v10079 = vshll.u32 %v10055, 16
        %v10081 = vrot.slane %v10079, 1
        %v10082 = vsel %vm2359, %v10077, %v10081
        %v10084 = vshrl.u32 %v10025, 16
        %v10086 = vshll.u32 %v10025, 16
        %v10088 = vrot.slane %v10086, 1
        %v10089 = vor.u32 %v10084, %v10088
        %v10091 = vshll.u32 %v10026, 16
        %v10093 = vrot.slane %v10091, 1
        %v10094 = vsel %vm2359, %v10089, %v10093
        %v10095 = vshrl.u32 %v10026, 16
        %v10097 = vor.u32 %v10095, %v10093
        %v10099 = vshll.u32 %v10056, 16
        %v10101 = vrot.slane %v10099, 1
        %v10102 = vsel %vm2359, %v10097, %v10101
        %v10104 = vshrl.u32 %v10027, 16
        %v10106 = vshll.u32 %v10027, 16
        %v10108 = vrot.slane %v10106, 1
        %v10109 = vor.u32 %v10104, %v10108
        %v10111 = vshll.u32 %v10028, 16
        %v10113 = vrot.slane %v10111, 1
        %v10114 = vsel %vm2359, %v10109, %v10113
        %v10115 = vshrl.u32 %v10028, 16
        %v10117 = vor.u32 %v10115, %v10113
        %v10119 = vshll.u32 %v10057, 16
        %v10121 = vrot.slane %v10119, 1
        %v10122 = vsel %vm2359, %v10117, %v10121
        %v10124 = vshrl.u32 %v10029, 16
        %v10126 = vshll.u32 %v10029, 16
        %v10128 = vrot.slane %v10126, 1
        %v10129 = vor.u32 %v10124, %v10128
        %v10131 = vshll.u32 %v10030, 16
        %v10133 = vrot.slane %v10131, 1
        %v10134 = vsel %vm2359, %v10129, %v10133
        %v10135 = vshrl.u32 %v10030, 16
        %v10137 = vor.u32 %v10135, %v10133
        %v10139 = vshll.u32 %v10058, 16
        %v10141 = vrot.slane %v10139, 1
        %v10142 = vsel %vm2359, %v10137, %v10141
        %v10144 = vshrl.u32 %v10031, 16
        %v10146 = vshll.u32 %v10031, 16
        %v10148 = vrot.slane %v10146, 1
        %v10149 = vor.u32 %v10144, %v10148
        %v10151 = vshll.u32 %v10032, 16
        %v10153 = vrot.slane %v10151, 1
        %v10154 = vsel %vm2359, %v10149, %v10153
        %v10155 = vshrl.u32 %v10032, 16
        %v10157 = vor.u32 %v10155, %v10153
        %v10159 = vshll.u32 %v10059, 16
        %v10161 = vrot.slane %v10159, 1
        %v10162 = vsel %vm2359, %v10157, %v10161
        %v10164 = vshrl.u32 %v10033, 16
        %v10166 = vshll.u32 %v10033, 16
        %v10168 = vrot.slane %v10166, 1
        %v10169 = vor.u32 %v10164, %v10168
        %v10171 = vshll.u32 %v10034, 16
        %v10173 = vrot.slane %v10171, 1
        %v10174 = vsel %vm2359, %v10169, %v10173
        %v10175 = vshrl.u32 %v10034, 16
        %v10177 = vor.u32 %v10175, %v10173
        %v10179 = vshll.u32 %v10060, 16
        %v10181 = vrot.slane %v10179, 1
        %v10182 = vsel %vm2359, %v10177, %v10181
        %v10184 = vshrl.u32 %v10035, 16
        %v10186 = vshll.u32 %v10035, 16
        %v10188 = vrot.slane %v10186, 1
        %v10189 = vor.u32 %v10184, %v10188
        %v10191 = vshll.u32 %v10036, 16
        %v10193 = vrot.slane %v10191, 1
        %v10194 = vsel %vm2359, %v10189, %v10193
        %v10195 = vshrl.u32 %v10036, 16
        %v10197 = vor.u32 %v10195, %v10193
        %v10199 = vshll.u32 %v10061, 16
        %v10201 = vrot.slane %v10199, 1
        %v10202 = vsel %vm2359, %v10197, %v10201
        %v10204 = vshrl.u32 %v10037, 16
        %v10206 = vshll.u32 %v10037, 16
        %v10208 = vrot.slane %v10206, 1
        %v10209 = vor.u32 %v10204, %v10208
        %v10211 = vshll.u32 %v10038, 16
        %v10213 = vrot.slane %v10211, 1
        %v10214 = vsel %vm2359, %v10209, %v10213
        %v10215 = vshrl.u32 %v10038, 16
        %v10217 = vor.u32 %v10215, %v10213
        %v10219 = vshll.u32 %v10062, 16
        %v10221 = vrot.slane %v10219, 1
        %v10222 = vsel %vm2359, %v10217, %v10221
        %10223 = vrot.lane.b32.xlu0 %v10074, 3
        %v10224 = vpop.permute.xlu0 %10223
        %10225 = vrot.lane.b32.xlu0 %v10082, 3
        %v10226 = vpop.permute.xlu0 %10225
        %10227 = vrot.lane.b32.xlu0 %v10094, 3
        %v10228 = vpop.permute.xlu0 %10227
        %10229 = vrot.lane.b32.xlu0 %v10102, 3
        %v10230 = vpop.permute.xlu0 %10229
        %10231 = vrot.lane.b32.xlu0 %v10114, 3
        %v10232 = vpop.permute.xlu0 %10231
        %10233 = vrot.lane.b32.xlu0 %v10122, 3
        %v10234 = vpop.permute.xlu0 %10233
        %10235 = vrot.lane.b32.xlu0 %v10134, 3
        %v10236 = vpop.permute.xlu0 %10235
        %10237 = vrot.lane.b32.xlu0 %v10142, 3
        %v10238 = vpop.permute.xlu0 %10237
        %10239 = vrot.lane.b32.xlu0 %v10154, 3
        %v10240 = vpop.permute.xlu0 %10239
        %10241 = vrot.lane.b32.xlu0 %v10162, 3
        %v10242 = vpop.permute.xlu0 %10241
        %10243 = vrot.lane.b32.xlu0 %v10174, 3
        %v10244 = vpop.permute.xlu0 %10243
        %10245 = vrot.lane.b32.xlu0 %v10182, 3
        %v10246 = vpop.permute.xlu0 %10245
        %10247 = vrot.lane.b32.xlu0 %v10194, 3
        %v10248 = vpop.permute.xlu0 %10247
        %10249 = vrot.lane.b32.xlu0 %v10202, 3
        %v10250 = vpop.permute.xlu0 %10249
        %10251 = vrot.lane.b32.xlu0 %v10214, 3
        %v10252 = vpop.permute.xlu0 %10251
        %10253 = vrot.lane.b32.xlu0 %v10222, 3
        %v10254 = vpop.permute.xlu0 %10253
        %v10255 = vrot.slane %v10023, 1
        %v10256 = vrot.slane %v10024, 1
        %v10257 = vsel %vm2552, %v10255, %v10256
        %v10258 = vrot.slane %v10055, 1
        %v10259 = vsel %vm2552, %v10256, %v10258
        %v10260 = vrot.slane %v10025, 1
        %v10261 = vrot.slane %v10026, 1
        %v10262 = vsel %vm2552, %v10260, %v10261
        %v10263 = vrot.slane %v10056, 1
        %v10264 = vsel %vm2552, %v10261, %v10263
        %v10265 = vrot.slane %v10027, 1
        %v10266 = vrot.slane %v10028, 1
        %v10267 = vsel %vm2552, %v10265, %v10266
        %v10268 = vrot.slane %v10057, 1
        %v10269 = vsel %vm2552, %v10266, %v10268
        %v10270 = vrot.slane %v10029, 1
        %v10271 = vrot.slane %v10030, 1
        %v10272 = vsel %vm2552, %v10270, %v10271
        %v10273 = vrot.slane %v10058, 1
        %v10274 = vsel %vm2552, %v10271, %v10273
        %v10275 = vrot.slane %v10031, 1
        %v10276 = vrot.slane %v10032, 1
        %v10277 = vsel %vm2552, %v10275, %v10276
        %v10278 = vrot.slane %v10059, 1
        %v10279 = vsel %vm2552, %v10276, %v10278
        %v10280 = vrot.slane %v10033, 1
        %v10281 = vrot.slane %v10034, 1
        %v10282 = vsel %vm2552, %v10280, %v10281
        %v10283 = vrot.slane %v10060, 1
        %v10284 = vsel %vm2552, %v10281, %v10283
        %v10285 = vrot.slane %v10035, 1
        %v10286 = vrot.slane %v10036, 1
        %v10287 = vsel %vm2552, %v10285, %v10286
        %v10288 = vrot.slane %v10061, 1
        %v10289 = vsel %vm2552, %v10286, %v10288
        %v10290 = vrot.slane %v10037, 1
        %v10291 = vrot.slane %v10038, 1
        %v10292 = vsel %vm2552, %v10290, %v10291
        %v10293 = vrot.slane %v10062, 1
        %v10294 = vsel %vm2552, %v10291, %v10293
        %10295 = vrot.lane.b32.xlu0 %v10257, 6
        %v10296 = vpop.permute.xlu0 %10295
        %10297 = vrot.lane.b32.xlu0 %v10259, 6
        %v10298 = vpop.permute.xlu0 %10297
        %10299 = vrot.lane.b32.xlu0 %v10262, 6
        %v10300 = vpop.permute.xlu0 %10299
        %10301 = vrot.lane.b32.xlu0 %v10264, 6
        %v10302 = vpop.permute.xlu0 %10301
        %10303 = vrot.lane.b32.xlu0 %v10267, 6
        %v10304 = vpop.permute.xlu0 %10303
        %10305 = vrot.lane.b32.xlu0 %v10269, 6
        %v10306 = vpop.permute.xlu0 %10305
        %10307 = vrot.lane.b32.xlu0 %v10272, 6
        %v10308 = vpop.permute.xlu0 %10307
        %10309 = vrot.lane.b32.xlu0 %v10274, 6
        %v10310 = vpop.permute.xlu0 %10309
        %10311 = vrot.lane.b32.xlu0 %v10277, 6
        %v10312 = vpop.permute.xlu0 %10311
        %10313 = vrot.lane.b32.xlu0 %v10279, 6
        %v10314 = vpop.permute.xlu0 %10313
        %10315 = vrot.lane.b32.xlu0 %v10282, 6
        %v10316 = vpop.permute.xlu0 %10315
        %10317 = vrot.lane.b32.xlu0 %v10284, 6
        %v10318 = vpop.permute.xlu0 %10317
        %10319 = vrot.lane.b32.xlu0 %v10287, 6
        %v10320 = vpop.permute.xlu0 %10319
        %10321 = vrot.lane.b32.xlu0 %v10289, 6
        %v10322 = vpop.permute.xlu0 %10321
        %10323 = vrot.lane.b32.xlu0 %v10292, 6
        %v10324 = vpop.permute.xlu0 %10323
        %10325 = vrot.lane.b32.xlu0 %v10294, 6
        %v10326 = vpop.permute.xlu0 %10325
        %v10359 = vunpack.c.l.b16 %v9878
        %v10360 = vunpack.c.l.b16 %v9879
        %v10361 = vunpack.c.l.b16 %v9880
        %v10362 = vunpack.c.l.b16 %v9881
        %v10363 = vunpack.c.l.b16 %v9883
        %v10364 = vunpack.c.l.b16 %v9884
        %v10365 = vunpack.c.l.b16 %v9885
        %v10366 = vunpack.c.l.b16 %v9886
        %v10367 = vunpack.c.l.b16 %v9888
        %v10368 = vunpack.c.l.b16 %v9889
        %v10369 = vunpack.c.l.b16 %v9890
        %v10370 = vunpack.c.l.b16 %v9891
        %v10371 = vunpack.c.l.b16 %v9893
        %v10372 = vunpack.c.l.b16 %v9894
        %v10373 = vunpack.c.l.b16 %v9895
        %v10374 = vunpack.c.l.b16 %v9896
        %v10375 = vunpack.c.l.b16 %v9898
        %v10376 = vunpack.c.l.b16 %v9899
        %v10377 = vunpack.c.l.b16 %v9900
        %v10378 = vunpack.c.l.b16 %v9901
        %v10379 = vunpack.c.l.b16 %v9903
        %v10380 = vunpack.c.l.b16 %v9904
        %v10381 = vunpack.c.l.b16 %v9905
        %v10382 = vunpack.c.l.b16 %v9906
        %v10383 = vunpack.c.l.b16 %v9908
        %v10384 = vunpack.c.l.b16 %v9909
        %v10385 = vunpack.c.l.b16 %v9910
        %v10386 = vunpack.c.l.b16 %v9911
        %v10387 = vunpack.c.l.b16 %v9913
        %v10388 = vunpack.c.l.b16 %v9914
        %v10389 = vunpack.c.l.b16 %v9915
        %v10390 = vunpack.c.l.b16 %v9916
        %v10391 = vpack.c.b16 %v10360, %v10359
        %v10392 = vpack.c.b16 %v10362, %v10361
        %v10393 = vpack.c.b16 %v10364, %v10363
        %v10394 = vpack.c.b16 %v10366, %v10365
        %v10395 = vpack.c.b16 %v10368, %v10367
        %v10396 = vpack.c.b16 %v10370, %v10369
        %v10397 = vpack.c.b16 %v10372, %v10371
        %v10398 = vpack.c.b16 %v10374, %v10373
        %v10399 = vpack.c.b16 %v10376, %v10375
        %v10400 = vpack.c.b16 %v10378, %v10377
        %v10401 = vpack.c.b16 %v10380, %v10379
        %v10402 = vpack.c.b16 %v10382, %v10381
        %v10403 = vpack.c.b16 %v10384, %v10383
        %v10404 = vpack.c.b16 %v10386, %v10385
        %v10405 = vpack.c.b16 %v10388, %v10387
        %v10406 = vpack.c.b16 %v10390, %v10389
        %10407 = vrot.lane.b32.xlu0 %v10391, 9
        %v10408 = vpop.permute.xlu0 %10407
        %10409 = vrot.lane.b32.xlu0 %v10392, 9
        %v10410 = vpop.permute.xlu0 %10409
        %10411 = vrot.lane.b32.xlu0 %v10393, 9
        %v10412 = vpop.permute.xlu0 %10411
        %10413 = vrot.lane.b32.xlu0 %v10394, 9
        %v10414 = vpop.permute.xlu0 %10413
        %10415 = vrot.lane.b32.xlu0 %v10395, 9
        %v10416 = vpop.permute.xlu0 %10415
        %10417 = vrot.lane.b32.xlu0 %v10396, 9
        %v10418 = vpop.permute.xlu0 %10417
        %10419 = vrot.lane.b32.xlu0 %v10397, 9
        %v10420 = vpop.permute.xlu0 %10419
        %10421 = vrot.lane.b32.xlu0 %v10398, 9
        %v10422 = vpop.permute.xlu0 %10421
        %10423 = vrot.lane.b32.xlu0 %v10399, 9
        %v10424 = vpop.permute.xlu0 %10423
        %10425 = vrot.lane.b32.xlu0 %v10400, 9
        %v10426 = vpop.permute.xlu0 %10425
        %10427 = vrot.lane.b32.xlu0 %v10401, 9
        %v10428 = vpop.permute.xlu0 %10427
        %10429 = vrot.lane.b32.xlu0 %v10402, 9
        %v10430 = vpop.permute.xlu0 %10429
        %10431 = vrot.lane.b32.xlu0 %v10403, 9
        %v10432 = vpop.permute.xlu0 %10431
        %10433 = vrot.lane.b32.xlu0 %v10404, 9
        %v10434 = vpop.permute.xlu0 %10433
        %10435 = vrot.lane.b32.xlu0 %v10405, 9
        %v10436 = vpop.permute.xlu0 %10435
        %10437 = vrot.lane.b32.xlu0 %v10406, 9
        %v10438 = vpop.permute.xlu0 %10437
        %v10447 = vunpack.c.l.b16 %v9882
        %v10448 = vunpack.c.l.b16 %v9887
        %v10449 = vunpack.c.l.b16 %v9892
        %v10450 = vunpack.c.l.b16 %v9897
        %v10451 = vunpack.c.l.b16 %v9902
        %v10452 = vunpack.c.l.b16 %v9907
        %v10453 = vunpack.c.l.b16 %v9912
        %v10454 = vunpack.c.l.b16 %v9917
        %v10455 = vpack.c.b16 %v10447, %v10447
        %v10456 = vpack.c.b16 %v10448, %v10448
        %v10457 = vpack.c.b16 %v10449, %v10449
        %v10458 = vpack.c.b16 %v10450, %v10450
        %v10459 = vpack.c.b16 %v10451, %v10451
        %v10460 = vpack.c.b16 %v10452, %v10452
        %v10461 = vpack.c.b16 %v10453, %v10453
        %v10462 = vpack.c.b16 %v10454, %v10454
        %v10464 = vshrl.u32 %v10391, 16
        %v10466 = vshll.u32 %v10391, 16
        %v10468 = vrot.slane %v10466, 1
        %v10469 = vor.u32 %v10464, %v10468
        %v10471 = vshll.u32 %v10392, 16
        %v10473 = vrot.slane %v10471, 1
        %v10474 = vsel %vm2359, %v10469, %v10473
        %v10475 = vshrl.u32 %v10392, 16
        %v10477 = vor.u32 %v10475, %v10473
        %v10479 = vshll.u32 %v10455, 16
        %v10481 = vrot.slane %v10479, 1
        %v10482 = vsel %vm2359, %v10477, %v10481
        %v10484 = vshrl.u32 %v10393, 16
        %v10486 = vshll.u32 %v10393, 16
        %v10488 = vrot.slane %v10486, 1
        %v10489 = vor.u32 %v10484, %v10488
        %v10491 = vshll.u32 %v10394, 16
        %v10493 = vrot.slane %v10491, 1
        %v10494 = vsel %vm2359, %v10489, %v10493
        %v10495 = vshrl.u32 %v10394, 16
        %v10497 = vor.u32 %v10495, %v10493
        %v10499 = vshll.u32 %v10456, 16
        %v10501 = vrot.slane %v10499, 1
        %v10502 = vsel %vm2359, %v10497, %v10501
        %v10504 = vshrl.u32 %v10395, 16
        %v10506 = vshll.u32 %v10395, 16
        %v10508 = vrot.slane %v10506, 1
        %v10509 = vor.u32 %v10504, %v10508
        %v10511 = vshll.u32 %v10396, 16
        %v10513 = vrot.slane %v10511, 1
        %v10514 = vsel %vm2359, %v10509, %v10513
        %v10515 = vshrl.u32 %v10396, 16
        %v10517 = vor.u32 %v10515, %v10513
        %v10519 = vshll.u32 %v10457, 16
        %v10521 = vrot.slane %v10519, 1
        %v10522 = vsel %vm2359, %v10517, %v10521
        %v10524 = vshrl.u32 %v10397, 16
        %v10526 = vshll.u32 %v10397, 16
        %v10528 = vrot.slane %v10526, 1
        %v10529 = vor.u32 %v10524, %v10528
        %v10531 = vshll.u32 %v10398, 16
        %v10533 = vrot.slane %v10531, 1
        %v10534 = vsel %vm2359, %v10529, %v10533
        %v10535 = vshrl.u32 %v10398, 16
        %v10537 = vor.u32 %v10535, %v10533
        %v10539 = vshll.u32 %v10458, 16
        %v10541 = vrot.slane %v10539, 1
        %v10542 = vsel %vm2359, %v10537, %v10541
        %v10544 = vshrl.u32 %v10399, 16
        %v10546 = vshll.u32 %v10399, 16
        %v10548 = vrot.slane %v10546, 1
        %v10549 = vor.u32 %v10544, %v10548
        %v10551 = vshll.u32 %v10400, 16
        %v10553 = vrot.slane %v10551, 1
        %v10554 = vsel %vm2359, %v10549, %v10553
        %v10555 = vshrl.u32 %v10400, 16
        %v10557 = vor.u32 %v10555, %v10553
        %v10559 = vshll.u32 %v10459, 16
        %v10561 = vrot.slane %v10559, 1
        %v10562 = vsel %vm2359, %v10557, %v10561
        %v10564 = vshrl.u32 %v10401, 16
        %v10566 = vshll.u32 %v10401, 16
        %v10568 = vrot.slane %v10566, 1
        %v10569 = vor.u32 %v10564, %v10568
        %v10571 = vshll.u32 %v10402, 16
        %v10573 = vrot.slane %v10571, 1
        %v10574 = vsel %vm2359, %v10569, %v10573
        %v10575 = vshrl.u32 %v10402, 16
        %v10577 = vor.u32 %v10575, %v10573
        %v10579 = vshll.u32 %v10460, 16
        %v10581 = vrot.slane %v10579, 1
        %v10582 = vsel %vm2359, %v10577, %v10581
        %v10584 = vshrl.u32 %v10403, 16
        %v10586 = vshll.u32 %v10403, 16
        %v10588 = vrot.slane %v10586, 1
        %v10589 = vor.u32 %v10584, %v10588
        %v10591 = vshll.u32 %v10404, 16
        %v10593 = vrot.slane %v10591, 1
        %v10594 = vsel %vm2359, %v10589, %v10593
        %v10595 = vshrl.u32 %v10404, 16
        %v10597 = vor.u32 %v10595, %v10593
        %v10599 = vshll.u32 %v10461, 16
        %v10601 = vrot.slane %v10599, 1
        %v10602 = vsel %vm2359, %v10597, %v10601
        %v10604 = vshrl.u32 %v10405, 16
        %v10606 = vshll.u32 %v10405, 16
        %v10608 = vrot.slane %v10606, 1
        %v10609 = vor.u32 %v10604, %v10608
        %v10611 = vshll.u32 %v10406, 16
        %v10613 = vrot.slane %v10611, 1
        %v10614 = vsel %vm2359, %v10609, %v10613
        %v10615 = vshrl.u32 %v10406, 16
        %v10617 = vor.u32 %v10615, %v10613
        %v10619 = vshll.u32 %v10462, 16
        %v10621 = vrot.slane %v10619, 1
        %v10622 = vsel %vm2359, %v10617, %v10621
        %10623 = vrot.lane.b32.xlu0 %v10474, 12
        %v10624 = vpop.permute.xlu0 %10623
        %10625 = vrot.lane.b32.xlu0 %v10482, 12
        %v10626 = vpop.permute.xlu0 %10625
        %10627 = vrot.lane.b32.xlu0 %v10494, 12
        %v10628 = vpop.permute.xlu0 %10627
        %10629 = vrot.lane.b32.xlu0 %v10502, 12
        %v10630 = vpop.permute.xlu0 %10629
        %10631 = vrot.lane.b32.xlu0 %v10514, 12
        %v10632 = vpop.permute.xlu0 %10631
        %10633 = vrot.lane.b32.xlu0 %v10522, 12
        %v10634 = vpop.permute.xlu0 %10633
        %10635 = vrot.lane.b32.xlu0 %v10534, 12
        %v10636 = vpop.permute.xlu0 %10635
        %10637 = vrot.lane.b32.xlu0 %v10542, 12
        %v10638 = vpop.permute.xlu0 %10637
        %10639 = vrot.lane.b32.xlu0 %v10554, 12
        %v10640 = vpop.permute.xlu0 %10639
        %10641 = vrot.lane.b32.xlu0 %v10562, 12
        %v10642 = vpop.permute.xlu0 %10641
        %10643 = vrot.lane.b32.xlu0 %v10574, 12
        %v10644 = vpop.permute.xlu0 %10643
        %10645 = vrot.lane.b32.xlu0 %v10582, 12
        %v10646 = vpop.permute.xlu0 %10645
        %10647 = vrot.lane.b32.xlu0 %v10594, 12
        %v10648 = vpop.permute.xlu0 %10647
        %10649 = vrot.lane.b32.xlu0 %v10602, 12
        %v10650 = vpop.permute.xlu0 %10649
        %10651 = vrot.lane.b32.xlu0 %v10614, 12
        %v10652 = vpop.permute.xlu0 %10651
        %10653 = vrot.lane.b32.xlu0 %v10622, 12
        %v10654 = vpop.permute.xlu0 %10653
        %v10655 = vrot.slane %v10391, 1
        %v10656 = vrot.slane %v10392, 1
        %v10657 = vsel %vm2552, %v10655, %v10656
        %v10658 = vrot.slane %v10455, 1
        %v10659 = vsel %vm2552, %v10656, %v10658
        %v10660 = vrot.slane %v10393, 1
        %v10661 = vrot.slane %v10394, 1
        %v10662 = vsel %vm2552, %v10660, %v10661
        %v10663 = vrot.slane %v10456, 1
        %v10664 = vsel %vm2552, %v10661, %v10663
        %v10665 = vrot.slane %v10395, 1
        %v10666 = vrot.slane %v10396, 1
        %v10667 = vsel %vm2552, %v10665, %v10666
        %v10668 = vrot.slane %v10457, 1
        %v10669 = vsel %vm2552, %v10666, %v10668
        %v10670 = vrot.slane %v10397, 1
        %v10671 = vrot.slane %v10398, 1
        %v10672 = vsel %vm2552, %v10670, %v10671
        %v10673 = vrot.slane %v10458, 1
        %v10674 = vsel %vm2552, %v10671, %v10673
        %v10675 = vrot.slane %v10399, 1
        %v10676 = vrot.slane %v10400, 1
        %v10677 = vsel %vm2552, %v10675, %v10676
        %v10678 = vrot.slane %v10459, 1
        %v10679 = vsel %vm2552, %v10676, %v10678
        %v10680 = vrot.slane %v10401, 1
        %v10681 = vrot.slane %v10402, 1
        %v10682 = vsel %vm2552, %v10680, %v10681
        %v10683 = vrot.slane %v10460, 1
        %v10684 = vsel %vm2552, %v10681, %v10683
        %v10685 = vrot.slane %v10403, 1
        %v10686 = vrot.slane %v10404, 1
        %v10687 = vsel %vm2552, %v10685, %v10686
        %v10688 = vrot.slane %v10461, 1
        %v10689 = vsel %vm2552, %v10686, %v10688
        %v10690 = vrot.slane %v10405, 1
        %v10691 = vrot.slane %v10406, 1
        %v10692 = vsel %vm2552, %v10690, %v10691
        %v10693 = vrot.slane %v10462, 1
        %v10694 = vsel %vm2552, %v10691, %v10693
        %10695 = vrot.lane.b32.xlu0 %v10657, 15
        %v10696 = vpop.permute.xlu0 %10695
        %10697 = vrot.lane.b32.xlu0 %v10659, 15
        %v10698 = vpop.permute.xlu0 %10697
        %10699 = vrot.lane.b32.xlu0 %v10662, 15
        %v10700 = vpop.permute.xlu0 %10699
        %10701 = vrot.lane.b32.xlu0 %v10664, 15
        %v10702 = vpop.permute.xlu0 %10701
        %10703 = vrot.lane.b32.xlu0 %v10667, 15
        %v10704 = vpop.permute.xlu0 %10703
        %10705 = vrot.lane.b32.xlu0 %v10669, 15
        %v10706 = vpop.permute.xlu0 %10705
        %10707 = vrot.lane.b32.xlu0 %v10672, 15
        %v10708 = vpop.permute.xlu0 %10707
        %10709 = vrot.lane.b32.xlu0 %v10674, 15
        %v10710 = vpop.permute.xlu0 %10709
        %10711 = vrot.lane.b32.xlu0 %v10677, 15
        %v10712 = vpop.permute.xlu0 %10711
        %10713 = vrot.lane.b32.xlu0 %v10679, 15
        %v10714 = vpop.permute.xlu0 %10713
        %10715 = vrot.lane.b32.xlu0 %v10682, 15
        %v10716 = vpop.permute.xlu0 %10715
        %10717 = vrot.lane.b32.xlu0 %v10684, 15
        %v10718 = vpop.permute.xlu0 %10717
        %10719 = vrot.lane.b32.xlu0 %v10687, 15
        %v10720 = vpop.permute.xlu0 %10719
        %10721 = vrot.lane.b32.xlu0 %v10689, 15
        %v10722 = vpop.permute.xlu0 %10721
        %10723 = vrot.lane.b32.xlu0 %v10692, 15
        %v10724 = vpop.permute.xlu0 %10723
        %10725 = vrot.lane.b32.xlu0 %v10694, 15
        %v10726 = vpop.permute.xlu0 %10725
        %v10759 = vunpack.c.l.b16 %v9919
        %v10760 = vunpack.c.l.b16 %v9920
        %v10761 = vunpack.c.l.b16 %v9921
        %v10762 = vunpack.c.l.b16 %v9922
        %v10763 = vunpack.c.l.b16 %v9924
        %v10764 = vunpack.c.l.b16 %v9925
        %v10765 = vunpack.c.l.b16 %v9926
        %v10766 = vunpack.c.l.b16 %v9927
        %v10767 = vunpack.c.l.b16 %v9929
        %v10768 = vunpack.c.l.b16 %v9930
        %v10769 = vunpack.c.l.b16 %v9931
        %v10770 = vunpack.c.l.b16 %v9932
        %v10771 = vunpack.c.l.b16 %v9934
        %v10772 = vunpack.c.l.b16 %v9935
        %v10773 = vunpack.c.l.b16 %v9936
        %v10774 = vunpack.c.l.b16 %v9937
        %v10775 = vunpack.c.l.b16 %v9939
        %v10776 = vunpack.c.l.b16 %v9940
        %v10777 = vunpack.c.l.b16 %v9941
        %v10778 = vunpack.c.l.b16 %v9942
        %v10779 = vunpack.c.l.b16 %v9944
        %v10780 = vunpack.c.l.b16 %v9945
        %v10781 = vunpack.c.l.b16 %v9946
        %v10782 = vunpack.c.l.b16 %v9947
        %v10783 = vunpack.c.l.b16 %v9949
        %v10784 = vunpack.c.l.b16 %v9950
        %v10785 = vunpack.c.l.b16 %v9951
        %v10786 = vunpack.c.l.b16 %v9952
        %v10787 = vunpack.c.l.b16 %v9954
        %v10788 = vunpack.c.l.b16 %v9955
        %v10789 = vunpack.c.l.b16 %v9956
        %v10790 = vunpack.c.l.b16 %v9957
        %v10791 = vpack.c.b16 %v10760, %v10759
        %v10792 = vpack.c.b16 %v10762, %v10761
        %v10793 = vpack.c.b16 %v10764, %v10763
        %v10794 = vpack.c.b16 %v10766, %v10765
        %v10795 = vpack.c.b16 %v10768, %v10767
        %v10796 = vpack.c.b16 %v10770, %v10769
        %v10797 = vpack.c.b16 %v10772, %v10771
        %v10798 = vpack.c.b16 %v10774, %v10773
        %v10799 = vpack.c.b16 %v10776, %v10775
        %v10800 = vpack.c.b16 %v10778, %v10777
        %v10801 = vpack.c.b16 %v10780, %v10779
        %v10802 = vpack.c.b16 %v10782, %v10781
        %v10803 = vpack.c.b16 %v10784, %v10783
        %v10804 = vpack.c.b16 %v10786, %v10785
        %v10805 = vpack.c.b16 %v10788, %v10787
        %v10806 = vpack.c.b16 %v10790, %v10789
        %10807 = vrot.lane.b32.xlu0 %v10791, 18
        %v10808 = vpop.permute.xlu0 %10807
        %10809 = vrot.lane.b32.xlu0 %v10792, 18
        %v10810 = vpop.permute.xlu0 %10809
        %10811 = vrot.lane.b32.xlu0 %v10793, 18
        %v10812 = vpop.permute.xlu0 %10811
        %10813 = vrot.lane.b32.xlu0 %v10794, 18
        %v10814 = vpop.permute.xlu0 %10813
        %10815 = vrot.lane.b32.xlu0 %v10795, 18
        %v10816 = vpop.permute.xlu0 %10815
        %10817 = vrot.lane.b32.xlu0 %v10796, 18
        %v10818 = vpop.permute.xlu0 %10817
        %10819 = vrot.lane.b32.xlu0 %v10797, 18
        %v10820 = vpop.permute.xlu0 %10819
        %10821 = vrot.lane.b32.xlu0 %v10798, 18
        %v10822 = vpop.permute.xlu0 %10821
        %10823 = vrot.lane.b32.xlu0 %v10799, 18
        %v10824 = vpop.permute.xlu0 %10823
        %10825 = vrot.lane.b32.xlu0 %v10800, 18
        %v10826 = vpop.permute.xlu0 %10825
        %10827 = vrot.lane.b32.xlu0 %v10801, 18
        %v10828 = vpop.permute.xlu0 %10827
        %10829 = vrot.lane.b32.xlu0 %v10802, 18
        %v10830 = vpop.permute.xlu0 %10829
        %10831 = vrot.lane.b32.xlu0 %v10803, 18
        %v10832 = vpop.permute.xlu0 %10831
        %10833 = vrot.lane.b32.xlu0 %v10804, 18
        %v10834 = vpop.permute.xlu0 %10833
        %10835 = vrot.lane.b32.xlu0 %v10805, 18
        %v10836 = vpop.permute.xlu0 %10835
        %10837 = vrot.lane.b32.xlu0 %v10806, 18
        %v10838 = vpop.permute.xlu0 %10837
        %v10847 = vunpack.c.l.b16 %v9923
        %v10848 = vunpack.c.l.b16 %v9928
        %v10849 = vunpack.c.l.b16 %v9933
        %v10850 = vunpack.c.l.b16 %v9938
        %v10851 = vunpack.c.l.b16 %v9943
        %v10852 = vunpack.c.l.b16 %v9948
        %v10853 = vunpack.c.l.b16 %v9953
        %v10854 = vunpack.c.l.b16 %v9958
        %v10855 = vpack.c.b16 %v10847, %v10847
        %v10856 = vpack.c.b16 %v10848, %v10848
        %v10857 = vpack.c.b16 %v10849, %v10849
        %v10858 = vpack.c.b16 %v10850, %v10850
        %v10859 = vpack.c.b16 %v10851, %v10851
        %v10860 = vpack.c.b16 %v10852, %v10852
        %v10861 = vpack.c.b16 %v10853, %v10853
        %v10862 = vpack.c.b16 %v10854, %v10854
        %v10864 = vshrl.u32 %v10791, 16
        %v10866 = vshll.u32 %v10791, 16
        %v10868 = vrot.slane %v10866, 1
        %v10869 = vor.u32 %v10864, %v10868
        %v10871 = vshll.u32 %v10792, 16
        %v10873 = vrot.slane %v10871, 1
        %v10874 = vsel %vm2359, %v10869, %v10873
        %v10875 = vshrl.u32 %v10792, 16
        %v10877 = vor.u32 %v10875, %v10873
        %v10879 = vshll.u32 %v10855, 16
        %v10881 = vrot.slane %v10879, 1
        %v10882 = vsel %vm2359, %v10877, %v10881
        %v10884 = vshrl.u32 %v10793, 16
        %v10886 = vshll.u32 %v10793, 16
        %v10888 = vrot.slane %v10886, 1
        %v10889 = vor.u32 %v10884, %v10888
        %v10891 = vshll.u32 %v10794, 16
        %v10893 = vrot.slane %v10891, 1
        %v10894 = vsel %vm2359, %v10889, %v10893
        %v10895 = vshrl.u32 %v10794, 16
        %v10897 = vor.u32 %v10895, %v10893
        %v10899 = vshll.u32 %v10856, 16
        %v10901 = vrot.slane %v10899, 1
        %v10902 = vsel %vm2359, %v10897, %v10901
        %v10904 = vshrl.u32 %v10795, 16
        %v10906 = vshll.u32 %v10795, 16
        %v10908 = vrot.slane %v10906, 1
        %v10909 = vor.u32 %v10904, %v10908
        %v10911 = vshll.u32 %v10796, 16
        %v10913 = vrot.slane %v10911, 1
        %v10914 = vsel %vm2359, %v10909, %v10913
        %v10915 = vshrl.u32 %v10796, 16
        %v10917 = vor.u32 %v10915, %v10913
        %v10919 = vshll.u32 %v10857, 16
        %v10921 = vrot.slane %v10919, 1
        %v10922 = vsel %vm2359, %v10917, %v10921
        %v10924 = vshrl.u32 %v10797, 16
        %v10926 = vshll.u32 %v10797, 16
        %v10928 = vrot.slane %v10926, 1
        %v10929 = vor.u32 %v10924, %v10928
        %v10931 = vshll.u32 %v10798, 16
        %v10933 = vrot.slane %v10931, 1
        %v10934 = vsel %vm2359, %v10929, %v10933
        %v10935 = vshrl.u32 %v10798, 16
        %v10937 = vor.u32 %v10935, %v10933
        %v10939 = vshll.u32 %v10858, 16
        %v10941 = vrot.slane %v10939, 1
        %v10942 = vsel %vm2359, %v10937, %v10941
        %v10944 = vshrl.u32 %v10799, 16
        %v10946 = vshll.u32 %v10799, 16
        %v10948 = vrot.slane %v10946, 1
        %v10949 = vor.u32 %v10944, %v10948
        %v10951 = vshll.u32 %v10800, 16
        %v10953 = vrot.slane %v10951, 1
        %v10954 = vsel %vm2359, %v10949, %v10953
        %v10955 = vshrl.u32 %v10800, 16
        %v10957 = vor.u32 %v10955, %v10953
        %v10959 = vshll.u32 %v10859, 16
        %v10961 = vrot.slane %v10959, 1
        %v10962 = vsel %vm2359, %v10957, %v10961
        %v10964 = vshrl.u32 %v10801, 16
        %v10966 = vshll.u32 %v10801, 16
        %v10968 = vrot.slane %v10966, 1
        %v10969 = vor.u32 %v10964, %v10968
        %v10971 = vshll.u32 %v10802, 16
        %v10973 = vrot.slane %v10971, 1
        %v10974 = vsel %vm2359, %v10969, %v10973
        %v10975 = vshrl.u32 %v10802, 16
        %v10977 = vor.u32 %v10975, %v10973
        %v10979 = vshll.u32 %v10860, 16
        %v10981 = vrot.slane %v10979, 1
        %v10982 = vsel %vm2359, %v10977, %v10981
        %v10984 = vshrl.u32 %v10803, 16
        %v10986 = vshll.u32 %v10803, 16
        %v10988 = vrot.slane %v10986, 1
        %v10989 = vor.u32 %v10984, %v10988
        %v10991 = vshll.u32 %v10804, 16
        %v10993 = vrot.slane %v10991, 1
        %v10994 = vsel %vm2359, %v10989, %v10993
        %v10995 = vshrl.u32 %v10804, 16
        %v10997 = vor.u32 %v10995, %v10993
        %v10999 = vshll.u32 %v10861, 16
        %v11001 = vrot.slane %v10999, 1
        %v11002 = vsel %vm2359, %v10997, %v11001
        %v11004 = vshrl.u32 %v10805, 16
        %v11006 = vshll.u32 %v10805, 16
        %v11008 = vrot.slane %v11006, 1
        %v11009 = vor.u32 %v11004, %v11008
        %v11011 = vshll.u32 %v10806, 16
        %v11013 = vrot.slane %v11011, 1
        %v11014 = vsel %vm2359, %v11009, %v11013
        %v11015 = vshrl.u32 %v10806, 16
        %v11017 = vor.u32 %v11015, %v11013
        %v11019 = vshll.u32 %v10862, 16
        %v11021 = vrot.slane %v11019, 1
        %v11022 = vsel %vm2359, %v11017, %v11021
        %11023 = vrot.lane.b32.xlu0 %v10874, 21
        %v11024 = vpop.permute.xlu0 %11023
        %11025 = vrot.lane.b32.xlu0 %v10882, 21
        %v11026 = vpop.permute.xlu0 %11025
        %11027 = vrot.lane.b32.xlu0 %v10894, 21
        %v11028 = vpop.permute.xlu0 %11027
        %11029 = vrot.lane.b32.xlu0 %v10902, 21
        %v11030 = vpop.permute.xlu0 %11029
        %11031 = vrot.lane.b32.xlu0 %v10914, 21
        %v11032 = vpop.permute.xlu0 %11031
        %11033 = vrot.lane.b32.xlu0 %v10922, 21
        %v11034 = vpop.permute.xlu0 %11033
        %11035 = vrot.lane.b32.xlu0 %v10934, 21
        %v11036 = vpop.permute.xlu0 %11035
        %11037 = vrot.lane.b32.xlu0 %v10942, 21
        %v11038 = vpop.permute.xlu0 %11037
        %11039 = vrot.lane.b32.xlu0 %v10954, 21
        %v11040 = vpop.permute.xlu0 %11039
        %11041 = vrot.lane.b32.xlu0 %v10962, 21
        %v11042 = vpop.permute.xlu0 %11041
        %11043 = vrot.lane.b32.xlu0 %v10974, 21
        %v11044 = vpop.permute.xlu0 %11043
        %11045 = vrot.lane.b32.xlu0 %v10982, 21
        %v11046 = vpop.permute.xlu0 %11045
        %11047 = vrot.lane.b32.xlu0 %v10994, 21
        %v11048 = vpop.permute.xlu0 %11047
        %11049 = vrot.lane.b32.xlu0 %v11002, 21
        %v11050 = vpop.permute.xlu0 %11049
        %11051 = vrot.lane.b32.xlu0 %v11014, 21
        %v11052 = vpop.permute.xlu0 %11051
        %11053 = vrot.lane.b32.xlu0 %v11022, 21
        %v11054 = vpop.permute.xlu0 %11053
        %v11055 = vrot.slane %v10791, 1
        %v11056 = vrot.slane %v10792, 1
        %v11057 = vsel %vm2552, %v11055, %v11056
        %v11058 = vrot.slane %v10855, 1
        %v11059 = vsel %vm2552, %v11056, %v11058
        %v11060 = vrot.slane %v10793, 1
        %v11061 = vrot.slane %v10794, 1
        %v11062 = vsel %vm2552, %v11060, %v11061
        %v11063 = vrot.slane %v10856, 1
        %v11064 = vsel %vm2552, %v11061, %v11063
        %v11065 = vrot.slane %v10795, 1
        %v11066 = vrot.slane %v10796, 1
        %v11067 = vsel %vm2552, %v11065, %v11066
        %v11068 = vrot.slane %v10857, 1
        %v11069 = vsel %vm2552, %v11066, %v11068
        %v11070 = vrot.slane %v10797, 1
        %v11071 = vrot.slane %v10798, 1
        %v11072 = vsel %vm2552, %v11070, %v11071
        %v11073 = vrot.slane %v10858, 1
        %v11074 = vsel %vm2552, %v11071, %v11073
        %v11075 = vrot.slane %v10799, 1
        %v11076 = vrot.slane %v10800, 1
        %v11077 = vsel %vm2552, %v11075, %v11076
        %v11078 = vrot.slane %v10859, 1
        %v11079 = vsel %vm2552, %v11076, %v11078
        %v11080 = vrot.slane %v10801, 1
        %v11081 = vrot.slane %v10802, 1
        %v11082 = vsel %vm2552, %v11080, %v11081
        %v11083 = vrot.slane %v10860, 1
        %v11084 = vsel %vm2552, %v11081, %v11083
        %v11085 = vrot.slane %v10803, 1
        %v11086 = vrot.slane %v10804, 1
        %v11087 = vsel %vm2552, %v11085, %v11086
        %v11088 = vrot.slane %v10861, 1
        %v11089 = vsel %vm2552, %v11086, %v11088
        %v11090 = vrot.slane %v10805, 1
        %v11091 = vrot.slane %v10806, 1
        %v11092 = vsel %vm2552, %v11090, %v11091
        %v11093 = vrot.slane %v10862, 1
        %v11094 = vsel %vm2552, %v11091, %v11093
        %11095 = vrot.lane.b32.xlu0 %v11057, 24
        %v11096 = vpop.permute.xlu0 %11095
        %11097 = vrot.lane.b32.xlu0 %v11059, 24
        %v11098 = vpop.permute.xlu0 %11097
        %11099 = vrot.lane.b32.xlu0 %v11062, 24
        %v11100 = vpop.permute.xlu0 %11099
        %11101 = vrot.lane.b32.xlu0 %v11064, 24
        %v11102 = vpop.permute.xlu0 %11101
        %11103 = vrot.lane.b32.xlu0 %v11067, 24
        %v11104 = vpop.permute.xlu0 %11103
        %11105 = vrot.lane.b32.xlu0 %v11069, 24
        %v11106 = vpop.permute.xlu0 %11105
        %11107 = vrot.lane.b32.xlu0 %v11072, 24
        %v11108 = vpop.permute.xlu0 %11107
        %11109 = vrot.lane.b32.xlu0 %v11074, 24
        %v11110 = vpop.permute.xlu0 %11109
        %11111 = vrot.lane.b32.xlu0 %v11077, 24
        %v11112 = vpop.permute.xlu0 %11111
        %11113 = vrot.lane.b32.xlu0 %v11079, 24
        %v11114 = vpop.permute.xlu0 %11113
        %11115 = vrot.lane.b32.xlu0 %v11082, 24
        %v11116 = vpop.permute.xlu0 %11115
        %11117 = vrot.lane.b32.xlu0 %v11084, 24
        %v11118 = vpop.permute.xlu0 %11117
        %11119 = vrot.lane.b32.xlu0 %v11087, 24
        %v11120 = vpop.permute.xlu0 %11119
        %11121 = vrot.lane.b32.xlu0 %v11089, 24
        %v11122 = vpop.permute.xlu0 %11121
        %11123 = vrot.lane.b32.xlu0 %v11092, 24
        %v11124 = vpop.permute.xlu0 %11123
        %11125 = vrot.lane.b32.xlu0 %v11094, 24
        %v11126 = vpop.permute.xlu0 %11125
        %v11128 = vsel %vm3425, %v10023, %v10224
        %v11130 = vsel %vm3425, %v10024, %v10226
        %v11132 = vsel %vm3425, %v10025, %v10228
        %v11134 = vsel %vm3425, %v10026, %v10230
        %v11136 = vsel %vm3425, %v10027, %v10232
        %v11138 = vsel %vm3425, %v10028, %v10234
        %v11140 = vsel %vm3425, %v10029, %v10236
        %v11142 = vsel %vm3425, %v10030, %v10238
        %v11144 = vsel %vm3425, %v10031, %v10240
        %v11146 = vsel %vm3425, %v10032, %v10242
        %v11148 = vsel %vm3425, %v10033, %v10244
        %v11150 = vsel %vm3425, %v10034, %v10246
        %v11152 = vsel %vm3425, %v10035, %v10248
        %v11154 = vsel %vm3425, %v10036, %v10250
        %v11156 = vsel %vm3425, %v10037, %v10252
        %v11158 = vsel %vm3425, %v10038, %v10254
        %v11160 = vsel %vm3458, %v11128, %v10296
        %v11162 = vsel %vm3458, %v11130, %v10298
        %v11164 = vsel %vm3458, %v11132, %v10300
        %v11166 = vsel %vm3458, %v11134, %v10302
        %v11168 = vsel %vm3458, %v11136, %v10304
        %v11170 = vsel %vm3458, %v11138, %v10306
        %v11172 = vsel %vm3458, %v11140, %v10308
        %v11174 = vsel %vm3458, %v11142, %v10310
        %v11176 = vsel %vm3458, %v11144, %v10312
        %v11178 = vsel %vm3458, %v11146, %v10314
        %v11180 = vsel %vm3458, %v11148, %v10316
        %v11182 = vsel %vm3458, %v11150, %v10318
        %v11184 = vsel %vm3458, %v11152, %v10320
        %v11186 = vsel %vm3458, %v11154, %v10322
        %v11188 = vsel %vm3458, %v11156, %v10324
        %v11190 = vsel %vm3458, %v11158, %v10326
        %v11192 = vsel %vm3491, %v11160, %v10408
        %v11194 = vsel %vm3491, %v11162, %v10410
        %v11196 = vsel %vm3491, %v11164, %v10412
        %v11198 = vsel %vm3491, %v11166, %v10414
        %v11200 = vsel %vm3491, %v11168, %v10416
        %v11202 = vsel %vm3491, %v11170, %v10418
        %v11204 = vsel %vm3491, %v11172, %v10420
        %v11206 = vsel %vm3491, %v11174, %v10422
        %v11208 = vsel %vm3491, %v11176, %v10424
        %v11210 = vsel %vm3491, %v11178, %v10426
        %v11212 = vsel %vm3491, %v11180, %v10428
        %v11214 = vsel %vm3491, %v11182, %v10430
        %v11216 = vsel %vm3491, %v11184, %v10432
        %v11218 = vsel %vm3491, %v11186, %v10434
        %v11220 = vsel %vm3491, %v11188, %v10436
        %v11222 = vsel %vm3491, %v11190, %v10438
        %v11224 = vsel %vm3524, %v11192, %v10624
        %v11226 = vsel %vm3524, %v11194, %v10626
        %v11228 = vsel %vm3524, %v11196, %v10628
        %v11230 = vsel %vm3524, %v11198, %v10630
        %v11232 = vsel %vm3524, %v11200, %v10632
        %v11234 = vsel %vm3524, %v11202, %v10634
        %v11236 = vsel %vm3524, %v11204, %v10636
        %v11238 = vsel %vm3524, %v11206, %v10638
        %v11240 = vsel %vm3524, %v11208, %v10640
        %v11242 = vsel %vm3524, %v11210, %v10642
        %v11244 = vsel %vm3524, %v11212, %v10644
        %v11246 = vsel %vm3524, %v11214, %v10646
        %v11248 = vsel %vm3524, %v11216, %v10648
        %v11250 = vsel %vm3524, %v11218, %v10650
        %v11252 = vsel %vm3524, %v11220, %v10652
        %v11254 = vsel %vm3524, %v11222, %v10654
        %v11256 = vsel %vm3557, %v11224, %v10696
        %v11258 = vsel %vm3557, %v11226, %v10698
        %v11260 = vsel %vm3557, %v11228, %v10700
        %v11262 = vsel %vm3557, %v11230, %v10702
        %v11264 = vsel %vm3557, %v11232, %v10704
        %v11266 = vsel %vm3557, %v11234, %v10706
        %v11268 = vsel %vm3557, %v11236, %v10708
        %v11270 = vsel %vm3557, %v11238, %v10710
        %v11272 = vsel %vm3557, %v11240, %v10712
        %v11274 = vsel %vm3557, %v11242, %v10714
        %v11276 = vsel %vm3557, %v11244, %v10716
        %v11278 = vsel %vm3557, %v11246, %v10718
        %v11280 = vsel %vm3557, %v11248, %v10720
        %v11282 = vsel %vm3557, %v11250, %v10722
        %v11284 = vsel %vm3557, %v11252, %v10724
        %v11286 = vsel %vm3557, %v11254, %v10726
        %v11288 = vsel %vm3590, %v11256, %v10808
        %v11290 = vsel %vm3590, %v11258, %v10810
        %v11292 = vsel %vm3590, %v11260, %v10812
        %v11294 = vsel %vm3590, %v11262, %v10814
        %v11296 = vsel %vm3590, %v11264, %v10816
        %v11298 = vsel %vm3590, %v11266, %v10818
        %v11300 = vsel %vm3590, %v11268, %v10820
        %v11302 = vsel %vm3590, %v11270, %v10822
        %v11304 = vsel %vm3590, %v11272, %v10824
        %v11306 = vsel %vm3590, %v11274, %v10826
        %v11308 = vsel %vm3590, %v11276, %v10828
        %v11310 = vsel %vm3590, %v11278, %v10830
        %v11312 = vsel %vm3590, %v11280, %v10832
        %v11314 = vsel %vm3590, %v11282, %v10834
        %v11316 = vsel %vm3590, %v11284, %v10836
        %v11318 = vsel %vm3590, %v11286, %v10838
        %v11320 = vsel %vm3623, %v11288, %v11024
        %v11322 = vsel %vm3623, %v11290, %v11026
        %v11324 = vsel %vm3623, %v11292, %v11028
        %v11326 = vsel %vm3623, %v11294, %v11030
        %v11328 = vsel %vm3623, %v11296, %v11032
        %v11330 = vsel %vm3623, %v11298, %v11034
        %v11332 = vsel %vm3623, %v11300, %v11036
        %v11334 = vsel %vm3623, %v11302, %v11038
        %v11336 = vsel %vm3623, %v11304, %v11040
        %v11338 = vsel %vm3623, %v11306, %v11042
        %v11340 = vsel %vm3623, %v11308, %v11044
        %v11342 = vsel %vm3623, %v11310, %v11046
        %v11344 = vsel %vm3623, %v11312, %v11048
        %v11346 = vsel %vm3623, %v11314, %v11050
        %v11348 = vsel %vm3623, %v11316, %v11052
        %v11350 = vsel %vm3623, %v11318, %v11054
        %v11352 = vsel %vm3656, %v11320, %v11096
        %v11354 = vsel %vm3656, %v11322, %v11098
        %v11356 = vsel %vm3656, %v11324, %v11100
        %v11358 = vsel %vm3656, %v11326, %v11102
        %v11360 = vsel %vm3656, %v11328, %v11104
        %v11362 = vsel %vm3656, %v11330, %v11106
        %v11364 = vsel %vm3656, %v11332, %v11108
        %v11366 = vsel %vm3656, %v11334, %v11110
        %v11368 = vsel %vm3656, %v11336, %v11112
        %v11370 = vsel %vm3656, %v11338, %v11114
        %v11372 = vsel %vm3656, %v11340, %v11116
        %v11374 = vsel %vm3656, %v11342, %v11118
        %v11376 = vsel %vm3656, %v11344, %v11120
        %v11378 = vsel %vm3656, %v11346, %v11122
        %v11380 = vsel %vm3656, %v11348, %v11124
        %v11382 = vsel %vm3656, %v11350, %v11126
        %v11383 = vld [vmem:[%s1] sm:$0xf]
        %v11384 = vld [vmem:[%s1 + $0x4] sm:$0xf]
        %v11385 = vld [vmem:[%s1 + $0x8] sm:$0xf]
        %v11386 = vld [vmem:[%s1 + $0xc] sm:$0x3]
        %v11391 = vunpack.c.l.b16 %v11383
        %v11392 = vunpack.c.l.b16 %v11384
        %v11393 = vunpack.c.l.b16 %v11385
        %v11394 = vunpack.c.l.b16 %v11386
        %v11395 = vpack.c.b16 %v11392, %v11391
        %v11396 = vpack.c.b16 %v11394, %v11393
        %v11398 = vsel %vm3707, %v11352, 0
        %v11400 = vsel %vm3707, %v11354, 0
        %v11402 = vsel %vm3707, %v11356, 0
        %v11404 = vsel %vm3707, %v11358, 0
        %v11406 = vsel %vm3707, %v11360, 0
        %v11408 = vsel %vm3707, %v11362, 0
        %v11410 = vsel %vm3707, %v11364, 0
        %v11412 = vsel %vm3707, %v11366, 0
        %v11414 = vsel %vm3707, %v11368, 0
        %v11416 = vsel %vm3707, %v11370, 0
        %v11418 = vsel %vm3707, %v11372, 0
        %v11420 = vsel %vm3707, %v11374, 0
        %v11422 = vsel %vm3707, %v11376, 0
        %v11424 = vsel %vm3707, %v11378, 0
        %v11426 = vsel %vm3707, %v11380, 0
        %v11428 = vsel %vm3707, %v11382, 0
        %v11431 = vand.u32 %v11396, %v3743
        %11433 = vmatpush.bf16.msra.mxu0 0
        %11434 = vmatpush.bf16.msra.mxu0 0
        %11435 = vmatpush.bf16.msra.mxu0 0
        %11436 = vmatpush.bf16.msra.mxu0 0
        %11437 = vmatpush.bf16.msra.mxu0 0
        %11438 = vmatpush.bf16.msra.mxu0 0
        %11439 = vmatpush.bf16.msra.mxu0 %v11431
        %11440 = vmatpush.bf16.msra.mxu0 %v11395
        %11441 = vmatmul.bf16.gmra.mxu0 %v11398
        %v11442 = vpop.f32.mrf.mxu0
        %v11443 = vadd.f32 %v3694, %v11442
        %v11444 = vpop.f32.mrf.mxu0
        %v11445 = vadd.f32 %v3694, %v11444
        %11446 = vmatmul.bf16.gmra.mxu0 %v11400
        %v11447 = vpop.f32.mrf.mxu0
        %v11448 = vadd.f32 %v3694, %v11447
        %v11449 = vpop.f32.mrf.mxu0
        %v11450 = vadd.f32 %v3694, %v11449
        %11451 = vmatmul.bf16.gmra.mxu0 %v11402
        %v11452 = vpop.f32.mrf.mxu0
        %v11453 = vadd.f32 %v3694, %v11452
        %v11454 = vpop.f32.mrf.mxu0
        %v11455 = vadd.f32 %v3694, %v11454
        %11456 = vmatmul.bf16.gmra.mxu0 %v11404
        %v11457 = vpop.f32.mrf.mxu0
        %v11458 = vadd.f32 %v3694, %v11457
        %v11459 = vpop.f32.mrf.mxu0
        %v11460 = vadd.f32 %v3694, %v11459
        %11461 = vmatmul.bf16.gmra.mxu0 %v11406
        %v11462 = vpop.f32.mrf.mxu0
        %v11463 = vadd.f32 %v3694, %v11462
        %v11464 = vpop.f32.mrf.mxu0
        %v11465 = vadd.f32 %v3694, %v11464
        %11466 = vmatmul.bf16.gmra.mxu0 %v11408
        %v11467 = vpop.f32.mrf.mxu0
        %v11468 = vadd.f32 %v3694, %v11467
        %v11469 = vpop.f32.mrf.mxu0
        %v11470 = vadd.f32 %v3694, %v11469
        %11471 = vmatmul.bf16.gmra.mxu0 %v11410
        %v11472 = vpop.f32.mrf.mxu0
        %v11473 = vadd.f32 %v3694, %v11472
        %v11474 = vpop.f32.mrf.mxu0
        %v11475 = vadd.f32 %v3694, %v11474
        %11476 = vmatmul.bf16.gmra.mxu0 %v11412
        %v11477 = vpop.f32.mrf.mxu0
        %v11478 = vadd.f32 %v3694, %v11477
        %v11479 = vpop.f32.mrf.mxu0
        %v11480 = vadd.f32 %v3694, %v11479
        %11481 = vmatmul.bf16.gmra.mxu0 %v11414
        %v11482 = vpop.f32.mrf.mxu0
        %v11483 = vadd.f32 %v3694, %v11482
        %v11484 = vpop.f32.mrf.mxu0
        %v11485 = vadd.f32 %v3694, %v11484
        %11486 = vmatmul.bf16.gmra.mxu0 %v11416
        %v11487 = vpop.f32.mrf.mxu0
        %v11488 = vadd.f32 %v3694, %v11487
        %v11489 = vpop.f32.mrf.mxu0
        %v11490 = vadd.f32 %v3694, %v11489
        %11491 = vmatmul.bf16.gmra.mxu0 %v11418
        %v11492 = vpop.f32.mrf.mxu0
        %v11493 = vadd.f32 %v3694, %v11492
        %v11494 = vpop.f32.mrf.mxu0
        %v11495 = vadd.f32 %v3694, %v11494
        %11496 = vmatmul.bf16.gmra.mxu0 %v11420
        %v11497 = vpop.f32.mrf.mxu0
        %v11498 = vadd.f32 %v3694, %v11497
        %v11499 = vpop.f32.mrf.mxu0
        %v11500 = vadd.f32 %v3694, %v11499
        %11501 = vmatmul.bf16.gmra.mxu0 %v11422
        %v11502 = vpop.f32.mrf.mxu0
        %v11503 = vadd.f32 %v3694, %v11502
        %v11504 = vpop.f32.mrf.mxu0
        %v11505 = vadd.f32 %v3694, %v11504
        %11506 = vmatmul.bf16.gmra.mxu0 %v11424
        %v11507 = vpop.f32.mrf.mxu0
        %v11508 = vadd.f32 %v3694, %v11507
        %v11509 = vpop.f32.mrf.mxu0
        %v11510 = vadd.f32 %v3694, %v11509
        %11511 = vmatmul.bf16.gmra.mxu0 %v11426
        %v11512 = vpop.f32.mrf.mxu0
        %v11513 = vadd.f32 %v3694, %v11512
        %v11514 = vpop.f32.mrf.mxu0
        %v11515 = vadd.f32 %v3694, %v11514
        %11516 = vmatmul.bf16.gmra.mxu0 %v11428
        %v11517 = vpop.f32.mrf.mxu0
        %v11518 = vadd.f32 %v3694, %v11517
        %v11519 = vpop.f32.mrf.mxu0
        %v11520 = vadd.f32 %v3694, %v11519
        %11521 = vdwg.mxu0
        %vm11522 = vcmp.gt.f32.partialorder %v11443, 0.0
        %vm11523 = vcmp.gt.f32.partialorder %v11445, 0.0
        %vm11524 = vcmp.gt.f32.partialorder %v11448, 0.0
        %vm11525 = vcmp.gt.f32.partialorder %v11450, 0.0
        %vm11526 = vcmp.gt.f32.partialorder %v11453, 0.0
        %vm11527 = vcmp.gt.f32.partialorder %v11455, 0.0
        %vm11528 = vcmp.gt.f32.partialorder %v11458, 0.0
        %vm11529 = vcmp.gt.f32.partialorder %v11460, 0.0
        %vm11530 = vcmp.gt.f32.partialorder %v11463, 0.0
        %vm11531 = vcmp.gt.f32.partialorder %v11465, 0.0
        %vm11532 = vcmp.gt.f32.partialorder %v11468, 0.0
        %vm11533 = vcmp.gt.f32.partialorder %v11470, 0.0
        %vm11534 = vcmp.gt.f32.partialorder %v11473, 0.0
        %vm11535 = vcmp.gt.f32.partialorder %v11475, 0.0
        %vm11536 = vcmp.gt.f32.partialorder %v11478, 0.0
        %vm11537 = vcmp.gt.f32.partialorder %v11480, 0.0
        %vm11538 = vcmp.gt.f32.partialorder %v11483, 0.0
        %vm11539 = vcmp.gt.f32.partialorder %v11485, 0.0
        %vm11540 = vcmp.gt.f32.partialorder %v11488, 0.0
        %vm11541 = vcmp.gt.f32.partialorder %v11490, 0.0
        %vm11542 = vcmp.gt.f32.partialorder %v11493, 0.0
        %vm11543 = vcmp.gt.f32.partialorder %v11495, 0.0
        %vm11544 = vcmp.gt.f32.partialorder %v11498, 0.0
        %vm11545 = vcmp.gt.f32.partialorder %v11500, 0.0
        %vm11546 = vcmp.gt.f32.partialorder %v11503, 0.0
        %vm11547 = vcmp.gt.f32.partialorder %v11505, 0.0
        %vm11548 = vcmp.gt.f32.partialorder %v11508, 0.0
        %vm11549 = vcmp.gt.f32.partialorder %v11510, 0.0
        %vm11550 = vcmp.gt.f32.partialorder %v11513, 0.0
        %vm11551 = vcmp.gt.f32.partialorder %v11515, 0.0
        %vm11552 = vcmp.gt.f32.partialorder %v11518, 0.0
        %vm11553 = vcmp.gt.f32.partialorder %v11520, 0.0
        %v11554 = vmul.f32 %v11443, 0.1
        %v11555 = vmul.f32 %v11445, 0.1
        %v11556 = vmul.f32 %v11448, 0.1
        %v11557 = vmul.f32 %v11450, 0.1
        %v11558 = vmul.f32 %v11453, 0.1
        %v11559 = vmul.f32 %v11455, 0.1
        %v11560 = vmul.f32 %v11458, 0.1
        %v11561 = vmul.f32 %v11460, 0.1
        %v11562 = vmul.f32 %v11463, 0.1
        %v11563 = vmul.f32 %v11465, 0.1
        %v11564 = vmul.f32 %v11468, 0.1
        %v11565 = vmul.f32 %v11470, 0.1
        %v11566 = vmul.f32 %v11473, 0.1
        %v11567 = vmul.f32 %v11475, 0.1
        %v11568 = vmul.f32 %v11478, 0.1
        %v11569 = vmul.f32 %v11480, 0.1
        %v11570 = vmul.f32 %v11483, 0.1
        %v11571 = vmul.f32 %v11485, 0.1
        %v11572 = vmul.f32 %v11488, 0.1
        %v11573 = vmul.f32 %v11490, 0.1
        %v11574 = vmul.f32 %v11493, 0.1
        %v11575 = vmul.f32 %v11495, 0.1
        %v11576 = vmul.f32 %v11498, 0.1
        %v11577 = vmul.f32 %v11500, 0.1
        %v11578 = vmul.f32 %v11503, 0.1
        %v11579 = vmul.f32 %v11505, 0.1
        %v11580 = vmul.f32 %v11508, 0.1
        %v11581 = vmul.f32 %v11510, 0.1
        %v11582 = vmul.f32 %v11513, 0.1
        %v11583 = vmul.f32 %v11515, 0.1
        %v11584 = vmul.f32 %v11518, 0.1
        %v11585 = vmul.f32 %v11520, 0.1
        %v11586 = vsel %vm11522, %v11443, %v11554
        %v11587 = vsel %vm11523, %v11445, %v11555
        %v11588 = vsel %vm11524, %v11448, %v11556
        %v11589 = vsel %vm11525, %v11450, %v11557
        %v11590 = vsel %vm11526, %v11453, %v11558
        %v11591 = vsel %vm11527, %v11455, %v11559
        %v11592 = vsel %vm11528, %v11458, %v11560
        %v11593 = vsel %vm11529, %v11460, %v11561
        %v11594 = vsel %vm11530, %v11463, %v11562
        %v11595 = vsel %vm11531, %v11465, %v11563
        %v11596 = vsel %vm11532, %v11468, %v11564
        %v11597 = vsel %vm11533, %v11470, %v11565
        %v11598 = vsel %vm11534, %v11473, %v11566
        %v11599 = vsel %vm11535, %v11475, %v11567
        %v11600 = vsel %vm11536, %v11478, %v11568
        %v11601 = vsel %vm11537, %v11480, %v11569
        %v11602 = vsel %vm11538, %v11483, %v11570
        %v11603 = vsel %vm11539, %v11485, %v11571
        %v11604 = vsel %vm11540, %v11488, %v11572
        %v11605 = vsel %vm11541, %v11490, %v11573
        %v11606 = vsel %vm11542, %v11493, %v11574
        %v11607 = vsel %vm11543, %v11495, %v11575
        %v11608 = vsel %vm11544, %v11498, %v11576
        %v11609 = vsel %vm11545, %v11500, %v11577
        %v11610 = vsel %vm11546, %v11503, %v11578
        %v11611 = vsel %vm11547, %v11505, %v11579
        %v11612 = vsel %vm11548, %v11508, %v11580
        %v11613 = vsel %vm11549, %v11510, %v11581
        %v11614 = vsel %vm11550, %v11513, %v11582
        %v11615 = vsel %vm11551, %v11515, %v11583
        %v11616 = vsel %vm11552, %v11518, %v11584
        %v11617 = vsel %vm11553, %v11520, %v11585
        %v11618 = vpack.c.bf16 %v11586, %v11586
        %v11619 = vpack.c.bf16 %v11587, %v11587
        %v11620 = vpack.c.bf16 %v11588, %v11588
        %v11621 = vpack.c.bf16 %v11589, %v11589
        %v11622 = vpack.c.bf16 %v11590, %v11590
        %v11623 = vpack.c.bf16 %v11591, %v11591
        %v11624 = vpack.c.bf16 %v11592, %v11592
        %v11625 = vpack.c.bf16 %v11593, %v11593
        %v11626 = vpack.c.bf16 %v11594, %v11594
        %v11627 = vpack.c.bf16 %v11595, %v11595
        %v11628 = vpack.c.bf16 %v11596, %v11596
        %v11629 = vpack.c.bf16 %v11597, %v11597
        %v11630 = vpack.c.bf16 %v11598, %v11598
        %v11631 = vpack.c.bf16 %v11599, %v11599
        %v11632 = vpack.c.bf16 %v11600, %v11600
        %v11633 = vpack.c.bf16 %v11601, %v11601
        %v11634 = vpack.c.bf16 %v11602, %v11602
        %v11635 = vpack.c.bf16 %v11603, %v11603
        %v11636 = vpack.c.bf16 %v11604, %v11604
        %v11637 = vpack.c.bf16 %v11605, %v11605
        %v11638 = vpack.c.bf16 %v11606, %v11606
        %v11639 = vpack.c.bf16 %v11607, %v11607
        %v11640 = vpack.c.bf16 %v11608, %v11608
        %v11641 = vpack.c.bf16 %v11609, %v11609
        %v11642 = vpack.c.bf16 %v11610, %v11610
        %v11643 = vpack.c.bf16 %v11611, %v11611
        %v11644 = vpack.c.bf16 %v11612, %v11612
        %v11645 = vpack.c.bf16 %v11613, %v11613
        %v11646 = vpack.c.bf16 %v11614, %v11614
        %v11647 = vpack.c.bf16 %v11615, %v11615
        %v11648 = vpack.c.bf16 %v11616, %v11616
        %v11649 = vpack.c.bf16 %v11617, %v11617
        %s11650 = scalar_lea.vmem %s208, 384
        %11651 = vst.msk [vmem:[%s11650] sm:$0xf] %vm3964, %v11618
        %11652 = vst.msk [vmem:[%s11650 + $0x4] sm:$0xf] %vm3964, %v11619
        %11653 = vst.msk [vmem:[%s11650 + $0x8] sm:$0xf] %vm3964, %v11620
        %11654 = vst.msk [vmem:[%s11650 + $0xc] sm:$0xf] %vm3964, %v11621
        %11655 = vst.msk [vmem:[%s11650 + $0x10] sm:$0xf] %vm3964, %v11622
        %11656 = vst.msk [vmem:[%s11650 + $0x14] sm:$0xf] %vm3964, %v11623
        %11657 = vst.msk [vmem:[%s11650 + $0x18] sm:$0xf] %vm3964, %v11624
        %11658 = vst.msk [vmem:[%s11650 + $0x1c] sm:$0xf] %vm3964, %v11625
        %11659 = vst.msk [vmem:[%s11650 + $0x20] sm:$0xf] %vm3964, %v11626
        %11660 = vst.msk [vmem:[%s11650 + $0x24] sm:$0xf] %vm3964, %v11627
        %11661 = vst.msk [vmem:[%s11650 + $0x28] sm:$0xf] %vm3964, %v11628
        %11662 = vst.msk [vmem:[%s11650 + $0x2c] sm:$0xf] %vm3964, %v11629
        %11663 = vst.msk [vmem:[%s11650 + $0x30] sm:$0xf] %vm3964, %v11630
        %11664 = vst.msk [vmem:[%s11650 + $0x34] sm:$0xf] %vm3964, %v11631
        %11665 = vst.msk [vmem:[%s11650 + $0x38] sm:$0xf] %vm3964, %v11632
        %11666 = vst.msk [vmem:[%s11650 + $0x3c] sm:$0xf] %vm3964, %v11633
        %11667 = vst.msk [vmem:[%s11650 + $0x40] sm:$0xf] %vm3964, %v11634
        %11668 = vst.msk [vmem:[%s11650 + $0x44] sm:$0xf] %vm3964, %v11635
        %11669 = vst.msk [vmem:[%s11650 + $0x48] sm:$0xf] %vm3964, %v11636
        %11670 = vst.msk [vmem:[%s11650 + $0x4c] sm:$0xf] %vm3964, %v11637
        %11671 = vst.msk [vmem:[%s11650 + $0x50] sm:$0xf] %vm3964, %v11638
        %11672 = vst.msk [vmem:[%s11650 + $0x54] sm:$0xf] %vm3964, %v11639
        %11673 = vst.msk [vmem:[%s11650 + $0x58] sm:$0xf] %vm3964, %v11640
        %11674 = vst.msk [vmem:[%s11650 + $0x5c] sm:$0xf] %vm3964, %v11641
        %11675 = vst.msk [vmem:[%s11650 + $0x60] sm:$0xf] %vm3964, %v11642
        %11676 = vst.msk [vmem:[%s11650 + $0x64] sm:$0xf] %vm3964, %v11643
        %11677 = vst.msk [vmem:[%s11650 + $0x68] sm:$0xf] %vm3964, %v11644
        %11678 = vst.msk [vmem:[%s11650 + $0x6c] sm:$0xf] %vm3964, %v11645
        %11679 = vst.msk [vmem:[%s11650 + $0x70] sm:$0xf] %vm3964, %v11646
        %11680 = vst.msk [vmem:[%s11650 + $0x74] sm:$0xf] %vm3964, %v11647
        %11681 = vst.msk [vmem:[%s11650 + $0x78] sm:$0xf] %vm3964, %v11648
        %11682 = vst.msk [vmem:[%s11650 + $0x7c] sm:$0xf] %vm3964, %v11649
        %v11683 = vmax.f32 %v11586, %v11590
        %v11684 = vmax.f32 %v11587, %v11591
        %v11685 = vmax.f32 %v11588, %v11592
        %v11686 = vmax.f32 %v11589, %v11593
        %v11687 = vmax.f32 %v11594, %v11598
        %v11688 = vmax.f32 %v11595, %v11599
        %v11689 = vmax.f32 %v11596, %v11600
        %v11690 = vmax.f32 %v11597, %v11601
        %v11691 = vmax.f32 %v11602, %v11606
        %v11692 = vmax.f32 %v11603, %v11607
        %v11693 = vmax.f32 %v11604, %v11608
        %v11694 = vmax.f32 %v11605, %v11609
        %v11695 = vmax.f32 %v11610, %v11614
        %v11696 = vmax.f32 %v11611, %v11615
        %v11697 = vmax.f32 %v11612, %v11616
        %v11698 = vmax.f32 %v11613, %v11617
        %v11715 = vrot.slane %v11683, 2
        %v11716 = vrot.slane %v11683, 4
        %v11717 = vrot.slane %v11683, 6
        %v11718 = vrot.slane %v11684, 2
        %v11719 = vrot.slane %v11684, 4
        %v11720 = vrot.slane %v11684, 6
        %v11721 = vrot.slane %v11685, 2
        %v11722 = vrot.slane %v11685, 4
        %v11723 = vrot.slane %v11685, 6
        %v11724 = vrot.slane %v11686, 2
        %v11725 = vrot.slane %v11686, 4
        %v11726 = vrot.slane %v11686, 6
        %v11727 = vrot.slane %v11687, 2
        %v11728 = vrot.slane %v11687, 4
        %v11729 = vrot.slane %v11687, 6
        %v11730 = vrot.slane %v11688, 2
        %v11731 = vrot.slane %v11688, 4
        %v11732 = vrot.slane %v11688, 6
        %v11733 = vrot.slane %v11689, 2
        %v11734 = vrot.slane %v11689, 4
        %v11735 = vrot.slane %v11689, 6
        %v11736 = vrot.slane %v11690, 2
        %v11737 = vrot.slane %v11690, 4
        %v11738 = vrot.slane %v11690, 6
        %v11739 = vrot.slane %v11691, 2
        %v11740 = vrot.slane %v11691, 4
        %v11741 = vrot.slane %v11691, 6
        %v11742 = vrot.slane %v11692, 2
        %v11743 = vrot.slane %v11692, 4
        %v11744 = vrot.slane %v11692, 6
        %v11745 = vrot.slane %v11693, 2
        %v11746 = vrot.slane %v11693, 4
        %v11747 = vrot.slane %v11693, 6
        %v11748 = vrot.slane %v11694, 2
        %v11749 = vrot.slane %v11694, 4
        %v11750 = vrot.slane %v11694, 6
        %v11751 = vrot.slane %v11695, 2
        %v11752 = vrot.slane %v11695, 4
        %v11753 = vrot.slane %v11695, 6
        %v11754 = vrot.slane %v11696, 2
        %v11755 = vrot.slane %v11696, 4
        %v11756 = vrot.slane %v11696, 6
        %v11757 = vrot.slane %v11697, 2
        %v11758 = vrot.slane %v11697, 4
        %v11759 = vrot.slane %v11697, 6
        %v11760 = vrot.slane %v11698, 2
        %v11761 = vrot.slane %v11698, 4
        %v11762 = vrot.slane %v11698, 6
        %v11811 = vrot.slane %v11683, 7
        %v11812 = vrot.slane %v11811, 2
        %v11813 = vrot.slane %v11715, 7
        %v11814 = vrot.slane %v11813, 2
        %v11815 = vrot.slane %v11716, 7
        %v11816 = vrot.slane %v11815, 2
        %v11817 = vrot.slane %v11717, 7
        %v11818 = vrot.slane %v11817, 2
        %v11819 = vrot.slane %v11684, 7
        %v11820 = vrot.slane %v11819, 2
        %v11821 = vrot.slane %v11718, 7
        %v11822 = vrot.slane %v11821, 2
        %v11823 = vrot.slane %v11719, 7
        %v11824 = vrot.slane %v11823, 2
        %v11825 = vrot.slane %v11720, 7
        %v11826 = vrot.slane %v11825, 2
        %v11827 = vrot.slane %v11685, 7
        %v11828 = vrot.slane %v11827, 2
        %v11829 = vrot.slane %v11721, 7
        %v11830 = vrot.slane %v11829, 2
        %v11831 = vrot.slane %v11722, 7
        %v11832 = vrot.slane %v11831, 2
        %v11833 = vrot.slane %v11723, 7
        %v11834 = vrot.slane %v11833, 2
        %v11835 = vrot.slane %v11686, 7
        %v11836 = vrot.slane %v11835, 2
        %v11837 = vrot.slane %v11724, 7
        %v11838 = vrot.slane %v11837, 2
        %v11839 = vrot.slane %v11725, 7
        %v11840 = vrot.slane %v11839, 2
        %v11841 = vrot.slane %v11726, 7
        %v11842 = vrot.slane %v11841, 2
        %v11843 = vrot.slane %v11687, 7
        %v11844 = vrot.slane %v11843, 2
        %v11845 = vrot.slane %v11727, 7
        %v11846 = vrot.slane %v11845, 2
        %v11847 = vrot.slane %v11728, 7
        %v11848 = vrot.slane %v11847, 2
        %v11849 = vrot.slane %v11729, 7
        %v11850 = vrot.slane %v11849, 2
        %v11851 = vrot.slane %v11688, 7
        %v11852 = vrot.slane %v11851, 2
        %v11853 = vrot.slane %v11730, 7
        %v11854 = vrot.slane %v11853, 2
        %v11855 = vrot.slane %v11731, 7
        %v11856 = vrot.slane %v11855, 2
        %v11857 = vrot.slane %v11732, 7
        %v11858 = vrot.slane %v11857, 2
        %v11859 = vrot.slane %v11689, 7
        %v11860 = vrot.slane %v11859, 2
        %v11861 = vrot.slane %v11733, 7
        %v11862 = vrot.slane %v11861, 2
        %v11863 = vrot.slane %v11734, 7
        %v11864 = vrot.slane %v11863, 2
        %v11865 = vrot.slane %v11735, 7
        %v11866 = vrot.slane %v11865, 2
        %v11867 = vrot.slane %v11690, 7
        %v11868 = vrot.slane %v11867, 2
        %v11869 = vrot.slane %v11736, 7
        %v11870 = vrot.slane %v11869, 2
        %v11871 = vrot.slane %v11737, 7
        %v11872 = vrot.slane %v11871, 2
        %v11873 = vrot.slane %v11738, 7
        %v11874 = vrot.slane %v11873, 2
        %v11875 = vrot.slane %v11691, 7
        %v11876 = vrot.slane %v11875, 2
        %v11877 = vrot.slane %v11739, 7
        %v11878 = vrot.slane %v11877, 2
        %v11879 = vrot.slane %v11740, 7
        %v11880 = vrot.slane %v11879, 2
        %v11881 = vrot.slane %v11741, 7
        %v11882 = vrot.slane %v11881, 2
        %v11883 = vrot.slane %v11692, 7
        %v11884 = vrot.slane %v11883, 2
        %v11885 = vrot.slane %v11742, 7
        %v11886 = vrot.slane %v11885, 2
        %v11887 = vrot.slane %v11743, 7
        %v11888 = vrot.slane %v11887, 2
        %v11889 = vrot.slane %v11744, 7
        %v11890 = vrot.slane %v11889, 2
        %v11891 = vrot.slane %v11693, 7
        %v11892 = vrot.slane %v11891, 2
        %v11893 = vrot.slane %v11745, 7
        %v11894 = vrot.slane %v11893, 2
        %v11895 = vrot.slane %v11746, 7
        %v11896 = vrot.slane %v11895, 2
        %v11897 = vrot.slane %v11747, 7
        %v11898 = vrot.slane %v11897, 2
        %v11899 = vrot.slane %v11694, 7
        %v11900 = vrot.slane %v11899, 2
        %v11901 = vrot.slane %v11748, 7
        %v11902 = vrot.slane %v11901, 2
        %v11903 = vrot.slane %v11749, 7
        %v11904 = vrot.slane %v11903, 2
        %v11905 = vrot.slane %v11750, 7
        %v11906 = vrot.slane %v11905, 2
        %v11907 = vrot.slane %v11695, 7
        %v11908 = vrot.slane %v11907, 2
        %v11909 = vrot.slane %v11751, 7
        %v11910 = vrot.slane %v11909, 2
        %v11911 = vrot.slane %v11752, 7
        %v11912 = vrot.slane %v11911, 2
        %v11913 = vrot.slane %v11753, 7
        %v11914 = vrot.slane %v11913, 2
        %v11915 = vrot.slane %v11696, 7
        %v11916 = vrot.slane %v11915, 2
        %v11917 = vrot.slane %v11754, 7
        %v11918 = vrot.slane %v11917, 2
        %v11919 = vrot.slane %v11755, 7
        %v11920 = vrot.slane %v11919, 2
        %v11921 = vrot.slane %v11756, 7
        %v11922 = vrot.slane %v11921, 2
        %v11923 = vrot.slane %v11697, 7
        %v11924 = vrot.slane %v11923, 2
        %v11925 = vrot.slane %v11757, 7
        %v11926 = vrot.slane %v11925, 2
        %v11927 = vrot.slane %v11758, 7
        %v11928 = vrot.slane %v11927, 2
        %v11929 = vrot.slane %v11759, 7
        %v11930 = vrot.slane %v11929, 2
        %v11931 = vrot.slane %v11698, 7
        %v11932 = vrot.slane %v11931, 2
        %v11933 = vrot.slane %v11760, 7
        %v11934 = vrot.slane %v11933, 2
        %v11935 = vrot.slane %v11761, 7
        %v11936 = vrot.slane %v11935, 2
        %v11937 = vrot.slane %v11762, 7
        %v11938 = vrot.slane %v11937, 2
        %v12003 = vmax.f32 %v11683, %v11812
        %v12004 = vmax.f32 %v11715, %v11814
        %v12005 = vmax.f32 %v11716, %v11816
        %v12006 = vmax.f32 %v11717, %v11818
        %v12007 = vmax.f32 %v11684, %v11820
        %v12008 = vmax.f32 %v11718, %v11822
        %v12009 = vmax.f32 %v11719, %v11824
        %v12010 = vmax.f32 %v11720, %v11826
        %v12011 = vmax.f32 %v11685, %v11828
        %v12012 = vmax.f32 %v11721, %v11830
        %v12013 = vmax.f32 %v11722, %v11832
        %v12014 = vmax.f32 %v11723, %v11834
        %v12015 = vmax.f32 %v11686, %v11836
        %v12016 = vmax.f32 %v11724, %v11838
        %v12017 = vmax.f32 %v11725, %v11840
        %v12018 = vmax.f32 %v11726, %v11842
        %v12019 = vmax.f32 %v11687, %v11844
        %v12020 = vmax.f32 %v11727, %v11846
        %v12021 = vmax.f32 %v11728, %v11848
        %v12022 = vmax.f32 %v11729, %v11850
        %v12023 = vmax.f32 %v11688, %v11852
        %v12024 = vmax.f32 %v11730, %v11854
        %v12025 = vmax.f32 %v11731, %v11856
        %v12026 = vmax.f32 %v11732, %v11858
        %v12027 = vmax.f32 %v11689, %v11860
        %v12028 = vmax.f32 %v11733, %v11862
        %v12029 = vmax.f32 %v11734, %v11864
        %v12030 = vmax.f32 %v11735, %v11866
        %v12031 = vmax.f32 %v11690, %v11868
        %v12032 = vmax.f32 %v11736, %v11870
        %v12033 = vmax.f32 %v11737, %v11872
        %v12034 = vmax.f32 %v11738, %v11874
        %v12035 = vmax.f32 %v11691, %v11876
        %v12036 = vmax.f32 %v11739, %v11878
        %v12037 = vmax.f32 %v11740, %v11880
        %v12038 = vmax.f32 %v11741, %v11882
        %v12039 = vmax.f32 %v11692, %v11884
        %v12040 = vmax.f32 %v11742, %v11886
        %v12041 = vmax.f32 %v11743, %v11888
        %v12042 = vmax.f32 %v11744, %v11890
        %v12043 = vmax.f32 %v11693, %v11892
        %v12044 = vmax.f32 %v11745, %v11894
        %v12045 = vmax.f32 %v11746, %v11896
        %v12046 = vmax.f32 %v11747, %v11898
        %v12047 = vmax.f32 %v11694, %v11900
        %v12048 = vmax.f32 %v11748, %v11902
        %v12049 = vmax.f32 %v11749, %v11904
        %v12050 = vmax.f32 %v11750, %v11906
        %v12051 = vmax.f32 %v11695, %v11908
        %v12052 = vmax.f32 %v11751, %v11910
        %v12053 = vmax.f32 %v11752, %v11912
        %v12054 = vmax.f32 %v11753, %v11914
        %v12055 = vmax.f32 %v11696, %v11916
        %v12056 = vmax.f32 %v11754, %v11918
        %v12057 = vmax.f32 %v11755, %v11920
        %v12058 = vmax.f32 %v11756, %v11922
        %v12059 = vmax.f32 %v11697, %v11924
        %v12060 = vmax.f32 %v11757, %v11926
        %v12061 = vmax.f32 %v11758, %v11928
        %v12062 = vmax.f32 %v11759, %v11930
        %v12063 = vmax.f32 %v11698, %v11932
        %v12064 = vmax.f32 %v11760, %v11934
        %v12065 = vmax.f32 %v11761, %v11936
        %v12066 = vmax.f32 %v11762, %v11938
        %v12067 = vpack.c.bf16 %v12003, %v12003
        %v12068 = vpack.c.bf16 %v12004, %v12004
        %v12069 = vpack.c.bf16 %v12005, %v12005
        %v12070 = vpack.c.bf16 %v12006, %v12006
        %v12071 = vpack.c.bf16 %v12007, %v12007
        %v12072 = vpack.c.bf16 %v12008, %v12008
        %v12073 = vpack.c.bf16 %v12009, %v12009
        %v12074 = vpack.c.bf16 %v12010, %v12010
        %v12075 = vpack.c.bf16 %v12011, %v12011
        %v12076 = vpack.c.bf16 %v12012, %v12012
        %v12077 = vpack.c.bf16 %v12013, %v12013
        %v12078 = vpack.c.bf16 %v12014, %v12014
        %v12079 = vpack.c.bf16 %v12015, %v12015
        %v12080 = vpack.c.bf16 %v12016, %v12016
        %v12081 = vpack.c.bf16 %v12017, %v12017
        %v12082 = vpack.c.bf16 %v12018, %v12018
        %v12083 = vpack.c.bf16 %v12019, %v12019
        %v12084 = vpack.c.bf16 %v12020, %v12020
        %v12085 = vpack.c.bf16 %v12021, %v12021
        %v12086 = vpack.c.bf16 %v12022, %v12022
        %v12087 = vpack.c.bf16 %v12023, %v12023
        %v12088 = vpack.c.bf16 %v12024, %v12024
        %v12089 = vpack.c.bf16 %v12025, %v12025
        %v12090 = vpack.c.bf16 %v12026, %v12026
        %v12091 = vpack.c.bf16 %v12027, %v12027
        %v12092 = vpack.c.bf16 %v12028, %v12028
        %v12093 = vpack.c.bf16 %v12029, %v12029
        %v12094 = vpack.c.bf16 %v12030, %v12030
        %v12095 = vpack.c.bf16 %v12031, %v12031
        %v12096 = vpack.c.bf16 %v12032, %v12032
        %v12097 = vpack.c.bf16 %v12033, %v12033
        %v12098 = vpack.c.bf16 %v12034, %v12034
        %v12099 = vpack.c.bf16 %v12035, %v12035
        %v12100 = vpack.c.bf16 %v12036, %v12036
        %v12101 = vpack.c.bf16 %v12037, %v12037
        %v12102 = vpack.c.bf16 %v12038, %v12038
        %v12103 = vpack.c.bf16 %v12039, %v12039
        %v12104 = vpack.c.bf16 %v12040, %v12040
        %v12105 = vpack.c.bf16 %v12041, %v12041
        %v12106 = vpack.c.bf16 %v12042, %v12042
        %v12107 = vpack.c.bf16 %v12043, %v12043
        %v12108 = vpack.c.bf16 %v12044, %v12044
        %v12109 = vpack.c.bf16 %v12045, %v12045
        %v12110 = vpack.c.bf16 %v12046, %v12046
        %v12111 = vpack.c.bf16 %v12047, %v12047
        %v12112 = vpack.c.bf16 %v12048, %v12048
        %v12113 = vpack.c.bf16 %v12049, %v12049
        %v12114 = vpack.c.bf16 %v12050, %v12050
        %v12115 = vpack.c.bf16 %v12051, %v12051
        %v12116 = vpack.c.bf16 %v12052, %v12052
        %v12117 = vpack.c.bf16 %v12053, %v12053
        %v12118 = vpack.c.bf16 %v12054, %v12054
        %v12119 = vpack.c.bf16 %v12055, %v12055
        %v12120 = vpack.c.bf16 %v12056, %v12056
        %v12121 = vpack.c.bf16 %v12057, %v12057
        %v12122 = vpack.c.bf16 %v12058, %v12058
        %v12123 = vpack.c.bf16 %v12059, %v12059
        %v12124 = vpack.c.bf16 %v12060, %v12060
        %v12125 = vpack.c.bf16 %v12061, %v12061
        %v12126 = vpack.c.bf16 %v12062, %v12062
        %v12127 = vpack.c.bf16 %v12063, %v12063
        %v12128 = vpack.c.bf16 %v12064, %v12064
        %v12129 = vpack.c.bf16 %v12065, %v12065
        %v12130 = vpack.c.bf16 %v12066, %v12066
        %v12195 = vunpack.c.l.b16 %v12067
        %v12196 = vunpack.c.l.b16 %v12068
        %v12197 = vunpack.c.l.b16 %v12069
        %v12198 = vunpack.c.l.b16 %v12070
        %v12199 = vunpack.c.l.b16 %v12071
        %v12200 = vunpack.c.l.b16 %v12072
        %v12201 = vunpack.c.l.b16 %v12073
        %v12202 = vunpack.c.l.b16 %v12074
        %v12203 = vunpack.c.l.b16 %v12075
        %v12204 = vunpack.c.l.b16 %v12076
        %v12205 = vunpack.c.l.b16 %v12077
        %v12206 = vunpack.c.l.b16 %v12078
        %v12207 = vunpack.c.l.b16 %v12079
        %v12208 = vunpack.c.l.b16 %v12080
        %v12209 = vunpack.c.l.b16 %v12081
        %v12210 = vunpack.c.l.b16 %v12082
        %v12211 = vunpack.c.l.b16 %v12083
        %v12212 = vunpack.c.l.b16 %v12084
        %v12213 = vunpack.c.l.b16 %v12085
        %v12214 = vunpack.c.l.b16 %v12086
        %v12215 = vunpack.c.l.b16 %v12087
        %v12216 = vunpack.c.l.b16 %v12088
        %v12217 = vunpack.c.l.b16 %v12089
        %v12218 = vunpack.c.l.b16 %v12090
        %v12219 = vunpack.c.l.b16 %v12091
        %v12220 = vunpack.c.l.b16 %v12092
        %v12221 = vunpack.c.l.b16 %v12093
        %v12222 = vunpack.c.l.b16 %v12094
        %v12223 = vunpack.c.l.b16 %v12095
        %v12224 = vunpack.c.l.b16 %v12096
        %v12225 = vunpack.c.l.b16 %v12097
        %v12226 = vunpack.c.l.b16 %v12098
        %v12227 = vunpack.c.l.b16 %v12099
        %v12228 = vunpack.c.l.b16 %v12100
        %v12229 = vunpack.c.l.b16 %v12101
        %v12230 = vunpack.c.l.b16 %v12102
        %v12231 = vunpack.c.l.b16 %v12103
        %v12232 = vunpack.c.l.b16 %v12104
        %v12233 = vunpack.c.l.b16 %v12105
        %v12234 = vunpack.c.l.b16 %v12106
        %v12235 = vunpack.c.l.b16 %v12107
        %v12236 = vunpack.c.l.b16 %v12108
        %v12237 = vunpack.c.l.b16 %v12109
        %v12238 = vunpack.c.l.b16 %v12110
        %v12239 = vunpack.c.l.b16 %v12111
        %v12240 = vunpack.c.l.b16 %v12112
        %v12241 = vunpack.c.l.b16 %v12113
        %v12242 = vunpack.c.l.b16 %v12114
        %v12243 = vunpack.c.l.b16 %v12115
        %v12244 = vunpack.c.l.b16 %v12116
        %v12245 = vunpack.c.l.b16 %v12117
        %v12246 = vunpack.c.l.b16 %v12118
        %v12247 = vunpack.c.l.b16 %v12119
        %v12248 = vunpack.c.l.b16 %v12120
        %v12249 = vunpack.c.l.b16 %v12121
        %v12250 = vunpack.c.l.b16 %v12122
        %v12251 = vunpack.c.l.b16 %v12123
        %v12252 = vunpack.c.l.b16 %v12124
        %v12253 = vunpack.c.l.b16 %v12125
        %v12254 = vunpack.c.l.b16 %v12126
        %v12255 = vunpack.c.l.b16 %v12127
        %v12256 = vunpack.c.l.b16 %v12128
        %v12257 = vunpack.c.l.b16 %v12129
        %v12258 = vunpack.c.l.b16 %v12130
        %v12259 = vrot.slane %v12196, 7
        %v12260 = vsel %vm4574, %v12259, %v12195
        %v12261 = vrot.slane %v12197, 6
        %v12262 = vsel %vm4577, %v12261, %v12260
        %v12263 = vrot.slane %v12198, 5
        %v12264 = vsel %vm4580, %v12263, %v12262
        %v12265 = vrot.slane %v12199, 4
        %v12266 = vsel %vm4583, %v12265, %v12264
        %v12267 = vrot.slane %v12200, 3
        %v12268 = vsel %vm4586, %v12267, %v12266
        %v12269 = vrot.slane %v12201, 2
        %v12270 = vsel %vm4589, %v12269, %v12268
        %v12271 = vrot.slane %v12202, 1
        %v12272 = vsel %vm4592, %v12271, %v12270
        %v12273 = vrot.slane %v12204, 7
        %v12274 = vsel %vm4574, %v12273, %v12203
        %v12275 = vrot.slane %v12205, 6
        %v12276 = vsel %vm4577, %v12275, %v12274
        %v12277 = vrot.slane %v12206, 5
        %v12278 = vsel %vm4580, %v12277, %v12276
        %v12279 = vrot.slane %v12207, 4
        %v12280 = vsel %vm4583, %v12279, %v12278
        %v12281 = vrot.slane %v12208, 3
        %v12282 = vsel %vm4586, %v12281, %v12280
        %v12283 = vrot.slane %v12209, 2
        %v12284 = vsel %vm4589, %v12283, %v12282
        %v12285 = vrot.slane %v12210, 1
        %v12286 = vsel %vm4592, %v12285, %v12284
        %v12287 = vrot.slane %v12212, 7
        %v12288 = vsel %vm4574, %v12287, %v12211
        %v12289 = vrot.slane %v12213, 6
        %v12290 = vsel %vm4577, %v12289, %v12288
        %v12291 = vrot.slane %v12214, 5
        %v12292 = vsel %vm4580, %v12291, %v12290
        %v12293 = vrot.slane %v12215, 4
        %v12294 = vsel %vm4583, %v12293, %v12292
        %v12295 = vrot.slane %v12216, 3
        %v12296 = vsel %vm4586, %v12295, %v12294
        %v12297 = vrot.slane %v12217, 2
        %v12298 = vsel %vm4589, %v12297, %v12296
        %v12299 = vrot.slane %v12218, 1
        %v12300 = vsel %vm4592, %v12299, %v12298
        %v12301 = vrot.slane %v12220, 7
        %v12302 = vsel %vm4574, %v12301, %v12219
        %v12303 = vrot.slane %v12221, 6
        %v12304 = vsel %vm4577, %v12303, %v12302
        %v12305 = vrot.slane %v12222, 5
        %v12306 = vsel %vm4580, %v12305, %v12304
        %v12307 = vrot.slane %v12223, 4
        %v12308 = vsel %vm4583, %v12307, %v12306
        %v12309 = vrot.slane %v12224, 3
        %v12310 = vsel %vm4586, %v12309, %v12308
        %v12311 = vrot.slane %v12225, 2
        %v12312 = vsel %vm4589, %v12311, %v12310
        %v12313 = vrot.slane %v12226, 1
        %v12314 = vsel %vm4592, %v12313, %v12312
        %v12315 = vrot.slane %v12228, 7
        %v12316 = vsel %vm4574, %v12315, %v12227
        %v12317 = vrot.slane %v12229, 6
        %v12318 = vsel %vm4577, %v12317, %v12316
        %v12319 = vrot.slane %v12230, 5
        %v12320 = vsel %vm4580, %v12319, %v12318
        %v12321 = vrot.slane %v12231, 4
        %v12322 = vsel %vm4583, %v12321, %v12320
        %v12323 = vrot.slane %v12232, 3
        %v12324 = vsel %vm4586, %v12323, %v12322
        %v12325 = vrot.slane %v12233, 2
        %v12326 = vsel %vm4589, %v12325, %v12324
        %v12327 = vrot.slane %v12234, 1
        %v12328 = vsel %vm4592, %v12327, %v12326
        %v12329 = vrot.slane %v12236, 7
        %v12330 = vsel %vm4574, %v12329, %v12235
        %v12331 = vrot.slane %v12237, 6
        %v12332 = vsel %vm4577, %v12331, %v12330
        %v12333 = vrot.slane %v12238, 5
        %v12334 = vsel %vm4580, %v12333, %v12332
        %v12335 = vrot.slane %v12239, 4
        %v12336 = vsel %vm4583, %v12335, %v12334
        %v12337 = vrot.slane %v12240, 3
        %v12338 = vsel %vm4586, %v12337, %v12336
        %v12339 = vrot.slane %v12241, 2
        %v12340 = vsel %vm4589, %v12339, %v12338
        %v12341 = vrot.slane %v12242, 1
        %v12342 = vsel %vm4592, %v12341, %v12340
        %v12343 = vrot.slane %v12244, 7
        %v12344 = vsel %vm4574, %v12343, %v12243
        %v12345 = vrot.slane %v12245, 6
        %v12346 = vsel %vm4577, %v12345, %v12344
        %v12347 = vrot.slane %v12246, 5
        %v12348 = vsel %vm4580, %v12347, %v12346
        %v12349 = vrot.slane %v12247, 4
        %v12350 = vsel %vm4583, %v12349, %v12348
        %v12351 = vrot.slane %v12248, 3
        %v12352 = vsel %vm4586, %v12351, %v12350
        %v12353 = vrot.slane %v12249, 2
        %v12354 = vsel %vm4589, %v12353, %v12352
        %v12355 = vrot.slane %v12250, 1
        %v12356 = vsel %vm4592, %v12355, %v12354
        %v12357 = vrot.slane %v12252, 7
        %v12358 = vsel %vm4574, %v12357, %v12251
        %v12359 = vrot.slane %v12253, 6
        %v12360 = vsel %vm4577, %v12359, %v12358
        %v12361 = vrot.slane %v12254, 5
        %v12362 = vsel %vm4580, %v12361, %v12360
        %v12363 = vrot.slane %v12255, 4
        %v12364 = vsel %vm4583, %v12363, %v12362
        %v12365 = vrot.slane %v12256, 3
        %v12366 = vsel %vm4586, %v12365, %v12364
        %v12367 = vrot.slane %v12257, 2
        %v12368 = vsel %vm4589, %v12367, %v12366
        %v12369 = vrot.slane %v12258, 1
        %v12370 = vsel %vm4592, %v12369, %v12368
        %v12371 = vpack.c.b16 %v12272, %v12272
        %v12372 = vpack.c.b16 %v12286, %v12286
        %v12373 = vpack.c.b16 %v12300, %v12300
        %v12374 = vpack.c.b16 %v12314, %v12314
        %v12375 = vpack.c.b16 %v12328, %v12328
        %v12376 = vpack.c.b16 %v12342, %v12342
        %v12377 = vpack.c.b16 %v12356, %v12356
        %v12378 = vpack.c.b16 %v12370, %v12370
        %s12387 = scalar_lea.vmem %s191, 96 [#allocation3]
        %12388 = vst.msk [vmem:[%s12387] sm:$0xf] %vm3964, %v12371
        %12389 = vst.msk [vmem:[%s12387 + $0x4] sm:$0xf] %vm3964, %v12372
        %12390 = vst.msk [vmem:[%s12387 + $0x8] sm:$0xf] %vm3964, %v12373
        %12391 = vst.msk [vmem:[%s12387 + $0xc] sm:$0xf] %vm3964, %v12374
        %12392 = vst.msk [vmem:[%s12387 + $0x10] sm:$0xf] %vm3964, %v12375
        %12393 = vst.msk [vmem:[%s12387 + $0x14] sm:$0xf] %vm3964, %v12376
        %12394 = vst.msk [vmem:[%s12387 + $0x18] sm:$0xf] %vm3964, %v12377
        %12395 = vst.msk [vmem:[%s12387 + $0x1c] sm:$0xf] %vm3964, %v12378
        %s12396 = sand.u32 %s95, 1
        %s12397 = scalar_lea.sflag [#allocation4], %s12396
        %s12398 = sand.u32 %s95, 1
        %s12399 = smul.addr %s12398, 128
        %s12400 = scalar_lea.vmem [#allocation3], %s12399
        %p12401 = scmp.lt.s32.totalorder %s19, 1
        %s12402 = scalar_select %p12401, %s19, 1
        %s12403 = smul.addr %s12402, 128
        %s12404 = smul.addr %s12403, 4
        %s12405 = scalar_lea.vmem %s4, %s12404
        // Predicated region
        $region33: #{tpu_custom_call.1} parent=31 // pred_check
          %p12406 = pneg %p105
        $region34: #{tpu_custom_call.1} parent=31 // pred_check_branch
          %12408 = sbr.rel (%p12406) target = $region36
        $region35: #{tpu_custom_call.1} parent=31 // pred_region
          %12410 = vsyncadd %s12397, 0
          %s12411 = smul.addr %s19, 32
          %s12412 = smul.addr %s12411, 4
          %s12413 = scalar_lea.hbm %s3, %s12412
          %s12414 = sshll.u32 %s12400, 4
          %s12415 = int_to_ptr.vmem [resolvable:$true] %s12414
          %s12416 = sshll.u32 %s12413, 4
          %s12417 = int_to_ptr.hbm [resolvable:$true] %s12416
          %12422 = dma.vmem_to_hbm [thread:$0]  %s12415, 2048, %s12417, %s12397, 64, 64, 4
        $region36: #{tpu_custom_call.1} parent=31 // pred_fallthru
          _
        // Predicated region
        $region37: #{tpu_custom_call.1} parent=31 // pred_check
          %p12423 = pneg %p131
        $region38: #{tpu_custom_call.1} parent=31 // pred_check_branch
          %12425 = sbr.rel (%p12423) target = $region40
        $region39: #{tpu_custom_call.1} parent=31 // pred_region
          _
        $region40: #{tpu_custom_call.1} parent=31 // pred_fallthru
          _
      $region32: #{tpu_custom_call.1} parent=5 // pred_fallthru
        _
      %p12426 = scmp.le.s32.totalorder 2, %s14
      // Predicated region
      $region41: #{tpu_custom_call.1} parent=5 // pred_check
        %p12427 = pneg %p12426
      $region42: #{tpu_custom_call.1} parent=5 // pred_check_branch
        %12429 = sbr.rel (%p12427) target = $region44
      $region43: #{tpu_custom_call.1} parent=5 // pred_region
        %s12430 = ssub.s32 %s14, 2
        // Predicated region
        $region45: #{tpu_custom_call.1} parent=43 // pred_check
          %p12431 = pneg %p111
        $region46: #{tpu_custom_call.1} parent=43 // pred_check_branch
          %12433 = sbr.rel (%p12431) target = $region48
        $region47: #{tpu_custom_call.1} parent=43 // pred_region
          %s12434 = sand.u32 %s96, 1
          %s12435 = scalar_lea.sflag [#allocation4], %s12434
          %s12436 = sand.u32 %s96, 1
          %s12437 = smul.addr %s12436, 128
          %s12438 = scalar_lea.vmem [#allocation3], %s12437
          %12440 = dma.done %s12435, 2048
        $region48: #{tpu_custom_call.1} parent=43 // pred_fallthru
          _
        // Predicated region
        $region49: #{tpu_custom_call.1} parent=43 // pred_check
          %p12441 = pneg %p137
        $region50: #{tpu_custom_call.1} parent=43 // pred_check_branch
          %12443 = sbr.rel (%p12441) target = $region52
        $region51: #{tpu_custom_call.1} parent=43 // pred_region
          %p12444 = scmp.lt.s32.totalorder %s20, 1
          %s12445 = scalar_select %p12444, %s20, 1
          %s12446 = smul.addr %s12445, 128
          %s12447 = smul.addr %s12446, 4
          %s12448 = scalar_lea.vmem %s4, %s12447
        $region52: #{tpu_custom_call.1} parent=43 // pred_fallthru
          _
      $region44: #{tpu_custom_call.1} parent=5 // pred_fallthru
        _
    $region6: #{tpu_custom_call.1} parent=1 // loop_footer
      %s18 = sadd.s32 1, %s14
    $region7: #{tpu_custom_call.1} parent=1 // loop_footer_branch
      %13 = sbr.rel target = $region3
    $region8: #{tpu_custom_call.1} parent=1 // loop_exit
      _
    %12449 = vsyncpa [#allocation4], 1
    %s12450 = scalar_lea.sflag [#allocation4], 1
    %12451 = vsyncpa %s12450, 1

</llo_original>
